<compile_context>
chip_gen: v7x
topology: tpu7x:2x2x1
jax: 0.10.0
libtpu: 0.0.40
codegen_flags: <defaults>
</compile_context>

<pallas_src>
import functools

import numpy as np
import jax
import jax.numpy as jnp
from jax import lax
from jax.experimental import pallas as pl
from jax.experimental.pallas import tpu as pltpu

LANES = 128
MAX_BLOCK_ROWS = 4096          # 2 inputs x 2 buffers x (4096*128*4B) = 8 MiB VMEM
_SSD_VMEM_LIMIT = 32 * 1024 * 1024
_SSIM_VMEM_LIMIT = 32 * 1024 * 1024

_WIN_SIZE = 3
_LEVELS = 3
_C1 = 0.01 ** 2                # max_val = 1.0
_C2 = 0.03 ** 2

# TODO(synk): the reference MSSSIM class was not provided; this is the standard
# Wang-et-al MS-SSIM (max_val=1.0) with window/levels reduced for small shapes.
_MSSSIM_WEIGHTS = np.array([0.0448, 0.2856, 0.3001], np.float32)
_MSSSIM_WEIGHTS = _MSSSIM_WEIGHTS / _MSSSIM_WEIGHTS.sum()


def _round_up(x, m):
    return -(-x // m) * m


# ----------------------------------------------------------------------------
# MSE numerator: per-plane sum of squared differences
# ----------------------------------------------------------------------------
def _as_rows_lanes(a):
    """Free reshape of a plane to 2-D.  Prefers a lane-dense (n/128, 128) view."""
    a = a.astype(jnp.float32)
    n = int(np.prod(a.shape))
    if n % LANES == 0:
        return a.reshape(n // LANES, LANES)
    return a.reshape(-1, a.shape[-1])


def _plane_ssd(a, b):
    """||a - b||^2 for one plane, single pallas_call, no staging copies."""
    a2 = _as_rows_lanes(a)
    b2 = _as_rows_lanes(b)
    R, C = a2.shape

    block_rows = min(MAX_BLOCK_ROWS, _round_up(R, 8))     # always a multiple of 8
    nblocks = -(-R // block_rows)
    num_halves = 2 if nblocks >= 2 else 1                 # v7x: one half per TC
    bph = -(-nblocks // num_halves)
    need_clamp = (num_halves * bph) != nblocks
    needs_mask = (num_halves * bph * block_rows) != R

    def idx(c, i):
        g = c * bph + i
        if need_clamp:
            g = jnp.minimum(g, nblocks - 1)
        return (g, 0)

    def kernel(a_ref, b_ref, out_ref, acc_ref):
        c = pl.program_id(0)
        i = pl.program_id(1)

        @pl.when(i == 0)
        def _():
            acc_ref[...] = jnp.zeros_like(acc_ref)

        d = a_ref[...] - b_ref[...]
        sq = d * d
        if needs_mask:
            g = c * bph + i
            rows = lax.broadcasted_iota(jnp.int32, sq.shape, 0) + g * block_rows
            sq = jnp.where(rows < R, sq, 0.0)
        # Small (8, C) accumulator: no per-vreg accumulator load/store traffic.
        acc_ref[...] += jnp.sum(sq.reshape(-1, 8, sq.shape[-1]), axis=0)

        @pl.when(i == pl.num_programs(1) - 1)
        def _():
            out_ref[...] = jnp.sum(acc_ref[...], keepdims=True)[None]

    out = pl.pallas_call(
        kernel,
        out_shape=jax.ShapeDtypeStruct((num_halves, 1, 1), jnp.float32),
        grid=(num_halves, bph),
        in_specs=[
            pl.BlockSpec((block_rows, C), idx),
            pl.BlockSpec((block_rows, C), idx),
        ],
        out_specs=pl.BlockSpec((1, 1, 1), lambda c, i: (c, 0, 0)),
        scratch_shapes=[pltpu.VMEM((8, C), jnp.float32)],
        compiler_params=pltpu.CompilerParams(
            dimension_semantics=("parallel", "arbitrary"),
            vmem_limit_bytes=_SSD_VMEM_LIMIT,
        ),
    )(a2, b2)
    return jnp.sum(out)


def mse_loss(x_hat, code):
    keys = ("y", "u", "v")
    tot = jnp.float32(0.0)
    total_n = 0
    for k in keys:
        tot = tot + _plane_ssd(x_hat[k], code[k])
        total_n += int(np.prod(x_hat[k].shape))
    return tot / total_n


# ----------------------------------------------------------------------------
# Fused multi-scale SSIM (all levels of one channel in one pallas_call)
# ----------------------------------------------------------------------------
def _gaussian_1d(size, sigma=1.5):
    coords = np.arange(size, dtype=np.float64) - (size - 1) / 2.0
    g = np.exp(-(coords ** 2) / (2.0 * sigma ** 2))
    return (g / g.sum()).astype(np.float32)


def _band_matrix(n, win):
    w = win.shape[0]
    m = np.zeros((n - w + 1, n), np.float32)
    for i in range(n - w + 1):
        m[i, i:i + w] = win
    return m


def _msssim_channel(x4, y4):
    """x4, y4: (B, C, H, W) -> MS-SSIM scalar for this channel."""
    B, Cc, H0, W0 = x4.shape
    N = B * Cc
    xs = x4.reshape(N, H0, W0).astype(jnp.float32)
    ys = y4.reshape(N, H0, W0).astype(jnp.float32)

    win = _gaussian_1d(_WIN_SIZE)

    # --- lane packing: G images side by side along lanes (G*W <= 128) --------
    G = max(1, min(N, LANES // W0)) if W0 <= LANES else 1
    NG = -(-N // G)
    n_pad_imgs = NG * G - N

    def pack(z):
        if n_pad_imgs:
            z = jnp.concatenate(
                [z, jnp.zeros((n_pad_imgs, H0, W0), z.dtype)], axis=0)
        return z.reshape(NG, G, H0, W0).transpose(0, 2, 1, 3).reshape(NG, H0, G * W0)

    xg = pack(xs)
    yg = pack(ys)

    # --- per-level geometry + constant blur / pooling matrices ---------------
    Hs, Ws, Hos, Wos, Hops = [], [], [], [], []
    A_mats, Bt_mats = [], []
    h, w = H0, W0
    for l in range(_LEVELS):
        ho, wo = h - _WIN_SIZE + 1, w - _WIN_SIZE + 1
        assert ho >= 1 and wo >= 1, "image too small for MS-SSIM levels"
        hop = _round_up(ho, 8)                      # sublane-aligned output rows
        Hs.append(h); Ws.append(w); Hos.append(ho); Wos.append(wo); Hops.append(hop)
        A = np.zeros((hop, h), np.float32)          # row blur, zero-padded rows
        for i in range(ho):
            A[i, i:i + _WIN_SIZE] = win
        bt1 = _band_matrix(w, win).T                # (w, wo) column blur
        BtG = np.zeros((G * w, G * wo), np.float32)
        for g in range(G):
            BtG[g * w:(g + 1) * w, g * wo:(g + 1) * wo] = bt1
        A_mats.append(A); Bt_mats.append(BtG)
        h, w = h // 2, w // 2

    PR_mats, PC_mats = [], []
    for l in range(_LEVELS - 1):
        h, w = Hs[l], Ws[l]
        h2, w2 = Hs[l + 1], Ws[l + 1]
        PR = np.zeros((h2, h), np.float32)          # 2x1 row average
        for i in range(h2):
            PR[i, 2 * i] = 0.5
            PR[i, 2 * i + 1] = 0.5
        pc1 = np.zeros((w, w2), np.float32)         # 1x2 column average (per image)
        for j in range(w2):
            pc1[2 * j, j] = 0.5
            pc1[2 * j + 1, j] = 0.5
        PCG = np.zeros((G * w, G * w2), np.float32)
        for g in range(G):
            PCG[g * w:(g + 1) * w, g * w2:(g + 1) * w2] = pc1
        PR_mats.append(PR); PC_mats.append(PCG)

    num_halves = 2 if NG >= 2 else 1                # v7x: split groups over 2 TCs
    gph = -(-NG // num_halves)
    need_clamp = (num_halves * gph) != NG

    # --- fused kernel: all levels for one group of G lane-packed images ------
    def kernel(*refs):
        pos = 0
        xr, yr = refs[0], refs[1]; pos = 2
        a_refs = refs[pos:pos + _LEVELS]; pos += _LEVELS
        b_refs = refs[pos:pos + _LEVELS]; pos += _LEVELS
        pr_refs = refs[pos:pos + _LEVELS - 1]; pos += _LEVELS - 1
        pc_refs = refs[pos:pos + _LEVELS - 1]; pos += _LEVELS - 1
        out_s = refs[pos:pos + _LEVELS]; pos += _LEVELS
        out_c = refs[pos:pos + _LEVELS]; pos += _LEVELS
        acc_s = refs[pos:pos + _LEVELS]; pos += _LEVELS
        acc_c = refs[pos:pos + _LEVELS]

        i = pl.program_id(1)

        @pl.when(i == 0)
        def _():
            for l in range(_LEVELS):
                acc_s[l][...] = jnp.zeros_like(acc_s[l])
                acc_c[l][...] = jnp.zeros_like(acc_c[l])

        if need_clamp:
            g_unc = pl.program_id(0) * gph + i
            w_grp = jnp.where(g_unc < NG, jnp.float32(1.0), jnp.float32(0.0))

        x = xr[0]                                   # (H0, G*W0)
        y = yr[0]

        for l in range(_LEVELS):
            A = a_refs[l][...]
            Bt = b_refs[l][...]

            def blur(z, A=A, Bt=Bt):
                t = jnp.dot(z, Bt, preferred_element_type=jnp.float32)
                return jnp.dot(A, t, preferred_element_type=jnp.float32)

            mu1 = blur(x)
            mu2 = blur(y)
            bxx = blur(x * x)
            byy = blur(y * y)
            bxy = blur(x * y)

            mu1_sq = mu1 * mu1
            mu2_sq = mu2 * mu2
            mu1mu2 = mu1 * mu2
            s1 = bxx - mu1_sq
            s2 = byy - mu2_sq
            s12 = bxy - mu1mu2

            # Exact division (approx reciprocal could make ms_ssim > 1 -> NaN dB).
            cs_map = (2.0 * s12 + _C2) / (s1 + s2 + _C2)
            ssim_map = ((2.0 * mu1mu2 + _C1) / (mu1_sq + mu2_sq + _C1)) * cs_map

            s_contrib = jnp.sum(ssim_map, keepdims=True)
            c_contrib = jnp.sum(cs_map, keepdims=True)
            if need_clamp:
                s_contrib = w_grp * s_contrib
                c_contrib = w_grp * c_contrib
            acc_s[l][...] += s_contrib
            acc_c[l][...] += c_contrib

            if l < _LEVELS - 1:
                PR = pr_refs[l][...]
                PC = pc_refs[l][...]
                x = jnp.dot(PR, jnp.dot(x, PC, preferred_element_type=jnp.float32),
                            preferred_element_type=jnp.float32)
                y = jnp.dot(PR, jnp.dot(y, PC, preferred_element_type=jnp.float32),
                            preferred_element_type=jnp.float32)

        @pl.when(i == pl.num_programs(1) - 1)
        def _():
            for l in range(_LEVELS):
                out_s[l][...] = acc_s[l][...][None]
                out_c[l][...] = acc_c[l][...][None]

    def img_idx(c, i):
        g = c * gph + i
        if need_clamp:
            g = jnp.minimum(g, NG - 1)
        return (g, 0, 0)

    mats = A_mats + Bt_mats + PR_mats + PC_mats
    in_specs = [
        pl.BlockSpec((1, H0, G * W0), img_idx),
        pl.BlockSpec((1, H0, G * W0), img_idx),
    ]
    for m in mats:
        in_specs.append(pl.BlockSpec(m.shape, lambda c, i: (0, 0)))

    # TODO(synk): at production resolutions (e.g. 1080p) the full-image block and
    # dense (Ho,H)/(W,Wo) blur matrices exceed v7x's 64 MiB VMEM; halo-tile H/W
    # with (win-1) overlap there.  At these shapes a full-image block is tiny.
    outs = pl.pallas_call(
        kernel,
        out_shape=tuple(
            jax.ShapeDtypeStruct((num_halves, 1, 1), jnp.float32)
            for _ in range(2 * _LEVELS)),
        grid=(num_halves, gph),
        in_specs=in_specs,
        out_specs=tuple(
            pl.BlockSpec((1, 1, 1), lambda c, i: (c, 0, 0))
            for _ in range(2 * _LEVELS)),
        scratch_shapes=[pltpu.VMEM((1, 1), jnp.float32) for _ in range(2 * _LEVELS)],
        compiler_params=pltpu.CompilerParams(
            dimension_semantics=("parallel", "arbitrary"),
            vmem_limit_bytes=_SSIM_VMEM_LIMIT,
        ),
    )(xg, yg, *[jnp.asarray(m) for m in mats])

    # Padded rows (zero rows of A) and zero-padded images contribute exactly 1.0
    # per element to the sums; subtract their (static) count, then normalize.
    ssim_means, cs_means = [], []
    for l in range(_LEVELS):
        real = N * Hos[l] * Wos[l]
        total = NG * Hops[l] * G * Wos[l]
        spur = float(total - real)
        s_sum = jnp.sum(outs[l]) - spur
        c_sum = jnp.sum(outs[_LEVELS + l]) - spur
        ssim_means.append(s_sum / real)
        cs_means.append(c_sum / real)

    val = jnp.float32(1.0)
    for l in range(_LEVELS - 1):
        val = val * jnp.maximum(cs_means[l], 1e-6) ** _MSSSIM_WEIGHTS[l]
    val = val * jnp.maximum(ssim_means[-1], 1e-6) ** _MSSSIM_WEIGHTS[-1]
    return val


def msssim_loss(x_hat, code):
    tot = jnp.float32(0.0)
    nb = 0
    for k in ("y", "u", "v"):
        n = int(np.prod(x_hat[k].shape))
        tot = tot + _msssim_channel(x_hat[k], code[k]) * n
        nb += n
    msssim = tot / nb
    return 1.0 - msssim, msssim


# ----------------------------------------------------------------------------
# Module-equivalent forward
# ----------------------------------------------------------------------------
@functools.partial(jax.jit, static_argnames=("mode",))
def entropy_mse_loss(x_hat, code, rate_y, rate_z, lambda_tradeoff, mode="mse"):
    """Equivalent of EntropyMSELoss.forward."""
    mse = mse_loss(x_hat, code)
    loss_ms_ssim, ms_ssim = msssim_loss(x_hat, code)

    if mode == "mse":
        dist = mse
    elif mode == "ms_ssim":
        dist = loss_ms_ssim
    else:
        raise ValueError(mode)

    ms_ssim_db = -10.0 * jnp.log10(loss_ms_ssim)

    nb_pixel = x_hat["y"].shape[2] * x_hat["y"].shape[3]
    nb_ex_in_batch = x_hat["y"].shape[0]
    # Tiny tensors: kernel dispatch would dominate, so plain jnp reductions.
    rate_bpp_y = jnp.sum(rate_y.astype(jnp.float32)) / (nb_pixel * nb_ex_in_batch)
    rate_bpp_z = jnp.sum(rate_z.astype(jnp.float32)) / (nb_pixel * nb_ex_in_batch)
    rate_bpp = rate_bpp_y + rate_bpp_z

    final_loss = lambda_tradeoff * dist + rate_bpp
    return (final_loss, dist, rate_bpp, rate_bpp_y, rate_bpp_z, mse, ms_ssim, ms_ssim_db)


# ----------------------------------------------------------------------------
if __name__ == "__main__":
    key = jax.random.PRNGKey(0)
    ks = jax.random.split(key, 8)

    B = 2
    Hy, Wy = 32, 32          # Y channel
    Hc, Wc = 16, 16          # U / V channels (YUV420 -> half resolution)

    x_hat = {
        "y": jax.random.uniform(ks[0], (B, 1, Hy, Wy), jnp.float32),
        "u": jax.random.uniform(ks[1], (B, 1, Hc, Wc), jnp.float32),
        "v": jax.random.uniform(ks[2], (B, 1, Hc, Wc), jnp.float32),
    }
    code = {
        "y": jax.random.uniform(ks[3], (B, 1, Hy, Wy), jnp.float32),
        "u": jax.random.uniform(ks[4], (B, 1, Hc, Wc), jnp.float32),
        "v": jax.random.uniform(ks[5], (B, 1, Hc, Wc), jnp.float32),
    }
    rate_y = jax.random.uniform(ks[6], (B, 8, 8, 8), jnp.float32)
    rate_z = jax.random.uniform(ks[7], (B, 4, 2, 2), jnp.float32)
    lambda_tradeoff = 0.01

    out = entropy_mse_loss(x_hat, code, rate_y, rate_z, lambda_tradeoff, mode="mse")
    out = jax.block_until_ready(out)

    (final_loss, dist, rate_bpp, rate_bpp_y, rate_bpp_z, mse, ms_ssim, ms_ssim_db) = out
    assert np.isfinite(np.asarray(final_loss))
    assert np.isfinite(np.asarray(mse))
    assert np.isfinite(np.asarray(ms_ssim))
    print("KERNEL_OK")
</pallas_src>

<mosaic_0001>
module attributes {stable_mosaic.version = 11 : i64} {
  func.func @kernel(%arg0: i32, %arg1: i32, %arg2: memref<1x16x32xf32, #tpu.memory_space<vmem>>, %arg3: memref<1x16x32xf32, #tpu.memory_space<vmem>>, %arg4: memref<16x16xf32, #tpu.memory_space<vmem>>, %arg5: memref<8x8xf32, #tpu.memory_space<vmem>>, %arg6: memref<8x4xf32, #tpu.memory_space<vmem>>, %arg7: memref<32x28xf32, #tpu.memory_space<vmem>>, %arg8: memref<16x12xf32, #tpu.memory_space<vmem>>, %arg9: memref<8x4xf32, #tpu.memory_space<vmem>>, %arg10: memref<8x16xf32, #tpu.memory_space<vmem>>, %arg11: memref<4x8xf32, #tpu.memory_space<vmem>>, %arg12: memref<32x16xf32, #tpu.memory_space<vmem>>, %arg13: memref<16x8xf32, #tpu.memory_space<vmem>>, %arg14: memref<1x1x1xf32, #tpu.memory_space<vmem>>, %arg15: memref<1x1x1xf32, #tpu.memory_space<vmem>>, %arg16: memref<1x1x1xf32, #tpu.memory_space<vmem>>, %arg17: memref<1x1x1xf32, #tpu.memory_space<vmem>>, %arg18: memref<1x1x1xf32, #tpu.memory_space<vmem>>, %arg19: memref<1x1x1xf32, #tpu.memory_space<vmem>>, %arg20: memref<1x1xf32, #tpu.memory_space<vmem>>, %arg21: memref<1x1xf32, #tpu.memory_space<vmem>>, %arg22: memref<1x1xf32, #tpu.memory_space<vmem>>, %arg23: memref<1x1xf32, #tpu.memory_space<vmem>>, %arg24: memref<1x1xf32, #tpu.memory_space<vmem>>, %arg25: memref<1x1xf32, #tpu.memory_space<vmem>>) attributes {dimension_semantics = [#tpu.dimension_semantics<parallel>, #tpu.dimension_semantics<arbitrary>], iteration_bounds = array<i64: 1, 1>, scalar_prefetch = 0 : i64, scratch_operands = 6 : i64, tpu.core_type = #tpu.core_type<tc>, window_params = [{transform_indices = @transform_0, window_bounds = array<i64: 1, 16, 32>}, {transform_indices = @transform_1, window_bounds = array<i64: 1, 16, 32>}, {pipeline_mode = #tpu.pipeline_mode<synchronous>, transform_indices = @transform_2, window_bounds = array<i64: 16, 16>}, {pipeline_mode = #tpu.pipeline_mode<synchronous>, transform_indices = @transform_3, window_bounds = array<i64: 8, 8>}, {pipeline_mode = #tpu.pipeline_mode<synchronous>, transform_indices = @transform_4, window_bounds = array<i64: 8, 4>}, {pipeline_mode = #tpu.pipeline_mode<synchronous>, transform_indices = @transform_5, window_bounds = array<i64: 32, 28>}, {pipeline_mode = #tpu.pipeline_mode<synchronous>, transform_indices = @transform_6, window_bounds = array<i64: 16, 12>}, {pipeline_mode = #tpu.pipeline_mode<synchronous>, transform_indices = @transform_7, window_bounds = array<i64: 8, 4>}, {pipeline_mode = #tpu.pipeline_mode<synchronous>, transform_indices = @transform_8, window_bounds = array<i64: 8, 16>}, {pipeline_mode = #tpu.pipeline_mode<synchronous>, transform_indices = @transform_9, window_bounds = array<i64: 4, 8>}, {pipeline_mode = #tpu.pipeline_mode<synchronous>, transform_indices = @transform_10, window_bounds = array<i64: 32, 16>}, {pipeline_mode = #tpu.pipeline_mode<synchronous>, transform_indices = @transform_11, window_bounds = array<i64: 16, 8>}, {transform_indices = @transform_12, window_bounds = array<i64: 1, 1, 1>}, {transform_indices = @transform_13, window_bounds = array<i64: 1, 1, 1>}, {transform_indices = @transform_14, window_bounds = array<i64: 1, 1, 1>}, {transform_indices = @transform_15, window_bounds = array<i64: 1, 1, 1>}, {transform_indices = @transform_16, window_bounds = array<i64: 1, 1, 1>}, {transform_indices = @transform_17, window_bounds = array<i64: 1, 1, 1>}]} {
    %c0_i32 = arith.constant 0 : i32
    %0 = arith.cmpi eq, %arg1, %c0_i32 : i32
    %1 = arith.extui %0 : i1 to i32
    %c0_i32_0 = arith.constant 0 : i32
    %2 = arith.cmpi ne, %1, %c0_i32_0 : i32
    scf.if %2 {
      %cst_113 = arith.constant 0.000000e+00 : f32
      %184 = vector.broadcast %cst_113 : f32 to vector<1x1xf32>
      %c0_114 = arith.constant 0 : index
      %c0_115 = arith.constant 0 : index
      %185 = vector.load %arg20[%c0_114, %c0_115] : memref<1x1xf32, #tpu.memory_space<vmem>>, vector<1x1xf32>
      tpu.vector_store %arg20[%c0_114, %c0_115], %184 {strides = array<i32>} : memref<1x1xf32, #tpu.memory_space<vmem>>, vector<1x1xf32>,
      %cst_116 = arith.constant 0.000000e+00 : f32
      %186 = vector.broadcast %cst_116 : f32 to vector<1x1xf32>
      %c0_117 = arith.constant 0 : index
      %c0_118 = arith.constant 0 : index
      %187 = vector.load %arg23[%c0_117, %c0_118] : memref<1x1xf32, #tpu.memory_space<vmem>>, vector<1x1xf32>
      tpu.vector_store %arg23[%c0_117, %c0_118], %186 {strides = array<i32>} : memref<1x1xf32, #tpu.memory_space<vmem>>, vector<1x1xf32>,
      %cst_119 = arith.constant 0.000000e+00 : f32
      %188 = vector.broadcast %cst_119 : f32 to vector<1x1xf32>
      %c0_120 = arith.constant 0 : index
      %c0_121 = arith.constant 0 : index
      %189 = vector.load %arg21[%c0_120, %c0_121] : memref<1x1xf32, #tpu.memory_space<vmem>>, vector<1x1xf32>
      tpu.vector_store %arg21[%c0_120, %c0_121], %188 {strides = array<i32>} : memref<1x1xf32, #tpu.memory_space<vmem>>, vector<1x1xf32>,
      %cst_122 = arith.constant 0.000000e+00 : f32
      %190 = vector.broadcast %cst_122 : f32 to vector<1x1xf32>
      %c0_123 = arith.constant 0 : index
      %c0_124 = arith.constant 0 : index
      %191 = vector.load %arg24[%c0_123, %c0_124] : memref<1x1xf32, #tpu.memory_space<vmem>>, vector<1x1xf32>
      tpu.vector_store %arg24[%c0_123, %c0_124], %190 {strides = array<i32>} : memref<1x1xf32, #tpu.memory_space<vmem>>, vector<1x1xf32>,
      %cst_125 = arith.constant 0.000000e+00 : f32
      %192 = vector.broadcast %cst_125 : f32 to vector<1x1xf32>
      %c0_126 = arith.constant 0 : index
      %c0_127 = arith.constant 0 : index
      %193 = vector.load %arg22[%c0_126, %c0_127] : memref<1x1xf32, #tpu.memory_space<vmem>>, vector<1x1xf32>
      tpu.vector_store %arg22[%c0_126, %c0_127], %192 {strides = array<i32>} : memref<1x1xf32, #tpu.memory_space<vmem>>, vector<1x1xf32>,
      %cst_128 = arith.constant 0.000000e+00 : f32
      %194 = vector.broadcast %cst_128 : f32 to vector<1x1xf32>
      %c0_129 = arith.constant 0 : index
      %c0_130 = arith.constant 0 : index
      %195 = vector.load %arg25[%c0_129, %c0_130] : memref<1x1xf32, #tpu.memory_space<vmem>>, vector<1x1xf32>
      tpu.vector_store %arg25[%c0_129, %c0_130], %194 {strides = array<i32>} : memref<1x1xf32, #tpu.memory_space<vmem>>, vector<1x1xf32>,
    } else {
    }
    %c0 = arith.constant 0 : index
    %c0_1 = arith.constant 0 : index
    %c0_2 = arith.constant 0 : index
    %3 = vector.load %arg2[%c0, %c0_1, %c0_2] : memref<1x16x32xf32, #tpu.memory_space<vmem>>, vector<1x16x32xf32>
    %4 = vector.shape_cast %3 : vector<1x16x32xf32> to vector<16x32xf32>
    %c0_3 = arith.constant 0 : index
    %c0_4 = arith.constant 0 : index
    %c0_5 = arith.constant 0 : index
    %5 = vector.load %arg3[%c0_3, %c0_4, %c0_5] : memref<1x16x32xf32, #tpu.memory_space<vmem>>, vector<1x16x32xf32>
    %6 = vector.shape_cast %5 : vector<1x16x32xf32> to vector<16x32xf32>
    %c0_6 = arith.constant 0 : index
    %c0_7 = arith.constant 0 : index
    %7 = vector.load %arg4[%c0_6, %c0_7] : memref<16x16xf32, #tpu.memory_space<vmem>>, vector<16x16xf32>
    %c0_8 = arith.constant 0 : index
    %c0_9 = arith.constant 0 : index
    %8 = vector.load %arg7[%c0_8, %c0_9] : memref<32x28xf32, #tpu.memory_space<vmem>>, vector<32x28xf32>
    %cst = arith.constant dense<0.000000e+00> : vector<16x28xf32>
    %9 = tpu.matmul %4, %8, %cst {dimension_numbers = #tpu.dot_dimension_numbers<[1], [0], [0], [1], [0, 0, 1, 1], [], []>} : vector<16x32xf32>, vector<32x28xf32>, vector<16x28xf32> -> vector<16x28xf32>
    %cst_10 = arith.constant dense<0.000000e+00> : vector<16x28xf32>
    %10 = tpu.matmul %7, %9, %cst_10 {dimension_numbers = #tpu.dot_dimension_numbers<[1], [0], [0], [1], [0, 0, 1, 1], [], []>} : vector<16x16xf32>, vector<16x28xf32>, vector<16x28xf32> -> vector<16x28xf32>
    %cst_11 = arith.constant dense<0.000000e+00> : vector<16x28xf32>
    %11 = tpu.matmul %6, %8, %cst_11 {dimension_numbers = #tpu.dot_dimension_numbers<[1], [0], [0], [1], [0, 0, 1, 1], [], []>} : vector<16x32xf32>, vector<32x28xf32>, vector<16x28xf32> -> vector<16x28xf32>
    %cst_12 = arith.constant dense<0.000000e+00> : vector<16x28xf32>
    %12 = tpu.matmul %7, %11, %cst_12 {dimension_numbers = #tpu.dot_dimension_numbers<[1], [0], [0], [1], [0, 0, 1, 1], [], []>} : vector<16x16xf32>, vector<16x28xf32>, vector<16x28xf32> -> vector<16x28xf32>
    %13 = arith.mulf %4, %4 : vector<16x32xf32>
    %cst_13 = arith.constant dense<0.000000e+00> : vector<16x28xf32>
    %14 = tpu.matmul %13, %8, %cst_13 {dimension_numbers = #tpu.dot_dimension_numbers<[1], [0], [0], [1], [0, 0, 1, 1], [], []>} : vector<16x32xf32>, vector<32x28xf32>, vector<16x28xf32> -> vector<16x28xf32>
    %cst_14 = arith.constant dense<0.000000e+00> : vector<16x28xf32>
    %15 = tpu.matmul %7, %14, %cst_14 {dimension_numbers = #tpu.dot_dimension_numbers<[1], [0], [0], [1], [0, 0, 1, 1], [], []>} : vector<16x16xf32>, vector<16x28xf32>, vector<16x28xf32> -> vector<16x28xf32>
    %16 = arith.mulf %6, %6 : vector<16x32xf32>
    %cst_15 = arith.constant dense<0.000000e+00> : vector<16x28xf32>
    %17 = tpu.matmul %16, %8, %cst_15 {dimension_numbers = #tpu.dot_dimension_numbers<[1], [0], [0], [1], [0, 0, 1, 1], [], []>} : vector<16x32xf32>, vector<32x28xf32>, vector<16x28xf32> -> vector<16x28xf32>
    %cst_16 = arith.constant dense<0.000000e+00> : vector<16x28xf32>
    %18 = tpu.matmul %7, %17, %cst_16 {dimension_numbers = #tpu.dot_dimension_numbers<[1], [0], [0], [1], [0, 0, 1, 1], [], []>} : vector<16x16xf32>, vector<16x28xf32>, vector<16x28xf32> -> vector<16x28xf32>
    %19 = arith.mulf %4, %6 : vector<16x32xf32>
    %cst_17 = arith.constant dense<0.000000e+00> : vector<16x28xf32>
    %20 = tpu.matmul %19, %8, %cst_17 {dimension_numbers = #tpu.dot_dimension_numbers<[1], [0], [0], [1], [0, 0, 1, 1], [], []>} : vector<16x32xf32>, vector<32x28xf32>, vector<16x28xf32> -> vector<16x28xf32>
    %cst_18 = arith.constant dense<0.000000e+00> : vector<16x28xf32>
    %21 = tpu.matmul %7, %20, %cst_18 {dimension_numbers = #tpu.dot_dimension_numbers<[1], [0], [0], [1], [0, 0, 1, 1], [], []>} : vector<16x16xf32>, vector<16x28xf32>, vector<16x28xf32> -> vector<16x28xf32>
    %22 = arith.mulf %10, %10 : vector<16x28xf32>
    %23 = arith.mulf %12, %12 : vector<16x28xf32>
    %24 = arith.mulf %10, %12 : vector<16x28xf32>
    %25 = arith.subf %15, %22 : vector<16x28xf32>
    %26 = arith.subf %18, %23 : vector<16x28xf32>
    %27 = arith.subf %21, %24 : vector<16x28xf32>
    %cst_19 = arith.constant 2.000000e+00 : f32
    %28 = vector.broadcast %cst_19 : f32 to vector<16x28xf32>
    %29 = arith.mulf %28, %27 : vector<16x28xf32>
    %cst_20 = arith.constant 8.99999984E-4 : f32
    %30 = vector.broadcast %cst_20 : f32 to vector<16x28xf32>
    %31 = arith.addf %29, %30 : vector<16x28xf32>
    %32 = arith.addf %25, %26 : vector<16x28xf32>
    %cst_21 = arith.constant 8.99999984E-4 : f32
    %33 = vector.broadcast %cst_21 : f32 to vector<16x28xf32>
    %34 = arith.addf %32, %33 : vector<16x28xf32>
    %35 = arith.divf %31, %34 : vector<16x28xf32>
    %cst_22 = arith.constant 2.000000e+00 : f32
    %36 = vector.broadcast %cst_22 : f32 to vector<16x28xf32>
    %37 = arith.mulf %36, %24 : vector<16x28xf32>
    %cst_23 = arith.constant 9.99999974E-5 : f32
    %38 = vector.broadcast %cst_23 : f32 to vector<16x28xf32>
    %39 = arith.addf %37, %38 : vector<16x28xf32>
    %40 = arith.addf %22, %23 : vector<16x28xf32>
    %cst_24 = arith.constant 9.99999974E-5 : f32
    %41 = vector.broadcast %cst_24 : f32 to vector<16x28xf32>
    %42 = arith.addf %40, %41 : vector<16x28xf32>
    %43 = arith.divf %39, %42 : vector<16x28xf32>
    %44 = arith.mulf %43, %35 : vector<16x28xf32>
    %45 = vector.shape_cast %44 : vector<16x28xf32> to vector<1x16x28xf32>
    %cst_25 = arith.constant dense<0.000000e+00> : vector<1xf32>
    %46 = vector.multi_reduction <add>, %45, %cst_25 [1, 2] : vector<1x16x28xf32> to vector<1xf32>
    %47 = vector.shape_cast %46 : vector<1xf32> to vector<1x1x1xf32>
    %48 = vector.extract %47[0, 0, 0] : f32 from vector<1x1x1xf32>
    %49 = vector.broadcast %48 : f32 to vector<1x1xf32>
    %50 = vector.shape_cast %35 : vector<16x28xf32> to vector<1x16x28xf32>
    %cst_26 = arith.constant dense<0.000000e+00> : vector<1xf32>
    %51 = vector.multi_reduction <add>, %50, %cst_26 [1, 2] : vector<1x16x28xf32> to vector<1xf32>
    %52 = vector.shape_cast %51 : vector<1xf32> to vector<1x1x1xf32>
    %53 = vector.extract %52[0, 0, 0] : f32 from vector<1x1x1xf32>
    %54 = vector.broadcast %53 : f32 to vector<1x1xf32>
    %c0_27 = arith.constant 0 : index
    %c0_28 = arith.constant 0 : index
    %55 = vector.load %arg20[%c0_27, %c0_28] : memref<1x1xf32, #tpu.memory_space<vmem>>, vector<1x1xf32>
    %56 = arith.addf %55, %49 : vector<1x1xf32>
    %c0_29 = arith.constant 0 : index
    %c0_30 = arith.constant 0 : index
    %57 = vector.load %arg20[%c0_29, %c0_30] : memref<1x1xf32, #tpu.memory_space<vmem>>, vector<1x1xf32>
    tpu.vector_store %arg20[%c0_29, %c0_30], %56 {strides = array<i32>} : memref<1x1xf32, #tpu.memory_space<vmem>>, vector<1x1xf32>,
    %c0_31 = arith.constant 0 : index
    %c0_32 = arith.constant 0 : index
    %58 = vector.load %arg23[%c0_31, %c0_32] : memref<1x1xf32, #tpu.memory_space<vmem>>, vector<1x1xf32>
    %59 = arith.addf %58, %54 : vector<1x1xf32>
    %c0_33 = arith.constant 0 : index
    %c0_34 = arith.constant 0 : index
    %60 = vector.load %arg23[%c0_33, %c0_34] : memref<1x1xf32, #tpu.memory_space<vmem>>, vector<1x1xf32>
    tpu.vector_store %arg23[%c0_33, %c0_34], %59 {strides = array<i32>} : memref<1x1xf32, #tpu.memory_space<vmem>>, vector<1x1xf32>,
    %c0_35 = arith.constant 0 : index
    %c0_36 = arith.constant 0 : index
    %61 = vector.load %arg10[%c0_35, %c0_36] : memref<8x16xf32, #tpu.memory_space<vmem>>, vector<8x16xf32>
    %c0_37 = arith.constant 0 : index
    %c0_38 = arith.constant 0 : index
    %62 = vector.load %arg12[%c0_37, %c0_38] : memref<32x16xf32, #tpu.memory_space<vmem>>, vector<32x16xf32>
    %cst_39 = arith.constant dense<0.000000e+00> : vector<16x16xf32>
    %63 = tpu.matmul %4, %62, %cst_39 {dimension_numbers = #tpu.dot_dimension_numbers<[1], [0], [0], [1], [0, 0, 1, 1], [], []>} : vector<16x32xf32>, vector<32x16xf32>, vector<16x16xf32> -> vector<16x16xf32>
    %cst_40 = arith.constant dense<0.000000e+00> : vector<8x16xf32>
    %64 = tpu.matmul %61, %63, %cst_40 {dimension_numbers = #tpu.dot_dimension_numbers<[1], [0], [0], [1], [0, 0, 1, 1], [], []>} : vector<8x16xf32>, vector<16x16xf32>, vector<8x16xf32> -> vector<8x16xf32>
    %cst_41 = arith.constant dense<0.000000e+00> : vector<16x16xf32>
    %65 = tpu.matmul %6, %62, %cst_41 {dimension_numbers = #tpu.dot_dimension_numbers<[1], [0], [0], [1], [0, 0, 1, 1], [], []>} : vector<16x32xf32>, vector<32x16xf32>, vector<16x16xf32> -> vector<16x16xf32>
    %cst_42 = arith.constant dense<0.000000e+00> : vector<8x16xf32>
    %66 = tpu.matmul %61, %65, %cst_42 {dimension_numbers = #tpu.dot_dimension_numbers<[1], [0], [0], [1], [0, 0, 1, 1], [], []>} : vector<8x16xf32>, vector<16x16xf32>, vector<8x16xf32> -> vector<8x16xf32>
    %c0_43 = arith.constant 0 : index
    %c0_44 = arith.constant 0 : index
    %67 = vector.load %arg5[%c0_43, %c0_44] : memref<8x8xf32, #tpu.memory_space<vmem>>, vector<8x8xf32>
    %c0_45 = arith.constant 0 : index
    %c0_46 = arith.constant 0 : index
    %68 = vector.load %arg8[%c0_45, %c0_46] : memref<16x12xf32, #tpu.memory_space<vmem>>, vector<16x12xf32>
    %cst_47 = arith.constant dense<0.000000e+00> : vector<8x12xf32>
    %69 = tpu.matmul %64, %68, %cst_47 {dimension_numbers = #tpu.dot_dimension_numbers<[1], [0], [0], [1], [0, 0, 1, 1], [], []>} : vector<8x16xf32>, vector<16x12xf32>, vector<8x12xf32> -> vector<8x12xf32>
    %cst_48 = arith.constant dense<0.000000e+00> : vector<8x12xf32>
    %70 = tpu.matmul %67, %69, %cst_48 {dimension_numbers = #tpu.dot_dimension_numbers<[1], [0], [0], [1], [0, 0, 1, 1], [], []>} : vector<8x8xf32>, vector<8x12xf32>, vector<8x12xf32> -> vector<8x12xf32>
    %cst_49 = arith.constant dense<0.000000e+00> : vector<8x12xf32>
    %71 = tpu.matmul %66, %68, %cst_49 {dimension_numbers = #tpu.dot_dimension_numbers<[1], [0], [0], [1], [0, 0, 1, 1], [], []>} : vector<8x16xf32>, vector<16x12xf32>, vector<8x12xf32> -> vector<8x12xf32>
    %cst_50 = arith.constant dense<0.000000e+00> : vector<8x12xf32>
    %72 = tpu.matmul %67, %71, %cst_50 {dimension_numbers = #tpu.dot_dimension_numbers<[1], [0], [0], [1], [0, 0, 1, 1], [], []>} : vector<8x8xf32>, vector<8x12xf32>, vector<8x12xf32> -> vector<8x12xf32>
    %73 = arith.mulf %64, %64 : vector<8x16xf32>
    %cst_51 = arith.constant dense<0.000000e+00> : vector<8x12xf32>
    %74 = tpu.matmul %73, %68, %cst_51 {dimension_numbers = #tpu.dot_dimension_numbers<[1], [0], [0], [1], [0, 0, 1, 1], [], []>} : vector<8x16xf32>, vector<16x12xf32>, vector<8x12xf32> -> vector<8x12xf32>
    %cst_52 = arith.constant dense<0.000000e+00> : vector<8x12xf32>
    %75 = tpu.matmul %67, %74, %cst_52 {dimension_numbers = #tpu.dot_dimension_numbers<[1], [0], [0], [1], [0, 0, 1, 1], [], []>} : vector<8x8xf32>, vector<8x12xf32>, vector<8x12xf32> -> vector<8x12xf32>
    %76 = arith.mulf %66, %66 : vector<8x16xf32>
    %cst_53 = arith.constant dense<0.000000e+00> : vector<8x12xf32>
    %77 = tpu.matmul %76, %68, %cst_53 {dimension_numbers = #tpu.dot_dimension_numbers<[1], [0], [0], [1], [0, 0, 1, 1], [], []>} : vector<8x16xf32>, vector<16x12xf32>, vector<8x12xf32> -> vector<8x12xf32>
    %cst_54 = arith.constant dense<0.000000e+00> : vector<8x12xf32>
    %78 = tpu.matmul %67, %77, %cst_54 {dimension_numbers = #tpu.dot_dimension_numbers<[1], [0], [0], [1], [0, 0, 1, 1], [], []>} : vector<8x8xf32>, vector<8x12xf32>, vector<8x12xf32> -> vector<8x12xf32>
    %79 = arith.mulf %64, %66 : vector<8x16xf32>
    %cst_55 = arith.constant dense<0.000000e+00> : vector<8x12xf32>
    %80 = tpu.matmul %79, %68, %cst_55 {dimension_numbers = #tpu.dot_dimension_numbers<[1], [0], [0], [1], [0, 0, 1, 1], [], []>} : vector<8x16xf32>, vector<16x12xf32>, vector<8x12xf32> -> vector<8x12xf32>
    %cst_56 = arith.constant dense<0.000000e+00> : vector<8x12xf32>
    %81 = tpu.matmul %67, %80, %cst_56 {dimension_numbers = #tpu.dot_dimension_numbers<[1], [0], [0], [1], [0, 0, 1, 1], [], []>} : vector<8x8xf32>, vector<8x12xf32>, vector<8x12xf32> -> vector<8x12xf32>
    %82 = arith.mulf %70, %70 : vector<8x12xf32>
    %83 = arith.mulf %72, %72 : vector<8x12xf32>
    %84 = arith.mulf %70, %72 : vector<8x12xf32>
    %85 = arith.subf %75, %82 : vector<8x12xf32>
    %86 = arith.subf %78, %83 : vector<8x12xf32>
    %87 = arith.subf %81, %84 : vector<8x12xf32>
    %cst_57 = arith.constant 2.000000e+00 : f32
    %88 = vector.broadcast %cst_57 : f32 to vector<8x12xf32>
    %89 = arith.mulf %88, %87 : vector<8x12xf32>
    %cst_58 = arith.constant 8.99999984E-4 : f32
    %90 = vector.broadcast %cst_58 : f32 to vector<8x12xf32>
    %91 = arith.addf %89, %90 : vector<8x12xf32>
    %92 = arith.addf %85, %86 : vector<8x12xf32>
    %cst_59 = arith.constant 8.99999984E-4 : f32
    %93 = vector.broadcast %cst_59 : f32 to vector<8x12xf32>
    %94 = arith.addf %92, %93 : vector<8x12xf32>
    %95 = arith.divf %91, %94 : vector<8x12xf32>
    %cst_60 = arith.constant 2.000000e+00 : f32
    %96 = vector.broadcast %cst_60 : f32 to vector<8x12xf32>
    %97 = arith.mulf %96, %84 : vector<8x12xf32>
    %cst_61 = arith.constant 9.99999974E-5 : f32
    %98 = vector.broadcast %cst_61 : f32 to vector<8x12xf32>
    %99 = arith.addf %97, %98 : vector<8x12xf32>
    %100 = arith.addf %82, %83 : vector<8x12xf32>
    %cst_62 = arith.constant 9.99999974E-5 : f32
    %101 = vector.broadcast %cst_62 : f32 to vector<8x12xf32>
    %102 = arith.addf %100, %101 : vector<8x12xf32>
    %103 = arith.divf %99, %102 : vector<8x12xf32>
    %104 = arith.mulf %103, %95 : vector<8x12xf32>
    %105 = vector.shape_cast %104 : vector<8x12xf32> to vector<1x8x12xf32>
    %cst_63 = arith.constant dense<0.000000e+00> : vector<1xf32>
    %106 = vector.multi_reduction <add>, %105, %cst_63 [1, 2] : vector<1x8x12xf32> to vector<1xf32>
    %107 = vector.shape_cast %106 : vector<1xf32> to vector<1x1x1xf32>
    %108 = vector.extract %107[0, 0, 0] : f32 from vector<1x1x1xf32>
    %109 = vector.broadcast %108 : f32 to vector<1x1xf32>
    %110 = vector.shape_cast %95 : vector<8x12xf32> to vector<1x8x12xf32>
    %cst_64 = arith.constant dense<0.000000e+00> : vector<1xf32>
    %111 = vector.multi_reduction <add>, %110, %cst_64 [1, 2] : vector<1x8x12xf32> to vector<1xf32>
    %112 = vector.shape_cast %111 : vector<1xf32> to vector<1x1x1xf32>
    %113 = vector.extract %112[0, 0, 0] : f32 from vector<1x1x1xf32>
    %114 = vector.broadcast %113 : f32 to vector<1x1xf32>
    %c0_65 = arith.constant 0 : index
    %c0_66 = arith.constant 0 : index
    %115 = vector.load %arg21[%c0_65, %c0_66] : memref<1x1xf32, #tpu.memory_space<vmem>>, vector<1x1xf32>
    %116 = arith.addf %115, %109 : vector<1x1xf32>
    %c0_67 = arith.constant 0 : index
    %c0_68 = arith.constant 0 : index
    %117 = vector.load %arg21[%c0_67, %c0_68] : memref<1x1xf32, #tpu.memory_space<vmem>>, vector<1x1xf32>
    tpu.vector_store %arg21[%c0_67, %c0_68], %116 {strides = array<i32>} : memref<1x1xf32, #tpu.memory_space<vmem>>, vector<1x1xf32>,
    %c0_69 = arith.constant 0 : index
    %c0_70 = arith.constant 0 : index
    %118 = vector.load %arg24[%c0_69, %c0_70] : memref<1x1xf32, #tpu.memory_space<vmem>>, vector<1x1xf32>
    %119 = arith.addf %118, %114 : vector<1x1xf32>
    %c0_71 = arith.constant 0 : index
    %c0_72 = arith.constant 0 : index
    %120 = vector.load %arg24[%c0_71, %c0_72] : memref<1x1xf32, #tpu.memory_space<vmem>>, vector<1x1xf32>
    tpu.vector_store %arg24[%c0_71, %c0_72], %119 {strides = array<i32>} : memref<1x1xf32, #tpu.memory_space<vmem>>, vector<1x1xf32>,
    %c0_73 = arith.constant 0 : index
    %c0_74 = arith.constant 0 : index
    %121 = vector.load %arg11[%c0_73, %c0_74] : memref<4x8xf32, #tpu.memory_space<vmem>>, vector<4x8xf32>
    %c0_75 = arith.constant 0 : index
    %c0_76 = arith.constant 0 : index
    %122 = vector.load %arg13[%c0_75, %c0_76] : memref<16x8xf32, #tpu.memory_space<vmem>>, vector<16x8xf32>
    %cst_77 = arith.constant dense<0.000000e+00> : vector<8x8xf32>
    %123 = tpu.matmul %64, %122, %cst_77 {dimension_numbers = #tpu.dot_dimension_numbers<[1], [0], [0], [1], [0, 0, 1, 1], [], []>} : vector<8x16xf32>, vector<16x8xf32>, vector<8x8xf32> -> vector<8x8xf32>
    %cst_78 = arith.constant dense<0.000000e+00> : vector<4x8xf32>
    %124 = tpu.matmul %121, %123, %cst_78 {dimension_numbers = #tpu.dot_dimension_numbers<[1], [0], [0], [1], [0, 0, 1, 1], [], []>} : vector<4x8xf32>, vector<8x8xf32>, vector<4x8xf32> -> vector<4x8xf32>
    %cst_79 = arith.constant dense<0.000000e+00> : vector<8x8xf32>
    %125 = tpu.matmul %66, %122, %cst_79 {dimension_numbers = #tpu.dot_dimension_numbers<[1], [0], [0], [1], [0, 0, 1, 1], [], []>} : vector<8x16xf32>, vector<16x8xf32>, vector<8x8xf32> -> vector<8x8xf32>
    %cst_80 = arith.constant dense<0.000000e+00> : vector<4x8xf32>
    %126 = tpu.matmul %121, %125, %cst_80 {dimension_numbers = #tpu.dot_dimension_numbers<[1], [0], [0], [1], [0, 0, 1, 1], [], []>} : vector<4x8xf32>, vector<8x8xf32>, vector<4x8xf32> -> vector<4x8xf32>
    %c0_81 = arith.constant 0 : index
    %c0_82 = arith.constant 0 : index
    %127 = vector.load %arg6[%c0_81, %c0_82] : memref<8x4xf32, #tpu.memory_space<vmem>>, vector<8x4xf32>
    %c0_83 = arith.constant 0 : index
    %c0_84 = arith.constant 0 : index
    %128 = vector.load %arg9[%c0_83, %c0_84] : memref<8x4xf32, #tpu.memory_space<vmem>>, vector<8x4xf32>
    %cst_85 = arith.constant dense<0.000000e+00> : vector<4x4xf32>
    %129 = tpu.matmul %124, %128, %cst_85 {dimension_numbers = #tpu.dot_dimension_numbers<[1], [0], [0], [1], [0, 0, 1, 1], [], []>} : vector<4x8xf32>, vector<8x4xf32>, vector<4x4xf32> -> vector<4x4xf32>
    %cst_86 = arith.constant dense<0.000000e+00> : vector<8x4xf32>
    %130 = tpu.matmul %127, %129, %cst_86 {dimension_numbers = #tpu.dot_dimension_numbers<[1], [0], [0], [1], [0, 0, 1, 1], [], []>} : vector<8x4xf32>, vector<4x4xf32>, vector<8x4xf32> -> vector<8x4xf32>
    %cst_87 = arith.constant dense<0.000000e+00> : vector<4x4xf32>
    %131 = tpu.matmul %126, %128, %cst_87 {dimension_numbers = #tpu.dot_dimension_numbers<[1], [0], [0], [1], [0, 0, 1, 1], [], []>} : vector<4x8xf32>, vector<8x4xf32>, vector<4x4xf32> -> vector<4x4xf32>
    %cst_88 = arith.constant dense<0.000000e+00> : vector<8x4xf32>
    %132 = tpu.matmul %127, %131, %cst_88 {dimension_numbers = #tpu.dot_dimension_numbers<[1], [0], [0], [1], [0, 0, 1, 1], [], []>} : vector<8x4xf32>, vector<4x4xf32>, vector<8x4xf32> -> vector<8x4xf32>
    %133 = arith.mulf %124, %124 : vector<4x8xf32>
    %cst_89 = arith.constant dense<0.000000e+00> : vector<4x4xf32>
    %134 = tpu.matmul %133, %128, %cst_89 {dimension_numbers = #tpu.dot_dimension_numbers<[1], [0], [0], [1], [0, 0, 1, 1], [], []>} : vector<4x8xf32>, vector<8x4xf32>, vector<4x4xf32> -> vector<4x4xf32>
    %cst_90 = arith.constant dense<0.000000e+00> : vector<8x4xf32>
    %135 = tpu.matmul %127, %134, %cst_90 {dimension_numbers = #tpu.dot_dimension_numbers<[1], [0], [0], [1], [0, 0, 1, 1], [], []>} : vector<8x4xf32>, vector<4x4xf32>, vector<8x4xf32> -> vector<8x4xf32>
    %136 = arith.mulf %126, %126 : vector<4x8xf32>
    %cst_91 = arith.constant dense<0.000000e+00> : vector<4x4xf32>
    %137 = tpu.matmul %136, %128, %cst_91 {dimension_numbers = #tpu.dot_dimension_numbers<[1], [0], [0], [1], [0, 0, 1, 1], [], []>} : vector<4x8xf32>, vector<8x4xf32>, vector<4x4xf32> -> vector<4x4xf32>
    %cst_92 = arith.constant dense<0.000000e+00> : vector<8x4xf32>
    %138 = tpu.matmul %127, %137, %cst_92 {dimension_numbers = #tpu.dot_dimension_numbers<[1], [0], [0], [1], [0, 0, 1, 1], [], []>} : vector<8x4xf32>, vector<4x4xf32>, vector<8x4xf32> -> vector<8x4xf32>
    %139 = arith.mulf %124, %126 : vector<4x8xf32>
    %cst_93 = arith.constant dense<0.000000e+00> : vector<4x4xf32>
    %140 = tpu.matmul %139, %128, %cst_93 {dimension_numbers = #tpu.dot_dimension_numbers<[1], [0], [0], [1], [0, 0, 1, 1], [], []>} : vector<4x8xf32>, vector<8x4xf32>, vector<4x4xf32> -> vector<4x4xf32>
    %cst_94 = arith.constant dense<0.000000e+00> : vector<8x4xf32>
    %141 = tpu.matmul %127, %140, %cst_94 {dimension_numbers = #tpu.dot_dimension_numbers<[1], [0], [0], [1], [0, 0, 1, 1], [], []>} : vector<8x4xf32>, vector<4x4xf32>, vector<8x4xf32> -> vector<8x4xf32>
    %142 = arith.mulf %130, %130 : vector<8x4xf32>
    %143 = arith.mulf %132, %132 : vector<8x4xf32>
    %144 = arith.mulf %130, %132 : vector<8x4xf32>
    %145 = arith.subf %135, %142 : vector<8x4xf32>
    %146 = arith.subf %138, %143 : vector<8x4xf32>
    %147 = arith.subf %141, %144 : vector<8x4xf32>
    %cst_95 = arith.constant 2.000000e+00 : f32
    %148 = vector.broadcast %cst_95 : f32 to vector<8x4xf32>
    %149 = arith.mulf %148, %147 : vector<8x4xf32>
    %cst_96 = arith.constant 8.99999984E-4 : f32
    %150 = vector.broadcast %cst_96 : f32 to vector<8x4xf32>
    %151 = arith.addf %149, %150 : vector<8x4xf32>
    %152 = arith.addf %145, %146 : vector<8x4xf32>
    %cst_97 = arith.constant 8.99999984E-4 : f32
    %153 = vector.broadcast %cst_97 : f32 to vector<8x4xf32>
    %154 = arith.addf %152, %153 : vector<8x4xf32>
    %155 = arith.divf %151, %154 : vector<8x4xf32>
    %cst_98 = arith.constant 2.000000e+00 : f32
    %156 = vector.broadcast %cst_98 : f32 to vector<8x4xf32>
    %157 = arith.mulf %156, %144 : vector<8x4xf32>
    %cst_99 = arith.constant 9.99999974E-5 : f32
    %158 = vector.broadcast %cst_99 : f32 to vector<8x4xf32>
    %159 = arith.addf %157, %158 : vector<8x4xf32>
    %160 = arith.addf %142, %143 : vector<8x4xf32>
    %cst_100 = arith.constant 9.99999974E-5 : f32
    %161 = vector.broadcast %cst_100 : f32 to vector<8x4xf32>
    %162 = arith.addf %160, %161 : vector<8x4xf32>
    %163 = arith.divf %159, %162 : vector<8x4xf32>
    %164 = arith.mulf %163, %155 : vector<8x4xf32>
    %165 = vector.shape_cast %164 : vector<8x4xf32> to vector<1x8x4xf32>
    %cst_101 = arith.constant dense<0.000000e+00> : vector<1xf32>
    %166 = vector.multi_reduction <add>, %165, %cst_101 [1, 2] : vector<1x8x4xf32> to vector<1xf32>
    %167 = vector.shape_cast %166 : vector<1xf32> to vector<1x1x1xf32>
    %168 = vector.extract %167[0, 0, 0] : f32 from vector<1x1x1xf32>
    %169 = vector.broadcast %168 : f32 to vector<1x1xf32>
    %170 = vector.shape_cast %155 : vector<8x4xf32> to vector<1x8x4xf32>
    %cst_102 = arith.constant dense<0.000000e+00> : vector<1xf32>
    %171 = vector.multi_reduction <add>, %170, %cst_102 [1, 2] : vector<1x8x4xf32> to vector<1xf32>
    %172 = vector.shape_cast %171 : vector<1xf32> to vector<1x1x1xf32>
    %173 = vector.extract %172[0, 0, 0] : f32 from vector<1x1x1xf32>
    %174 = vector.broadcast %173 : f32 to vector<1x1xf32>
    %c0_103 = arith.constant 0 : index
    %c0_104 = arith.constant 0 : index
    %175 = vector.load %arg22[%c0_103, %c0_104] : memref<1x1xf32, #tpu.memory_space<vmem>>, vector<1x1xf32>
    %176 = arith.addf %175, %169 : vector<1x1xf32>
    %c0_105 = arith.constant 0 : index
    %c0_106 = arith.constant 0 : index
    %177 = vector.load %arg22[%c0_105, %c0_106] : memref<1x1xf32, #tpu.memory_space<vmem>>, vector<1x1xf32>
    tpu.vector_store %arg22[%c0_105, %c0_106], %176 {strides = array<i32>} : memref<1x1xf32, #tpu.memory_space<vmem>>, vector<1x1xf32>,
    %c0_107 = arith.constant 0 : index
    %c0_108 = arith.constant 0 : index
    %178 = vector.load %arg25[%c0_107, %c0_108] : memref<1x1xf32, #tpu.memory_space<vmem>>, vector<1x1xf32>
    %179 = arith.addf %178, %174 : vector<1x1xf32>
    %c0_109 = arith.constant 0 : index
    %c0_110 = arith.constant 0 : index
    %180 = vector.load %arg25[%c0_109, %c0_110] : memref<1x1xf32, #tpu.memory_space<vmem>>, vector<1x1xf32>
    tpu.vector_store %arg25[%c0_109, %c0_110], %179 {strides = array<i32>} : memref<1x1xf32, #tpu.memory_space<vmem>>, vector<1x1xf32>,
    %c0_i32_111 = arith.constant 0 : i32
    %181 = arith.cmpi eq, %arg1, %c0_i32_111 : i32
    %182 = arith.extui %181 : i1 to i32
    %c0_i32_112 = arith.constant 0 : i32
    %183 = arith.cmpi ne, %182, %c0_i32_112 : i32
    scf.if %183 {
      %c0_113 = arith.constant 0 : index
      %c0_114 = arith.constant 0 : index
      %184 = vector.load %arg20[%c0_113, %c0_114] : memref<1x1xf32, #tpu.memory_space<vmem>>, vector<1x1xf32>
      %185 = vector.shape_cast %184 : vector<1x1xf32> to vector<1x1x1xf32>
      %c0_115 = arith.constant 0 : index
      %c0_116 = arith.constant 0 : index
      %c0_117 = arith.constant 0 : index
      %186 = vector.load %arg14[%c0_115, %c0_116, %c0_117] : memref<1x1x1xf32, #tpu.memory_space<vmem>>, vector<1x1x1xf32>
      tpu.vector_store %arg14[%c0_115, %c0_116, %c0_117], %185 {strides = array<i32>} : memref<1x1x1xf32, #tpu.memory_space<vmem>>, vector<1x1x1xf32>,
      %c0_118 = arith.constant 0 : index
      %c0_119 = arith.constant 0 : index
      %187 = vector.load %arg23[%c0_118, %c0_119] : memref<1x1xf32, #tpu.memory_space<vmem>>, vector<1x1xf32>
      %188 = vector.shape_cast %187 : vector<1x1xf32> to vector<1x1x1xf32>
      %c0_120 = arith.constant 0 : index
      %c0_121 = arith.constant 0 : index
      %c0_122 = arith.constant 0 : index
      %189 = vector.load %arg17[%c0_120, %c0_121, %c0_122] : memref<1x1x1xf32, #tpu.memory_space<vmem>>, vector<1x1x1xf32>
      tpu.vector_store %arg17[%c0_120, %c0_121, %c0_122], %188 {strides = array<i32>} : memref<1x1x1xf32, #tpu.memory_space<vmem>>, vector<1x1x1xf32>,
      %c0_123 = arith.constant 0 : index
      %c0_124 = arith.constant 0 : index
      %190 = vector.load %arg21[%c0_123, %c0_124] : memref<1x1xf32, #tpu.memory_space<vmem>>, vector<1x1xf32>
      %191 = vector.shape_cast %190 : vector<1x1xf32> to vector<1x1x1xf32>
      %c0_125 = arith.constant 0 : index
      %c0_126 = arith.constant 0 : index
      %c0_127 = arith.constant 0 : index
      %192 = vector.load %arg15[%c0_125, %c0_126, %c0_127] : memref<1x1x1xf32, #tpu.memory_space<vmem>>, vector<1x1x1xf32>
      tpu.vector_store %arg15[%c0_125, %c0_126, %c0_127], %191 {strides = array<i32>} : memref<1x1x1xf32, #tpu.memory_space<vmem>>, vector<1x1x1xf32>,
      %c0_128 = arith.constant 0 : index
      %c0_129 = arith.constant 0 : index
      %193 = vector.load %arg24[%c0_128, %c0_129] : memref<1x1xf32, #tpu.memory_space<vmem>>, vector<1x1xf32>
      %194 = vector.shape_cast %193 : vector<1x1xf32> to vector<1x1x1xf32>
      %c0_130 = arith.constant 0 : index
      %c0_131 = arith.constant 0 : index
      %c0_132 = arith.constant 0 : index
      %195 = vector.load %arg18[%c0_130, %c0_131, %c0_132] : memref<1x1x1xf32, #tpu.memory_space<vmem>>, vector<1x1x1xf32>
      tpu.vector_store %arg18[%c0_130, %c0_131, %c0_132], %194 {strides = array<i32>} : memref<1x1x1xf32, #tpu.memory_space<vmem>>, vector<1x1x1xf32>,
      %c0_133 = arith.constant 0 : index
      %c0_134 = arith.constant 0 : index
      %196 = vector.load %arg22[%c0_133, %c0_134] : memref<1x1xf32, #tpu.memory_space<vmem>>, vector<1x1xf32>
      %197 = vector.shape_cast %196 : vector<1x1xf32> to vector<1x1x1xf32>
      %c0_135 = arith.constant 0 : index
      %c0_136 = arith.constant 0 : index
      %c0_137 = arith.constant 0 : index
      %198 = vector.load %arg16[%c0_135, %c0_136, %c0_137] : memref<1x1x1xf32, #tpu.memory_space<vmem>>, vector<1x1x1xf32>
      tpu.vector_store %arg16[%c0_135, %c0_136, %c0_137], %197 {strides = array<i32>} : memref<1x1x1xf32, #tpu.memory_space<vmem>>, vector<1x1x1xf32>,
      %c0_138 = arith.constant 0 : index
      %c0_139 = arith.constant 0 : index
      %199 = vector.load %arg25[%c0_138, %c0_139] : memref<1x1xf32, #tpu.memory_space<vmem>>, vector<1x1xf32>
      %200 = vector.shape_cast %199 : vector<1x1xf32> to vector<1x1x1xf32>
      %c0_140 = arith.constant 0 : index
      %c0_141 = arith.constant 0 : index
      %c0_142 = arith.constant 0 : index
      %201 = vector.load %arg19[%c0_140, %c0_141, %c0_142] : memref<1x1x1xf32, #tpu.memory_space<vmem>>, vector<1x1x1xf32>
      tpu.vector_store %arg19[%c0_140, %c0_141, %c0_142], %200 {strides = array<i32>} : memref<1x1x1xf32, #tpu.memory_space<vmem>>, vector<1x1x1xf32>,
    } else {
    }
    return
  }
  func.func @transform_0(%arg0: i32, %arg1: i32) -> (i32, i32, i32) {
    %c1_i32 = arith.constant 1 : i32
    %0 = arith.muli %arg0, %c1_i32 : i32
    %1 = arith.addi %0, %arg1 : i32
    %c0_i32 = arith.constant 0 : i32
    %c0_i32_0 = arith.constant 0 : i32
    %c0_i32_1 = arith.constant 0 : i32
    return %1, %c0_i32, %c0_i32_0 : i32, i32, i32
  }
  func.func @transform_1(%arg0: i32, %arg1: i32) -> (i32, i32, i32) {
    %c1_i32 = arith.constant 1 : i32
    %0 = arith.muli %arg0, %c1_i32 : i32
    %1 = arith.addi %0, %arg1 : i32
    %c0_i32 = arith.constant 0 : i32
    %c0_i32_0 = arith.constant 0 : i32
    %c0_i32_1 = arith.constant 0 : i32
    return %1, %c0_i32, %c0_i32_0 : i32, i32, i32
  }
  func.func @transform_2(%arg0: i32, %arg1: i32) -> (i32, i32) {
    %c0_i32 = arith.constant 0 : i32
    %c0_i32_0 = arith.constant 0 : i32
    %c0_i32_1 = arith.constant 0 : i32
    return %c0_i32, %c0_i32_0 : i32, i32
  }
  func.func @transform_3(%arg0: i32, %arg1: i32) -> (i32, i32) {
    %c0_i32 = arith.constant 0 : i32
    %c0_i32_0 = arith.constant 0 : i32
    %c0_i32_1 = arith.constant 0 : i32
    return %c0_i32, %c0_i32_0 : i32, i32
  }
  func.func @transform_4(%arg0: i32, %arg1: i32) -> (i32, i32) {
    %c0_i32 = arith.constant 0 : i32
    %c0_i32_0 = arith.constant 0 : i32
    %c0_i32_1 = arith.constant 0 : i32
    return %c0_i32, %c0_i32_0 : i32, i32
  }
  func.func @transform_5(%arg0: i32, %arg1: i32) -> (i32, i32) {
    %c0_i32 = arith.constant 0 : i32
    %c0_i32_0 = arith.constant 0 : i32
    %c0_i32_1 = arith.constant 0 : i32
    return %c0_i32, %c0_i32_0 : i32, i32
  }
  func.func @transform_6(%arg0: i32, %arg1: i32) -> (i32, i32) {
    %c0_i32 = arith.constant 0 : i32
    %c0_i32_0 = arith.constant 0 : i32
    %c0_i32_1 = arith.constant 0 : i32
    return %c0_i32, %c0_i32_0 : i32, i32
  }
  func.func @transform_7(%arg0: i32, %arg1: i32) -> (i32, i32) {
    %c0_i32 = arith.constant 0 : i32
    %c0_i32_0 = arith.constant 0 : i32
    %c0_i32_1 = arith.constant 0 : i32
    return %c0_i32, %c0_i32_0 : i32, i32
  }
  func.func @transform_8(%arg0: i32, %arg1: i32) -> (i32, i32) {
    %c0_i32 = arith.constant 0 : i32
    %c0_i32_0 = arith.constant 0 : i32
    %c0_i32_1 = arith.constant 0 : i32
    return %c0_i32, %c0_i32_0 : i32, i32
  }
  func.func @transform_9(%arg0: i32, %arg1: i32) -> (i32, i32) {
    %c0_i32 = arith.constant 0 : i32
    %c0_i32_0 = arith.constant 0 : i32
    %c0_i32_1 = arith.constant 0 : i32
    return %c0_i32, %c0_i32_0 : i32, i32
  }
  func.func @transform_10(%arg0: i32, %arg1: i32) -> (i32, i32) {
    %c0_i32 = arith.constant 0 : i32
    %c0_i32_0 = arith.constant 0 : i32
    %c0_i32_1 = arith.constant 0 : i32
    return %c0_i32, %c0_i32_0 : i32, i32
  }
  func.func @transform_11(%arg0: i32, %arg1: i32) -> (i32, i32) {
    %c0_i32 = arith.constant 0 : i32
    %c0_i32_0 = arith.constant 0 : i32
    %c0_i32_1 = arith.constant 0 : i32
    return %c0_i32, %c0_i32_0 : i32, i32
  }
  func.func @transform_12(%arg0: i32, %arg1: i32) -> (i32, i32, i32) {
    %c0_i32 = arith.constant 0 : i32
    %c0_i32_0 = arith.constant 0 : i32
    %c0_i32_1 = arith.constant 0 : i32
    return %arg0, %c0_i32, %c0_i32_0 : i32, i32, i32
  }
  func.func @transform_13(%arg0: i32, %arg1: i32) -> (i32, i32, i32) {
    %c0_i32 = arith.constant 0 : i32
    %c0_i32_0 = arith.constant 0 : i32
    %c0_i32_1 = arith.constant 0 : i32
    return %arg0, %c0_i32, %c0_i32_0 : i32, i32, i32
  }
  func.func @transform_14(%arg0: i32, %arg1: i32) -> (i32, i32, i32) {
    %c0_i32 = arith.constant 0 : i32
    %c0_i32_0 = arith.constant 0 : i32
    %c0_i32_1 = arith.constant 0 : i32
    return %arg0, %c0_i32, %c0_i32_0 : i32, i32, i32
  }
  func.func @transform_15(%arg0: i32, %arg1: i32) -> (i32, i32, i32) {
    %c0_i32 = arith.constant 0 : i32
    %c0_i32_0 = arith.constant 0 : i32
    %c0_i32_1 = arith.constant 0 : i32
    return %arg0, %c0_i32, %c0_i32_0 : i32, i32, i32
  }
  func.func @transform_16(%arg0: i32, %arg1: i32) -> (i32, i32, i32) {
    %c0_i32 = arith.constant 0 : i32
    %c0_i32_0 = arith.constant 0 : i32
    %c0_i32_1 = arith.constant 0 : i32
    return %arg0, %c0_i32, %c0_i32_0 : i32, i32, i32
  }
  func.func @transform_17(%arg0: i32, %arg1: i32) -> (i32, i32, i32) {
    %c0_i32 = arith.constant 0 : i32
    %c0_i32_0 = arith.constant 0 : i32
    %c0_i32_1 = arith.constant 0 : i32
    return %arg0, %c0_i32, %c0_i32_0 : i32, i32, i32
  }
}

module attributes {stable_mosaic.version = 11 : i64} {
  func.func @kernel(%arg0: i32, %arg1: i32, %arg2: memref<1x32x64xf32, #tpu.memory_space<vmem>>, %arg3: memref<1x32x64xf32, #tpu.memory_space<vmem>>, %arg4: memref<32x32xf32, #tpu.memory_space<vmem>>, %arg5: memref<16x16xf32, #tpu.memory_space<vmem>>, %arg6: memref<8x8xf32, #tpu.memory_space<vmem>>, %arg7: memref<64x60xf32, #tpu.memory_space<vmem>>, %arg8: memref<32x28xf32, #tpu.memory_space<vmem>>, %arg9: memref<16x12xf32, #tpu.memory_space<vmem>>, %arg10: memref<16x32xf32, #tpu.memory_space<vmem>>, %arg11: memref<8x16xf32, #tpu.memory_space<vmem>>, %arg12: memref<64x32xf32, #tpu.memory_space<vmem>>, %arg13: memref<32x16xf32, #tpu.memory_space<vmem>>, %arg14: memref<1x1x1xf32, #tpu.memory_space<vmem>>, %arg15: memref<1x1x1xf32, #tpu.memory_space<vmem>>, %arg16: memref<1x1x1xf32, #tpu.memory_space<vmem>>, %arg17: memref<1x1x1xf32, #tpu.memory_space<vmem>>, %arg18: memref<1x1x1xf32, #tpu.memory_space<vmem>>, %arg19: memref<1x1x1xf32, #tpu.memory_space<vmem>>, %arg20: memref<1x1xf32, #tpu.memory_space<vmem>>, %arg21: memref<1x1xf32, #tpu.memory_space<vmem>>, %arg22: memref<1x1xf32, #tpu.memory_space<vmem>>, %arg23: memref<1x1xf32, #tpu.memory_space<vmem>>, %arg24: memref<1x1xf32, #tpu.memory_space<vmem>>, %arg25: memref<1x1xf32, #tpu.memory_space<vmem>>) attributes {dimension_semantics = [#tpu.dimension_semantics<parallel>, #tpu.dimension_semantics<arbitrary>], iteration_bounds = array<i64: 1, 1>, scalar_prefetch = 0 : i64, scratch_operands = 6 : i64, tpu.core_type = #tpu.core_type<tc>, window_params = [{transform_indices = @transform_0, window_bounds = array<i64: 1, 32, 64>}, {transform_indices = @transform_1, window_bounds = array<i64: 1, 32, 64>}, {pipeline_mode = #tpu.pipeline_mode<synchronous>, transform_indices = @transform_2, window_bounds = array<i64: 32, 32>}, {pipeline_mode = #tpu.pipeline_mode<synchronous>, transform_indices = @transform_3, window_bounds = array<i64: 16, 16>}, {pipeline_mode = #tpu.pipeline_mode<synchronous>, transform_indices = @transform_4, window_bounds = array<i64: 8, 8>}, {pipeline_mode = #tpu.pipeline_mode<synchronous>, transform_indices = @transform_5, window_bounds = array<i64: 64, 60>}, {pipeline_mode = #tpu.pipeline_mode<synchronous>, transform_indices = @transform_6, window_bounds = array<i64: 32, 28>}, {pipeline_mode = #tpu.pipeline_mode<synchronous>, transform_indices = @transform_7, window_bounds = array<i64: 16, 12>}, {pipeline_mode = #tpu.pipeline_mode<synchronous>, transform_indices = @transform_8, window_bounds = array<i64: 16, 32>}, {pipeline_mode = #tpu.pipeline_mode<synchronous>, transform_indices = @transform_9, window_bounds = array<i64: 8, 16>}, {pipeline_mode = #tpu.pipeline_mode<synchronous>, transform_indices = @transform_10, window_bounds = array<i64: 64, 32>}, {pipeline_mode = #tpu.pipeline_mode<synchronous>, transform_indices = @transform_11, window_bounds = array<i64: 32, 16>}, {transform_indices = @transform_12, window_bounds = array<i64: 1, 1, 1>}, {transform_indices = @transform_13, window_bounds = array<i64: 1, 1, 1>}, {transform_indices = @transform_14, window_bounds = array<i64: 1, 1, 1>}, {transform_indices = @transform_15, window_bounds = array<i64: 1, 1, 1>}, {transform_indices = @transform_16, window_bounds = array<i64: 1, 1, 1>}, {transform_indices = @transform_17, window_bounds = array<i64: 1, 1, 1>}]} {
    %c0_i32 = arith.constant 0 : i32
    %0 = arith.cmpi eq, %arg1, %c0_i32 : i32
    %1 = arith.extui %0 : i1 to i32
    %c0_i32_0 = arith.constant 0 : i32
    %2 = arith.cmpi ne, %1, %c0_i32_0 : i32
    scf.if %2 {
      %cst_113 = arith.constant 0.000000e+00 : f32
      %184 = vector.broadcast %cst_113 : f32 to vector<1x1xf32>
      %c0_114 = arith.constant 0 : index
      %c0_115 = arith.constant 0 : index
      %185 = vector.load %arg20[%c0_114, %c0_115] : memref<1x1xf32, #tpu.memory_space<vmem>>, vector<1x1xf32>
      tpu.vector_store %arg20[%c0_114, %c0_115], %184 {strides = array<i32>} : memref<1x1xf32, #tpu.memory_space<vmem>>, vector<1x1xf32>,
      %cst_116 = arith.constant 0.000000e+00 : f32
      %186 = vector.broadcast %cst_116 : f32 to vector<1x1xf32>
      %c0_117 = arith.constant 0 : index
      %c0_118 = arith.constant 0 : index
      %187 = vector.load %arg23[%c0_117, %c0_118] : memref<1x1xf32, #tpu.memory_space<vmem>>, vector<1x1xf32>
      tpu.vector_store %arg23[%c0_117, %c0_118], %186 {strides = array<i32>} : memref<1x1xf32, #tpu.memory_space<vmem>>, vector<1x1xf32>,
      %cst_119 = arith.constant 0.000000e+00 : f32
      %188 = vector.broadcast %cst_119 : f32 to vector<1x1xf32>
      %c0_120 = arith.constant 0 : index
      %c0_121 = arith.constant 0 : index
      %189 = vector.load %arg21[%c0_120, %c0_121] : memref<1x1xf32, #tpu.memory_space<vmem>>, vector<1x1xf32>
      tpu.vector_store %arg21[%c0_120, %c0_121], %188 {strides = array<i32>} : memref<1x1xf32, #tpu.memory_space<vmem>>, vector<1x1xf32>,
      %cst_122 = arith.constant 0.000000e+00 : f32
      %190 = vector.broadcast %cst_122 : f32 to vector<1x1xf32>
      %c0_123 = arith.constant 0 : index
      %c0_124 = arith.constant 0 : index
      %191 = vector.load %arg24[%c0_123, %c0_124] : memref<1x1xf32, #tpu.memory_space<vmem>>, vector<1x1xf32>
      tpu.vector_store %arg24[%c0_123, %c0_124], %190 {strides = array<i32>} : memref<1x1xf32, #tpu.memory_space<vmem>>, vector<1x1xf32>,
      %cst_125 = arith.constant 0.000000e+00 : f32
      %192 = vector.broadcast %cst_125 : f32 to vector<1x1xf32>
      %c0_126 = arith.constant 0 : index
      %c0_127 = arith.constant 0 : index
      %193 = vector.load %arg22[%c0_126, %c0_127] : memref<1x1xf32, #tpu.memory_space<vmem>>, vector<1x1xf32>
      tpu.vector_store %arg22[%c0_126, %c0_127], %192 {strides = array<i32>} : memref<1x1xf32, #tpu.memory_space<vmem>>, vector<1x1xf32>,
      %cst_128 = arith.constant 0.000000e+00 : f32
      %194 = vector.broadcast %cst_128 : f32 to vector<1x1xf32>
      %c0_129 = arith.constant 0 : index
      %c0_130 = arith.constant 0 : index
      %195 = vector.load %arg25[%c0_129, %c0_130] : memref<1x1xf32, #tpu.memory_space<vmem>>, vector<1x1xf32>
      tpu.vector_store %arg25[%c0_129, %c0_130], %194 {strides = array<i32>} : memref<1x1xf32, #tpu.memory_space<vmem>>, vector<1x1xf32>,
    } else {
    }
    %c0 = arith.constant 0 : index
    %c0_1 = arith.constant 0 : index
    %c0_2 = arith.constant 0 : index
    %3 = vector.load %arg2[%c0, %c0_1, %c0_2] : memref<1x32x64xf32, #tpu.memory_space<vmem>>, vector<1x32x64xf32>
    %4 = vector.shape_cast %3 : vector<1x32x64xf32> to vector<32x64xf32>
    %c0_3 = arith.constant 0 : index
    %c0_4 = arith.constant 0 : index
    %c0_5 = arith.constant 0 : index
    %5 = vector.load %arg3[%c0_3, %c0_4, %c0_5] : memref<1x32x64xf32, #tpu.memory_space<vmem>>, vector<1x32x64xf32>
    %6 = vector.shape_cast %5 : vector<1x32x64xf32> to vector<32x64xf32>
    %c0_6 = arith.constant 0 : index
    %c0_7 = arith.constant 0 : index
    %7 = vector.load %arg4[%c0_6, %c0_7] : memref<32x32xf32, #tpu.memory_space<vmem>>, vector<32x32xf32>
    %c0_8 = arith.constant 0 : index
    %c0_9 = arith.constant 0 : index
    %8 = vector.load %arg7[%c0_8, %c0_9] : memref<64x60xf32, #tpu.memory_space<vmem>>, vector<64x60xf32>
    %cst = arith.constant dense<0.000000e+00> : vector<32x60xf32>
    %9 = tpu.matmul %4, %8, %cst {dimension_numbers = #tpu.dot_dimension_numbers<[1], [0], [0], [1], [0, 0, 1, 1], [], []>} : vector<32x64xf32>, vector<64x60xf32>, vector<32x60xf32> -> vector<32x60xf32>
    %cst_10 = arith.constant dense<0.000000e+00> : vector<32x60xf32>
    %10 = tpu.matmul %7, %9, %cst_10 {dimension_numbers = #tpu.dot_dimension_numbers<[1], [0], [0], [1], [0, 0, 1, 1], [], []>} : vector<32x32xf32>, vector<32x60xf32>, vector<32x60xf32> -> vector<32x60xf32>
    %cst_11 = arith.constant dense<0.000000e+00> : vector<32x60xf32>
    %11 = tpu.matmul %6, %8, %cst_11 {dimension_numbers = #tpu.dot_dimension_numbers<[1], [0], [0], [1], [0, 0, 1, 1], [], []>} : vector<32x64xf32>, vector<64x60xf32>, vector<32x60xf32> -> vector<32x60xf32>
    %cst_12 = arith.constant dense<0.000000e+00> : vector<32x60xf32>
    %12 = tpu.matmul %7, %11, %cst_12 {dimension_numbers = #tpu.dot_dimension_numbers<[1], [0], [0], [1], [0, 0, 1, 1], [], []>} : vector<32x32xf32>, vector<32x60xf32>, vector<32x60xf32> -> vector<32x60xf32>
    %13 = arith.mulf %4, %4 : vector<32x64xf32>
    %cst_13 = arith.constant dense<0.000000e+00> : vector<32x60xf32>
    %14 = tpu.matmul %13, %8, %cst_13 {dimension_numbers = #tpu.dot_dimension_numbers<[1], [0], [0], [1], [0, 0, 1, 1], [], []>} : vector<32x64xf32>, vector<64x60xf32>, vector<32x60xf32> -> vector<32x60xf32>
    %cst_14 = arith.constant dense<0.000000e+00> : vector<32x60xf32>
    %15 = tpu.matmul %7, %14, %cst_14 {dimension_numbers = #tpu.dot_dimension_numbers<[1], [0], [0], [1], [0, 0, 1, 1], [], []>} : vector<32x32xf32>, vector<32x60xf32>, vector<32x60xf32> -> vector<32x60xf32>
    %16 = arith.mulf %6, %6 : vector<32x64xf32>
    %cst_15 = arith.constant dense<0.000000e+00> : vector<32x60xf32>
    %17 = tpu.matmul %16, %8, %cst_15 {dimension_numbers = #tpu.dot_dimension_numbers<[1], [0], [0], [1], [0, 0, 1, 1], [], []>} : vector<32x64xf32>, vector<64x60xf32>, vector<32x60xf32> -> vector<32x60xf32>
    %cst_16 = arith.constant dense<0.000000e+00> : vector<32x60xf32>
    %18 = tpu.matmul %7, %17, %cst_16 {dimension_numbers = #tpu.dot_dimension_numbers<[1], [0], [0], [1], [0, 0, 1, 1], [], []>} : vector<32x32xf32>, vector<32x60xf32>, vector<32x60xf32> -> vector<32x60xf32>
    %19 = arith.mulf %4, %6 : vector<32x64xf32>
    %cst_17 = arith.constant dense<0.000000e+00> : vector<32x60xf32>
    %20 = tpu.matmul %19, %8, %cst_17 {dimension_numbers = #tpu.dot_dimension_numbers<[1], [0], [0], [1], [0, 0, 1, 1], [], []>} : vector<32x64xf32>, vector<64x60xf32>, vector<32x60xf32> -> vector<32x60xf32>
    %cst_18 = arith.constant dense<0.000000e+00> : vector<32x60xf32>
    %21 = tpu.matmul %7, %20, %cst_18 {dimension_numbers = #tpu.dot_dimension_numbers<[1], [0], [0], [1], [0, 0, 1, 1], [], []>} : vector<32x32xf32>, vector<32x60xf32>, vector<32x60xf32> -> vector<32x60xf32>
    %22 = arith.mulf %10, %10 : vector<32x60xf32>
    %23 = arith.mulf %12, %12 : vector<32x60xf32>
    %24 = arith.mulf %10, %12 : vector<32x60xf32>
    %25 = arith.subf %15, %22 : vector<32x60xf32>
    %26 = arith.subf %18, %23 : vector<32x60xf32>
    %27 = arith.subf %21, %24 : vector<32x60xf32>
    %cst_19 = arith.constant 2.000000e+00 : f32
    %28 = vector.broadcast %cst_19 : f32 to vector<32x60xf32>
    %29 = arith.mulf %28, %27 : vector<32x60xf32>
    %cst_20 = arith.constant 8.99999984E-4 : f32
    %30 = vector.broadcast %cst_20 : f32 to vector<32x60xf32>
    %31 = arith.addf %29, %30 : vector<32x60xf32>
    %32 = arith.addf %25, %26 : vector<32x60xf32>
    %cst_21 = arith.constant 8.99999984E-4 : f32
    %33 = vector.broadcast %cst_21 : f32 to vector<32x60xf32>
    %34 = arith.addf %32, %33 : vector<32x60xf32>
    %35 = arith.divf %31, %34 : vector<32x60xf32>
    %cst_22 = arith.constant 2.000000e+00 : f32
    %36 = vector.broadcast %cst_22 : f32 to vector<32x60xf32>
    %37 = arith.mulf %36, %24 : vector<32x60xf32>
    %cst_23 = arith.constant 9.99999974E-5 : f32
    %38 = vector.broadcast %cst_23 : f32 to vector<32x60xf32>
    %39 = arith.addf %37, %38 : vector<32x60xf32>
    %40 = arith.addf %22, %23 : vector<32x60xf32>
    %cst_24 = arith.constant 9.99999974E-5 : f32
    %41 = vector.broadcast %cst_24 : f32 to vector<32x60xf32>
    %42 = arith.addf %40, %41 : vector<32x60xf32>
    %43 = arith.divf %39, %42 : vector<32x60xf32>
    %44 = arith.mulf %43, %35 : vector<32x60xf32>
    %45 = vector.shape_cast %44 : vector<32x60xf32> to vector<1x32x60xf32>
    %cst_25 = arith.constant dense<0.000000e+00> : vector<1xf32>
    %46 = vector.multi_reduction <add>, %45, %cst_25 [1, 2] : vector<1x32x60xf32> to vector<1xf32>
    %47 = vector.shape_cast %46 : vector<1xf32> to vector<1x1x1xf32>
    %48 = vector.extract %47[0, 0, 0] : f32 from vector<1x1x1xf32>
    %49 = vector.broadcast %48 : f32 to vector<1x1xf32>
    %50 = vector.shape_cast %35 : vector<32x60xf32> to vector<1x32x60xf32>
    %cst_26 = arith.constant dense<0.000000e+00> : vector<1xf32>
    %51 = vector.multi_reduction <add>, %50, %cst_26 [1, 2] : vector<1x32x60xf32> to vector<1xf32>
    %52 = vector.shape_cast %51 : vector<1xf32> to vector<1x1x1xf32>
    %53 = vector.extract %52[0, 0, 0] : f32 from vector<1x1x1xf32>
    %54 = vector.broadcast %53 : f32 to vector<1x1xf32>
    %c0_27 = arith.constant 0 : index
    %c0_28 = arith.constant 0 : index
    %55 = vector.load %arg20[%c0_27, %c0_28] : memref<1x1xf32, #tpu.memory_space<vmem>>, vector<1x1xf32>
    %56 = arith.addf %55, %49 : vector<1x1xf32>
    %c0_29 = arith.constant 0 : index
    %c0_30 = arith.constant 0 : index
    %57 = vector.load %arg20[%c0_29, %c0_30] : memref<1x1xf32, #tpu.memory_space<vmem>>, vector<1x1xf32>
    tpu.vector_store %arg20[%c0_29, %c0_30], %56 {strides = array<i32>} : memref<1x1xf32, #tpu.memory_space<vmem>>, vector<1x1xf32>,
    %c0_31 = arith.constant 0 : index
    %c0_32 = arith.constant 0 : index
    %58 = vector.load %arg23[%c0_31, %c0_32] : memref<1x1xf32, #tpu.memory_space<vmem>>, vector<1x1xf32>
    %59 = arith.addf %58, %54 : vector<1x1xf32>
    %c0_33 = arith.constant 0 : index
    %c0_34 = arith.constant 0 : index
    %60 = vector.load %arg23[%c0_33, %c0_34] : memref<1x1xf32, #tpu.memory_space<vmem>>, vector<1x1xf32>
    tpu.vector_store %arg23[%c0_33, %c0_34], %59 {strides = array<i32>} : memref<1x1xf32, #tpu.memory_space<vmem>>, vector<1x1xf32>,
    %c0_35 = arith.constant 0 : index
    %c0_36 = arith.constant 0 : index
    %61 = vector.load %arg10[%c0_35, %c0_36] : memref<16x32xf32, #tpu.memory_space<vmem>>, vector<16x32xf32>
    %c0_37 = arith.constant 0 : index
    %c0_38 = arith.constant 0 : index
    %62 = vector.load %arg12[%c0_37, %c0_38] : memref<64x32xf32, #tpu.memory_space<vmem>>, vector<64x32xf32>
    %cst_39 = arith.constant dense<0.000000e+00> : vector<32x32xf32>
    %63 = tpu.matmul %4, %62, %cst_39 {dimension_numbers = #tpu.dot_dimension_numbers<[1], [0], [0], [1], [0, 0, 1, 1], [], []>} : vector<32x64xf32>, vector<64x32xf32>, vector<32x32xf32> -> vector<32x32xf32>
    %cst_40 = arith.constant dense<0.000000e+00> : vector<16x32xf32>
    %64 = tpu.matmul %61, %63, %cst_40 {dimension_numbers = #tpu.dot_dimension_numbers<[1], [0], [0], [1], [0, 0, 1, 1], [], []>} : vector<16x32xf32>, vector<32x32xf32>, vector<16x32xf32> -> vector<16x32xf32>
    %cst_41 = arith.constant dense<0.000000e+00> : vector<32x32xf32>
    %65 = tpu.matmul %6, %62, %cst_41 {dimension_numbers = #tpu.dot_dimension_numbers<[1], [0], [0], [1], [0, 0, 1, 1], [], []>} : vector<32x64xf32>, vector<64x32xf32>, vector<32x32xf32> -> vector<32x32xf32>
    %cst_42 = arith.constant dense<0.000000e+00> : vector<16x32xf32>
    %66 = tpu.matmul %61, %65, %cst_42 {dimension_numbers = #tpu.dot_dimension_numbers<[1], [0], [0], [1], [0, 0, 1, 1], [], []>} : vector<16x32xf32>, vector<32x32xf32>, vector<16x32xf32> -> vector<16x32xf32>
    %c0_43 = arith.constant 0 : index
    %c0_44 = arith.constant 0 : index
    %67 = vector.load %arg5[%c0_43, %c0_44] : memref<16x16xf32, #tpu.memory_space<vmem>>, vector<16x16xf32>
    %c0_45 = arith.constant 0 : index
    %c0_46 = arith.constant 0 : index
    %68 = vector.load %arg8[%c0_45, %c0_46] : memref<32x28xf32, #tpu.memory_space<vmem>>, vector<32x28xf32>
    %cst_47 = arith.constant dense<0.000000e+00> : vector<16x28xf32>
    %69 = tpu.matmul %64, %68, %cst_47 {dimension_numbers = #tpu.dot_dimension_numbers<[1], [0], [0], [1], [0, 0, 1, 1], [], []>} : vector<16x32xf32>, vector<32x28xf32>, vector<16x28xf32> -> vector<16x28xf32>
    %cst_48 = arith.constant dense<0.000000e+00> : vector<16x28xf32>
    %70 = tpu.matmul %67, %69, %cst_48 {dimension_numbers = #tpu.dot_dimension_numbers<[1], [0], [0], [1], [0, 0, 1, 1], [], []>} : vector<16x16xf32>, vector<16x28xf32>, vector<16x28xf32> -> vector<16x28xf32>
    %cst_49 = arith.constant dense<0.000000e+00> : vector<16x28xf32>
    %71 = tpu.matmul %66, %68, %cst_49 {dimension_numbers = #tpu.dot_dimension_numbers<[1], [0], [0], [1], [0, 0, 1, 1], [], []>} : vector<16x32xf32>, vector<32x28xf32>, vector<16x28xf32> -> vector<16x28xf32>
    %cst_50 = arith.constant dense<0.000000e+00> : vector<16x28xf32>
    %72 = tpu.matmul %67, %71, %cst_50 {dimension_numbers = #tpu.dot_dimension_numbers<[1], [0], [0], [1], [0, 0, 1, 1], [], []>} : vector<16x16xf32>, vector<16x28xf32>, vector<16x28xf32> -> vector<16x28xf32>
    %73 = arith.mulf %64, %64 : vector<16x32xf32>
    %cst_51 = arith.constant dense<0.000000e+00> : vector<16x28xf32>
    %74 = tpu.matmul %73, %68, %cst_51 {dimension_numbers = #tpu.dot_dimension_numbers<[1], [0], [0], [1], [0, 0, 1, 1], [], []>} : vector<16x32xf32>, vector<32x28xf32>, vector<16x28xf32> -> vector<16x28xf32>
    %cst_52 = arith.constant dense<0.000000e+00> : vector<16x28xf32>
    %75 = tpu.matmul %67, %74, %cst_52 {dimension_numbers = #tpu.dot_dimension_numbers<[1], [0], [0], [1], [0, 0, 1, 1], [], []>} : vector<16x16xf32>, vector<16x28xf32>, vector<16x28xf32> -> vector<16x28xf32>
    %76 = arith.mulf %66, %66 : vector<16x32xf32>
    %cst_53 = arith.constant dense<0.000000e+00> : vector<16x28xf32>
    %77 = tpu.matmul %76, %68, %cst_53 {dimension_numbers = #tpu.dot_dimension_numbers<[1], [0], [0], [1], [0, 0, 1, 1], [], []>} : vector<16x32xf32>, vector<32x28xf32>, vector<16x28xf32> -> vector<16x28xf32>
    %cst_54 = arith.constant dense<0.000000e+00> : vector<16x28xf32>
    %78 = tpu.matmul %67, %77, %cst_54 {dimension_numbers = #tpu.dot_dimension_numbers<[1], [0], [0], [1], [0, 0, 1, 1], [], []>} : vector<16x16xf32>, vector<16x28xf32>, vector<16x28xf32> -> vector<16x28xf32>
    %79 = arith.mulf %64, %66 : vector<16x32xf32>
    %cst_55 = arith.constant dense<0.000000e+00> : vector<16x28xf32>
    %80 = tpu.matmul %79, %68, %cst_55 {dimension_numbers = #tpu.dot_dimension_numbers<[1], [0], [0], [1], [0, 0, 1, 1], [], []>} : vector<16x32xf32>, vector<32x28xf32>, vector<16x28xf32> -> vector<16x28xf32>
    %cst_56 = arith.constant dense<0.000000e+00> : vector<16x28xf32>
    %81 = tpu.matmul %67, %80, %cst_56 {dimension_numbers = #tpu.dot_dimension_numbers<[1], [0], [0], [1], [0, 0, 1, 1], [], []>} : vector<16x16xf32>, vector<16x28xf32>, vector<16x28xf32> -> vector<16x28xf32>
    %82 = arith.mulf %70, %70 : vector<16x28xf32>
    %83 = arith.mulf %72, %72 : vector<16x28xf32>
    %84 = arith.mulf %70, %72 : vector<16x28xf32>
    %85 = arith.subf %75, %82 : vector<16x28xf32>
    %86 = arith.subf %78, %83 : vector<16x28xf32>
    %87 = arith.subf %81, %84 : vector<16x28xf32>
    %cst_57 = arith.constant 2.000000e+00 : f32
    %88 = vector.broadcast %cst_57 : f32 to vector<16x28xf32>
    %89 = arith.mulf %88, %87 : vector<16x28xf32>
    %cst_58 = arith.constant 8.99999984E-4 : f32
    %90 = vector.broadcast %cst_58 : f32 to vector<16x28xf32>
    %91 = arith.addf %89, %90 : vector<16x28xf32>
    %92 = arith.addf %85, %86 : vector<16x28xf32>
    %cst_59 = arith.constant 8.99999984E-4 : f32
    %93 = vector.broadcast %cst_59 : f32 to vector<16x28xf32>
    %94 = arith.addf %92, %93 : vector<16x28xf32>
    %95 = arith.divf %91, %94 : vector<16x28xf32>
    %cst_60 = arith.constant 2.000000e+00 : f32
    %96 = vector.broadcast %cst_60 : f32 to vector<16x28xf32>
    %97 = arith.mulf %96, %84 : vector<16x28xf32>
    %cst_61 = arith.constant 9.99999974E-5 : f32
    %98 = vector.broadcast %cst_61 : f32 to vector<16x28xf32>
    %99 = arith.addf %97, %98 : vector<16x28xf32>
    %100 = arith.addf %82, %83 : vector<16x28xf32>
    %cst_62 = arith.constant 9.99999974E-5 : f32
    %101 = vector.broadcast %cst_62 : f32 to vector<16x28xf32>
    %102 = arith.addf %100, %101 : vector<16x28xf32>
    %103 = arith.divf %99, %102 : vector<16x28xf32>
    %104 = arith.mulf %103, %95 : vector<16x28xf32>
    %105 = vector.shape_cast %104 : vector<16x28xf32> to vector<1x16x28xf32>
    %cst_63 = arith.constant dense<0.000000e+00> : vector<1xf32>
    %106 = vector.multi_reduction <add>, %105, %cst_63 [1, 2] : vector<1x16x28xf32> to vector<1xf32>
    %107 = vector.shape_cast %106 : vector<1xf32> to vector<1x1x1xf32>
    %108 = vector.extract %107[0, 0, 0] : f32 from vector<1x1x1xf32>
    %109 = vector.broadcast %108 : f32 to vector<1x1xf32>
    %110 = vector.shape_cast %95 : vector<16x28xf32> to vector<1x16x28xf32>
    %cst_64 = arith.constant dense<0.000000e+00> : vector<1xf32>
    %111 = vector.multi_reduction <add>, %110, %cst_64 [1, 2] : vector<1x16x28xf32> to vector<1xf32>
    %112 = vector.shape_cast %111 : vector<1xf32> to vector<1x1x1xf32>
    %113 = vector.extract %112[0, 0, 0] : f32 from vector<1x1x1xf32>
    %114 = vector.broadcast %113 : f32 to vector<1x1xf32>
    %c0_65 = arith.constant 0 : index
    %c0_66 = arith.constant 0 : index
    %115 = vector.load %arg21[%c0_65, %c0_66] : memref<1x1xf32, #tpu.memory_space<vmem>>, vector<1x1xf32>
    %116 = arith.addf %115, %109 : vector<1x1xf32>
    %c0_67 = arith.constant 0 : index
    %c0_68 = arith.constant 0 : index
    %117 = vector.load %arg21[%c0_67, %c0_68] : memref<1x1xf32, #tpu.memory_space<vmem>>, vector<1x1xf32>
    tpu.vector_store %arg21[%c0_67, %c0_68], %116 {strides = array<i32>} : memref<1x1xf32, #tpu.memory_space<vmem>>, vector<1x1xf32>,
    %c0_69 = arith.constant 0 : index
    %c0_70 = arith.constant 0 : index
    %118 = vector.load %arg24[%c0_69, %c0_70] : memref<1x1xf32, #tpu.memory_space<vmem>>, vector<1x1xf32>
    %119 = arith.addf %118, %114 : vector<1x1xf32>
    %c0_71 = arith.constant 0 : index
    %c0_72 = arith.constant 0 : index
    %120 = vector.load %arg24[%c0_71, %c0_72] : memref<1x1xf32, #tpu.memory_space<vmem>>, vector<1x1xf32>
    tpu.vector_store %arg24[%c0_71, %c0_72], %119 {strides = array<i32>} : memref<1x1xf32, #tpu.memory_space<vmem>>, vector<1x1xf32>,
    %c0_73 = arith.constant 0 : index
    %c0_74 = arith.constant 0 : index
    %121 = vector.load %arg11[%c0_73, %c0_74] : memref<8x16xf32, #tpu.memory_space<vmem>>, vector<8x16xf32>
    %c0_75 = arith.constant 0 : index
    %c0_76 = arith.constant 0 : index
    %122 = vector.load %arg13[%c0_75, %c0_76] : memref<32x16xf32, #tpu.memory_space<vmem>>, vector<32x16xf32>
    %cst_77 = arith.constant dense<0.000000e+00> : vector<16x16xf32>
    %123 = tpu.matmul %64, %122, %cst_77 {dimension_numbers = #tpu.dot_dimension_numbers<[1], [0], [0], [1], [0, 0, 1, 1], [], []>} : vector<16x32xf32>, vector<32x16xf32>, vector<16x16xf32> -> vector<16x16xf32>
    %cst_78 = arith.constant dense<0.000000e+00> : vector<8x16xf32>
    %124 = tpu.matmul %121, %123, %cst_78 {dimension_numbers = #tpu.dot_dimension_numbers<[1], [0], [0], [1], [0, 0, 1, 1], [], []>} : vector<8x16xf32>, vector<16x16xf32>, vector<8x16xf32> -> vector<8x16xf32>
    %cst_79 = arith.constant dense<0.000000e+00> : vector<16x16xf32>
    %125 = tpu.matmul %66, %122, %cst_79 {dimension_numbers = #tpu.dot_dimension_numbers<[1], [0], [0], [1], [0, 0, 1, 1], [], []>} : vector<16x32xf32>, vector<32x16xf32>, vector<16x16xf32> -> vector<16x16xf32>
    %cst_80 = arith.constant dense<0.000000e+00> : vector<8x16xf32>
    %126 = tpu.matmul %121, %125, %cst_80 {dimension_numbers = #tpu.dot_dimension_numbers<[1], [0], [0], [1], [0, 0, 1, 1], [], []>} : vector<8x16xf32>, vector<16x16xf32>, vector<8x16xf32> -> vector<8x16xf32>
    %c0_81 = arith.constant 0 : index
    %c0_82 = arith.constant 0 : index
    %127 = vector.load %arg6[%c0_81, %c0_82] : memref<8x8xf32, #tpu.memory_space<vmem>>, vector<8x8xf32>
    %c0_83 = arith.constant 0 : index
    %c0_84 = arith.constant 0 : index
    %128 = vector.load %arg9[%c0_83, %c0_84] : memref<16x12xf32, #tpu.memory_space<vmem>>, vector<16x12xf32>
    %cst_85 = arith.constant dense<0.000000e+00> : vector<8x12xf32>
    %129 = tpu.matmul %124, %128, %cst_85 {dimension_numbers = #tpu.dot_dimension_numbers<[1], [0], [0], [1], [0, 0, 1, 1], [], []>} : vector<8x16xf32>, vector<16x12xf32>, vector<8x12xf32> -> vector<8x12xf32>
    %cst_86 = arith.constant dense<0.000000e+00> : vector<8x12xf32>
    %130 = tpu.matmul %127, %129, %cst_86 {dimension_numbers = #tpu.dot_dimension_numbers<[1], [0], [0], [1], [0, 0, 1, 1], [], []>} : vector<8x8xf32>, vector<8x12xf32>, vector<8x12xf32> -> vector<8x12xf32>
    %cst_87 = arith.constant dense<0.000000e+00> : vector<8x12xf32>
    %131 = tpu.matmul %126, %128, %cst_87 {dimension_numbers = #tpu.dot_dimension_numbers<[1], [0], [0], [1], [0, 0, 1, 1], [], []>} : vector<8x16xf32>, vector<16x12xf32>, vector<8x12xf32> -> vector<8x12xf32>
    %cst_88 = arith.constant dense<0.000000e+00> : vector<8x12xf32>
    %132 = tpu.matmul %127, %131, %cst_88 {dimension_numbers = #tpu.dot_dimension_numbers<[1], [0], [0], [1], [0, 0, 1, 1], [], []>} : vector<8x8xf32>, vector<8x12xf32>, vector<8x12xf32> -> vector<8x12xf32>
    %133 = arith.mulf %124, %124 : vector<8x16xf32>
    %cst_89 = arith.constant dense<0.000000e+00> : vector<8x12xf32>
    %134 = tpu.matmul %133, %128, %cst_89 {dimension_numbers = #tpu.dot_dimension_numbers<[1], [0], [0], [1], [0, 0, 1, 1], [], []>} : vector<8x16xf32>, vector<16x12xf32>, vector<8x12xf32> -> vector<8x12xf32>
    %cst_90 = arith.constant dense<0.000000e+00> : vector<8x12xf32>
    %135 = tpu.matmul %127, %134, %cst_90 {dimension_numbers = #tpu.dot_dimension_numbers<[1], [0], [0], [1], [0, 0, 1, 1], [], []>} : vector<8x8xf32>, vector<8x12xf32>, vector<8x12xf32> -> vector<8x12xf32>
    %136 = arith.mulf %126, %126 : vector<8x16xf32>
    %cst_91 = arith.constant dense<0.000000e+00> : vector<8x12xf32>
    %137 = tpu.matmul %136, %128, %cst_91 {dimension_numbers = #tpu.dot_dimension_numbers<[1], [0], [0], [1], [0, 0, 1, 1], [], []>} : vector<8x16xf32>, vector<16x12xf32>, vector<8x12xf32> -> vector<8x12xf32>
    %cst_92 = arith.constant dense<0.000000e+00> : vector<8x12xf32>
    %138 = tpu.matmul %127, %137, %cst_92 {dimension_numbers = #tpu.dot_dimension_numbers<[1], [0], [0], [1], [0, 0, 1, 1], [], []>} : vector<8x8xf32>, vector<8x12xf32>, vector<8x12xf32> -> vector<8x12xf32>
    %139 = arith.mulf %124, %126 : vector<8x16xf32>
    %cst_93 = arith.constant dense<0.000000e+00> : vector<8x12xf32>
    %140 = tpu.matmul %139, %128, %cst_93 {dimension_numbers = #tpu.dot_dimension_numbers<[1], [0], [0], [1], [0, 0, 1, 1], [], []>} : vector<8x16xf32>, vector<16x12xf32>, vector<8x12xf32> -> vector<8x12xf32>
    %cst_94 = arith.constant dense<0.000000e+00> : vector<8x12xf32>
    %141 = tpu.matmul %127, %140, %cst_94 {dimension_numbers = #tpu.dot_dimension_numbers<[1], [0], [0], [1], [0, 0, 1, 1], [], []>} : vector<8x8xf32>, vector<8x12xf32>, vector<8x12xf32> -> vector<8x12xf32>
    %142 = arith.mulf %130, %130 : vector<8x12xf32>
    %143 = arith.mulf %132, %132 : vector<8x12xf32>
    %144 = arith.mulf %130, %132 : vector<8x12xf32>
    %145 = arith.subf %135, %142 : vector<8x12xf32>
    %146 = arith.subf %138, %143 : vector<8x12xf32>
    %147 = arith.subf %141, %144 : vector<8x12xf32>
    %cst_95 = arith.constant 2.000000e+00 : f32
    %148 = vector.broadcast %cst_95 : f32 to vector<8x12xf32>
    %149 = arith.mulf %148, %147 : vector<8x12xf32>
    %cst_96 = arith.constant 8.99999984E-4 : f32
    %150 = vector.broadcast %cst_96 : f32 to vector<8x12xf32>
    %151 = arith.addf %149, %150 : vector<8x12xf32>
    %152 = arith.addf %145, %146 : vector<8x12xf32>
    %cst_97 = arith.constant 8.99999984E-4 : f32
    %153 = vector.broadcast %cst_97 : f32 to vector<8x12xf32>
    %154 = arith.addf %152, %153 : vector<8x12xf32>
    %155 = arith.divf %151, %154 : vector<8x12xf32>
    %cst_98 = arith.constant 2.000000e+00 : f32
    %156 = vector.broadcast %cst_98 : f32 to vector<8x12xf32>
    %157 = arith.mulf %156, %144 : vector<8x12xf32>
    %cst_99 = arith.constant 9.99999974E-5 : f32
    %158 = vector.broadcast %cst_99 : f32 to vector<8x12xf32>
    %159 = arith.addf %157, %158 : vector<8x12xf32>
    %160 = arith.addf %142, %143 : vector<8x12xf32>
    %cst_100 = arith.constant 9.99999974E-5 : f32
    %161 = vector.broadcast %cst_100 : f32 to vector<8x12xf32>
    %162 = arith.addf %160, %161 : vector<8x12xf32>
    %163 = arith.divf %159, %162 : vector<8x12xf32>
    %164 = arith.mulf %163, %155 : vector<8x12xf32>
    %165 = vector.shape_cast %164 : vector<8x12xf32> to vector<1x8x12xf32>
    %cst_101 = arith.constant dense<0.000000e+00> : vector<1xf32>
    %166 = vector.multi_reduction <add>, %165, %cst_101 [1, 2] : vector<1x8x12xf32> to vector<1xf32>
    %167 = vector.shape_cast %166 : vector<1xf32> to vector<1x1x1xf32>
    %168 = vector.extract %167[0, 0, 0] : f32 from vector<1x1x1xf32>
    %169 = vector.broadcast %168 : f32 to vector<1x1xf32>
    %170 = vector.shape_cast %155 : vector<8x12xf32> to vector<1x8x12xf32>
    %cst_102 = arith.constant dense<0.000000e+00> : vector<1xf32>
    %171 = vector.multi_reduction <add>, %170, %cst_102 [1, 2] : vector<1x8x12xf32> to vector<1xf32>
    %172 = vector.shape_cast %171 : vector<1xf32> to vector<1x1x1xf32>
    %173 = vector.extract %172[0, 0, 0] : f32 from vector<1x1x1xf32>
    %174 = vector.broadcast %173 : f32 to vector<1x1xf32>
    %c0_103 = arith.constant 0 : index
    %c0_104 = arith.constant 0 : index
    %175 = vector.load %arg22[%c0_103, %c0_104] : memref<1x1xf32, #tpu.memory_space<vmem>>, vector<1x1xf32>
    %176 = arith.addf %175, %169 : vector<1x1xf32>
    %c0_105 = arith.constant 0 : index
    %c0_106 = arith.constant 0 : index
    %177 = vector.load %arg22[%c0_105, %c0_106] : memref<1x1xf32, #tpu.memory_space<vmem>>, vector<1x1xf32>
    tpu.vector_store %arg22[%c0_105, %c0_106], %176 {strides = array<i32>} : memref<1x1xf32, #tpu.memory_space<vmem>>, vector<1x1xf32>,
    %c0_107 = arith.constant 0 : index
    %c0_108 = arith.constant 0 : index
    %178 = vector.load %arg25[%c0_107, %c0_108] : memref<1x1xf32, #tpu.memory_space<vmem>>, vector<1x1xf32>
    %179 = arith.addf %178, %174 : vector<1x1xf32>
    %c0_109 = arith.constant 0 : index
    %c0_110 = arith.constant 0 : index
    %180 = vector.load %arg25[%c0_109, %c0_110] : memref<1x1xf32, #tpu.memory_space<vmem>>, vector<1x1xf32>
    tpu.vector_store %arg25[%c0_109, %c0_110], %179 {strides = array<i32>} : memref<1x1xf32, #tpu.memory_space<vmem>>, vector<1x1xf32>,
    %c0_i32_111 = arith.constant 0 : i32
    %181 = arith.cmpi eq, %arg1, %c0_i32_111 : i32
    %182 = arith.extui %181 : i1 to i32
    %c0_i32_112 = arith.constant 0 : i32
    %183 = arith.cmpi ne, %182, %c0_i32_112 : i32
    scf.if %183 {
      %c0_113 = arith.constant 0 : index
      %c0_114 = arith.constant 0 : index
      %184 = vector.load %arg20[%c0_113, %c0_114] : memref<1x1xf32, #tpu.memory_space<vmem>>, vector<1x1xf32>
      %185 = vector.shape_cast %184 : vector<1x1xf32> to vector<1x1x1xf32>
      %c0_115 = arith.constant 0 : index
      %c0_116 = arith.constant 0 : index
      %c0_117 = arith.constant 0 : index
      %186 = vector.load %arg14[%c0_115, %c0_116, %c0_117] : memref<1x1x1xf32, #tpu.memory_space<vmem>>, vector<1x1x1xf32>
      tpu.vector_store %arg14[%c0_115, %c0_116, %c0_117], %185 {strides = array<i32>} : memref<1x1x1xf32, #tpu.memory_space<vmem>>, vector<1x1x1xf32>,
      %c0_118 = arith.constant 0 : index
      %c0_119 = arith.constant 0 : index
      %187 = vector.load %arg23[%c0_118, %c0_119] : memref<1x1xf32, #tpu.memory_space<vmem>>, vector<1x1xf32>
      %188 = vector.shape_cast %187 : vector<1x1xf32> to vector<1x1x1xf32>
      %c0_120 = arith.constant 0 : index
      %c0_121 = arith.constant 0 : index
      %c0_122 = arith.constant 0 : index
      %189 = vector.load %arg17[%c0_120, %c0_121, %c0_122] : memref<1x1x1xf32, #tpu.memory_space<vmem>>, vector<1x1x1xf32>
      tpu.vector_store %arg17[%c0_120, %c0_121, %c0_122], %188 {strides = array<i32>} : memref<1x1x1xf32, #tpu.memory_space<vmem>>, vector<1x1x1xf32>,
      %c0_123 = arith.constant 0 : index
      %c0_124 = arith.constant 0 : index
      %190 = vector.load %arg21[%c0_123, %c0_124] : memref<1x1xf32, #tpu.memory_space<vmem>>, vector<1x1xf32>
      %191 = vector.shape_cast %190 : vector<1x1xf32> to vector<1x1x1xf32>
      %c0_125 = arith.constant 0 : index
      %c0_126 = arith.constant 0 : index
      %c0_127 = arith.constant 0 : index
      %192 = vector.load %arg15[%c0_125, %c0_126, %c0_127] : memref<1x1x1xf32, #tpu.memory_space<vmem>>, vector<1x1x1xf32>
      tpu.vector_store %arg15[%c0_125, %c0_126, %c0_127], %191 {strides = array<i32>} : memref<1x1x1xf32, #tpu.memory_space<vmem>>, vector<1x1x1xf32>,
      %c0_128 = arith.constant 0 : index
      %c0_129 = arith.constant 0 : index
      %193 = vector.load %arg24[%c0_128, %c0_129] : memref<1x1xf32, #tpu.memory_space<vmem>>, vector<1x1xf32>
      %194 = vector.shape_cast %193 : vector<1x1xf32> to vector<1x1x1xf32>
      %c0_130 = arith.constant 0 : index
      %c0_131 = arith.constant 0 : index
      %c0_132 = arith.constant 0 : index
      %195 = vector.load %arg18[%c0_130, %c0_131, %c0_132] : memref<1x1x1xf32, #tpu.memory_space<vmem>>, vector<1x1x1xf32>
      tpu.vector_store %arg18[%c0_130, %c0_131, %c0_132], %194 {strides = array<i32>} : memref<1x1x1xf32, #tpu.memory_space<vmem>>, vector<1x1x1xf32>,
      %c0_133 = arith.constant 0 : index
      %c0_134 = arith.constant 0 : index
      %196 = vector.load %arg22[%c0_133, %c0_134] : memref<1x1xf32, #tpu.memory_space<vmem>>, vector<1x1xf32>
      %197 = vector.shape_cast %196 : vector<1x1xf32> to vector<1x1x1xf32>
      %c0_135 = arith.constant 0 : index
      %c0_136 = arith.constant 0 : index
      %c0_137 = arith.constant 0 : index
      %198 = vector.load %arg16[%c0_135, %c0_136, %c0_137] : memref<1x1x1xf32, #tpu.memory_space<vmem>>, vector<1x1x1xf32>
      tpu.vector_store %arg16[%c0_135, %c0_136, %c0_137], %197 {strides = array<i32>} : memref<1x1x1xf32, #tpu.memory_space<vmem>>, vector<1x1x1xf32>,
      %c0_138 = arith.constant 0 : index
      %c0_139 = arith.constant 0 : index
      %199 = vector.load %arg25[%c0_138, %c0_139] : memref<1x1xf32, #tpu.memory_space<vmem>>, vector<1x1xf32>
      %200 = vector.shape_cast %199 : vector<1x1xf32> to vector<1x1x1xf32>
      %c0_140 = arith.constant 0 : index
      %c0_141 = arith.constant 0 : index
      %c0_142 = arith.constant 0 : index
      %201 = vector.load %arg19[%c0_140, %c0_141, %c0_142] : memref<1x1x1xf32, #tpu.memory_space<vmem>>, vector<1x1x1xf32>
      tpu.vector_store %arg19[%c0_140, %c0_141, %c0_142], %200 {strides = array<i32>} : memref<1x1x1xf32, #tpu.memory_space<vmem>>, vector<1x1x1xf32>,
    } else {
    }
    return
  }
  func.func @transform_0(%arg0: i32, %arg1: i32) -> (i32, i32, i32) {
    %c1_i32 = arith.constant 1 : i32
    %0 = arith.muli %arg0, %c1_i32 : i32
    %1 = arith.addi %0, %arg1 : i32
    %c0_i32 = arith.constant 0 : i32
    %c0_i32_0 = arith.constant 0 : i32
    %c0_i32_1 = arith.constant 0 : i32
    return %1, %c0_i32, %c0_i32_0 : i32, i32, i32
  }
  func.func @transform_1(%arg0: i32, %arg1: i32) -> (i32, i32, i32) {
    %c1_i32 = arith.constant 1 : i32
    %0 = arith.muli %arg0, %c1_i32 : i32
    %1 = arith.addi %0, %arg1 : i32
    %c0_i32 = arith.constant 0 : i32
    %c0_i32_0 = arith.constant 0 : i32
    %c0_i32_1 = arith.constant 0 : i32
    return %1, %c0_i32, %c0_i32_0 : i32, i32, i32
  }
  func.func @transform_2(%arg0: i32, %arg1: i32) -> (i32, i32) {
    %c0_i32 = arith.constant 0 : i32
    %c0_i32_0 = arith.constant 0 : i32
    %c0_i32_1 = arith.constant 0 : i32
    return %c0_i32, %c0_i32_0 : i32, i32
  }
  func.func @transform_3(%arg0: i32, %arg1: i32) -> (i32, i32) {
    %c0_i32 = arith.constant 0 : i32
    %c0_i32_0 = arith.constant 0 : i32
    %c0_i32_1 = arith.constant 0 : i32
    return %c0_i32, %c0_i32_0 : i32, i32
  }
  func.func @transform_4(%arg0: i32, %arg1: i32) -> (i32, i32) {
    %c0_i32 = arith.constant 0 : i32
    %c0_i32_0 = arith.constant 0 : i32
    %c0_i32_1 = arith.constant 0 : i32
    return %c0_i32, %c0_i32_0 : i32, i32
  }
  func.func @transform_5(%arg0: i32, %arg1: i32) -> (i32, i32) {
    %c0_i32 = arith.constant 0 : i32
    %c0_i32_0 = arith.constant 0 : i32
    %c0_i32_1 = arith.constant 0 : i32
    return %c0_i32, %c0_i32_0 : i32, i32
  }
  func.func @transform_6(%arg0: i32, %arg1: i32) -> (i32, i32) {
    %c0_i32 = arith.constant 0 : i32
    %c0_i32_0 = arith.constant 0 : i32
    %c0_i32_1 = arith.constant 0 : i32
    return %c0_i32, %c0_i32_0 : i32, i32
  }
  func.func @transform_7(%arg0: i32, %arg1: i32) -> (i32, i32) {
    %c0_i32 = arith.constant 0 : i32
    %c0_i32_0 = arith.constant 0 : i32
    %c0_i32_1 = arith.constant 0 : i32
    return %c0_i32, %c0_i32_0 : i32, i32
  }
  func.func @transform_8(%arg0: i32, %arg1: i32) -> (i32, i32) {
    %c0_i32 = arith.constant 0 : i32
    %c0_i32_0 = arith.constant 0 : i32
    %c0_i32_1 = arith.constant 0 : i32
    return %c0_i32, %c0_i32_0 : i32, i32
  }
  func.func @transform_9(%arg0: i32, %arg1: i32) -> (i32, i32) {
    %c0_i32 = arith.constant 0 : i32
    %c0_i32_0 = arith.constant 0 : i32
    %c0_i32_1 = arith.constant 0 : i32
    return %c0_i32, %c0_i32_0 : i32, i32
  }
  func.func @transform_10(%arg0: i32, %arg1: i32) -> (i32, i32) {
    %c0_i32 = arith.constant 0 : i32
    %c0_i32_0 = arith.constant 0 : i32
    %c0_i32_1 = arith.constant 0 : i32
    return %c0_i32, %c0_i32_0 : i32, i32
  }
  func.func @transform_11(%arg0: i32, %arg1: i32) -> (i32, i32) {
    %c0_i32 = arith.constant 0 : i32
    %c0_i32_0 = arith.constant 0 : i32
    %c0_i32_1 = arith.constant 0 : i32
    return %c0_i32, %c0_i32_0 : i32, i32
  }
  func.func @transform_12(%arg0: i32, %arg1: i32) -> (i32, i32, i32) {
    %c0_i32 = arith.constant 0 : i32
    %c0_i32_0 = arith.constant 0 : i32
    %c0_i32_1 = arith.constant 0 : i32
    return %arg0, %c0_i32, %c0_i32_0 : i32, i32, i32
  }
  func.func @transform_13(%arg0: i32, %arg1: i32) -> (i32, i32, i32) {
    %c0_i32 = arith.constant 0 : i32
    %c0_i32_0 = arith.constant 0 : i32
    %c0_i32_1 = arith.constant 0 : i32
    return %arg0, %c0_i32, %c0_i32_0 : i32, i32, i32
  }
  func.func @transform_14(%arg0: i32, %arg1: i32) -> (i32, i32, i32) {
    %c0_i32 = arith.constant 0 : i32
    %c0_i32_0 = arith.constant 0 : i32
    %c0_i32_1 = arith.constant 0 : i32
    return %arg0, %c0_i32, %c0_i32_0 : i32, i32, i32
  }
  func.func @transform_15(%arg0: i32, %arg1: i32) -> (i32, i32, i32) {
    %c0_i32 = arith.constant 0 : i32
    %c0_i32_0 = arith.constant 0 : i32
    %c0_i32_1 = arith.constant 0 : i32
    return %arg0, %c0_i32, %c0_i32_0 : i32, i32, i32
  }
  func.func @transform_16(%arg0: i32, %arg1: i32) -> (i32, i32, i32) {
    %c0_i32 = arith.constant 0 : i32
    %c0_i32_0 = arith.constant 0 : i32
    %c0_i32_1 = arith.constant 0 : i32
    return %arg0, %c0_i32, %c0_i32_0 : i32, i32, i32
  }
  func.func @transform_17(%arg0: i32, %arg1: i32) -> (i32, i32, i32) {
    %c0_i32 = arith.constant 0 : i32
    %c0_i32_0 = arith.constant 0 : i32
    %c0_i32_1 = arith.constant 0 : i32
    return %arg0, %c0_i32, %c0_i32_0 : i32, i32, i32
  }
}

module attributes {stable_mosaic.version = 11 : i64} {
  func.func @kernel(%arg0: i32, %arg1: i32, %arg2: memref<16x128xf32, #tpu.memory_space<vmem>>, %arg3: memref<16x128xf32, #tpu.memory_space<vmem>>, %arg4: memref<1x1x1xf32, #tpu.memory_space<vmem>>, %arg5: memref<8x128xf32, #tpu.memory_space<vmem>>) attributes {dimension_semantics = [#tpu.dimension_semantics<parallel>, #tpu.dimension_semantics<arbitrary>], iteration_bounds = array<i64: 1, 1>, scalar_prefetch = 0 : i64, scratch_operands = 1 : i64, tpu.core_type = #tpu.core_type<tc>, window_params = [{transform_indices = @transform_0, window_bounds = array<i64: 16, 128>}, {transform_indices = @transform_1, window_bounds = array<i64: 16, 128>}, {transform_indices = @transform_2, window_bounds = array<i64: 1, 1, 1>}]} {
    %c0_i32 = arith.constant 0 : i32
    %0 = arith.cmpi eq, %arg1, %c0_i32 : i32
    %1 = arith.extui %0 : i1 to i32
    %c0_i32_0 = arith.constant 0 : i32
    %2 = arith.cmpi ne, %1, %c0_i32_0 : i32
    scf.if %2 {
      %cst_10 = arith.constant 0.000000e+00 : f32
      %15 = vector.broadcast %cst_10 : f32 to vector<8x128xf32>
      %c0_11 = arith.constant 0 : index
      %c0_12 = arith.constant 0 : index
      %16 = vector.load %arg5[%c0_11, %c0_12] : memref<8x128xf32, #tpu.memory_space<vmem>>, vector<8x128xf32>
      tpu.vector_store %arg5[%c0_11, %c0_12], %15 {strides = array<i32>} : memref<8x128xf32, #tpu.memory_space<vmem>>, vector<8x128xf32>,
    } else {
    }
    %c0 = arith.constant 0 : index
    %c0_1 = arith.constant 0 : index
    %3 = vector.load %arg2[%c0, %c0_1] : memref<16x128xf32, #tpu.memory_space<vmem>>, vector<16x128xf32>
    %c0_2 = arith.constant 0 : index
    %c0_3 = arith.constant 0 : index
    %4 = vector.load %arg3[%c0_2, %c0_3] : memref<16x128xf32, #tpu.memory_space<vmem>>, vector<16x128xf32>
    %5 = arith.subf %3, %4 : vector<16x128xf32>
    %6 = arith.mulf %5, %5 : vector<16x128xf32>
    %c0_4 = arith.constant 0 : index
    %c0_5 = arith.constant 0 : index
    %7 = vector.load %arg5[%c0_4, %c0_5] : memref<8x128xf32, #tpu.memory_space<vmem>>, vector<8x128xf32>
    %8 = vector.shape_cast %6 : vector<16x128xf32> to vector<2x8x128xf32>
    %cst = arith.constant dense<0.000000e+00> : vector<8x128xf32>
    %9 = vector.multi_reduction <add>, %8, %cst [0] : vector<2x8x128xf32> to vector<8x128xf32>
    %10 = arith.addf %7, %9 : vector<8x128xf32>
    %c0_6 = arith.constant 0 : index
    %c0_7 = arith.constant 0 : index
    %11 = vector.load %arg5[%c0_6, %c0_7] : memref<8x128xf32, #tpu.memory_space<vmem>>, vector<8x128xf32>
    tpu.vector_store %arg5[%c0_6, %c0_7], %10 {strides = array<i32>} : memref<8x128xf32, #tpu.memory_space<vmem>>, vector<8x128xf32>,
    %c0_i32_8 = arith.constant 0 : i32
    %12 = arith.cmpi eq, %arg1, %c0_i32_8 : i32
    %13 = arith.extui %12 : i1 to i32
    %c0_i32_9 = arith.constant 0 : i32
    %14 = arith.cmpi ne, %13, %c0_i32_9 : i32
    scf.if %14 {
      %c0_10 = arith.constant 0 : index
      %c0_11 = arith.constant 0 : index
      %15 = vector.load %arg5[%c0_10, %c0_11] : memref<8x128xf32, #tpu.memory_space<vmem>>, vector<8x128xf32>
      %16 = vector.shape_cast %15 : vector<8x128xf32> to vector<1x8x128xf32>
      %cst_12 = arith.constant dense<0.000000e+00> : vector<1xf32>
      %17 = vector.multi_reduction <add>, %16, %cst_12 [1, 2] : vector<1x8x128xf32> to vector<1xf32>
      %18 = vector.shape_cast %17 : vector<1xf32> to vector<1x1x1xf32>
      %19 = vector.extract %18[0, 0, 0] : f32 from vector<1x1x1xf32>
      %20 = vector.broadcast %19 : f32 to vector<1x1xf32>
      %21 = vector.shape_cast %20 : vector<1x1xf32> to vector<1x1x1xf32>
      %c0_13 = arith.constant 0 : index
      %c0_14 = arith.constant 0 : index
      %c0_15 = arith.constant 0 : index
      %22 = vector.load %arg4[%c0_13, %c0_14, %c0_15] : memref<1x1x1xf32, #tpu.memory_space<vmem>>, vector<1x1x1xf32>
      tpu.vector_store %arg4[%c0_13, %c0_14, %c0_15], %21 {strides = array<i32>} : memref<1x1x1xf32, #tpu.memory_space<vmem>>, vector<1x1x1xf32>,
    } else {
    }
    return
  }
  func.func @transform_0(%arg0: i32, %arg1: i32) -> (i32, i32) {
    %c1_i32 = arith.constant 1 : i32
    %0 = arith.muli %arg0, %c1_i32 : i32
    %1 = arith.addi %0, %arg1 : i32
    %c0_i32 = arith.constant 0 : i32
    %c0_i32_0 = arith.constant 0 : i32
    return %1, %c0_i32 : i32, i32
  }
  func.func @transform_1(%arg0: i32, %arg1: i32) -> (i32, i32) {
    %c1_i32 = arith.constant 1 : i32
    %0 = arith.muli %arg0, %c1_i32 : i32
    %1 = arith.addi %0, %arg1 : i32
    %c0_i32 = arith.constant 0 : i32
    %c0_i32_0 = arith.constant 0 : i32
    return %1, %c0_i32 : i32, i32
  }
  func.func @transform_2(%arg0: i32, %arg1: i32) -> (i32, i32, i32) {
    %c0_i32 = arith.constant 0 : i32
    %c0_i32_0 = arith.constant 0 : i32
    %c0_i32_1 = arith.constant 0 : i32
    return %arg0, %c0_i32, %c0_i32_0 : i32, i32, i32
  }
}

module attributes {stable_mosaic.version = 11 : i64} {
  func.func @kernel(%arg0: i32, %arg1: i32, %arg2: memref<8x128xf32, #tpu.memory_space<vmem>>, %arg3: memref<8x128xf32, #tpu.memory_space<vmem>>, %arg4: memref<1x1x1xf32, #tpu.memory_space<vmem>>, %arg5: memref<8x128xf32, #tpu.memory_space<vmem>>) attributes {dimension_semantics = [#tpu.dimension_semantics<parallel>, #tpu.dimension_semantics<arbitrary>], iteration_bounds = array<i64: 1, 1>, scalar_prefetch = 0 : i64, scratch_operands = 1 : i64, tpu.core_type = #tpu.core_type<tc>, window_params = [{transform_indices = @transform_0, window_bounds = array<i64: 8, 128>}, {transform_indices = @transform_1, window_bounds = array<i64: 8, 128>}, {transform_indices = @transform_2, window_bounds = array<i64: 1, 1, 1>}]} {
    %c0_i32 = arith.constant 0 : i32
    %0 = arith.cmpi eq, %arg1, %c0_i32 : i32
    %1 = arith.extui %0 : i1 to i32
    %c0_i32_0 = arith.constant 0 : i32
    %2 = arith.cmpi ne, %1, %c0_i32_0 : i32
    scf.if %2 {
      %cst_11 = arith.constant 0.000000e+00 : f32
      %25 = vector.broadcast %cst_11 : f32 to vector<8x128xf32>
      %c0_12 = arith.constant 0 : index
      %c0_13 = arith.constant 0 : index
      %26 = vector.load %arg5[%c0_12, %c0_13] : memref<8x128xf32, #tpu.memory_space<vmem>>, vector<8x128xf32>
      tpu.vector_store %arg5[%c0_12, %c0_13], %25 {strides = array<i32>} : memref<8x128xf32, #tpu.memory_space<vmem>>, vector<8x128xf32>,
    } else {
    }
    %c0 = arith.constant 0 : index
    %c0_1 = arith.constant 0 : index
    %3 = vector.load %arg2[%c0, %c0_1] : memref<8x128xf32, #tpu.memory_space<vmem>>, vector<8x128xf32>
    %c0_2 = arith.constant 0 : index
    %c0_3 = arith.constant 0 : index
    %4 = vector.load %arg3[%c0_2, %c0_3] : memref<8x128xf32, #tpu.memory_space<vmem>>, vector<8x128xf32>
    %5 = arith.subf %3, %4 : vector<8x128xf32>
    %6 = arith.mulf %5, %5 : vector<8x128xf32>
    %c1_i32 = arith.constant 1 : i32
    %7 = arith.muli %arg0, %c1_i32 : i32
    %8 = arith.addi %7, %arg1 : i32
    %9 = tpu.iota {dimensions = array<i32: 0>} : vector<8x128xi32>
    %c8_i32 = arith.constant 8 : i32
    %10 = arith.muli %8, %c8_i32 : i32
    %11 = vector.broadcast %10 : i32 to vector<8x128xi32>
    %12 = arith.addi %9, %11 : vector<8x128xi32>
    %c4_i32 = arith.constant 4 : i32
    %13 = vector.broadcast %c4_i32 : i32 to vector<8x128xi32>
    %14 = arith.cmpi slt, %12, %13 : vector<8x128xi32>
    %cst = arith.constant 0.000000e+00 : f32
    %15 = vector.broadcast %cst : f32 to vector<8x128xf32>
    %16 = arith.select %14, %6, %15 : vector<8x128xi1>, vector<8x128xf32>
    %c0_4 = arith.constant 0 : index
    %c0_5 = arith.constant 0 : index
    %17 = vector.load %arg5[%c0_4, %c0_5] : memref<8x128xf32, #tpu.memory_space<vmem>>, vector<8x128xf32>
    %18 = vector.shape_cast %16 : vector<8x128xf32> to vector<1x8x128xf32>
    %cst_6 = arith.constant dense<0.000000e+00> : vector<8x128xf32>
    %19 = vector.multi_reduction <add>, %18, %cst_6 [0] : vector<1x8x128xf32> to vector<8x128xf32>
    %20 = arith.addf %17, %19 : vector<8x128xf32>
    %c0_7 = arith.constant 0 : index
    %c0_8 = arith.constant 0 : index
    %21 = vector.load %arg5[%c0_7, %c0_8] : memref<8x128xf32, #tpu.memory_space<vmem>>, vector<8x128xf32>
    tpu.vector_store %arg5[%c0_7, %c0_8], %20 {strides = array<i32>} : memref<8x128xf32, #tpu.memory_space<vmem>>, vector<8x128xf32>,
    %c0_i32_9 = arith.constant 0 : i32
    %22 = arith.cmpi eq, %arg1, %c0_i32_9 : i32
    %23 = arith.extui %22 : i1 to i32
    %c0_i32_10 = arith.constant 0 : i32
    %24 = arith.cmpi ne, %23, %c0_i32_10 : i32
    scf.if %24 {
      %c0_11 = arith.constant 0 : index
      %c0_12 = arith.constant 0 : index
      %25 = vector.load %arg5[%c0_11, %c0_12] : memref<8x128xf32, #tpu.memory_space<vmem>>, vector<8x128xf32>
      %26 = vector.shape_cast %25 : vector<8x128xf32> to vector<1x8x128xf32>
      %cst_13 = arith.constant dense<0.000000e+00> : vector<1xf32>
      %27 = vector.multi_reduction <add>, %26, %cst_13 [1, 2] : vector<1x8x128xf32> to vector<1xf32>
      %28 = vector.shape_cast %27 : vector<1xf32> to vector<1x1x1xf32>
      %29 = vector.extract %28[0, 0, 0] : f32 from vector<1x1x1xf32>
      %30 = vector.broadcast %29 : f32 to vector<1x1xf32>
      %31 = vector.shape_cast %30 : vector<1x1xf32> to vector<1x1x1xf32>
      %c0_14 = arith.constant 0 : index
      %c0_15 = arith.constant 0 : index
      %c0_16 = arith.constant 0 : index
      %32 = vector.load %arg4[%c0_14, %c0_15, %c0_16] : memref<1x1x1xf32, #tpu.memory_space<vmem>>, vector<1x1x1xf32>
      tpu.vector_store %arg4[%c0_14, %c0_15, %c0_16], %31 {strides = array<i32>} : memref<1x1x1xf32, #tpu.memory_space<vmem>>, vector<1x1x1xf32>,
    } else {
    }
    return
  }
  func.func @transform_0(%arg0: i32, %arg1: i32) -> (i32, i32) {
    %c1_i32 = arith.constant 1 : i32
    %0 = arith.muli %arg0, %c1_i32 : i32
    %1 = arith.addi %0, %arg1 : i32
    %c0_i32 = arith.constant 0 : i32
    %c0_i32_0 = arith.constant 0 : i32
    return %1, %c0_i32 : i32, i32
  }
  func.func @transform_1(%arg0: i32, %arg1: i32) -> (i32, i32) {
    %c1_i32 = arith.constant 1 : i32
    %0 = arith.muli %arg0, %c1_i32 : i32
    %1 = arith.addi %0, %arg1 : i32
    %c0_i32 = arith.constant 0 : i32
    %c0_i32_0 = arith.constant 0 : i32
    return %1, %c0_i32 : i32, i32
  }
  func.func @transform_2(%arg0: i32, %arg1: i32) -> (i32, i32, i32) {
    %c0_i32 = arith.constant 0 : i32
    %c0_i32_0 = arith.constant 0 : i32
    %c0_i32_1 = arith.constant 0 : i32
    return %arg0, %c0_i32, %c0_i32_0 : i32, i32, i32
  }
}

</mosaic_0001>

<llo_original>
// kernel: entropy_mse_loss.6
$region0: #{entropy_mse_loss.6}
  #allocation0 [shape = 'u32[]', space=smem, size = 0x4, offset = 0x4, fixed_abs, tag = 'smem constant byte address 0x4 - core index']
  #allocation1 [shape = 'u32[144,128]{1,0:T(1,128)}', space=vmem, size = 0x12000, scoped, tag = 'internal scratch']
  #allocation2 [shape = 'f32[8,128]{1,0:T(8,128)}', space=vmem, size = 0x1000, scoped, tag = 'scratch operand']
  %s0 = inlined_call_operand.vmem [shape: f32[16,128], index: 0, kind: input, shape index: {}]
  %s1 = inlined_call_operand.vmem [shape: f32[16,128], index: 1, kind: input, shape index: {}]
  %s2 = inlined_call_operand.hbm [shape: f32[1,1,1], index: 2, kind: output, shape index: {}]
  %s3 = sld [smem:[#allocation0]]
  $region26: #{entropy_mse_loss.6} parent=0
    _
  %s5 = ssub.s32 1, %s3
  %s6 = scalar_select 0, %s5, %s3
  $region1: #{entropy_mse_loss.6} parent=0
    #allocation3 [shape = 'u8[512]{0}', space=vmem, size = 0x400, scoped, tag = 'output window, operand 0, single buffered']
    #allocation4 [shape = 's32[1]{0}', space=sflag, size = 0x4, scoped, tag = 'scoped memory for entropy_mse_loss.6']
    %7 = vsyncpa [#allocation4], 0
    // Predicated region
    $region2: #{entropy_mse_loss.6} parent=1 // pred_check
      _
    $region3: #{entropy_mse_loss.6} parent=1 // pred_check_branch
      %9 = sbr.rel (0) target = $region5
    $region4: #{entropy_mse_loss.6} parent=1 // pred_region
      %s10 = sadd.s32 0, 0
      %s11 = smul.u32 2, %s10
      %p12 = scmp.lt.s32.totalorder %s11, 1
      %s13 = scalar_select %p12, %s11, 1
      %s14 = smul.addr %s13, 8
      %s15 = scalar_lea.vmem %s0, %s14
      %s16 = sadd.s32 0, 0
      %s17 = smul.u32 2, %s16
    $region5: #{entropy_mse_loss.6} parent=1 // pred_fallthru
      _
    // Predicated region
    $region6: #{entropy_mse_loss.6} parent=1 // pred_check
      _
    $region7: #{entropy_mse_loss.6} parent=1 // pred_check_branch
      %19 = sbr.rel (0) target = $region9
    $region8: #{entropy_mse_loss.6} parent=1 // pred_region
      %s20 = sadd.s32 0, 0
      %s21 = smul.u32 2, %s20
      %p22 = scmp.lt.s32.totalorder %s21, 1
      %s23 = scalar_select %p22, %s21, 1
      %s24 = smul.addr %s23, 8
      %s25 = scalar_lea.vmem %s1, %s24
      %s26 = sadd.s32 0, 0
      %s27 = smul.u32 2, %s26
    $region9: #{entropy_mse_loss.6} parent=1 // pred_fallthru
      _
    %s28 = sadd.s32 0, 0
    %s29 = smul.u32 2, %s28
    %p30 = scmp.lt.s32.totalorder %s29, 1
    %s31 = scalar_select %p30, %s29, 1
    %s32 = smul.addr %s31, 8
    %s33 = scalar_lea.vmem %s0, %s32
    %s34 = sadd.s32 0, 0
    %s35 = smul.u32 2, %s34
    %p36 = scmp.lt.s32.totalorder %s35, 1
    %s37 = scalar_select %p36, %s35, 1
    %s38 = smul.addr %s37, 8
    %s39 = scalar_lea.vmem %s1, %s38
    %s40 = sadd.s32 0, 0
    %s41 = smul.u32 2, %s40
    %p42 = scmp.lt.s32.totalorder %s41, 1
    %s43 = scalar_select %p42, %s41, 1
    %s44 = smul.addr %s43, 8
    %s45 = scalar_lea.vmem %s0, %s44
    %s46 = sadd.s32 0, 0
    %s47 = smul.u32 2, %s46
    %s48 = sadd.s32 0, 0
    %s49 = smul.u32 2, %s48
    %p50 = scmp.lt.s32.totalorder %s49, 1
    %s51 = scalar_select %p50, %s49, 1
    %s52 = smul.addr %s51, 8
    %s53 = scalar_lea.vmem %s1, %s52
    %s54 = sadd.s32 0, 0
    %s55 = smul.u32 2, %s54
    %p56 = scmp.eq.s32.totalorder 0, 0
    // Predicated region
    $region10: #{entropy_mse_loss.6} parent=1 // pred_check
      %p57 = pneg %p56
    $region11: #{entropy_mse_loss.6} parent=1 // pred_check_branch
      %59 = sbr.rel (%p57) target = $region13
    $region12: #{entropy_mse_loss.6} parent=1 // pred_region
      %60 = vst [vmem:[#allocation2] sm:$0xff] 0.0
    $region13: #{entropy_mse_loss.6} parent=1 // pred_fallthru
      _
    %v61 = vld [vmem:[%s45] sm:$0xff]
    %v62 = vld [vmem:[%s45 + $0x8] sm:$0xff]
    %v63 = vld [vmem:[%s53] sm:$0xff]
    %v64 = vld [vmem:[%s53 + $0x8] sm:$0xff]
    %v65 = vsub.f32 %v61, %v63
    %v66 = vsub.f32 %v62, %v64
    %v67 = vmul.f32 %v65, %v65
    %v68 = vmul.f32 %v66, %v66
    %v69 = vld [vmem:[#allocation2] sm:$0xff]
    %v70 = vadd.f32 %v67, %v68
    %v71 = vadd.f32 %v69, %v70
    %72 = vst [vmem:[#allocation2] sm:$0xff] %v71
    // Predicated region
    $region14: #{entropy_mse_loss.6} parent=1 // pred_check
      %p73 = pneg %p56
    $region15: #{entropy_mse_loss.6} parent=1 // pred_check_branch
      %75 = sbr.rel (%p73) target = $region17
    $region16: #{entropy_mse_loss.6} parent=1 // pred_region
      %v76 = vld [vmem:[#allocation2] sm:$0xff]
      %77 = vadd.xlane.f32.xlu0 %v76
      %v78 = vpop.xlane.xlu0 %77
      %v79 = vrot.slane %v78, 4
      %v80 = vadd.f32 %v78, %v79
      %v81 = vrot.slane %v80, 2
      %v82 = vadd.f32 %v80, %v81
      %v83 = vrot.slane %v82, 1
      %v84 = vadd.f32 %v82, %v83
      %s85 = vtos %v84
      %v86 = vstv %s85
      %vm87 = vcmask 0
      %88 = vst.msk [vmem:[#allocation3] sm:$0x1] %vm87, %v86
    $region17: #{entropy_mse_loss.6} parent=1 // pred_fallthru
      _
    // Predicated region
    $region18: #{entropy_mse_loss.6} parent=1 // pred_check
      _
    $region19: #{entropy_mse_loss.6} parent=1 // pred_check_branch
      %90 = sbr.rel (0) target = $region21
    $region20: #{entropy_mse_loss.6} parent=1 // pred_region
      %s92 = ssub.s32 16, 16
      %93 = vsyncadd [#allocation4], %s92
      %s95 = sshll.u32 [#allocation3], 4
      %s96 = int_to_ptr.vmem [resolvable:$true] %s95
      %98 = dma.vmem_to_hbm [thread:$0]  %s96, 16, %s2, [#allocation4]
    $region21: #{entropy_mse_loss.6} parent=1 // pred_fallthru
      _
    // Predicated region
    $region22: #{entropy_mse_loss.6} parent=1 // pred_check
      _
    $region23: #{entropy_mse_loss.6} parent=1 // pred_check_branch
      %100 = sbr.rel (0) target = $region25
    $region24: #{entropy_mse_loss.6} parent=1 // pred_region
      %101 = dma.done [#allocation4], 16
    $region25: #{entropy_mse_loss.6} parent=1 // pred_fallthru
      _
    %102 = vsyncpa [#allocation4], 1

// kernel: entropy_mse_loss.7
$region0: #{entropy_mse_loss.7}
  #allocation0 [shape = 'u32[]', space=smem, size = 0x4, offset = 0x4, fixed_abs, tag = 'smem constant byte address 0x4 - core index']
  #allocation1 [shape = 'u32[144,128]{1,0:T(1,128)}', space=vmem, size = 0x12000, scoped, tag = 'internal scratch']
  #allocation2 [shape = 'f32[8,128]{1,0:T(8,128)}', space=vmem, size = 0x1000, scoped, tag = 'scratch operand']
  %s0 = inlined_call_operand.vmem [shape: f32[4,128], index: 0, kind: input, shape index: {}]
  %s1 = inlined_call_operand.vmem [shape: f32[4,128], index: 1, kind: input, shape index: {}]
  %s2 = inlined_call_operand.hbm [shape: f32[1,1,1], index: 2, kind: output, shape index: {}]
  %s3 = sld [smem:[#allocation0]]
  $region26: #{entropy_mse_loss.7} parent=0
    _
  %s5 = ssub.s32 1, %s3
  %s6 = scalar_select 0, %s5, %s3
  $region1: #{entropy_mse_loss.7} parent=0
    #allocation3 [shape = 'u8[512]{0}', space=vmem, size = 0x400, scoped, tag = 'output window, operand 0, single buffered']
    #allocation4 [shape = 's32[1]{0}', space=sflag, size = 0x4, scoped, tag = 'scoped memory for entropy_mse_loss.7']
    %7 = vsyncpa [#allocation4], 0
    // Predicated region
    $region2: #{entropy_mse_loss.7} parent=1 // pred_check
      _
    $region3: #{entropy_mse_loss.7} parent=1 // pred_check_branch
      %9 = sbr.rel (0) target = $region5
    $region4: #{entropy_mse_loss.7} parent=1 // pred_region
      %s10 = sadd.s32 0, 0
      %s11 = smul.u32 2, %s10
      %s12 = ssub.s32 1, %s11
      %s13 = smul.u32 64, %s12
      %p14 = scmp.lt.s32.totalorder %s11, 0
      %s15 = scalar_select %p14, %s11, 0
      %s16 = smul.addr %s15, 4
      %s17 = scalar_lea.vmem %s0, %s16
      %s18 = sadd.s32 0, 0
      %s19 = smul.u32 2, %s18
      %s20 = ssub.s32 1, %s19
      %s21 = smul.u32 64, %s20
    $region5: #{entropy_mse_loss.7} parent=1 // pred_fallthru
      _
    // Predicated region
    $region6: #{entropy_mse_loss.7} parent=1 // pred_check
      _
    $region7: #{entropy_mse_loss.7} parent=1 // pred_check_branch
      %23 = sbr.rel (0) target = $region9
    $region8: #{entropy_mse_loss.7} parent=1 // pred_region
      %s24 = sadd.s32 0, 0
      %s25 = smul.u32 2, %s24
      %s26 = ssub.s32 1, %s25
      %s27 = smul.u32 64, %s26
      %p28 = scmp.lt.s32.totalorder %s25, 0
      %s29 = scalar_select %p28, %s25, 0
      %s30 = smul.addr %s29, 4
      %s31 = scalar_lea.vmem %s1, %s30
      %s32 = sadd.s32 0, 0
      %s33 = smul.u32 2, %s32
      %s34 = ssub.s32 1, %s33
      %s35 = smul.u32 64, %s34
    $region9: #{entropy_mse_loss.7} parent=1 // pred_fallthru
      _
    %s36 = sadd.s32 0, 0
    %s37 = smul.u32 2, %s36
    %s38 = ssub.s32 1, %s37
    %s39 = smul.u32 64, %s38
    %p40 = scmp.lt.s32.totalorder %s37, 0
    %s41 = scalar_select %p40, %s37, 0
    %s42 = smul.addr %s41, 4
    %s43 = scalar_lea.vmem %s0, %s42
    %s44 = sadd.s32 0, 0
    %s45 = smul.u32 2, %s44
    %s46 = ssub.s32 1, %s45
    %s47 = smul.u32 64, %s46
    %p48 = scmp.lt.s32.totalorder %s45, 0
    %s49 = scalar_select %p48, %s45, 0
    %s50 = smul.addr %s49, 4
    %s51 = scalar_lea.vmem %s1, %s50
    %s52 = sadd.s32 0, 0
    %s53 = smul.u32 2, %s52
    %s54 = ssub.s32 1, %s53
    %s55 = smul.u32 64, %s54
    %p56 = scmp.lt.s32.totalorder %s53, 0
    %s57 = scalar_select %p56, %s53, 0
    %s58 = smul.addr %s57, 4
    %s59 = scalar_lea.vmem %s0, %s58
    %s60 = sadd.s32 0, 0
    %s61 = smul.u32 2, %s60
    %s62 = ssub.s32 1, %s61
    %s63 = smul.u32 64, %s62
    %s64 = sadd.s32 0, 0
    %s65 = smul.u32 2, %s64
    %s66 = ssub.s32 1, %s65
    %s67 = smul.u32 64, %s66
    %p68 = scmp.lt.s32.totalorder %s65, 0
    %s69 = scalar_select %p68, %s65, 0
    %s70 = smul.addr %s69, 4
    %s71 = scalar_lea.vmem %s1, %s70
    %s72 = sadd.s32 0, 0
    %s73 = smul.u32 2, %s72
    %s74 = ssub.s32 1, %s73
    %s75 = smul.u32 64, %s74
    %p76 = scmp.eq.s32.totalorder 0, 0
    // Predicated region
    $region10: #{entropy_mse_loss.7} parent=1 // pred_check
      %p77 = pneg %p76
    $region11: #{entropy_mse_loss.7} parent=1 // pred_check_branch
      %79 = sbr.rel (%p77) target = $region13
    $region12: #{entropy_mse_loss.7} parent=1 // pred_region
      %80 = vst [vmem:[#allocation2] sm:$0xff] 0.0
    $region13: #{entropy_mse_loss.7} parent=1 // pred_fallthru
      _
    %v81 = vld [vmem:[%s59] sm:$0xff]
    %v82 = vld [vmem:[%s71] sm:$0xff]
    %v83 = vsub.f32 %v81, %v82
    %v84 = vmul.f32 %v83, %v83
    %s85 = sadd.s32 0, 0
    %v86 = vlaneseq
    %v87 = vshrl.u32 %v86, 7
    %s88 = smul.u32 %s85, 8
    %v89 = vstv %s88
    %v90 = vadd.s32 %v87, %v89
    %vm91 = vcmp.lt.s32.totalorder %v90, 4
    %v92 = vsel %vm91, %v84, 0.0
    %v93 = vld [vmem:[#allocation2] sm:$0xff]
    %v94 = vadd.f32 %v92, 0.0
    %v95 = vadd.f32 %v93, %v94
    %96 = vst [vmem:[#allocation2] sm:$0xff] %v95
    // Predicated region
    $region14: #{entropy_mse_loss.7} parent=1 // pred_check
      %p97 = pneg %p76
    $region15: #{entropy_mse_loss.7} parent=1 // pred_check_branch
      %99 = sbr.rel (%p97) target = $region17
    $region16: #{entropy_mse_loss.7} parent=1 // pred_region
      %v100 = vld [vmem:[#allocation2] sm:$0xff]
      %101 = vadd.xlane.f32.xlu0 %v100
      %v102 = vpop.xlane.xlu0 %101
      %v103 = vrot.slane %v102, 4
      %v104 = vadd.f32 %v102, %v103
      %v105 = vrot.slane %v104, 2
      %v106 = vadd.f32 %v104, %v105
      %v107 = vrot.slane %v106, 1
      %v108 = vadd.f32 %v106, %v107
      %s109 = vtos %v108
      %v110 = vstv %s109
      %vm111 = vcmask 0
      %112 = vst.msk [vmem:[#allocation3] sm:$0x1] %vm111, %v110
    $region17: #{entropy_mse_loss.7} parent=1 // pred_fallthru
      _
    // Predicated region
    $region18: #{entropy_mse_loss.7} parent=1 // pred_check
      _
    $region19: #{entropy_mse_loss.7} parent=1 // pred_check_branch
      %114 = sbr.rel (0) target = $region21
    $region20: #{entropy_mse_loss.7} parent=1 // pred_region
      %s116 = ssub.s32 16, 16
      %117 = vsyncadd [#allocation4], %s116
      %s119 = sshll.u32 [#allocation3], 4
      %s120 = int_to_ptr.vmem [resolvable:$true] %s119
      %122 = dma.vmem_to_hbm [thread:$0]  %s120, 16, %s2, [#allocation4]
    $region21: #{entropy_mse_loss.7} parent=1 // pred_fallthru
      _
    // Predicated region
    $region22: #{entropy_mse_loss.7} parent=1 // pred_check
      _
    $region23: #{entropy_mse_loss.7} parent=1 // pred_check_branch
      %124 = sbr.rel (0) target = $region25
    $region24: #{entropy_mse_loss.7} parent=1 // pred_region
      %125 = dma.done [#allocation4], 16
    $region25: #{entropy_mse_loss.7} parent=1 // pred_fallthru
      _
    %126 = vsyncpa [#allocation4], 1

// kernel: entropy_mse_loss.10
$region0: #{entropy_mse_loss.10}
  #allocation0 [shape = 'u32[]', space=smem, size = 0x4, offset = 0x4, fixed_abs, tag = 'smem constant byte address 0x4 - core index']
  #allocation1 [shape = 'u32[144,128]{1,0:T(1,128)}', space=vmem, size = 0x12000, scoped, tag = 'internal scratch']
  #allocation2 [shape = 'f32[1,1]{1,0:T(1,128)}', space=vmem, size = 0x200, scoped, tag = 'scratch operand']
  #allocation3 [shape = 'f32[1,1]{1,0:T(1,128)}', space=vmem, size = 0x200, scoped, tag = 'scratch operand']
  #allocation4 [shape = 'f32[1,1]{1,0:T(1,128)}', space=vmem, size = 0x200, scoped, tag = 'scratch operand']
  #allocation5 [shape = 'f32[1,1]{1,0:T(1,128)}', space=vmem, size = 0x200, scoped, tag = 'scratch operand']
  #allocation6 [shape = 'f32[1,1]{1,0:T(1,128)}', space=vmem, size = 0x200, scoped, tag = 'scratch operand']
  #allocation7 [shape = 'f32[1,1]{1,0:T(1,128)}', space=vmem, size = 0x200, scoped, tag = 'scratch operand']
  %s0 = inlined_call_operand.vmem [shape: f32[1,16,32], index: 0, kind: input, shape index: {}]
  %s1 = inlined_call_operand.vmem [shape: f32[1,16,32], index: 1, kind: input, shape index: {}]
  %s2 = inlined_call_operand.vmem [shape: f32[16,16], index: 2, kind: input, shape index: {}]
  %s3 = inlined_call_operand.vmem [shape: f32[8,8], index: 3, kind: input, shape index: {}]
  %s4 = inlined_call_operand.vmem [shape: f32[8,4], index: 4, kind: input, shape index: {}]
  %s5 = inlined_call_operand.vmem [shape: f32[32,28], index: 5, kind: input, shape index: {}]
  %s6 = inlined_call_operand.vmem [shape: f32[16,12], index: 6, kind: input, shape index: {}]
  %s7 = inlined_call_operand.vmem [shape: f32[8,4], index: 7, kind: input, shape index: {}]
  %s8 = inlined_call_operand.vmem [shape: f32[8,16], index: 8, kind: input, shape index: {}]
  %s9 = inlined_call_operand.vmem [shape: f32[4,8], index: 9, kind: input, shape index: {}]
  %s10 = inlined_call_operand.vmem [shape: f32[32,16], index: 10, kind: input, shape index: {}]
  %s11 = inlined_call_operand.vmem [shape: f32[16,8], index: 11, kind: input, shape index: {}]
  %s12 = inlined_call_operand.hbm [shape: f32[1,1,1], index: 12, kind: output, shape index: {0}]
  %s13 = inlined_call_operand.hbm [shape: f32[1,1,1], index: 13, kind: output, shape index: {1}]
  %s14 = inlined_call_operand.hbm [shape: f32[1,1,1], index: 14, kind: output, shape index: {2}]
  %s15 = inlined_call_operand.hbm [shape: f32[1,1,1], index: 15, kind: output, shape index: {3}]
  %s16 = inlined_call_operand.hbm [shape: f32[1,1,1], index: 16, kind: output, shape index: {4}]
  %s17 = inlined_call_operand.hbm [shape: f32[1,1,1], index: 17, kind: output, shape index: {5}]
  %18 = xla_tuple %s12, %s13, %s14, %s15, %s16, %s17
  %s19 = sld [smem:[#allocation0]]
  $region106: #{entropy_mse_loss.10} parent=0
    _
  %s21 = ssub.s32 1, %s19
  %s22 = scalar_select 0, %s21, %s19
  $region1: #{entropy_mse_loss.10} parent=0
    #allocation8 [shape = 'u8[512]{0}', space=vmem, size = 0x400, scoped, tag = 'output window, operand 0, single buffered']
    #allocation9 [shape = 's32[1]{0}', space=sflag, size = 0x4, scoped, tag = 'scoped memory for entropy_mse_loss.10']
    #allocation10 [shape = 'u8[512]{0}', space=vmem, size = 0x400, scoped, tag = 'output window, operand 1, single buffered']
    #allocation11 [shape = 's32[1]{0}', space=sflag, size = 0x4, scoped, tag = 'scoped memory for entropy_mse_loss.10']
    #allocation12 [shape = 'u8[512]{0}', space=vmem, size = 0x400, scoped, tag = 'output window, operand 2, single buffered']
    #allocation13 [shape = 'u8[512]{0}', space=vmem, size = 0x400, scoped, tag = 'output window, operand 3, single buffered']
    #allocation14 [shape = 's32[1]{0}', space=sflag, size = 0x4, scoped, tag = 'scoped memory for entropy_mse_loss.10']
    #allocation15 [shape = 'u8[512]{0}', space=vmem, size = 0x400, scoped, tag = 'output window, operand 4, single buffered']
    #allocation16 [shape = 'u8[512]{0}', space=vmem, size = 0x400, scoped, tag = 'output window, operand 5, single buffered']
    #allocation17 [shape = 's32[1]{0}', space=sflag, size = 0x4, scoped, tag = 'scoped memory for entropy_mse_loss.10']
    %23 = vsyncpa [#allocation9], 0
    %24 = vsyncpa [#allocation11], 0
    %25 = vsyncpa [#allocation14], 0
    %26 = vsyncpa [#allocation17], 0
    // Predicated region
    $region2: #{entropy_mse_loss.10} parent=1 // pred_check
      _
    $region3: #{entropy_mse_loss.10} parent=1 // pred_check_branch
      %28 = sbr.rel (0) target = $region5
    $region4: #{entropy_mse_loss.10} parent=1 // pred_region
      %s29 = sadd.s32 0, 0
      %p30 = scmp.lt.s32.totalorder %s29, 0
      %s31 = scalar_select %p30, %s29, 0
      %s32 = smul.addr %s31, 2
      %s33 = smul.addr %s32, 8
      %s34 = scalar_lea.vmem %s0, %s33
      %s35 = sadd.s32 0, 0
    $region5: #{entropy_mse_loss.10} parent=1 // pred_fallthru
      _
    // Predicated region
    $region6: #{entropy_mse_loss.10} parent=1 // pred_check
      _
    $region7: #{entropy_mse_loss.10} parent=1 // pred_check_branch
      %37 = sbr.rel (0) target = $region9
    $region8: #{entropy_mse_loss.10} parent=1 // pred_region
      %s38 = sadd.s32 0, 0
      %p39 = scmp.lt.s32.totalorder %s38, 0
      %s40 = scalar_select %p39, %s38, 0
      %s41 = smul.addr %s40, 2
      %s42 = smul.addr %s41, 8
      %s43 = scalar_lea.vmem %s1, %s42
      %s44 = sadd.s32 0, 0
    $region9: #{entropy_mse_loss.10} parent=1 // pred_fallthru
      _
    // Predicated region
    $region10: #{entropy_mse_loss.10} parent=1 // pred_check
      _
    $region11: #{entropy_mse_loss.10} parent=1 // pred_check_branch
      %46 = sbr.rel (0) target = $region13
    $region12: #{entropy_mse_loss.10} parent=1 // pred_region
      _
    $region13: #{entropy_mse_loss.10} parent=1 // pred_fallthru
      _
    // Predicated region
    $region14: #{entropy_mse_loss.10} parent=1 // pred_check
      _
    $region15: #{entropy_mse_loss.10} parent=1 // pred_check_branch
      %48 = sbr.rel (0) target = $region17
    $region16: #{entropy_mse_loss.10} parent=1 // pred_region
      _
    $region17: #{entropy_mse_loss.10} parent=1 // pred_fallthru
      _
    // Predicated region
    $region18: #{entropy_mse_loss.10} parent=1 // pred_check
      _
    $region19: #{entropy_mse_loss.10} parent=1 // pred_check_branch
      %50 = sbr.rel (0) target = $region21
    $region20: #{entropy_mse_loss.10} parent=1 // pred_region
      _
    $region21: #{entropy_mse_loss.10} parent=1 // pred_fallthru
      _
    // Predicated region
    $region22: #{entropy_mse_loss.10} parent=1 // pred_check
      _
    $region23: #{entropy_mse_loss.10} parent=1 // pred_check_branch
      %52 = sbr.rel (0) target = $region25
    $region24: #{entropy_mse_loss.10} parent=1 // pred_region
      _
    $region25: #{entropy_mse_loss.10} parent=1 // pred_fallthru
      _
    // Predicated region
    $region26: #{entropy_mse_loss.10} parent=1 // pred_check
      _
    $region27: #{entropy_mse_loss.10} parent=1 // pred_check_branch
      %54 = sbr.rel (0) target = $region29
    $region28: #{entropy_mse_loss.10} parent=1 // pred_region
      _
    $region29: #{entropy_mse_loss.10} parent=1 // pred_fallthru
      _
    // Predicated region
    $region30: #{entropy_mse_loss.10} parent=1 // pred_check
      _
    $region31: #{entropy_mse_loss.10} parent=1 // pred_check_branch
      %56 = sbr.rel (0) target = $region33
    $region32: #{entropy_mse_loss.10} parent=1 // pred_region
      _
    $region33: #{entropy_mse_loss.10} parent=1 // pred_fallthru
      _
    // Predicated region
    $region34: #{entropy_mse_loss.10} parent=1 // pred_check
      _
    $region35: #{entropy_mse_loss.10} parent=1 // pred_check_branch
      %58 = sbr.rel (0) target = $region37
    $region36: #{entropy_mse_loss.10} parent=1 // pred_region
      _
    $region37: #{entropy_mse_loss.10} parent=1 // pred_fallthru
      _
    // Predicated region
    $region38: #{entropy_mse_loss.10} parent=1 // pred_check
      _
    $region39: #{entropy_mse_loss.10} parent=1 // pred_check_branch
      %60 = sbr.rel (0) target = $region41
    $region40: #{entropy_mse_loss.10} parent=1 // pred_region
      _
    $region41: #{entropy_mse_loss.10} parent=1 // pred_fallthru
      _
    // Predicated region
    $region42: #{entropy_mse_loss.10} parent=1 // pred_check
      _
    $region43: #{entropy_mse_loss.10} parent=1 // pred_check_branch
      %62 = sbr.rel (0) target = $region45
    $region44: #{entropy_mse_loss.10} parent=1 // pred_region
      _
    $region45: #{entropy_mse_loss.10} parent=1 // pred_fallthru
      _
    // Predicated region
    $region46: #{entropy_mse_loss.10} parent=1 // pred_check
      _
    $region47: #{entropy_mse_loss.10} parent=1 // pred_check_branch
      %64 = sbr.rel (0) target = $region49
    $region48: #{entropy_mse_loss.10} parent=1 // pred_region
      _
    $region49: #{entropy_mse_loss.10} parent=1 // pred_fallthru
      _
    %s65 = sadd.s32 0, 0
    %p66 = scmp.lt.s32.totalorder %s65, 0
    %s67 = scalar_select %p66, %s65, 0
    %s68 = smul.addr %s67, 2
    %s69 = smul.addr %s68, 8
    %s70 = scalar_lea.vmem %s0, %s69
    %s71 = sadd.s32 0, 0
    %p72 = scmp.lt.s32.totalorder %s71, 0
    %s73 = scalar_select %p72, %s71, 0
    %s74 = smul.addr %s73, 2
    %s75 = smul.addr %s74, 8
    %s76 = scalar_lea.vmem %s1, %s75
    %s77 = sadd.s32 0, 0
    %p78 = scmp.lt.s32.totalorder %s77, 0
    %s79 = scalar_select %p78, %s77, 0
    %s80 = smul.addr %s79, 2
    %s81 = smul.addr %s80, 8
    %s82 = scalar_lea.vmem %s0, %s81
    %s83 = sadd.s32 0, 0
    %s84 = sadd.s32 0, 0
    %p85 = scmp.lt.s32.totalorder %s84, 0
    %s86 = scalar_select %p85, %s84, 0
    %s87 = smul.addr %s86, 2
    %s88 = smul.addr %s87, 8
    %s89 = scalar_lea.vmem %s1, %s88
    %s90 = sadd.s32 0, 0
    %p91 = scmp.eq.s32.totalorder 0, 0
    // Predicated region
    $region50: #{entropy_mse_loss.10} parent=1 // pred_check
      %p92 = pneg %p91
    $region51: #{entropy_mse_loss.10} parent=1 // pred_check_branch
      %94 = sbr.rel (%p92) target = $region53
    $region52: #{entropy_mse_loss.10} parent=1 // pred_region
      %vm95 = vcmask 0
      %96 = vst.msk [vmem:[#allocation2] sm:$0x1] %vm95, 0.0
      %97 = vst.msk [vmem:[#allocation5] sm:$0x1] %vm95, 0.0
      %98 = vst.msk [vmem:[#allocation3] sm:$0x1] %vm95, 0.0
      %99 = vst.msk [vmem:[#allocation6] sm:$0x1] %vm95, 0.0
      %100 = vst.msk [vmem:[#allocation4] sm:$0x1] %vm95, 0.0
      %101 = vst.msk [vmem:[#allocation7] sm:$0x1] %vm95, 0.0
    $region53: #{entropy_mse_loss.10} parent=1 // pred_fallthru
      _
    %v102 = vld [vmem:[%s82] sm:$0xff]
    %v103 = vld [vmem:[%s82 + $0x8] sm:$0xff]
    %v104 = vld [vmem:[%s89] sm:$0xff]
    %v105 = vld [vmem:[%s89 + $0x8] sm:$0xff]
    %v106 = vld [vmem:[%s2] sm:$0xff]
    %v107 = vld [vmem:[%s2 + $0x8] sm:$0xff]
    %v108 = vld [vmem:[%s5] sm:$0xff]
    %v109 = vld [vmem:[%s5 + $0x8] sm:$0xff]
    %v110 = vld [vmem:[%s5 + $0x10] sm:$0xff]
    %v111 = vld [vmem:[%s5 + $0x18] sm:$0xff]
    %vm112 = vcmask 261120
    %v114 = vsel %vm112, %v102, 0
    %v117 = vsel %vm112, %v103, 0
    %119 = vmatprep.subr.mxu0 0.0
    %120 = vmatpush1.msra.mxu0 %v108
    %121 = vmatprep.subr.mxu0 0.0
    %122 = vmatpush1.msra.mxu0 %v109
    %123 = vmatprep.subr.mxu0 0.0
    %124 = vmatpush1.msra.mxu0 %v110
    %125 = vmatprep.subr.mxu0 0.0
    %126 = vmatpush1.msra.mxu0 %v111
    %127 = vmatprep.subr.mxu0 0.0
    %128 = vmatpush1.msra.mxu0 0.0
    %129 = vmatprep.subr.mxu0 0.0
    %130 = vmatpush1.msra.mxu0 0.0
    %131 = vmatprep.subr.mxu0 0.0
    %132 = vmatpush1.msra.mxu0 0.0
    %133 = vmatprep.subr.mxu0 0.0
    %134 = vmatpush1.msra.mxu0 0.0
    %135 = vmatprep.subr.mxu0 0.0
    %136 = vmatpush1.msra.mxu0 0.0
    %137 = vmatprep.subr.mxu0 0.0
    %138 = vmatpush1.msra.mxu0 0.0
    %139 = vmatprep.subr.mxu0 0.0
    %140 = vmatpush1.msra.mxu0 0.0
    %141 = vmatprep.subr.mxu0 0.0
    %142 = vmatpush1.msra.mxu0 0.0
    %143 = vmatprep.subr.mxu0 0.0
    %144 = vmatpush1.msra.mxu0 0.0
    %145 = vmatprep.subr.mxu0 0.0
    %146 = vmatpush1.msra.mxu0 0.0
    %147 = vmatprep.subr.mxu0 0.0
    %148 = vmatpush1.msra.mxu0 0.0
    %149 = vmatprep.subr.mxu0 0.0
    %150 = vmatpush1.msra.mxu0 0.0
    %151 = vmatprep.subr.mxu0 0.0
    %152 = vmatpush1.msra.mxu0 0.0
    %153 = vmatprep.subr.mxu0 0.0
    %154 = vmatpush1.msra.mxu0 0.0
    %155 = vmatprep.subr.mxu0 0.0
    %156 = vmatpush1.msra.mxu0 0.0
    %157 = vmatprep.subr.mxu0 0.0
    %158 = vmatpush1.msra.mxu0 0.0
    %159 = vmatprep.subr.mxu0 0.0
    %160 = vmatpush1.msra.mxu0 0.0
    %161 = vmatprep.subr.mxu0 0.0
    %162 = vmatpush1.msra.mxu0 0.0
    %163 = vmatprep.subr.mxu0 0.0
    %164 = vmatpush1.msra.mxu0 0.0
    %165 = vmatprep.subr.mxu0 0.0
    %166 = vmatpush1.msra.mxu0 0.0
    %167 = vmatprep.subr.mxu0 0.0
    %168 = vmatpush1.msra.mxu0 0.0
    %169 = vmatprep.subr.mxu0 0.0
    %170 = vmatpush1.msra.mxu0 0.0
    %171 = vmatprep.subr.mxu0 0.0
    %172 = vmatpush1.msra.mxu0 0.0
    %173 = vmatprep.subr.mxu0 0.0
    %174 = vmatpush1.msra.mxu0 0.0
    %175 = vmatprep.subr.mxu0 0.0
    %176 = vmatpush1.msra.mxu0 0.0
    %177 = vmatprep.subr.mxu0 0.0
    %178 = vmatpush1.msra.mxu0 0.0
    %179 = vmatprep.subr.mxu0 0.0
    %180 = vmatpush1.msra.mxu0 0.0
    %181 = vmatprep.subr.mxu0 0.0
    %182 = vmatpush1.msra.mxu0 0.0
    %183 = vmatprep.mubr.f32.mxu0 0.0
    %184 = vmatmul.mubr.f32.gmra.mrb[0].mxu0 %v114
    %v185 = vpop.f32.mrb[0].mxu0
    %v186 = vadd.f32 0.0, %v185
    %v187 = vpop.f32.mrb[0].mxu0
    %188 = vmatprep.mubr.f32.mxu0 0.0
    %189 = vmatmul.mubr.f32.gmra.mrb[0].mxu0 %v117
    %v190 = vpop.f32.mrb[0].mxu0
    %v191 = vadd.f32 0.0, %v190
    %v192 = vpop.f32.mrb[0].mxu0
    %193 = vdwg.mxu0
    %vm194 = vcmask 130048
    %v196 = vsel %vm194, %v106, 0
    %v199 = vsel %vm194, %v107, 0
    %201 = vmatprep.subr.mxu0 0.0
    %202 = vmatpush1.msra.mxu0 %v186
    %203 = vmatprep.subr.mxu0 0.0
    %204 = vmatpush1.msra.mxu0 %v191
    %205 = vmatprep.subr.mxu0 0.0
    %206 = vmatpush1.msra.mxu0 0.0
    %207 = vmatprep.subr.mxu0 0.0
    %208 = vmatpush1.msra.mxu0 0.0
    %209 = vmatprep.subr.mxu0 0.0
    %210 = vmatpush1.msra.mxu0 0.0
    %211 = vmatprep.subr.mxu0 0.0
    %212 = vmatpush1.msra.mxu0 0.0
    %213 = vmatprep.subr.mxu0 0.0
    %214 = vmatpush1.msra.mxu0 0.0
    %215 = vmatprep.subr.mxu0 0.0
    %216 = vmatpush1.msra.mxu0 0.0
    %217 = vmatprep.subr.mxu0 0.0
    %218 = vmatpush1.msra.mxu0 0.0
    %219 = vmatprep.subr.mxu0 0.0
    %220 = vmatpush1.msra.mxu0 0.0
    %221 = vmatprep.subr.mxu0 0.0
    %222 = vmatpush1.msra.mxu0 0.0
    %223 = vmatprep.subr.mxu0 0.0
    %224 = vmatpush1.msra.mxu0 0.0
    %225 = vmatprep.subr.mxu0 0.0
    %226 = vmatpush1.msra.mxu0 0.0
    %227 = vmatprep.subr.mxu0 0.0
    %228 = vmatpush1.msra.mxu0 0.0
    %229 = vmatprep.subr.mxu0 0.0
    %230 = vmatpush1.msra.mxu0 0.0
    %231 = vmatprep.subr.mxu0 0.0
    %232 = vmatpush1.msra.mxu0 0.0
    %233 = vmatprep.subr.mxu0 0.0
    %234 = vmatpush1.msra.mxu0 0.0
    %235 = vmatprep.subr.mxu0 0.0
    %236 = vmatpush1.msra.mxu0 0.0
    %237 = vmatprep.subr.mxu0 0.0
    %238 = vmatpush1.msra.mxu0 0.0
    %239 = vmatprep.subr.mxu0 0.0
    %240 = vmatpush1.msra.mxu0 0.0
    %241 = vmatprep.subr.mxu0 0.0
    %242 = vmatpush1.msra.mxu0 0.0
    %243 = vmatprep.subr.mxu0 0.0
    %244 = vmatpush1.msra.mxu0 0.0
    %245 = vmatprep.subr.mxu0 0.0
    %246 = vmatpush1.msra.mxu0 0.0
    %247 = vmatprep.subr.mxu0 0.0
    %248 = vmatpush1.msra.mxu0 0.0
    %249 = vmatprep.subr.mxu0 0.0
    %250 = vmatpush1.msra.mxu0 0.0
    %251 = vmatprep.subr.mxu0 0.0
    %252 = vmatpush1.msra.mxu0 0.0
    %253 = vmatprep.subr.mxu0 0.0
    %254 = vmatpush1.msra.mxu0 0.0
    %255 = vmatprep.subr.mxu0 0.0
    %256 = vmatpush1.msra.mxu0 0.0
    %257 = vmatprep.subr.mxu0 0.0
    %258 = vmatpush1.msra.mxu0 0.0
    %259 = vmatprep.subr.mxu0 0.0
    %260 = vmatpush1.msra.mxu0 0.0
    %261 = vmatprep.subr.mxu0 0.0
    %262 = vmatpush1.msra.mxu0 0.0
    %263 = vmatprep.subr.mxu0 0.0
    %264 = vmatpush1.msra.mxu0 0.0
    %265 = vmatprep.mubr.f32.mxu0 0.0
    %266 = vmatmul.mubr.f32.gmra.mrb[0].mxu0 %v196
    %v267 = vpop.f32.mrb[0].mxu0
    %v268 = vadd.f32 0.0, %v267
    %v269 = vpop.f32.mrb[0].mxu0
    %270 = vmatprep.mubr.f32.mxu0 0.0
    %271 = vmatmul.mubr.f32.gmra.mrb[0].mxu0 %v199
    %v272 = vpop.f32.mrb[0].mxu0
    %v273 = vadd.f32 0.0, %v272
    %v274 = vpop.f32.mrb[0].mxu0
    %275 = vdwg.mxu0
    %v277 = vsel %vm112, %v104, 0
    %v280 = vsel %vm112, %v105, 0
    %282 = vmatprep.subr.mxu0 0.0
    %283 = vmatpush1.msra.mxu0 %v108
    %284 = vmatprep.subr.mxu0 0.0
    %285 = vmatpush1.msra.mxu0 %v109
    %286 = vmatprep.subr.mxu0 0.0
    %287 = vmatpush1.msra.mxu0 %v110
    %288 = vmatprep.subr.mxu0 0.0
    %289 = vmatpush1.msra.mxu0 %v111
    %290 = vmatprep.subr.mxu0 0.0
    %291 = vmatpush1.msra.mxu0 0.0
    %292 = vmatprep.subr.mxu0 0.0
    %293 = vmatpush1.msra.mxu0 0.0
    %294 = vmatprep.subr.mxu0 0.0
    %295 = vmatpush1.msra.mxu0 0.0
    %296 = vmatprep.subr.mxu0 0.0
    %297 = vmatpush1.msra.mxu0 0.0
    %298 = vmatprep.subr.mxu0 0.0
    %299 = vmatpush1.msra.mxu0 0.0
    %300 = vmatprep.subr.mxu0 0.0
    %301 = vmatpush1.msra.mxu0 0.0
    %302 = vmatprep.subr.mxu0 0.0
    %303 = vmatpush1.msra.mxu0 0.0
    %304 = vmatprep.subr.mxu0 0.0
    %305 = vmatpush1.msra.mxu0 0.0
    %306 = vmatprep.subr.mxu0 0.0
    %307 = vmatpush1.msra.mxu0 0.0
    %308 = vmatprep.subr.mxu0 0.0
    %309 = vmatpush1.msra.mxu0 0.0
    %310 = vmatprep.subr.mxu0 0.0
    %311 = vmatpush1.msra.mxu0 0.0
    %312 = vmatprep.subr.mxu0 0.0
    %313 = vmatpush1.msra.mxu0 0.0
    %314 = vmatprep.subr.mxu0 0.0
    %315 = vmatpush1.msra.mxu0 0.0
    %316 = vmatprep.subr.mxu0 0.0
    %317 = vmatpush1.msra.mxu0 0.0
    %318 = vmatprep.subr.mxu0 0.0
    %319 = vmatpush1.msra.mxu0 0.0
    %320 = vmatprep.subr.mxu0 0.0
    %321 = vmatpush1.msra.mxu0 0.0
    %322 = vmatprep.subr.mxu0 0.0
    %323 = vmatpush1.msra.mxu0 0.0
    %324 = vmatprep.subr.mxu0 0.0
    %325 = vmatpush1.msra.mxu0 0.0
    %326 = vmatprep.subr.mxu0 0.0
    %327 = vmatpush1.msra.mxu0 0.0
    %328 = vmatprep.subr.mxu0 0.0
    %329 = vmatpush1.msra.mxu0 0.0
    %330 = vmatprep.subr.mxu0 0.0
    %331 = vmatpush1.msra.mxu0 0.0
    %332 = vmatprep.subr.mxu0 0.0
    %333 = vmatpush1.msra.mxu0 0.0
    %334 = vmatprep.subr.mxu0 0.0
    %335 = vmatpush1.msra.mxu0 0.0
    %336 = vmatprep.subr.mxu0 0.0
    %337 = vmatpush1.msra.mxu0 0.0
    %338 = vmatprep.subr.mxu0 0.0
    %339 = vmatpush1.msra.mxu0 0.0
    %340 = vmatprep.subr.mxu0 0.0
    %341 = vmatpush1.msra.mxu0 0.0
    %342 = vmatprep.subr.mxu0 0.0
    %343 = vmatpush1.msra.mxu0 0.0
    %344 = vmatprep.subr.mxu0 0.0
    %345 = vmatpush1.msra.mxu0 0.0
    %346 = vmatprep.mubr.f32.mxu0 0.0
    %347 = vmatmul.mubr.f32.gmra.mrb[0].mxu0 %v277
    %v348 = vpop.f32.mrb[0].mxu0
    %v349 = vadd.f32 0.0, %v348
    %v350 = vpop.f32.mrb[0].mxu0
    %351 = vmatprep.mubr.f32.mxu0 0.0
    %352 = vmatmul.mubr.f32.gmra.mrb[0].mxu0 %v280
    %v353 = vpop.f32.mrb[0].mxu0
    %v354 = vadd.f32 0.0, %v353
    %v355 = vpop.f32.mrb[0].mxu0
    %356 = vdwg.mxu0
    %357 = vmatprep.subr.mxu0 0.0
    %358 = vmatpush1.msra.mxu0 %v349
    %359 = vmatprep.subr.mxu0 0.0
    %360 = vmatpush1.msra.mxu0 %v354
    %361 = vmatprep.subr.mxu0 0.0
    %362 = vmatpush1.msra.mxu0 0.0
    %363 = vmatprep.subr.mxu0 0.0
    %364 = vmatpush1.msra.mxu0 0.0
    %365 = vmatprep.subr.mxu0 0.0
    %366 = vmatpush1.msra.mxu0 0.0
    %367 = vmatprep.subr.mxu0 0.0
    %368 = vmatpush1.msra.mxu0 0.0
    %369 = vmatprep.subr.mxu0 0.0
    %370 = vmatpush1.msra.mxu0 0.0
    %371 = vmatprep.subr.mxu0 0.0
    %372 = vmatpush1.msra.mxu0 0.0
    %373 = vmatprep.subr.mxu0 0.0
    %374 = vmatpush1.msra.mxu0 0.0
    %375 = vmatprep.subr.mxu0 0.0
    %376 = vmatpush1.msra.mxu0 0.0
    %377 = vmatprep.subr.mxu0 0.0
    %378 = vmatpush1.msra.mxu0 0.0
    %379 = vmatprep.subr.mxu0 0.0
    %380 = vmatpush1.msra.mxu0 0.0
    %381 = vmatprep.subr.mxu0 0.0
    %382 = vmatpush1.msra.mxu0 0.0
    %383 = vmatprep.subr.mxu0 0.0
    %384 = vmatpush1.msra.mxu0 0.0
    %385 = vmatprep.subr.mxu0 0.0
    %386 = vmatpush1.msra.mxu0 0.0
    %387 = vmatprep.subr.mxu0 0.0
    %388 = vmatpush1.msra.mxu0 0.0
    %389 = vmatprep.subr.mxu0 0.0
    %390 = vmatpush1.msra.mxu0 0.0
    %391 = vmatprep.subr.mxu0 0.0
    %392 = vmatpush1.msra.mxu0 0.0
    %393 = vmatprep.subr.mxu0 0.0
    %394 = vmatpush1.msra.mxu0 0.0
    %395 = vmatprep.subr.mxu0 0.0
    %396 = vmatpush1.msra.mxu0 0.0
    %397 = vmatprep.subr.mxu0 0.0
    %398 = vmatpush1.msra.mxu0 0.0
    %399 = vmatprep.subr.mxu0 0.0
    %400 = vmatpush1.msra.mxu0 0.0
    %401 = vmatprep.subr.mxu0 0.0
    %402 = vmatpush1.msra.mxu0 0.0
    %403 = vmatprep.subr.mxu0 0.0
    %404 = vmatpush1.msra.mxu0 0.0
    %405 = vmatprep.subr.mxu0 0.0
    %406 = vmatpush1.msra.mxu0 0.0
    %407 = vmatprep.subr.mxu0 0.0
    %408 = vmatpush1.msra.mxu0 0.0
    %409 = vmatprep.subr.mxu0 0.0
    %410 = vmatpush1.msra.mxu0 0.0
    %411 = vmatprep.subr.mxu0 0.0
    %412 = vmatpush1.msra.mxu0 0.0
    %413 = vmatprep.subr.mxu0 0.0
    %414 = vmatpush1.msra.mxu0 0.0
    %415 = vmatprep.subr.mxu0 0.0
    %416 = vmatpush1.msra.mxu0 0.0
    %417 = vmatprep.subr.mxu0 0.0
    %418 = vmatpush1.msra.mxu0 0.0
    %419 = vmatprep.subr.mxu0 0.0
    %420 = vmatpush1.msra.mxu0 0.0
    %421 = vmatprep.mubr.f32.mxu0 0.0
    %422 = vmatmul.mubr.f32.gmra.mrb[0].mxu0 %v196
    %v423 = vpop.f32.mrb[0].mxu0
    %v424 = vadd.f32 0.0, %v423
    %v425 = vpop.f32.mrb[0].mxu0
    %426 = vmatprep.mubr.f32.mxu0 0.0
    %427 = vmatmul.mubr.f32.gmra.mrb[0].mxu0 %v199
    %v428 = vpop.f32.mrb[0].mxu0
    %v429 = vadd.f32 0.0, %v428
    %v430 = vpop.f32.mrb[0].mxu0
    %431 = vdwg.mxu0
    %v432 = vmul.f32 %v102, %v102
    %v433 = vmul.f32 %v103, %v103
    %v435 = vsel %vm112, %v432, 0
    %v438 = vsel %vm112, %v433, 0
    %440 = vmatprep.subr.mxu0 0.0
    %441 = vmatpush1.msra.mxu0 %v108
    %442 = vmatprep.subr.mxu0 0.0
    %443 = vmatpush1.msra.mxu0 %v109
    %444 = vmatprep.subr.mxu0 0.0
    %445 = vmatpush1.msra.mxu0 %v110
    %446 = vmatprep.subr.mxu0 0.0
    %447 = vmatpush1.msra.mxu0 %v111
    %448 = vmatprep.subr.mxu0 0.0
    %449 = vmatpush1.msra.mxu0 0.0
    %450 = vmatprep.subr.mxu0 0.0
    %451 = vmatpush1.msra.mxu0 0.0
    %452 = vmatprep.subr.mxu0 0.0
    %453 = vmatpush1.msra.mxu0 0.0
    %454 = vmatprep.subr.mxu0 0.0
    %455 = vmatpush1.msra.mxu0 0.0
    %456 = vmatprep.subr.mxu0 0.0
    %457 = vmatpush1.msra.mxu0 0.0
    %458 = vmatprep.subr.mxu0 0.0
    %459 = vmatpush1.msra.mxu0 0.0
    %460 = vmatprep.subr.mxu0 0.0
    %461 = vmatpush1.msra.mxu0 0.0
    %462 = vmatprep.subr.mxu0 0.0
    %463 = vmatpush1.msra.mxu0 0.0
    %464 = vmatprep.subr.mxu0 0.0
    %465 = vmatpush1.msra.mxu0 0.0
    %466 = vmatprep.subr.mxu0 0.0
    %467 = vmatpush1.msra.mxu0 0.0
    %468 = vmatprep.subr.mxu0 0.0
    %469 = vmatpush1.msra.mxu0 0.0
    %470 = vmatprep.subr.mxu0 0.0
    %471 = vmatpush1.msra.mxu0 0.0
    %472 = vmatprep.subr.mxu0 0.0
    %473 = vmatpush1.msra.mxu0 0.0
    %474 = vmatprep.subr.mxu0 0.0
    %475 = vmatpush1.msra.mxu0 0.0
    %476 = vmatprep.subr.mxu0 0.0
    %477 = vmatpush1.msra.mxu0 0.0
    %478 = vmatprep.subr.mxu0 0.0
    %479 = vmatpush1.msra.mxu0 0.0
    %480 = vmatprep.subr.mxu0 0.0
    %481 = vmatpush1.msra.mxu0 0.0
    %482 = vmatprep.subr.mxu0 0.0
    %483 = vmatpush1.msra.mxu0 0.0
    %484 = vmatprep.subr.mxu0 0.0
    %485 = vmatpush1.msra.mxu0 0.0
    %486 = vmatprep.subr.mxu0 0.0
    %487 = vmatpush1.msra.mxu0 0.0
    %488 = vmatprep.subr.mxu0 0.0
    %489 = vmatpush1.msra.mxu0 0.0
    %490 = vmatprep.subr.mxu0 0.0
    %491 = vmatpush1.msra.mxu0 0.0
    %492 = vmatprep.subr.mxu0 0.0
    %493 = vmatpush1.msra.mxu0 0.0
    %494 = vmatprep.subr.mxu0 0.0
    %495 = vmatpush1.msra.mxu0 0.0
    %496 = vmatprep.subr.mxu0 0.0
    %497 = vmatpush1.msra.mxu0 0.0
    %498 = vmatprep.subr.mxu0 0.0
    %499 = vmatpush1.msra.mxu0 0.0
    %500 = vmatprep.subr.mxu0 0.0
    %501 = vmatpush1.msra.mxu0 0.0
    %502 = vmatprep.subr.mxu0 0.0
    %503 = vmatpush1.msra.mxu0 0.0
    %504 = vmatprep.mubr.f32.mxu0 0.0
    %505 = vmatmul.mubr.f32.gmra.mrb[0].mxu0 %v435
    %v506 = vpop.f32.mrb[0].mxu0
    %v507 = vadd.f32 0.0, %v506
    %v508 = vpop.f32.mrb[0].mxu0
    %509 = vmatprep.mubr.f32.mxu0 0.0
    %510 = vmatmul.mubr.f32.gmra.mrb[0].mxu0 %v438
    %v511 = vpop.f32.mrb[0].mxu0
    %v512 = vadd.f32 0.0, %v511
    %v513 = vpop.f32.mrb[0].mxu0
    %514 = vdwg.mxu0
    %515 = vmatprep.subr.mxu0 0.0
    %516 = vmatpush1.msra.mxu0 %v507
    %517 = vmatprep.subr.mxu0 0.0
    %518 = vmatpush1.msra.mxu0 %v512
    %519 = vmatprep.subr.mxu0 0.0
    %520 = vmatpush1.msra.mxu0 0.0
    %521 = vmatprep.subr.mxu0 0.0
    %522 = vmatpush1.msra.mxu0 0.0
    %523 = vmatprep.subr.mxu0 0.0
    %524 = vmatpush1.msra.mxu0 0.0
    %525 = vmatprep.subr.mxu0 0.0
    %526 = vmatpush1.msra.mxu0 0.0
    %527 = vmatprep.subr.mxu0 0.0
    %528 = vmatpush1.msra.mxu0 0.0
    %529 = vmatprep.subr.mxu0 0.0
    %530 = vmatpush1.msra.mxu0 0.0
    %531 = vmatprep.subr.mxu0 0.0
    %532 = vmatpush1.msra.mxu0 0.0
    %533 = vmatprep.subr.mxu0 0.0
    %534 = vmatpush1.msra.mxu0 0.0
    %535 = vmatprep.subr.mxu0 0.0
    %536 = vmatpush1.msra.mxu0 0.0
    %537 = vmatprep.subr.mxu0 0.0
    %538 = vmatpush1.msra.mxu0 0.0
    %539 = vmatprep.subr.mxu0 0.0
    %540 = vmatpush1.msra.mxu0 0.0
    %541 = vmatprep.subr.mxu0 0.0
    %542 = vmatpush1.msra.mxu0 0.0
    %543 = vmatprep.subr.mxu0 0.0
    %544 = vmatpush1.msra.mxu0 0.0
    %545 = vmatprep.subr.mxu0 0.0
    %546 = vmatpush1.msra.mxu0 0.0
    %547 = vmatprep.subr.mxu0 0.0
    %548 = vmatpush1.msra.mxu0 0.0
    %549 = vmatprep.subr.mxu0 0.0
    %550 = vmatpush1.msra.mxu0 0.0
    %551 = vmatprep.subr.mxu0 0.0
    %552 = vmatpush1.msra.mxu0 0.0
    %553 = vmatprep.subr.mxu0 0.0
    %554 = vmatpush1.msra.mxu0 0.0
    %555 = vmatprep.subr.mxu0 0.0
    %556 = vmatpush1.msra.mxu0 0.0
    %557 = vmatprep.subr.mxu0 0.0
    %558 = vmatpush1.msra.mxu0 0.0
    %559 = vmatprep.subr.mxu0 0.0
    %560 = vmatpush1.msra.mxu0 0.0
    %561 = vmatprep.subr.mxu0 0.0
    %562 = vmatpush1.msra.mxu0 0.0
    %563 = vmatprep.subr.mxu0 0.0
    %564 = vmatpush1.msra.mxu0 0.0
    %565 = vmatprep.subr.mxu0 0.0
    %566 = vmatpush1.msra.mxu0 0.0
    %567 = vmatprep.subr.mxu0 0.0
    %568 = vmatpush1.msra.mxu0 0.0
    %569 = vmatprep.subr.mxu0 0.0
    %570 = vmatpush1.msra.mxu0 0.0
    %571 = vmatprep.subr.mxu0 0.0
    %572 = vmatpush1.msra.mxu0 0.0
    %573 = vmatprep.subr.mxu0 0.0
    %574 = vmatpush1.msra.mxu0 0.0
    %575 = vmatprep.subr.mxu0 0.0
    %576 = vmatpush1.msra.mxu0 0.0
    %577 = vmatprep.subr.mxu0 0.0
    %578 = vmatpush1.msra.mxu0 0.0
    %579 = vmatprep.mubr.f32.mxu0 0.0
    %580 = vmatmul.mubr.f32.gmra.mrb[0].mxu0 %v196
    %v581 = vpop.f32.mrb[0].mxu0
    %v582 = vadd.f32 0.0, %v581
    %v583 = vpop.f32.mrb[0].mxu0
    %584 = vmatprep.mubr.f32.mxu0 0.0
    %585 = vmatmul.mubr.f32.gmra.mrb[0].mxu0 %v199
    %v586 = vpop.f32.mrb[0].mxu0
    %v587 = vadd.f32 0.0, %v586
    %v588 = vpop.f32.mrb[0].mxu0
    %589 = vdwg.mxu0
    %v590 = vmul.f32 %v104, %v104
    %v591 = vmul.f32 %v105, %v105
    %v593 = vsel %vm112, %v590, 0
    %v596 = vsel %vm112, %v591, 0
    %598 = vmatprep.subr.mxu0 0.0
    %599 = vmatpush1.msra.mxu0 %v108
    %600 = vmatprep.subr.mxu0 0.0
    %601 = vmatpush1.msra.mxu0 %v109
    %602 = vmatprep.subr.mxu0 0.0
    %603 = vmatpush1.msra.mxu0 %v110
    %604 = vmatprep.subr.mxu0 0.0
    %605 = vmatpush1.msra.mxu0 %v111
    %606 = vmatprep.subr.mxu0 0.0
    %607 = vmatpush1.msra.mxu0 0.0
    %608 = vmatprep.subr.mxu0 0.0
    %609 = vmatpush1.msra.mxu0 0.0
    %610 = vmatprep.subr.mxu0 0.0
    %611 = vmatpush1.msra.mxu0 0.0
    %612 = vmatprep.subr.mxu0 0.0
    %613 = vmatpush1.msra.mxu0 0.0
    %614 = vmatprep.subr.mxu0 0.0
    %615 = vmatpush1.msra.mxu0 0.0
    %616 = vmatprep.subr.mxu0 0.0
    %617 = vmatpush1.msra.mxu0 0.0
    %618 = vmatprep.subr.mxu0 0.0
    %619 = vmatpush1.msra.mxu0 0.0
    %620 = vmatprep.subr.mxu0 0.0
    %621 = vmatpush1.msra.mxu0 0.0
    %622 = vmatprep.subr.mxu0 0.0
    %623 = vmatpush1.msra.mxu0 0.0
    %624 = vmatprep.subr.mxu0 0.0
    %625 = vmatpush1.msra.mxu0 0.0
    %626 = vmatprep.subr.mxu0 0.0
    %627 = vmatpush1.msra.mxu0 0.0
    %628 = vmatprep.subr.mxu0 0.0
    %629 = vmatpush1.msra.mxu0 0.0
    %630 = vmatprep.subr.mxu0 0.0
    %631 = vmatpush1.msra.mxu0 0.0
    %632 = vmatprep.subr.mxu0 0.0
    %633 = vmatpush1.msra.mxu0 0.0
    %634 = vmatprep.subr.mxu0 0.0
    %635 = vmatpush1.msra.mxu0 0.0
    %636 = vmatprep.subr.mxu0 0.0
    %637 = vmatpush1.msra.mxu0 0.0
    %638 = vmatprep.subr.mxu0 0.0
    %639 = vmatpush1.msra.mxu0 0.0
    %640 = vmatprep.subr.mxu0 0.0
    %641 = vmatpush1.msra.mxu0 0.0
    %642 = vmatprep.subr.mxu0 0.0
    %643 = vmatpush1.msra.mxu0 0.0
    %644 = vmatprep.subr.mxu0 0.0
    %645 = vmatpush1.msra.mxu0 0.0
    %646 = vmatprep.subr.mxu0 0.0
    %647 = vmatpush1.msra.mxu0 0.0
    %648 = vmatprep.subr.mxu0 0.0
    %649 = vmatpush1.msra.mxu0 0.0
    %650 = vmatprep.subr.mxu0 0.0
    %651 = vmatpush1.msra.mxu0 0.0
    %652 = vmatprep.subr.mxu0 0.0
    %653 = vmatpush1.msra.mxu0 0.0
    %654 = vmatprep.subr.mxu0 0.0
    %655 = vmatpush1.msra.mxu0 0.0
    %656 = vmatprep.subr.mxu0 0.0
    %657 = vmatpush1.msra.mxu0 0.0
    %658 = vmatprep.subr.mxu0 0.0
    %659 = vmatpush1.msra.mxu0 0.0
    %660 = vmatprep.subr.mxu0 0.0
    %661 = vmatpush1.msra.mxu0 0.0
    %662 = vmatprep.mubr.f32.mxu0 0.0
    %663 = vmatmul.mubr.f32.gmra.mrb[0].mxu0 %v593
    %v664 = vpop.f32.mrb[0].mxu0
    %v665 = vadd.f32 0.0, %v664
    %v666 = vpop.f32.mrb[0].mxu0
    %667 = vmatprep.mubr.f32.mxu0 0.0
    %668 = vmatmul.mubr.f32.gmra.mrb[0].mxu0 %v596
    %v669 = vpop.f32.mrb[0].mxu0
    %v670 = vadd.f32 0.0, %v669
    %v671 = vpop.f32.mrb[0].mxu0
    %672 = vdwg.mxu0
    %673 = vmatprep.subr.mxu0 0.0
    %674 = vmatpush1.msra.mxu0 %v665
    %675 = vmatprep.subr.mxu0 0.0
    %676 = vmatpush1.msra.mxu0 %v670
    %677 = vmatprep.subr.mxu0 0.0
    %678 = vmatpush1.msra.mxu0 0.0
    %679 = vmatprep.subr.mxu0 0.0
    %680 = vmatpush1.msra.mxu0 0.0
    %681 = vmatprep.subr.mxu0 0.0
    %682 = vmatpush1.msra.mxu0 0.0
    %683 = vmatprep.subr.mxu0 0.0
    %684 = vmatpush1.msra.mxu0 0.0
    %685 = vmatprep.subr.mxu0 0.0
    %686 = vmatpush1.msra.mxu0 0.0
    %687 = vmatprep.subr.mxu0 0.0
    %688 = vmatpush1.msra.mxu0 0.0
    %689 = vmatprep.subr.mxu0 0.0
    %690 = vmatpush1.msra.mxu0 0.0
    %691 = vmatprep.subr.mxu0 0.0
    %692 = vmatpush1.msra.mxu0 0.0
    %693 = vmatprep.subr.mxu0 0.0
    %694 = vmatpush1.msra.mxu0 0.0
    %695 = vmatprep.subr.mxu0 0.0
    %696 = vmatpush1.msra.mxu0 0.0
    %697 = vmatprep.subr.mxu0 0.0
    %698 = vmatpush1.msra.mxu0 0.0
    %699 = vmatprep.subr.mxu0 0.0
    %700 = vmatpush1.msra.mxu0 0.0
    %701 = vmatprep.subr.mxu0 0.0
    %702 = vmatpush1.msra.mxu0 0.0
    %703 = vmatprep.subr.mxu0 0.0
    %704 = vmatpush1.msra.mxu0 0.0
    %705 = vmatprep.subr.mxu0 0.0
    %706 = vmatpush1.msra.mxu0 0.0
    %707 = vmatprep.subr.mxu0 0.0
    %708 = vmatpush1.msra.mxu0 0.0
    %709 = vmatprep.subr.mxu0 0.0
    %710 = vmatpush1.msra.mxu0 0.0
    %711 = vmatprep.subr.mxu0 0.0
    %712 = vmatpush1.msra.mxu0 0.0
    %713 = vmatprep.subr.mxu0 0.0
    %714 = vmatpush1.msra.mxu0 0.0
    %715 = vmatprep.subr.mxu0 0.0
    %716 = vmatpush1.msra.mxu0 0.0
    %717 = vmatprep.subr.mxu0 0.0
    %718 = vmatpush1.msra.mxu0 0.0
    %719 = vmatprep.subr.mxu0 0.0
    %720 = vmatpush1.msra.mxu0 0.0
    %721 = vmatprep.subr.mxu0 0.0
    %722 = vmatpush1.msra.mxu0 0.0
    %723 = vmatprep.subr.mxu0 0.0
    %724 = vmatpush1.msra.mxu0 0.0
    %725 = vmatprep.subr.mxu0 0.0
    %726 = vmatpush1.msra.mxu0 0.0
    %727 = vmatprep.subr.mxu0 0.0
    %728 = vmatpush1.msra.mxu0 0.0
    %729 = vmatprep.subr.mxu0 0.0
    %730 = vmatpush1.msra.mxu0 0.0
    %731 = vmatprep.subr.mxu0 0.0
    %732 = vmatpush1.msra.mxu0 0.0
    %733 = vmatprep.subr.mxu0 0.0
    %734 = vmatpush1.msra.mxu0 0.0
    %735 = vmatprep.subr.mxu0 0.0
    %736 = vmatpush1.msra.mxu0 0.0
    %737 = vmatprep.mubr.f32.mxu0 0.0
    %738 = vmatmul.mubr.f32.gmra.mrb[0].mxu0 %v196
    %v739 = vpop.f32.mrb[0].mxu0
    %v740 = vadd.f32 0.0, %v739
    %v741 = vpop.f32.mrb[0].mxu0
    %742 = vmatprep.mubr.f32.mxu0 0.0
    %743 = vmatmul.mubr.f32.gmra.mrb[0].mxu0 %v199
    %v744 = vpop.f32.mrb[0].mxu0
    %v745 = vadd.f32 0.0, %v744
    %v746 = vpop.f32.mrb[0].mxu0
    %747 = vdwg.mxu0
    %v748 = vmul.f32 %v102, %v104
    %v749 = vmul.f32 %v103, %v105
    %v751 = vsel %vm112, %v748, 0
    %v754 = vsel %vm112, %v749, 0
    %756 = vmatprep.subr.mxu0 0.0
    %757 = vmatpush1.msra.mxu0 %v108
    %758 = vmatprep.subr.mxu0 0.0
    %759 = vmatpush1.msra.mxu0 %v109
    %760 = vmatprep.subr.mxu0 0.0
    %761 = vmatpush1.msra.mxu0 %v110
    %762 = vmatprep.subr.mxu0 0.0
    %763 = vmatpush1.msra.mxu0 %v111
    %764 = vmatprep.subr.mxu0 0.0
    %765 = vmatpush1.msra.mxu0 0.0
    %766 = vmatprep.subr.mxu0 0.0
    %767 = vmatpush1.msra.mxu0 0.0
    %768 = vmatprep.subr.mxu0 0.0
    %769 = vmatpush1.msra.mxu0 0.0
    %770 = vmatprep.subr.mxu0 0.0
    %771 = vmatpush1.msra.mxu0 0.0
    %772 = vmatprep.subr.mxu0 0.0
    %773 = vmatpush1.msra.mxu0 0.0
    %774 = vmatprep.subr.mxu0 0.0
    %775 = vmatpush1.msra.mxu0 0.0
    %776 = vmatprep.subr.mxu0 0.0
    %777 = vmatpush1.msra.mxu0 0.0
    %778 = vmatprep.subr.mxu0 0.0
    %779 = vmatpush1.msra.mxu0 0.0
    %780 = vmatprep.subr.mxu0 0.0
    %781 = vmatpush1.msra.mxu0 0.0
    %782 = vmatprep.subr.mxu0 0.0
    %783 = vmatpush1.msra.mxu0 0.0
    %784 = vmatprep.subr.mxu0 0.0
    %785 = vmatpush1.msra.mxu0 0.0
    %786 = vmatprep.subr.mxu0 0.0
    %787 = vmatpush1.msra.mxu0 0.0
    %788 = vmatprep.subr.mxu0 0.0
    %789 = vmatpush1.msra.mxu0 0.0
    %790 = vmatprep.subr.mxu0 0.0
    %791 = vmatpush1.msra.mxu0 0.0
    %792 = vmatprep.subr.mxu0 0.0
    %793 = vmatpush1.msra.mxu0 0.0
    %794 = vmatprep.subr.mxu0 0.0
    %795 = vmatpush1.msra.mxu0 0.0
    %796 = vmatprep.subr.mxu0 0.0
    %797 = vmatpush1.msra.mxu0 0.0
    %798 = vmatprep.subr.mxu0 0.0
    %799 = vmatpush1.msra.mxu0 0.0
    %800 = vmatprep.subr.mxu0 0.0
    %801 = vmatpush1.msra.mxu0 0.0
    %802 = vmatprep.subr.mxu0 0.0
    %803 = vmatpush1.msra.mxu0 0.0
    %804 = vmatprep.subr.mxu0 0.0
    %805 = vmatpush1.msra.mxu0 0.0
    %806 = vmatprep.subr.mxu0 0.0
    %807 = vmatpush1.msra.mxu0 0.0
    %808 = vmatprep.subr.mxu0 0.0
    %809 = vmatpush1.msra.mxu0 0.0
    %810 = vmatprep.subr.mxu0 0.0
    %811 = vmatpush1.msra.mxu0 0.0
    %812 = vmatprep.subr.mxu0 0.0
    %813 = vmatpush1.msra.mxu0 0.0
    %814 = vmatprep.subr.mxu0 0.0
    %815 = vmatpush1.msra.mxu0 0.0
    %816 = vmatprep.subr.mxu0 0.0
    %817 = vmatpush1.msra.mxu0 0.0
    %818 = vmatprep.subr.mxu0 0.0
    %819 = vmatpush1.msra.mxu0 0.0
    %820 = vmatprep.mubr.f32.mxu0 0.0
    %821 = vmatmul.mubr.f32.gmra.mrb[0].mxu0 %v751
    %v822 = vpop.f32.mrb[0].mxu0
    %v823 = vadd.f32 0.0, %v822
    %v824 = vpop.f32.mrb[0].mxu0
    %825 = vmatprep.mubr.f32.mxu0 0.0
    %826 = vmatmul.mubr.f32.gmra.mrb[0].mxu0 %v754
    %v827 = vpop.f32.mrb[0].mxu0
    %v828 = vadd.f32 0.0, %v827
    %v829 = vpop.f32.mrb[0].mxu0
    %830 = vdwg.mxu0
    %831 = vmatprep.subr.mxu0 0.0
    %832 = vmatpush1.msra.mxu0 %v823
    %833 = vmatprep.subr.mxu0 0.0
    %834 = vmatpush1.msra.mxu0 %v828
    %835 = vmatprep.subr.mxu0 0.0
    %836 = vmatpush1.msra.mxu0 0.0
    %837 = vmatprep.subr.mxu0 0.0
    %838 = vmatpush1.msra.mxu0 0.0
    %839 = vmatprep.subr.mxu0 0.0
    %840 = vmatpush1.msra.mxu0 0.0
    %841 = vmatprep.subr.mxu0 0.0
    %842 = vmatpush1.msra.mxu0 0.0
    %843 = vmatprep.subr.mxu0 0.0
    %844 = vmatpush1.msra.mxu0 0.0
    %845 = vmatprep.subr.mxu0 0.0
    %846 = vmatpush1.msra.mxu0 0.0
    %847 = vmatprep.subr.mxu0 0.0
    %848 = vmatpush1.msra.mxu0 0.0
    %849 = vmatprep.subr.mxu0 0.0
    %850 = vmatpush1.msra.mxu0 0.0
    %851 = vmatprep.subr.mxu0 0.0
    %852 = vmatpush1.msra.mxu0 0.0
    %853 = vmatprep.subr.mxu0 0.0
    %854 = vmatpush1.msra.mxu0 0.0
    %855 = vmatprep.subr.mxu0 0.0
    %856 = vmatpush1.msra.mxu0 0.0
    %857 = vmatprep.subr.mxu0 0.0
    %858 = vmatpush1.msra.mxu0 0.0
    %859 = vmatprep.subr.mxu0 0.0
    %860 = vmatpush1.msra.mxu0 0.0
    %861 = vmatprep.subr.mxu0 0.0
    %862 = vmatpush1.msra.mxu0 0.0
    %863 = vmatprep.subr.mxu0 0.0
    %864 = vmatpush1.msra.mxu0 0.0
    %865 = vmatprep.subr.mxu0 0.0
    %866 = vmatpush1.msra.mxu0 0.0
    %867 = vmatprep.subr.mxu0 0.0
    %868 = vmatpush1.msra.mxu0 0.0
    %869 = vmatprep.subr.mxu0 0.0
    %870 = vmatpush1.msra.mxu0 0.0
    %871 = vmatprep.subr.mxu0 0.0
    %872 = vmatpush1.msra.mxu0 0.0
    %873 = vmatprep.subr.mxu0 0.0
    %874 = vmatpush1.msra.mxu0 0.0
    %875 = vmatprep.subr.mxu0 0.0
    %876 = vmatpush1.msra.mxu0 0.0
    %877 = vmatprep.subr.mxu0 0.0
    %878 = vmatpush1.msra.mxu0 0.0
    %879 = vmatprep.subr.mxu0 0.0
    %880 = vmatpush1.msra.mxu0 0.0
    %881 = vmatprep.subr.mxu0 0.0
    %882 = vmatpush1.msra.mxu0 0.0
    %883 = vmatprep.subr.mxu0 0.0
    %884 = vmatpush1.msra.mxu0 0.0
    %885 = vmatprep.subr.mxu0 0.0
    %886 = vmatpush1.msra.mxu0 0.0
    %887 = vmatprep.subr.mxu0 0.0
    %888 = vmatpush1.msra.mxu0 0.0
    %889 = vmatprep.subr.mxu0 0.0
    %890 = vmatpush1.msra.mxu0 0.0
    %891 = vmatprep.subr.mxu0 0.0
    %892 = vmatpush1.msra.mxu0 0.0
    %893 = vmatprep.subr.mxu0 0.0
    %894 = vmatpush1.msra.mxu0 0.0
    %895 = vmatprep.mubr.f32.mxu0 0.0
    %896 = vmatmul.mubr.f32.gmra.mrb[0].mxu0 %v196
    %v897 = vpop.f32.mrb[0].mxu0
    %v898 = vadd.f32 0.0, %v897
    %v899 = vpop.f32.mrb[0].mxu0
    %900 = vmatprep.mubr.f32.mxu0 0.0
    %901 = vmatmul.mubr.f32.gmra.mrb[0].mxu0 %v199
    %v902 = vpop.f32.mrb[0].mxu0
    %v903 = vadd.f32 0.0, %v902
    %v904 = vpop.f32.mrb[0].mxu0
    %905 = vdwg.mxu0
    %v906 = vmul.f32 %v268, %v268
    %v907 = vmul.f32 %v273, %v273
    %v908 = vmul.f32 %v424, %v424
    %v909 = vmul.f32 %v429, %v429
    %v910 = vmul.f32 %v268, %v424
    %v911 = vmul.f32 %v273, %v429
    %v912 = vsub.f32 %v582, %v906
    %v913 = vsub.f32 %v587, %v907
    %v914 = vsub.f32 %v740, %v908
    %v915 = vsub.f32 %v745, %v909
    %v916 = vsub.f32 %v898, %v910
    %v917 = vsub.f32 %v903, %v911
    %v918 = vmul.f32 %v916, 2.0
    %v919 = vmul.f32 %v917, 2.0
    %v920 = vadd.f32 %v918, 0.0009
    %v921 = vadd.f32 %v919, 0.0009
    %v922 = vadd.f32 %v912, %v914
    %v923 = vadd.f32 %v913, %v915
    %v924 = vadd.f32 %v922, 0.0009
    %v925 = vadd.f32 %v923, 0.0009
    %v926 = vrcp.pop %v924
    %v927 = vmul.f32 %v920, %v926
    %v928 = vrcp.pop %v925
    %v929 = vmul.f32 %v921, %v928
    %v930 = vmul.f32 %v910, 2.0
    %v931 = vmul.f32 %v911, 2.0
    %v932 = vadd.f32 %v930, 0.0001
    %v933 = vadd.f32 %v931, 0.0001
    %v934 = vadd.f32 %v906, %v908
    %v935 = vadd.f32 %v907, %v909
    %v936 = vadd.f32 %v934, 0.0001
    %v937 = vadd.f32 %v935, 0.0001
    %v938 = vrcp.pop %v936
    %v939 = vmul.f32 %v932, %v938
    %v940 = vrcp.pop %v937
    %v941 = vmul.f32 %v933, %v940
    %v942 = vmul.f32 %v939, %v927
    %v943 = vmul.f32 %v941, %v929
    %vm944 = vcmask 228352
    %v945 = vsel %vm944, %v942, 0.0
    %v946 = vsel %vm944, %v943, 0.0
    %v947 = vadd.f32 %v945, %v946
    %948 = vadd.xlane.f32.xlu0 %v947
    %v949 = vpop.xlane.xlu0 %948
    %v950 = vrot.slane %v949, 4
    %v951 = vadd.f32 %v949, %v950
    %v952 = vrot.slane %v951, 2
    %v953 = vadd.f32 %v951, %v952
    %v954 = vrot.slane %v953, 1
    %v955 = vadd.f32 %v953, %v954
    %s956 = vtos %v955
    %v957 = vstv %s956
    %v958 = vsel %vm944, %v927, 0.0
    %v959 = vsel %vm944, %v929, 0.0
    %v960 = vadd.f32 %v958, %v959
    %961 = vadd.xlane.f32.xlu0 %v960
    %v962 = vpop.xlane.xlu0 %961
    %v963 = vrot.slane %v962, 4
    %v964 = vadd.f32 %v962, %v963
    %v965 = vrot.slane %v964, 2
    %v966 = vadd.f32 %v964, %v965
    %v967 = vrot.slane %v966, 1
    %v968 = vadd.f32 %v966, %v967
    %s969 = vtos %v968
    %v970 = vstv %s969
    %v971 = vld [vmem:[#allocation2] sm:$0x1]
    %v972 = vadd.f32 %v971, %v957
    %vm973 = vcmask 0
    %974 = vst.msk [vmem:[#allocation2] sm:$0x1] %vm973, %v972
    %v975 = vld [vmem:[#allocation5] sm:$0x1]
    %v976 = vadd.f32 %v975, %v970
    %977 = vst.msk [vmem:[#allocation5] sm:$0x1] %vm973, %v976
    %v978 = vld [vmem:[%s8] sm:$0xff]
    %v979 = vld [vmem:[%s10] sm:$0xff]
    %v980 = vld [vmem:[%s10 + $0x8] sm:$0xff]
    %v981 = vld [vmem:[%s10 + $0x10] sm:$0xff]
    %v982 = vld [vmem:[%s10 + $0x18] sm:$0xff]
    %983 = vmatprep.subr.mxu0 0.0
    %984 = vmatpush1.msra.mxu0 %v979
    %985 = vmatprep.subr.mxu0 0.0
    %986 = vmatpush1.msra.mxu0 %v980
    %987 = vmatprep.subr.mxu0 0.0
    %988 = vmatpush1.msra.mxu0 %v981
    %989 = vmatprep.subr.mxu0 0.0
    %990 = vmatpush1.msra.mxu0 %v982
    %991 = vmatprep.subr.mxu0 0.0
    %992 = vmatpush1.msra.mxu0 0.0
    %993 = vmatprep.subr.mxu0 0.0
    %994 = vmatpush1.msra.mxu0 0.0
    %995 = vmatprep.subr.mxu0 0.0
    %996 = vmatpush1.msra.mxu0 0.0
    %997 = vmatprep.subr.mxu0 0.0
    %998 = vmatpush1.msra.mxu0 0.0
    %999 = vmatprep.subr.mxu0 0.0
    %1000 = vmatpush1.msra.mxu0 0.0
    %1001 = vmatprep.subr.mxu0 0.0
    %1002 = vmatpush1.msra.mxu0 0.0
    %1003 = vmatprep.subr.mxu0 0.0
    %1004 = vmatpush1.msra.mxu0 0.0
    %1005 = vmatprep.subr.mxu0 0.0
    %1006 = vmatpush1.msra.mxu0 0.0
    %1007 = vmatprep.subr.mxu0 0.0
    %1008 = vmatpush1.msra.mxu0 0.0
    %1009 = vmatprep.subr.mxu0 0.0
    %1010 = vmatpush1.msra.mxu0 0.0
    %1011 = vmatprep.subr.mxu0 0.0
    %1012 = vmatpush1.msra.mxu0 0.0
    %1013 = vmatprep.subr.mxu0 0.0
    %1014 = vmatpush1.msra.mxu0 0.0
    %1015 = vmatprep.subr.mxu0 0.0
    %1016 = vmatpush1.msra.mxu0 0.0
    %1017 = vmatprep.subr.mxu0 0.0
    %1018 = vmatpush1.msra.mxu0 0.0
    %1019 = vmatprep.subr.mxu0 0.0
    %1020 = vmatpush1.msra.mxu0 0.0
    %1021 = vmatprep.subr.mxu0 0.0
    %1022 = vmatpush1.msra.mxu0 0.0
    %1023 = vmatprep.subr.mxu0 0.0
    %1024 = vmatpush1.msra.mxu0 0.0
    %1025 = vmatprep.subr.mxu0 0.0
    %1026 = vmatpush1.msra.mxu0 0.0
    %1027 = vmatprep.subr.mxu0 0.0
    %1028 = vmatpush1.msra.mxu0 0.0
    %1029 = vmatprep.subr.mxu0 0.0
    %1030 = vmatpush1.msra.mxu0 0.0
    %1031 = vmatprep.subr.mxu0 0.0
    %1032 = vmatpush1.msra.mxu0 0.0
    %1033 = vmatprep.subr.mxu0 0.0
    %1034 = vmatpush1.msra.mxu0 0.0
    %1035 = vmatprep.subr.mxu0 0.0
    %1036 = vmatpush1.msra.mxu0 0.0
    %1037 = vmatprep.subr.mxu0 0.0
    %1038 = vmatpush1.msra.mxu0 0.0
    %1039 = vmatprep.subr.mxu0 0.0
    %1040 = vmatpush1.msra.mxu0 0.0
    %1041 = vmatprep.subr.mxu0 0.0
    %1042 = vmatpush1.msra.mxu0 0.0
    %1043 = vmatprep.subr.mxu0 0.0
    %1044 = vmatpush1.msra.mxu0 0.0
    %1045 = vmatprep.subr.mxu0 0.0
    %1046 = vmatpush1.msra.mxu0 0.0
    %1047 = vmatprep.mubr.f32.mxu0 0.0
    %1048 = vmatmul.mubr.f32.gmra.mrb[0].mxu0 %v114
    %v1049 = vpop.f32.mrb[0].mxu0
    %v1050 = vadd.f32 0.0, %v1049
    %v1051 = vpop.f32.mrb[0].mxu0
    %1052 = vmatprep.mubr.f32.mxu0 0.0
    %1053 = vmatmul.mubr.f32.gmra.mrb[0].mxu0 %v117
    %v1054 = vpop.f32.mrb[0].mxu0
    %v1055 = vadd.f32 0.0, %v1054
    %v1056 = vpop.f32.mrb[0].mxu0
    %1057 = vdwg.mxu0
    %v1059 = vsel %vm194, %v978, 0
    %1061 = vmatprep.subr.mxu0 0.0
    %1062 = vmatpush1.msra.mxu0 %v1050
    %1063 = vmatprep.subr.mxu0 0.0
    %1064 = vmatpush1.msra.mxu0 %v1055
    %1065 = vmatprep.subr.mxu0 0.0
    %1066 = vmatpush1.msra.mxu0 0.0
    %1067 = vmatprep.subr.mxu0 0.0
    %1068 = vmatpush1.msra.mxu0 0.0
    %1069 = vmatprep.subr.mxu0 0.0
    %1070 = vmatpush1.msra.mxu0 0.0
    %1071 = vmatprep.subr.mxu0 0.0
    %1072 = vmatpush1.msra.mxu0 0.0
    %1073 = vmatprep.subr.mxu0 0.0
    %1074 = vmatpush1.msra.mxu0 0.0
    %1075 = vmatprep.subr.mxu0 0.0
    %1076 = vmatpush1.msra.mxu0 0.0
    %1077 = vmatprep.subr.mxu0 0.0
    %1078 = vmatpush1.msra.mxu0 0.0
    %1079 = vmatprep.subr.mxu0 0.0
    %1080 = vmatpush1.msra.mxu0 0.0
    %1081 = vmatprep.subr.mxu0 0.0
    %1082 = vmatpush1.msra.mxu0 0.0
    %1083 = vmatprep.subr.mxu0 0.0
    %1084 = vmatpush1.msra.mxu0 0.0
    %1085 = vmatprep.subr.mxu0 0.0
    %1086 = vmatpush1.msra.mxu0 0.0
    %1087 = vmatprep.subr.mxu0 0.0
    %1088 = vmatpush1.msra.mxu0 0.0
    %1089 = vmatprep.subr.mxu0 0.0
    %1090 = vmatpush1.msra.mxu0 0.0
    %1091 = vmatprep.subr.mxu0 0.0
    %1092 = vmatpush1.msra.mxu0 0.0
    %1093 = vmatprep.subr.mxu0 0.0
    %1094 = vmatpush1.msra.mxu0 0.0
    %1095 = vmatprep.subr.mxu0 0.0
    %1096 = vmatpush1.msra.mxu0 0.0
    %1097 = vmatprep.subr.mxu0 0.0
    %1098 = vmatpush1.msra.mxu0 0.0
    %1099 = vmatprep.subr.mxu0 0.0
    %1100 = vmatpush1.msra.mxu0 0.0
    %1101 = vmatprep.subr.mxu0 0.0
    %1102 = vmatpush1.msra.mxu0 0.0
    %1103 = vmatprep.subr.mxu0 0.0
    %1104 = vmatpush1.msra.mxu0 0.0
    %1105 = vmatprep.subr.mxu0 0.0
    %1106 = vmatpush1.msra.mxu0 0.0
    %1107 = vmatprep.subr.mxu0 0.0
    %1108 = vmatpush1.msra.mxu0 0.0
    %1109 = vmatprep.subr.mxu0 0.0
    %1110 = vmatpush1.msra.mxu0 0.0
    %1111 = vmatprep.subr.mxu0 0.0
    %1112 = vmatpush1.msra.mxu0 0.0
    %1113 = vmatprep.subr.mxu0 0.0
    %1114 = vmatpush1.msra.mxu0 0.0
    %1115 = vmatprep.subr.mxu0 0.0
    %1116 = vmatpush1.msra.mxu0 0.0
    %1117 = vmatprep.subr.mxu0 0.0
    %1118 = vmatpush1.msra.mxu0 0.0
    %1119 = vmatprep.subr.mxu0 0.0
    %1120 = vmatpush1.msra.mxu0 0.0
    %1121 = vmatprep.subr.mxu0 0.0
    %1122 = vmatpush1.msra.mxu0 0.0
    %1123 = vmatprep.subr.mxu0 0.0
    %1124 = vmatpush1.msra.mxu0 0.0
    %1125 = vmatprep.mubr.f32.mxu0 0.0
    %1126 = vmatmul.mubr.f32.gmra.mrb[0].mxu0 %v1059
    %v1127 = vpop.f32.mrb[0].mxu0
    %v1128 = vadd.f32 0.0, %v1127
    %v1129 = vpop.f32.mrb[0].mxu0
    %1130 = vdwg.mxu0
    %1131 = vmatprep.subr.mxu0 0.0
    %1132 = vmatpush1.msra.mxu0 %v979
    %1133 = vmatprep.subr.mxu0 0.0
    %1134 = vmatpush1.msra.mxu0 %v980
    %1135 = vmatprep.subr.mxu0 0.0
    %1136 = vmatpush1.msra.mxu0 %v981
    %1137 = vmatprep.subr.mxu0 0.0
    %1138 = vmatpush1.msra.mxu0 %v982
    %1139 = vmatprep.subr.mxu0 0.0
    %1140 = vmatpush1.msra.mxu0 0.0
    %1141 = vmatprep.subr.mxu0 0.0
    %1142 = vmatpush1.msra.mxu0 0.0
    %1143 = vmatprep.subr.mxu0 0.0
    %1144 = vmatpush1.msra.mxu0 0.0
    %1145 = vmatprep.subr.mxu0 0.0
    %1146 = vmatpush1.msra.mxu0 0.0
    %1147 = vmatprep.subr.mxu0 0.0
    %1148 = vmatpush1.msra.mxu0 0.0
    %1149 = vmatprep.subr.mxu0 0.0
    %1150 = vmatpush1.msra.mxu0 0.0
    %1151 = vmatprep.subr.mxu0 0.0
    %1152 = vmatpush1.msra.mxu0 0.0
    %1153 = vmatprep.subr.mxu0 0.0
    %1154 = vmatpush1.msra.mxu0 0.0
    %1155 = vmatprep.subr.mxu0 0.0
    %1156 = vmatpush1.msra.mxu0 0.0
    %1157 = vmatprep.subr.mxu0 0.0
    %1158 = vmatpush1.msra.mxu0 0.0
    %1159 = vmatprep.subr.mxu0 0.0
    %1160 = vmatpush1.msra.mxu0 0.0
    %1161 = vmatprep.subr.mxu0 0.0
    %1162 = vmatpush1.msra.mxu0 0.0
    %1163 = vmatprep.subr.mxu0 0.0
    %1164 = vmatpush1.msra.mxu0 0.0
    %1165 = vmatprep.subr.mxu0 0.0
    %1166 = vmatpush1.msra.mxu0 0.0
    %1167 = vmatprep.subr.mxu0 0.0
    %1168 = vmatpush1.msra.mxu0 0.0
    %1169 = vmatprep.subr.mxu0 0.0
    %1170 = vmatpush1.msra.mxu0 0.0
    %1171 = vmatprep.subr.mxu0 0.0
    %1172 = vmatpush1.msra.mxu0 0.0
    %1173 = vmatprep.subr.mxu0 0.0
    %1174 = vmatpush1.msra.mxu0 0.0
    %1175 = vmatprep.subr.mxu0 0.0
    %1176 = vmatpush1.msra.mxu0 0.0
    %1177 = vmatprep.subr.mxu0 0.0
    %1178 = vmatpush1.msra.mxu0 0.0
    %1179 = vmatprep.subr.mxu0 0.0
    %1180 = vmatpush1.msra.mxu0 0.0
    %1181 = vmatprep.subr.mxu0 0.0
    %1182 = vmatpush1.msra.mxu0 0.0
    %1183 = vmatprep.subr.mxu0 0.0
    %1184 = vmatpush1.msra.mxu0 0.0
    %1185 = vmatprep.subr.mxu0 0.0
    %1186 = vmatpush1.msra.mxu0 0.0
    %1187 = vmatprep.subr.mxu0 0.0
    %1188 = vmatpush1.msra.mxu0 0.0
    %1189 = vmatprep.subr.mxu0 0.0
    %1190 = vmatpush1.msra.mxu0 0.0
    %1191 = vmatprep.subr.mxu0 0.0
    %1192 = vmatpush1.msra.mxu0 0.0
    %1193 = vmatprep.subr.mxu0 0.0
    %1194 = vmatpush1.msra.mxu0 0.0
    %1195 = vmatprep.mubr.f32.mxu0 0.0
    %1196 = vmatmul.mubr.f32.gmra.mrb[0].mxu0 %v277
    %v1197 = vpop.f32.mrb[0].mxu0
    %v1198 = vadd.f32 0.0, %v1197
    %v1199 = vpop.f32.mrb[0].mxu0
    %1200 = vmatprep.mubr.f32.mxu0 0.0
    %1201 = vmatmul.mubr.f32.gmra.mrb[0].mxu0 %v280
    %v1202 = vpop.f32.mrb[0].mxu0
    %v1203 = vadd.f32 0.0, %v1202
    %v1204 = vpop.f32.mrb[0].mxu0
    %1205 = vdwg.mxu0
    %1206 = vmatprep.subr.mxu0 0.0
    %1207 = vmatpush1.msra.mxu0 %v1198
    %1208 = vmatprep.subr.mxu0 0.0
    %1209 = vmatpush1.msra.mxu0 %v1203
    %1210 = vmatprep.subr.mxu0 0.0
    %1211 = vmatpush1.msra.mxu0 0.0
    %1212 = vmatprep.subr.mxu0 0.0
    %1213 = vmatpush1.msra.mxu0 0.0
    %1214 = vmatprep.subr.mxu0 0.0
    %1215 = vmatpush1.msra.mxu0 0.0
    %1216 = vmatprep.subr.mxu0 0.0
    %1217 = vmatpush1.msra.mxu0 0.0
    %1218 = vmatprep.subr.mxu0 0.0
    %1219 = vmatpush1.msra.mxu0 0.0
    %1220 = vmatprep.subr.mxu0 0.0
    %1221 = vmatpush1.msra.mxu0 0.0
    %1222 = vmatprep.subr.mxu0 0.0
    %1223 = vmatpush1.msra.mxu0 0.0
    %1224 = vmatprep.subr.mxu0 0.0
    %1225 = vmatpush1.msra.mxu0 0.0
    %1226 = vmatprep.subr.mxu0 0.0
    %1227 = vmatpush1.msra.mxu0 0.0
    %1228 = vmatprep.subr.mxu0 0.0
    %1229 = vmatpush1.msra.mxu0 0.0
    %1230 = vmatprep.subr.mxu0 0.0
    %1231 = vmatpush1.msra.mxu0 0.0
    %1232 = vmatprep.subr.mxu0 0.0
    %1233 = vmatpush1.msra.mxu0 0.0
    %1234 = vmatprep.subr.mxu0 0.0
    %1235 = vmatpush1.msra.mxu0 0.0
    %1236 = vmatprep.subr.mxu0 0.0
    %1237 = vmatpush1.msra.mxu0 0.0
    %1238 = vmatprep.subr.mxu0 0.0
    %1239 = vmatpush1.msra.mxu0 0.0
    %1240 = vmatprep.subr.mxu0 0.0
    %1241 = vmatpush1.msra.mxu0 0.0
    %1242 = vmatprep.subr.mxu0 0.0
    %1243 = vmatpush1.msra.mxu0 0.0
    %1244 = vmatprep.subr.mxu0 0.0
    %1245 = vmatpush1.msra.mxu0 0.0
    %1246 = vmatprep.subr.mxu0 0.0
    %1247 = vmatpush1.msra.mxu0 0.0
    %1248 = vmatprep.subr.mxu0 0.0
    %1249 = vmatpush1.msra.mxu0 0.0
    %1250 = vmatprep.subr.mxu0 0.0
    %1251 = vmatpush1.msra.mxu0 0.0
    %1252 = vmatprep.subr.mxu0 0.0
    %1253 = vmatpush1.msra.mxu0 0.0
    %1254 = vmatprep.subr.mxu0 0.0
    %1255 = vmatpush1.msra.mxu0 0.0
    %1256 = vmatprep.subr.mxu0 0.0
    %1257 = vmatpush1.msra.mxu0 0.0
    %1258 = vmatprep.subr.mxu0 0.0
    %1259 = vmatpush1.msra.mxu0 0.0
    %1260 = vmatprep.subr.mxu0 0.0
    %1261 = vmatpush1.msra.mxu0 0.0
    %1262 = vmatprep.subr.mxu0 0.0
    %1263 = vmatpush1.msra.mxu0 0.0
    %1264 = vmatprep.subr.mxu0 0.0
    %1265 = vmatpush1.msra.mxu0 0.0
    %1266 = vmatprep.subr.mxu0 0.0
    %1267 = vmatpush1.msra.mxu0 0.0
    %1268 = vmatprep.subr.mxu0 0.0
    %1269 = vmatpush1.msra.mxu0 0.0
    %1270 = vmatprep.mubr.f32.mxu0 0.0
    %1271 = vmatmul.mubr.f32.gmra.mrb[0].mxu0 %v1059
    %v1272 = vpop.f32.mrb[0].mxu0
    %v1273 = vadd.f32 0.0, %v1272
    %v1274 = vpop.f32.mrb[0].mxu0
    %1275 = vdwg.mxu0
    %v1276 = vld [vmem:[%s3] sm:$0xff]
    %v1277 = vld [vmem:[%s6] sm:$0xff]
    %v1278 = vld [vmem:[%s6 + $0x8] sm:$0xff]
    %v1280 = vsel %vm194, %v1128, 0
    %1282 = vmatprep.subr.mxu0 0.0
    %1283 = vmatpush1.msra.mxu0 %v1277
    %1284 = vmatprep.subr.mxu0 0.0
    %1285 = vmatpush1.msra.mxu0 %v1278
    %1286 = vmatprep.subr.mxu0 0.0
    %1287 = vmatpush1.msra.mxu0 0.0
    %1288 = vmatprep.subr.mxu0 0.0
    %1289 = vmatpush1.msra.mxu0 0.0
    %1290 = vmatprep.subr.mxu0 0.0
    %1291 = vmatpush1.msra.mxu0 0.0
    %1292 = vmatprep.subr.mxu0 0.0
    %1293 = vmatpush1.msra.mxu0 0.0
    %1294 = vmatprep.subr.mxu0 0.0
    %1295 = vmatpush1.msra.mxu0 0.0
    %1296 = vmatprep.subr.mxu0 0.0
    %1297 = vmatpush1.msra.mxu0 0.0
    %1298 = vmatprep.subr.mxu0 0.0
    %1299 = vmatpush1.msra.mxu0 0.0
    %1300 = vmatprep.subr.mxu0 0.0
    %1301 = vmatpush1.msra.mxu0 0.0
    %1302 = vmatprep.subr.mxu0 0.0
    %1303 = vmatpush1.msra.mxu0 0.0
    %1304 = vmatprep.subr.mxu0 0.0
    %1305 = vmatpush1.msra.mxu0 0.0
    %1306 = vmatprep.subr.mxu0 0.0
    %1307 = vmatpush1.msra.mxu0 0.0
    %1308 = vmatprep.subr.mxu0 0.0
    %1309 = vmatpush1.msra.mxu0 0.0
    %1310 = vmatprep.subr.mxu0 0.0
    %1311 = vmatpush1.msra.mxu0 0.0
    %1312 = vmatprep.subr.mxu0 0.0
    %1313 = vmatpush1.msra.mxu0 0.0
    %1314 = vmatprep.subr.mxu0 0.0
    %1315 = vmatpush1.msra.mxu0 0.0
    %1316 = vmatprep.subr.mxu0 0.0
    %1317 = vmatpush1.msra.mxu0 0.0
    %1318 = vmatprep.subr.mxu0 0.0
    %1319 = vmatpush1.msra.mxu0 0.0
    %1320 = vmatprep.subr.mxu0 0.0
    %1321 = vmatpush1.msra.mxu0 0.0
    %1322 = vmatprep.subr.mxu0 0.0
    %1323 = vmatpush1.msra.mxu0 0.0
    %1324 = vmatprep.subr.mxu0 0.0
    %1325 = vmatpush1.msra.mxu0 0.0
    %1326 = vmatprep.subr.mxu0 0.0
    %1327 = vmatpush1.msra.mxu0 0.0
    %1328 = vmatprep.subr.mxu0 0.0
    %1329 = vmatpush1.msra.mxu0 0.0
    %1330 = vmatprep.subr.mxu0 0.0
    %1331 = vmatpush1.msra.mxu0 0.0
    %1332 = vmatprep.subr.mxu0 0.0
    %1333 = vmatpush1.msra.mxu0 0.0
    %1334 = vmatprep.subr.mxu0 0.0
    %1335 = vmatpush1.msra.mxu0 0.0
    %1336 = vmatprep.subr.mxu0 0.0
    %1337 = vmatpush1.msra.mxu0 0.0
    %1338 = vmatprep.subr.mxu0 0.0
    %1339 = vmatpush1.msra.mxu0 0.0
    %1340 = vmatprep.subr.mxu0 0.0
    %1341 = vmatpush1.msra.mxu0 0.0
    %1342 = vmatprep.subr.mxu0 0.0
    %1343 = vmatpush1.msra.mxu0 0.0
    %1344 = vmatprep.subr.mxu0 0.0
    %1345 = vmatpush1.msra.mxu0 0.0
    %1346 = vmatprep.mubr.f32.mxu0 0.0
    %1347 = vmatmul.mubr.f32.gmra.mrb[0].mxu0 %v1280
    %v1348 = vpop.f32.mrb[0].mxu0
    %v1349 = vadd.f32 0.0, %v1348
    %v1350 = vpop.f32.mrb[0].mxu0
    %1351 = vdwg.mxu0
    %vm1352 = vcmask 64512
    %v1354 = vsel %vm1352, %v1276, 0
    %1356 = vmatprep.subr.mxu0 0.0
    %1357 = vmatpush1.msra.mxu0 %v1349
    %1358 = vmatprep.subr.mxu0 0.0
    %1359 = vmatpush1.msra.mxu0 0.0
    %1360 = vmatprep.subr.mxu0 0.0
    %1361 = vmatpush1.msra.mxu0 0.0
    %1362 = vmatprep.subr.mxu0 0.0
    %1363 = vmatpush1.msra.mxu0 0.0
    %1364 = vmatprep.subr.mxu0 0.0
    %1365 = vmatpush1.msra.mxu0 0.0
    %1366 = vmatprep.subr.mxu0 0.0
    %1367 = vmatpush1.msra.mxu0 0.0
    %1368 = vmatprep.subr.mxu0 0.0
    %1369 = vmatpush1.msra.mxu0 0.0
    %1370 = vmatprep.subr.mxu0 0.0
    %1371 = vmatpush1.msra.mxu0 0.0
    %1372 = vmatprep.subr.mxu0 0.0
    %1373 = vmatpush1.msra.mxu0 0.0
    %1374 = vmatprep.subr.mxu0 0.0
    %1375 = vmatpush1.msra.mxu0 0.0
    %1376 = vmatprep.subr.mxu0 0.0
    %1377 = vmatpush1.msra.mxu0 0.0
    %1378 = vmatprep.subr.mxu0 0.0
    %1379 = vmatpush1.msra.mxu0 0.0
    %1380 = vmatprep.subr.mxu0 0.0
    %1381 = vmatpush1.msra.mxu0 0.0
    %1382 = vmatprep.subr.mxu0 0.0
    %1383 = vmatpush1.msra.mxu0 0.0
    %1384 = vmatprep.subr.mxu0 0.0
    %1385 = vmatpush1.msra.mxu0 0.0
    %1386 = vmatprep.subr.mxu0 0.0
    %1387 = vmatpush1.msra.mxu0 0.0
    %1388 = vmatprep.subr.mxu0 0.0
    %1389 = vmatpush1.msra.mxu0 0.0
    %1390 = vmatprep.subr.mxu0 0.0
    %1391 = vmatpush1.msra.mxu0 0.0
    %1392 = vmatprep.subr.mxu0 0.0
    %1393 = vmatpush1.msra.mxu0 0.0
    %1394 = vmatprep.subr.mxu0 0.0
    %1395 = vmatpush1.msra.mxu0 0.0
    %1396 = vmatprep.subr.mxu0 0.0
    %1397 = vmatpush1.msra.mxu0 0.0
    %1398 = vmatprep.subr.mxu0 0.0
    %1399 = vmatpush1.msra.mxu0 0.0
    %1400 = vmatprep.subr.mxu0 0.0
    %1401 = vmatpush1.msra.mxu0 0.0
    %1402 = vmatprep.subr.mxu0 0.0
    %1403 = vmatpush1.msra.mxu0 0.0
    %1404 = vmatprep.subr.mxu0 0.0
    %1405 = vmatpush1.msra.mxu0 0.0
    %1406 = vmatprep.subr.mxu0 0.0
    %1407 = vmatpush1.msra.mxu0 0.0
    %1408 = vmatprep.subr.mxu0 0.0
    %1409 = vmatpush1.msra.mxu0 0.0
    %1410 = vmatprep.subr.mxu0 0.0
    %1411 = vmatpush1.msra.mxu0 0.0
    %1412 = vmatprep.subr.mxu0 0.0
    %1413 = vmatpush1.msra.mxu0 0.0
    %1414 = vmatprep.subr.mxu0 0.0
    %1415 = vmatpush1.msra.mxu0 0.0
    %1416 = vmatprep.subr.mxu0 0.0
    %1417 = vmatpush1.msra.mxu0 0.0
    %1418 = vmatprep.subr.mxu0 0.0
    %1419 = vmatpush1.msra.mxu0 0.0
    %1420 = vmatprep.mubr.f32.mxu0 0.0
    %1421 = vmatmul.mubr.f32.gmra.mrb[0].mxu0 %v1354
    %v1422 = vpop.f32.mrb[0].mxu0
    %v1423 = vadd.f32 0.0, %v1422
    %v1424 = vpop.f32.mrb[0].mxu0
    %1425 = vdwg.mxu0
    %v1427 = vsel %vm194, %v1273, 0
    %1429 = vmatprep.subr.mxu0 0.0
    %1430 = vmatpush1.msra.mxu0 %v1277
    %1431 = vmatprep.subr.mxu0 0.0
    %1432 = vmatpush1.msra.mxu0 %v1278
    %1433 = vmatprep.subr.mxu0 0.0
    %1434 = vmatpush1.msra.mxu0 0.0
    %1435 = vmatprep.subr.mxu0 0.0
    %1436 = vmatpush1.msra.mxu0 0.0
    %1437 = vmatprep.subr.mxu0 0.0
    %1438 = vmatpush1.msra.mxu0 0.0
    %1439 = vmatprep.subr.mxu0 0.0
    %1440 = vmatpush1.msra.mxu0 0.0
    %1441 = vmatprep.subr.mxu0 0.0
    %1442 = vmatpush1.msra.mxu0 0.0
    %1443 = vmatprep.subr.mxu0 0.0
    %1444 = vmatpush1.msra.mxu0 0.0
    %1445 = vmatprep.subr.mxu0 0.0
    %1446 = vmatpush1.msra.mxu0 0.0
    %1447 = vmatprep.subr.mxu0 0.0
    %1448 = vmatpush1.msra.mxu0 0.0
    %1449 = vmatprep.subr.mxu0 0.0
    %1450 = vmatpush1.msra.mxu0 0.0
    %1451 = vmatprep.subr.mxu0 0.0
    %1452 = vmatpush1.msra.mxu0 0.0
    %1453 = vmatprep.subr.mxu0 0.0
    %1454 = vmatpush1.msra.mxu0 0.0
    %1455 = vmatprep.subr.mxu0 0.0
    %1456 = vmatpush1.msra.mxu0 0.0
    %1457 = vmatprep.subr.mxu0 0.0
    %1458 = vmatpush1.msra.mxu0 0.0
    %1459 = vmatprep.subr.mxu0 0.0
    %1460 = vmatpush1.msra.mxu0 0.0
    %1461 = vmatprep.subr.mxu0 0.0
    %1462 = vmatpush1.msra.mxu0 0.0
    %1463 = vmatprep.subr.mxu0 0.0
    %1464 = vmatpush1.msra.mxu0 0.0
    %1465 = vmatprep.subr.mxu0 0.0
    %1466 = vmatpush1.msra.mxu0 0.0
    %1467 = vmatprep.subr.mxu0 0.0
    %1468 = vmatpush1.msra.mxu0 0.0
    %1469 = vmatprep.subr.mxu0 0.0
    %1470 = vmatpush1.msra.mxu0 0.0
    %1471 = vmatprep.subr.mxu0 0.0
    %1472 = vmatpush1.msra.mxu0 0.0
    %1473 = vmatprep.subr.mxu0 0.0
    %1474 = vmatpush1.msra.mxu0 0.0
    %1475 = vmatprep.subr.mxu0 0.0
    %1476 = vmatpush1.msra.mxu0 0.0
    %1477 = vmatprep.subr.mxu0 0.0
    %1478 = vmatpush1.msra.mxu0 0.0
    %1479 = vmatprep.subr.mxu0 0.0
    %1480 = vmatpush1.msra.mxu0 0.0
    %1481 = vmatprep.subr.mxu0 0.0
    %1482 = vmatpush1.msra.mxu0 0.0
    %1483 = vmatprep.subr.mxu0 0.0
    %1484 = vmatpush1.msra.mxu0 0.0
    %1485 = vmatprep.subr.mxu0 0.0
    %1486 = vmatpush1.msra.mxu0 0.0
    %1487 = vmatprep.subr.mxu0 0.0
    %1488 = vmatpush1.msra.mxu0 0.0
    %1489 = vmatprep.subr.mxu0 0.0
    %1490 = vmatpush1.msra.mxu0 0.0
    %1491 = vmatprep.subr.mxu0 0.0
    %1492 = vmatpush1.msra.mxu0 0.0
    %1493 = vmatprep.mubr.f32.mxu0 0.0
    %1494 = vmatmul.mubr.f32.gmra.mrb[0].mxu0 %v1427
    %v1495 = vpop.f32.mrb[0].mxu0
    %v1496 = vadd.f32 0.0, %v1495
    %v1497 = vpop.f32.mrb[0].mxu0
    %1498 = vdwg.mxu0
    %1499 = vmatprep.subr.mxu0 0.0
    %1500 = vmatpush1.msra.mxu0 %v1496
    %1501 = vmatprep.subr.mxu0 0.0
    %1502 = vmatpush1.msra.mxu0 0.0
    %1503 = vmatprep.subr.mxu0 0.0
    %1504 = vmatpush1.msra.mxu0 0.0
    %1505 = vmatprep.subr.mxu0 0.0
    %1506 = vmatpush1.msra.mxu0 0.0
    %1507 = vmatprep.subr.mxu0 0.0
    %1508 = vmatpush1.msra.mxu0 0.0
    %1509 = vmatprep.subr.mxu0 0.0
    %1510 = vmatpush1.msra.mxu0 0.0
    %1511 = vmatprep.subr.mxu0 0.0
    %1512 = vmatpush1.msra.mxu0 0.0
    %1513 = vmatprep.subr.mxu0 0.0
    %1514 = vmatpush1.msra.mxu0 0.0
    %1515 = vmatprep.subr.mxu0 0.0
    %1516 = vmatpush1.msra.mxu0 0.0
    %1517 = vmatprep.subr.mxu0 0.0
    %1518 = vmatpush1.msra.mxu0 0.0
    %1519 = vmatprep.subr.mxu0 0.0
    %1520 = vmatpush1.msra.mxu0 0.0
    %1521 = vmatprep.subr.mxu0 0.0
    %1522 = vmatpush1.msra.mxu0 0.0
    %1523 = vmatprep.subr.mxu0 0.0
    %1524 = vmatpush1.msra.mxu0 0.0
    %1525 = vmatprep.subr.mxu0 0.0
    %1526 = vmatpush1.msra.mxu0 0.0
    %1527 = vmatprep.subr.mxu0 0.0
    %1528 = vmatpush1.msra.mxu0 0.0
    %1529 = vmatprep.subr.mxu0 0.0
    %1530 = vmatpush1.msra.mxu0 0.0
    %1531 = vmatprep.subr.mxu0 0.0
    %1532 = vmatpush1.msra.mxu0 0.0
    %1533 = vmatprep.subr.mxu0 0.0
    %1534 = vmatpush1.msra.mxu0 0.0
    %1535 = vmatprep.subr.mxu0 0.0
    %1536 = vmatpush1.msra.mxu0 0.0
    %1537 = vmatprep.subr.mxu0 0.0
    %1538 = vmatpush1.msra.mxu0 0.0
    %1539 = vmatprep.subr.mxu0 0.0
    %1540 = vmatpush1.msra.mxu0 0.0
    %1541 = vmatprep.subr.mxu0 0.0
    %1542 = vmatpush1.msra.mxu0 0.0
    %1543 = vmatprep.subr.mxu0 0.0
    %1544 = vmatpush1.msra.mxu0 0.0
    %1545 = vmatprep.subr.mxu0 0.0
    %1546 = vmatpush1.msra.mxu0 0.0
    %1547 = vmatprep.subr.mxu0 0.0
    %1548 = vmatpush1.msra.mxu0 0.0
    %1549 = vmatprep.subr.mxu0 0.0
    %1550 = vmatpush1.msra.mxu0 0.0
    %1551 = vmatprep.subr.mxu0 0.0
    %1552 = vmatpush1.msra.mxu0 0.0
    %1553 = vmatprep.subr.mxu0 0.0
    %1554 = vmatpush1.msra.mxu0 0.0
    %1555 = vmatprep.subr.mxu0 0.0
    %1556 = vmatpush1.msra.mxu0 0.0
    %1557 = vmatprep.subr.mxu0 0.0
    %1558 = vmatpush1.msra.mxu0 0.0
    %1559 = vmatprep.subr.mxu0 0.0
    %1560 = vmatpush1.msra.mxu0 0.0
    %1561 = vmatprep.subr.mxu0 0.0
    %1562 = vmatpush1.msra.mxu0 0.0
    %1563 = vmatprep.mubr.f32.mxu0 0.0
    %1564 = vmatmul.mubr.f32.gmra.mrb[0].mxu0 %v1354
    %v1565 = vpop.f32.mrb[0].mxu0
    %v1566 = vadd.f32 0.0, %v1565
    %v1567 = vpop.f32.mrb[0].mxu0
    %1568 = vdwg.mxu0
    %v1569 = vmul.f32 %v1128, %v1128
    %v1571 = vsel %vm194, %v1569, 0
    %1573 = vmatprep.subr.mxu0 0.0
    %1574 = vmatpush1.msra.mxu0 %v1277
    %1575 = vmatprep.subr.mxu0 0.0
    %1576 = vmatpush1.msra.mxu0 %v1278
    %1577 = vmatprep.subr.mxu0 0.0
    %1578 = vmatpush1.msra.mxu0 0.0
    %1579 = vmatprep.subr.mxu0 0.0
    %1580 = vmatpush1.msra.mxu0 0.0
    %1581 = vmatprep.subr.mxu0 0.0
    %1582 = vmatpush1.msra.mxu0 0.0
    %1583 = vmatprep.subr.mxu0 0.0
    %1584 = vmatpush1.msra.mxu0 0.0
    %1585 = vmatprep.subr.mxu0 0.0
    %1586 = vmatpush1.msra.mxu0 0.0
    %1587 = vmatprep.subr.mxu0 0.0
    %1588 = vmatpush1.msra.mxu0 0.0
    %1589 = vmatprep.subr.mxu0 0.0
    %1590 = vmatpush1.msra.mxu0 0.0
    %1591 = vmatprep.subr.mxu0 0.0
    %1592 = vmatpush1.msra.mxu0 0.0
    %1593 = vmatprep.subr.mxu0 0.0
    %1594 = vmatpush1.msra.mxu0 0.0
    %1595 = vmatprep.subr.mxu0 0.0
    %1596 = vmatpush1.msra.mxu0 0.0
    %1597 = vmatprep.subr.mxu0 0.0
    %1598 = vmatpush1.msra.mxu0 0.0
    %1599 = vmatprep.subr.mxu0 0.0
    %1600 = vmatpush1.msra.mxu0 0.0
    %1601 = vmatprep.subr.mxu0 0.0
    %1602 = vmatpush1.msra.mxu0 0.0
    %1603 = vmatprep.subr.mxu0 0.0
    %1604 = vmatpush1.msra.mxu0 0.0
    %1605 = vmatprep.subr.mxu0 0.0
    %1606 = vmatpush1.msra.mxu0 0.0
    %1607 = vmatprep.subr.mxu0 0.0
    %1608 = vmatpush1.msra.mxu0 0.0
    %1609 = vmatprep.subr.mxu0 0.0
    %1610 = vmatpush1.msra.mxu0 0.0
    %1611 = vmatprep.subr.mxu0 0.0
    %1612 = vmatpush1.msra.mxu0 0.0
    %1613 = vmatprep.subr.mxu0 0.0
    %1614 = vmatpush1.msra.mxu0 0.0
    %1615 = vmatprep.subr.mxu0 0.0
    %1616 = vmatpush1.msra.mxu0 0.0
    %1617 = vmatprep.subr.mxu0 0.0
    %1618 = vmatpush1.msra.mxu0 0.0
    %1619 = vmatprep.subr.mxu0 0.0
    %1620 = vmatpush1.msra.mxu0 0.0
    %1621 = vmatprep.subr.mxu0 0.0
    %1622 = vmatpush1.msra.mxu0 0.0
    %1623 = vmatprep.subr.mxu0 0.0
    %1624 = vmatpush1.msra.mxu0 0.0
    %1625 = vmatprep.subr.mxu0 0.0
    %1626 = vmatpush1.msra.mxu0 0.0
    %1627 = vmatprep.subr.mxu0 0.0
    %1628 = vmatpush1.msra.mxu0 0.0
    %1629 = vmatprep.subr.mxu0 0.0
    %1630 = vmatpush1.msra.mxu0 0.0
    %1631 = vmatprep.subr.mxu0 0.0
    %1632 = vmatpush1.msra.mxu0 0.0
    %1633 = vmatprep.subr.mxu0 0.0
    %1634 = vmatpush1.msra.mxu0 0.0
    %1635 = vmatprep.subr.mxu0 0.0
    %1636 = vmatpush1.msra.mxu0 0.0
    %1637 = vmatprep.mubr.f32.mxu0 0.0
    %1638 = vmatmul.mubr.f32.gmra.mrb[0].mxu0 %v1571
    %v1639 = vpop.f32.mrb[0].mxu0
    %v1640 = vadd.f32 0.0, %v1639
    %v1641 = vpop.f32.mrb[0].mxu0
    %1642 = vdwg.mxu0
    %1643 = vmatprep.subr.mxu0 0.0
    %1644 = vmatpush1.msra.mxu0 %v1640
    %1645 = vmatprep.subr.mxu0 0.0
    %1646 = vmatpush1.msra.mxu0 0.0
    %1647 = vmatprep.subr.mxu0 0.0
    %1648 = vmatpush1.msra.mxu0 0.0
    %1649 = vmatprep.subr.mxu0 0.0
    %1650 = vmatpush1.msra.mxu0 0.0
    %1651 = vmatprep.subr.mxu0 0.0
    %1652 = vmatpush1.msra.mxu0 0.0
    %1653 = vmatprep.subr.mxu0 0.0
    %1654 = vmatpush1.msra.mxu0 0.0
    %1655 = vmatprep.subr.mxu0 0.0
    %1656 = vmatpush1.msra.mxu0 0.0
    %1657 = vmatprep.subr.mxu0 0.0
    %1658 = vmatpush1.msra.mxu0 0.0
    %1659 = vmatprep.subr.mxu0 0.0
    %1660 = vmatpush1.msra.mxu0 0.0
    %1661 = vmatprep.subr.mxu0 0.0
    %1662 = vmatpush1.msra.mxu0 0.0
    %1663 = vmatprep.subr.mxu0 0.0
    %1664 = vmatpush1.msra.mxu0 0.0
    %1665 = vmatprep.subr.mxu0 0.0
    %1666 = vmatpush1.msra.mxu0 0.0
    %1667 = vmatprep.subr.mxu0 0.0
    %1668 = vmatpush1.msra.mxu0 0.0
    %1669 = vmatprep.subr.mxu0 0.0
    %1670 = vmatpush1.msra.mxu0 0.0
    %1671 = vmatprep.subr.mxu0 0.0
    %1672 = vmatpush1.msra.mxu0 0.0
    %1673 = vmatprep.subr.mxu0 0.0
    %1674 = vmatpush1.msra.mxu0 0.0
    %1675 = vmatprep.subr.mxu0 0.0
    %1676 = vmatpush1.msra.mxu0 0.0
    %1677 = vmatprep.subr.mxu0 0.0
    %1678 = vmatpush1.msra.mxu0 0.0
    %1679 = vmatprep.subr.mxu0 0.0
    %1680 = vmatpush1.msra.mxu0 0.0
    %1681 = vmatprep.subr.mxu0 0.0
    %1682 = vmatpush1.msra.mxu0 0.0
    %1683 = vmatprep.subr.mxu0 0.0
    %1684 = vmatpush1.msra.mxu0 0.0
    %1685 = vmatprep.subr.mxu0 0.0
    %1686 = vmatpush1.msra.mxu0 0.0
    %1687 = vmatprep.subr.mxu0 0.0
    %1688 = vmatpush1.msra.mxu0 0.0
    %1689 = vmatprep.subr.mxu0 0.0
    %1690 = vmatpush1.msra.mxu0 0.0
    %1691 = vmatprep.subr.mxu0 0.0
    %1692 = vmatpush1.msra.mxu0 0.0
    %1693 = vmatprep.subr.mxu0 0.0
    %1694 = vmatpush1.msra.mxu0 0.0
    %1695 = vmatprep.subr.mxu0 0.0
    %1696 = vmatpush1.msra.mxu0 0.0
    %1697 = vmatprep.subr.mxu0 0.0
    %1698 = vmatpush1.msra.mxu0 0.0
    %1699 = vmatprep.subr.mxu0 0.0
    %1700 = vmatpush1.msra.mxu0 0.0
    %1701 = vmatprep.subr.mxu0 0.0
    %1702 = vmatpush1.msra.mxu0 0.0
    %1703 = vmatprep.subr.mxu0 0.0
    %1704 = vmatpush1.msra.mxu0 0.0
    %1705 = vmatprep.subr.mxu0 0.0
    %1706 = vmatpush1.msra.mxu0 0.0
    %1707 = vmatprep.mubr.f32.mxu0 0.0
    %1708 = vmatmul.mubr.f32.gmra.mrb[0].mxu0 %v1354
    %v1709 = vpop.f32.mrb[0].mxu0
    %v1710 = vadd.f32 0.0, %v1709
    %v1711 = vpop.f32.mrb[0].mxu0
    %1712 = vdwg.mxu0
    %v1713 = vmul.f32 %v1273, %v1273
    %v1715 = vsel %vm194, %v1713, 0
    %1717 = vmatprep.subr.mxu0 0.0
    %1718 = vmatpush1.msra.mxu0 %v1277
    %1719 = vmatprep.subr.mxu0 0.0
    %1720 = vmatpush1.msra.mxu0 %v1278
    %1721 = vmatprep.subr.mxu0 0.0
    %1722 = vmatpush1.msra.mxu0 0.0
    %1723 = vmatprep.subr.mxu0 0.0
    %1724 = vmatpush1.msra.mxu0 0.0
    %1725 = vmatprep.subr.mxu0 0.0
    %1726 = vmatpush1.msra.mxu0 0.0
    %1727 = vmatprep.subr.mxu0 0.0
    %1728 = vmatpush1.msra.mxu0 0.0
    %1729 = vmatprep.subr.mxu0 0.0
    %1730 = vmatpush1.msra.mxu0 0.0
    %1731 = vmatprep.subr.mxu0 0.0
    %1732 = vmatpush1.msra.mxu0 0.0
    %1733 = vmatprep.subr.mxu0 0.0
    %1734 = vmatpush1.msra.mxu0 0.0
    %1735 = vmatprep.subr.mxu0 0.0
    %1736 = vmatpush1.msra.mxu0 0.0
    %1737 = vmatprep.subr.mxu0 0.0
    %1738 = vmatpush1.msra.mxu0 0.0
    %1739 = vmatprep.subr.mxu0 0.0
    %1740 = vmatpush1.msra.mxu0 0.0
    %1741 = vmatprep.subr.mxu0 0.0
    %1742 = vmatpush1.msra.mxu0 0.0
    %1743 = vmatprep.subr.mxu0 0.0
    %1744 = vmatpush1.msra.mxu0 0.0
    %1745 = vmatprep.subr.mxu0 0.0
    %1746 = vmatpush1.msra.mxu0 0.0
    %1747 = vmatprep.subr.mxu0 0.0
    %1748 = vmatpush1.msra.mxu0 0.0
    %1749 = vmatprep.subr.mxu0 0.0
    %1750 = vmatpush1.msra.mxu0 0.0
    %1751 = vmatprep.subr.mxu0 0.0
    %1752 = vmatpush1.msra.mxu0 0.0
    %1753 = vmatprep.subr.mxu0 0.0
    %1754 = vmatpush1.msra.mxu0 0.0
    %1755 = vmatprep.subr.mxu0 0.0
    %1756 = vmatpush1.msra.mxu0 0.0
    %1757 = vmatprep.subr.mxu0 0.0
    %1758 = vmatpush1.msra.mxu0 0.0
    %1759 = vmatprep.subr.mxu0 0.0
    %1760 = vmatpush1.msra.mxu0 0.0
    %1761 = vmatprep.subr.mxu0 0.0
    %1762 = vmatpush1.msra.mxu0 0.0
    %1763 = vmatprep.subr.mxu0 0.0
    %1764 = vmatpush1.msra.mxu0 0.0
    %1765 = vmatprep.subr.mxu0 0.0
    %1766 = vmatpush1.msra.mxu0 0.0
    %1767 = vmatprep.subr.mxu0 0.0
    %1768 = vmatpush1.msra.mxu0 0.0
    %1769 = vmatprep.subr.mxu0 0.0
    %1770 = vmatpush1.msra.mxu0 0.0
    %1771 = vmatprep.subr.mxu0 0.0
    %1772 = vmatpush1.msra.mxu0 0.0
    %1773 = vmatprep.subr.mxu0 0.0
    %1774 = vmatpush1.msra.mxu0 0.0
    %1775 = vmatprep.subr.mxu0 0.0
    %1776 = vmatpush1.msra.mxu0 0.0
    %1777 = vmatprep.subr.mxu0 0.0
    %1778 = vmatpush1.msra.mxu0 0.0
    %1779 = vmatprep.subr.mxu0 0.0
    %1780 = vmatpush1.msra.mxu0 0.0
    %1781 = vmatprep.mubr.f32.mxu0 0.0
    %1782 = vmatmul.mubr.f32.gmra.mrb[0].mxu0 %v1715
    %v1783 = vpop.f32.mrb[0].mxu0
    %v1784 = vadd.f32 0.0, %v1783
    %v1785 = vpop.f32.mrb[0].mxu0
    %1786 = vdwg.mxu0
    %1787 = vmatprep.subr.mxu0 0.0
    %1788 = vmatpush1.msra.mxu0 %v1784
    %1789 = vmatprep.subr.mxu0 0.0
    %1790 = vmatpush1.msra.mxu0 0.0
    %1791 = vmatprep.subr.mxu0 0.0
    %1792 = vmatpush1.msra.mxu0 0.0
    %1793 = vmatprep.subr.mxu0 0.0
    %1794 = vmatpush1.msra.mxu0 0.0
    %1795 = vmatprep.subr.mxu0 0.0
    %1796 = vmatpush1.msra.mxu0 0.0
    %1797 = vmatprep.subr.mxu0 0.0
    %1798 = vmatpush1.msra.mxu0 0.0
    %1799 = vmatprep.subr.mxu0 0.0
    %1800 = vmatpush1.msra.mxu0 0.0
    %1801 = vmatprep.subr.mxu0 0.0
    %1802 = vmatpush1.msra.mxu0 0.0
    %1803 = vmatprep.subr.mxu0 0.0
    %1804 = vmatpush1.msra.mxu0 0.0
    %1805 = vmatprep.subr.mxu0 0.0
    %1806 = vmatpush1.msra.mxu0 0.0
    %1807 = vmatprep.subr.mxu0 0.0
    %1808 = vmatpush1.msra.mxu0 0.0
    %1809 = vmatprep.subr.mxu0 0.0
    %1810 = vmatpush1.msra.mxu0 0.0
    %1811 = vmatprep.subr.mxu0 0.0
    %1812 = vmatpush1.msra.mxu0 0.0
    %1813 = vmatprep.subr.mxu0 0.0
    %1814 = vmatpush1.msra.mxu0 0.0
    %1815 = vmatprep.subr.mxu0 0.0
    %1816 = vmatpush1.msra.mxu0 0.0
    %1817 = vmatprep.subr.mxu0 0.0
    %1818 = vmatpush1.msra.mxu0 0.0
    %1819 = vmatprep.subr.mxu0 0.0
    %1820 = vmatpush1.msra.mxu0 0.0
    %1821 = vmatprep.subr.mxu0 0.0
    %1822 = vmatpush1.msra.mxu0 0.0
    %1823 = vmatprep.subr.mxu0 0.0
    %1824 = vmatpush1.msra.mxu0 0.0
    %1825 = vmatprep.subr.mxu0 0.0
    %1826 = vmatpush1.msra.mxu0 0.0
    %1827 = vmatprep.subr.mxu0 0.0
    %1828 = vmatpush1.msra.mxu0 0.0
    %1829 = vmatprep.subr.mxu0 0.0
    %1830 = vmatpush1.msra.mxu0 0.0
    %1831 = vmatprep.subr.mxu0 0.0
    %1832 = vmatpush1.msra.mxu0 0.0
    %1833 = vmatprep.subr.mxu0 0.0
    %1834 = vmatpush1.msra.mxu0 0.0
    %1835 = vmatprep.subr.mxu0 0.0
    %1836 = vmatpush1.msra.mxu0 0.0
    %1837 = vmatprep.subr.mxu0 0.0
    %1838 = vmatpush1.msra.mxu0 0.0
    %1839 = vmatprep.subr.mxu0 0.0
    %1840 = vmatpush1.msra.mxu0 0.0
    %1841 = vmatprep.subr.mxu0 0.0
    %1842 = vmatpush1.msra.mxu0 0.0
    %1843 = vmatprep.subr.mxu0 0.0
    %1844 = vmatpush1.msra.mxu0 0.0
    %1845 = vmatprep.subr.mxu0 0.0
    %1846 = vmatpush1.msra.mxu0 0.0
    %1847 = vmatprep.subr.mxu0 0.0
    %1848 = vmatpush1.msra.mxu0 0.0
    %1849 = vmatprep.subr.mxu0 0.0
    %1850 = vmatpush1.msra.mxu0 0.0
    %1851 = vmatprep.mubr.f32.mxu0 0.0
    %1852 = vmatmul.mubr.f32.gmra.mrb[0].mxu0 %v1354
    %v1853 = vpop.f32.mrb[0].mxu0
    %v1854 = vadd.f32 0.0, %v1853
    %v1855 = vpop.f32.mrb[0].mxu0
    %1856 = vdwg.mxu0
    %v1857 = vmul.f32 %v1128, %v1273
    %v1859 = vsel %vm194, %v1857, 0
    %1861 = vmatprep.subr.mxu0 0.0
    %1862 = vmatpush1.msra.mxu0 %v1277
    %1863 = vmatprep.subr.mxu0 0.0
    %1864 = vmatpush1.msra.mxu0 %v1278
    %1865 = vmatprep.subr.mxu0 0.0
    %1866 = vmatpush1.msra.mxu0 0.0
    %1867 = vmatprep.subr.mxu0 0.0
    %1868 = vmatpush1.msra.mxu0 0.0
    %1869 = vmatprep.subr.mxu0 0.0
    %1870 = vmatpush1.msra.mxu0 0.0
    %1871 = vmatprep.subr.mxu0 0.0
    %1872 = vmatpush1.msra.mxu0 0.0
    %1873 = vmatprep.subr.mxu0 0.0
    %1874 = vmatpush1.msra.mxu0 0.0
    %1875 = vmatprep.subr.mxu0 0.0
    %1876 = vmatpush1.msra.mxu0 0.0
    %1877 = vmatprep.subr.mxu0 0.0
    %1878 = vmatpush1.msra.mxu0 0.0
    %1879 = vmatprep.subr.mxu0 0.0
    %1880 = vmatpush1.msra.mxu0 0.0
    %1881 = vmatprep.subr.mxu0 0.0
    %1882 = vmatpush1.msra.mxu0 0.0
    %1883 = vmatprep.subr.mxu0 0.0
    %1884 = vmatpush1.msra.mxu0 0.0
    %1885 = vmatprep.subr.mxu0 0.0
    %1886 = vmatpush1.msra.mxu0 0.0
    %1887 = vmatprep.subr.mxu0 0.0
    %1888 = vmatpush1.msra.mxu0 0.0
    %1889 = vmatprep.subr.mxu0 0.0
    %1890 = vmatpush1.msra.mxu0 0.0
    %1891 = vmatprep.subr.mxu0 0.0
    %1892 = vmatpush1.msra.mxu0 0.0
    %1893 = vmatprep.subr.mxu0 0.0
    %1894 = vmatpush1.msra.mxu0 0.0
    %1895 = vmatprep.subr.mxu0 0.0
    %1896 = vmatpush1.msra.mxu0 0.0
    %1897 = vmatprep.subr.mxu0 0.0
    %1898 = vmatpush1.msra.mxu0 0.0
    %1899 = vmatprep.subr.mxu0 0.0
    %1900 = vmatpush1.msra.mxu0 0.0
    %1901 = vmatprep.subr.mxu0 0.0
    %1902 = vmatpush1.msra.mxu0 0.0
    %1903 = vmatprep.subr.mxu0 0.0
    %1904 = vmatpush1.msra.mxu0 0.0
    %1905 = vmatprep.subr.mxu0 0.0
    %1906 = vmatpush1.msra.mxu0 0.0
    %1907 = vmatprep.subr.mxu0 0.0
    %1908 = vmatpush1.msra.mxu0 0.0
    %1909 = vmatprep.subr.mxu0 0.0
    %1910 = vmatpush1.msra.mxu0 0.0
    %1911 = vmatprep.subr.mxu0 0.0
    %1912 = vmatpush1.msra.mxu0 0.0
    %1913 = vmatprep.subr.mxu0 0.0
    %1914 = vmatpush1.msra.mxu0 0.0
    %1915 = vmatprep.subr.mxu0 0.0
    %1916 = vmatpush1.msra.mxu0 0.0
    %1917 = vmatprep.subr.mxu0 0.0
    %1918 = vmatpush1.msra.mxu0 0.0
    %1919 = vmatprep.subr.mxu0 0.0
    %1920 = vmatpush1.msra.mxu0 0.0
    %1921 = vmatprep.subr.mxu0 0.0
    %1922 = vmatpush1.msra.mxu0 0.0
    %1923 = vmatprep.subr.mxu0 0.0
    %1924 = vmatpush1.msra.mxu0 0.0
    %1925 = vmatprep.mubr.f32.mxu0 0.0
    %1926 = vmatmul.mubr.f32.gmra.mrb[0].mxu0 %v1859
    %v1927 = vpop.f32.mrb[0].mxu0
    %v1928 = vadd.f32 0.0, %v1927
    %v1929 = vpop.f32.mrb[0].mxu0
    %1930 = vdwg.mxu0
    %1931 = vmatprep.subr.mxu0 0.0
    %1932 = vmatpush1.msra.mxu0 %v1928
    %1933 = vmatprep.subr.mxu0 0.0
    %1934 = vmatpush1.msra.mxu0 0.0
    %1935 = vmatprep.subr.mxu0 0.0
    %1936 = vmatpush1.msra.mxu0 0.0
    %1937 = vmatprep.subr.mxu0 0.0
    %1938 = vmatpush1.msra.mxu0 0.0
    %1939 = vmatprep.subr.mxu0 0.0
    %1940 = vmatpush1.msra.mxu0 0.0
    %1941 = vmatprep.subr.mxu0 0.0
    %1942 = vmatpush1.msra.mxu0 0.0
    %1943 = vmatprep.subr.mxu0 0.0
    %1944 = vmatpush1.msra.mxu0 0.0
    %1945 = vmatprep.subr.mxu0 0.0
    %1946 = vmatpush1.msra.mxu0 0.0
    %1947 = vmatprep.subr.mxu0 0.0
    %1948 = vmatpush1.msra.mxu0 0.0
    %1949 = vmatprep.subr.mxu0 0.0
    %1950 = vmatpush1.msra.mxu0 0.0
    %1951 = vmatprep.subr.mxu0 0.0
    %1952 = vmatpush1.msra.mxu0 0.0
    %1953 = vmatprep.subr.mxu0 0.0
    %1954 = vmatpush1.msra.mxu0 0.0
    %1955 = vmatprep.subr.mxu0 0.0
    %1956 = vmatpush1.msra.mxu0 0.0
    %1957 = vmatprep.subr.mxu0 0.0
    %1958 = vmatpush1.msra.mxu0 0.0
    %1959 = vmatprep.subr.mxu0 0.0
    %1960 = vmatpush1.msra.mxu0 0.0
    %1961 = vmatprep.subr.mxu0 0.0
    %1962 = vmatpush1.msra.mxu0 0.0
    %1963 = vmatprep.subr.mxu0 0.0
    %1964 = vmatpush1.msra.mxu0 0.0
    %1965 = vmatprep.subr.mxu0 0.0
    %1966 = vmatpush1.msra.mxu0 0.0
    %1967 = vmatprep.subr.mxu0 0.0
    %1968 = vmatpush1.msra.mxu0 0.0
    %1969 = vmatprep.subr.mxu0 0.0
    %1970 = vmatpush1.msra.mxu0 0.0
    %1971 = vmatprep.subr.mxu0 0.0
    %1972 = vmatpush1.msra.mxu0 0.0
    %1973 = vmatprep.subr.mxu0 0.0
    %1974 = vmatpush1.msra.mxu0 0.0
    %1975 = vmatprep.subr.mxu0 0.0
    %1976 = vmatpush1.msra.mxu0 0.0
    %1977 = vmatprep.subr.mxu0 0.0
    %1978 = vmatpush1.msra.mxu0 0.0
    %1979 = vmatprep.subr.mxu0 0.0
    %1980 = vmatpush1.msra.mxu0 0.0
    %1981 = vmatprep.subr.mxu0 0.0
    %1982 = vmatpush1.msra.mxu0 0.0
    %1983 = vmatprep.subr.mxu0 0.0
    %1984 = vmatpush1.msra.mxu0 0.0
    %1985 = vmatprep.subr.mxu0 0.0
    %1986 = vmatpush1.msra.mxu0 0.0
    %1987 = vmatprep.subr.mxu0 0.0
    %1988 = vmatpush1.msra.mxu0 0.0
    %1989 = vmatprep.subr.mxu0 0.0
    %1990 = vmatpush1.msra.mxu0 0.0
    %1991 = vmatprep.subr.mxu0 0.0
    %1992 = vmatpush1.msra.mxu0 0.0
    %1993 = vmatprep.subr.mxu0 0.0
    %1994 = vmatpush1.msra.mxu0 0.0
    %1995 = vmatprep.mubr.f32.mxu0 0.0
    %1996 = vmatmul.mubr.f32.gmra.mrb[0].mxu0 %v1354
    %v1997 = vpop.f32.mrb[0].mxu0
    %v1998 = vadd.f32 0.0, %v1997
    %v1999 = vpop.f32.mrb[0].mxu0
    %2000 = vdwg.mxu0
    %v2001 = vmul.f32 %v1423, %v1423
    %v2002 = vmul.f32 %v1566, %v1566
    %v2003 = vmul.f32 %v1423, %v1566
    %v2004 = vsub.f32 %v1710, %v2001
    %v2005 = vsub.f32 %v1854, %v2002
    %v2006 = vsub.f32 %v1998, %v2003
    %v2007 = vmul.f32 %v2006, 2.0
    %v2008 = vadd.f32 %v2007, 0.0009
    %v2009 = vadd.f32 %v2004, %v2005
    %v2010 = vadd.f32 %v2009, 0.0009
    %v2011 = vrcp.pop %v2010
    %v2012 = vmul.f32 %v2008, %v2011
    %v2013 = vmul.f32 %v2003, 2.0
    %v2014 = vadd.f32 %v2013, 0.0001
    %v2015 = vadd.f32 %v2001, %v2002
    %v2016 = vadd.f32 %v2015, 0.0001
    %v2017 = vrcp.pop %v2016
    %v2018 = vmul.f32 %v2014, %v2017
    %v2019 = vmul.f32 %v2018, %v2012
    %vm2020 = vcmask 97280
    %v2021 = vsel %vm2020, %v2019, 0.0
    %2022 = vadd.xlane.f32.xlu0 %v2021
    %v2023 = vpop.xlane.xlu0 %2022
    %v2024 = vrot.slane %v2023, 4
    %v2025 = vadd.f32 %v2023, %v2024
    %v2026 = vrot.slane %v2025, 2
    %v2027 = vadd.f32 %v2025, %v2026
    %v2028 = vrot.slane %v2027, 1
    %v2029 = vadd.f32 %v2027, %v2028
    %s2030 = vtos %v2029
    %v2031 = vstv %s2030
    %v2032 = vsel %vm2020, %v2012, 0.0
    %2033 = vadd.xlane.f32.xlu0 %v2032
    %v2034 = vpop.xlane.xlu0 %2033
    %v2035 = vrot.slane %v2034, 4
    %v2036 = vadd.f32 %v2034, %v2035
    %v2037 = vrot.slane %v2036, 2
    %v2038 = vadd.f32 %v2036, %v2037
    %v2039 = vrot.slane %v2038, 1
    %v2040 = vadd.f32 %v2038, %v2039
    %s2041 = vtos %v2040
    %v2042 = vstv %s2041
    %v2043 = vld [vmem:[#allocation3] sm:$0x1]
    %v2044 = vadd.f32 %v2043, %v2031
    %2045 = vst.msk [vmem:[#allocation3] sm:$0x1] %vm973, %v2044
    %v2046 = vld [vmem:[#allocation6] sm:$0x1]
    %v2047 = vadd.f32 %v2046, %v2042
    %2048 = vst.msk [vmem:[#allocation6] sm:$0x1] %vm973, %v2047
    %v2049 = vld [vmem:[%s9] sm:$0xf]
    %v2050 = vld [vmem:[%s11] sm:$0xff]
    %v2051 = vld [vmem:[%s11 + $0x8] sm:$0xff]
    %2052 = vmatprep.subr.mxu0 0.0
    %2053 = vmatpush1.msra.mxu0 %v2050
    %2054 = vmatprep.subr.mxu0 0.0
    %2055 = vmatpush1.msra.mxu0 %v2051
    %2056 = vmatprep.subr.mxu0 0.0
    %2057 = vmatpush1.msra.mxu0 0.0
    %2058 = vmatprep.subr.mxu0 0.0
    %2059 = vmatpush1.msra.mxu0 0.0
    %2060 = vmatprep.subr.mxu0 0.0
    %2061 = vmatpush1.msra.mxu0 0.0
    %2062 = vmatprep.subr.mxu0 0.0
    %2063 = vmatpush1.msra.mxu0 0.0
    %2064 = vmatprep.subr.mxu0 0.0
    %2065 = vmatpush1.msra.mxu0 0.0
    %2066 = vmatprep.subr.mxu0 0.0
    %2067 = vmatpush1.msra.mxu0 0.0
    %2068 = vmatprep.subr.mxu0 0.0
    %2069 = vmatpush1.msra.mxu0 0.0
    %2070 = vmatprep.subr.mxu0 0.0
    %2071 = vmatpush1.msra.mxu0 0.0
    %2072 = vmatprep.subr.mxu0 0.0
    %2073 = vmatpush1.msra.mxu0 0.0
    %2074 = vmatprep.subr.mxu0 0.0
    %2075 = vmatpush1.msra.mxu0 0.0
    %2076 = vmatprep.subr.mxu0 0.0
    %2077 = vmatpush1.msra.mxu0 0.0
    %2078 = vmatprep.subr.mxu0 0.0
    %2079 = vmatpush1.msra.mxu0 0.0
    %2080 = vmatprep.subr.mxu0 0.0
    %2081 = vmatpush1.msra.mxu0 0.0
    %2082 = vmatprep.subr.mxu0 0.0
    %2083 = vmatpush1.msra.mxu0 0.0
    %2084 = vmatprep.subr.mxu0 0.0
    %2085 = vmatpush1.msra.mxu0 0.0
    %2086 = vmatprep.subr.mxu0 0.0
    %2087 = vmatpush1.msra.mxu0 0.0
    %2088 = vmatprep.subr.mxu0 0.0
    %2089 = vmatpush1.msra.mxu0 0.0
    %2090 = vmatprep.subr.mxu0 0.0
    %2091 = vmatpush1.msra.mxu0 0.0
    %2092 = vmatprep.subr.mxu0 0.0
    %2093 = vmatpush1.msra.mxu0 0.0
    %2094 = vmatprep.subr.mxu0 0.0
    %2095 = vmatpush1.msra.mxu0 0.0
    %2096 = vmatprep.subr.mxu0 0.0
    %2097 = vmatpush1.msra.mxu0 0.0
    %2098 = vmatprep.subr.mxu0 0.0
    %2099 = vmatpush1.msra.mxu0 0.0
    %2100 = vmatprep.subr.mxu0 0.0
    %2101 = vmatpush1.msra.mxu0 0.0
    %2102 = vmatprep.subr.mxu0 0.0
    %2103 = vmatpush1.msra.mxu0 0.0
    %2104 = vmatprep.subr.mxu0 0.0
    %2105 = vmatpush1.msra.mxu0 0.0
    %2106 = vmatprep.subr.mxu0 0.0
    %2107 = vmatpush1.msra.mxu0 0.0
    %2108 = vmatprep.subr.mxu0 0.0
    %2109 = vmatpush1.msra.mxu0 0.0
    %2110 = vmatprep.subr.mxu0 0.0
    %2111 = vmatpush1.msra.mxu0 0.0
    %2112 = vmatprep.subr.mxu0 0.0
    %2113 = vmatpush1.msra.mxu0 0.0
    %2114 = vmatprep.subr.mxu0 0.0
    %2115 = vmatpush1.msra.mxu0 0.0
    %2116 = vmatprep.mubr.f32.mxu0 0.0
    %2117 = vmatmul.mubr.f32.gmra.mrb[0].mxu0 %v1280
    %v2118 = vpop.f32.mrb[0].mxu0
    %v2119 = vadd.f32 0.0, %v2118
    %v2120 = vpop.f32.mrb[0].mxu0
    %2121 = vdwg.mxu0
    %v2123 = vsel %vm1352, %v2049, 0
    %2125 = vmatprep.subr.mxu0 0.0
    %2126 = vmatpush1.msra.mxu0 %v2119
    %2127 = vmatprep.subr.mxu0 0.0
    %2128 = vmatpush1.msra.mxu0 0.0
    %2129 = vmatprep.subr.mxu0 0.0
    %2130 = vmatpush1.msra.mxu0 0.0
    %2131 = vmatprep.subr.mxu0 0.0
    %2132 = vmatpush1.msra.mxu0 0.0
    %2133 = vmatprep.subr.mxu0 0.0
    %2134 = vmatpush1.msra.mxu0 0.0
    %2135 = vmatprep.subr.mxu0 0.0
    %2136 = vmatpush1.msra.mxu0 0.0
    %2137 = vmatprep.subr.mxu0 0.0
    %2138 = vmatpush1.msra.mxu0 0.0
    %2139 = vmatprep.subr.mxu0 0.0
    %2140 = vmatpush1.msra.mxu0 0.0
    %2141 = vmatprep.subr.mxu0 0.0
    %2142 = vmatpush1.msra.mxu0 0.0
    %2143 = vmatprep.subr.mxu0 0.0
    %2144 = vmatpush1.msra.mxu0 0.0
    %2145 = vmatprep.subr.mxu0 0.0
    %2146 = vmatpush1.msra.mxu0 0.0
    %2147 = vmatprep.subr.mxu0 0.0
    %2148 = vmatpush1.msra.mxu0 0.0
    %2149 = vmatprep.subr.mxu0 0.0
    %2150 = vmatpush1.msra.mxu0 0.0
    %2151 = vmatprep.subr.mxu0 0.0
    %2152 = vmatpush1.msra.mxu0 0.0
    %2153 = vmatprep.subr.mxu0 0.0
    %2154 = vmatpush1.msra.mxu0 0.0
    %2155 = vmatprep.subr.mxu0 0.0
    %2156 = vmatpush1.msra.mxu0 0.0
    %2157 = vmatprep.subr.mxu0 0.0
    %2158 = vmatpush1.msra.mxu0 0.0
    %2159 = vmatprep.subr.mxu0 0.0
    %2160 = vmatpush1.msra.mxu0 0.0
    %2161 = vmatprep.subr.mxu0 0.0
    %2162 = vmatpush1.msra.mxu0 0.0
    %2163 = vmatprep.subr.mxu0 0.0
    %2164 = vmatpush1.msra.mxu0 0.0
    %2165 = vmatprep.subr.mxu0 0.0
    %2166 = vmatpush1.msra.mxu0 0.0
    %2167 = vmatprep.subr.mxu0 0.0
    %2168 = vmatpush1.msra.mxu0 0.0
    %2169 = vmatprep.subr.mxu0 0.0
    %2170 = vmatpush1.msra.mxu0 0.0
    %2171 = vmatprep.subr.mxu0 0.0
    %2172 = vmatpush1.msra.mxu0 0.0
    %2173 = vmatprep.subr.mxu0 0.0
    %2174 = vmatpush1.msra.mxu0 0.0
    %2175 = vmatprep.subr.mxu0 0.0
    %2176 = vmatpush1.msra.mxu0 0.0
    %2177 = vmatprep.subr.mxu0 0.0
    %2178 = vmatpush1.msra.mxu0 0.0
    %2179 = vmatprep.subr.mxu0 0.0
    %2180 = vmatpush1.msra.mxu0 0.0
    %2181 = vmatprep.subr.mxu0 0.0
    %2182 = vmatpush1.msra.mxu0 0.0
    %2183 = vmatprep.subr.mxu0 0.0
    %2184 = vmatpush1.msra.mxu0 0.0
    %2185 = vmatprep.subr.mxu0 0.0
    %2186 = vmatpush1.msra.mxu0 0.0
    %2187 = vmatprep.subr.mxu0 0.0
    %2188 = vmatpush1.msra.mxu0 0.0
    %2189 = vmatprep.mubr.f32.mxu0 0.0
    %2190 = vmatmul.mubr.f32.gmra.mrb[0].mxu0 %v2123
    %v2191 = vpop.f32.mrb[0].mxu0
    %v2192 = vadd.f32 0.0, %v2191
    %v2193 = vpop.f32.mrb[0].mxu0
    %2194 = vdwg.mxu0
    %2195 = vmatprep.subr.mxu0 0.0
    %2196 = vmatpush1.msra.mxu0 %v2050
    %2197 = vmatprep.subr.mxu0 0.0
    %2198 = vmatpush1.msra.mxu0 %v2051
    %2199 = vmatprep.subr.mxu0 0.0
    %2200 = vmatpush1.msra.mxu0 0.0
    %2201 = vmatprep.subr.mxu0 0.0
    %2202 = vmatpush1.msra.mxu0 0.0
    %2203 = vmatprep.subr.mxu0 0.0
    %2204 = vmatpush1.msra.mxu0 0.0
    %2205 = vmatprep.subr.mxu0 0.0
    %2206 = vmatpush1.msra.mxu0 0.0
    %2207 = vmatprep.subr.mxu0 0.0
    %2208 = vmatpush1.msra.mxu0 0.0
    %2209 = vmatprep.subr.mxu0 0.0
    %2210 = vmatpush1.msra.mxu0 0.0
    %2211 = vmatprep.subr.mxu0 0.0
    %2212 = vmatpush1.msra.mxu0 0.0
    %2213 = vmatprep.subr.mxu0 0.0
    %2214 = vmatpush1.msra.mxu0 0.0
    %2215 = vmatprep.subr.mxu0 0.0
    %2216 = vmatpush1.msra.mxu0 0.0
    %2217 = vmatprep.subr.mxu0 0.0
    %2218 = vmatpush1.msra.mxu0 0.0
    %2219 = vmatprep.subr.mxu0 0.0
    %2220 = vmatpush1.msra.mxu0 0.0
    %2221 = vmatprep.subr.mxu0 0.0
    %2222 = vmatpush1.msra.mxu0 0.0
    %2223 = vmatprep.subr.mxu0 0.0
    %2224 = vmatpush1.msra.mxu0 0.0
    %2225 = vmatprep.subr.mxu0 0.0
    %2226 = vmatpush1.msra.mxu0 0.0
    %2227 = vmatprep.subr.mxu0 0.0
    %2228 = vmatpush1.msra.mxu0 0.0
    %2229 = vmatprep.subr.mxu0 0.0
    %2230 = vmatpush1.msra.mxu0 0.0
    %2231 = vmatprep.subr.mxu0 0.0
    %2232 = vmatpush1.msra.mxu0 0.0
    %2233 = vmatprep.subr.mxu0 0.0
    %2234 = vmatpush1.msra.mxu0 0.0
    %2235 = vmatprep.subr.mxu0 0.0
    %2236 = vmatpush1.msra.mxu0 0.0
    %2237 = vmatprep.subr.mxu0 0.0
    %2238 = vmatpush1.msra.mxu0 0.0
    %2239 = vmatprep.subr.mxu0 0.0
    %2240 = vmatpush1.msra.mxu0 0.0
    %2241 = vmatprep.subr.mxu0 0.0
    %2242 = vmatpush1.msra.mxu0 0.0
    %2243 = vmatprep.subr.mxu0 0.0
    %2244 = vmatpush1.msra.mxu0 0.0
    %2245 = vmatprep.subr.mxu0 0.0
    %2246 = vmatpush1.msra.mxu0 0.0
    %2247 = vmatprep.subr.mxu0 0.0
    %2248 = vmatpush1.msra.mxu0 0.0
    %2249 = vmatprep.subr.mxu0 0.0
    %2250 = vmatpush1.msra.mxu0 0.0
    %2251 = vmatprep.subr.mxu0 0.0
    %2252 = vmatpush1.msra.mxu0 0.0
    %2253 = vmatprep.subr.mxu0 0.0
    %2254 = vmatpush1.msra.mxu0 0.0
    %2255 = vmatprep.subr.mxu0 0.0
    %2256 = vmatpush1.msra.mxu0 0.0
    %2257 = vmatprep.subr.mxu0 0.0
    %2258 = vmatpush1.msra.mxu0 0.0
    %2259 = vmatprep.mubr.f32.mxu0 0.0
    %2260 = vmatmul.mubr.f32.gmra.mrb[0].mxu0 %v1427
    %v2261 = vpop.f32.mrb[0].mxu0
    %v2262 = vadd.f32 0.0, %v2261
    %v2263 = vpop.f32.mrb[0].mxu0
    %2264 = vdwg.mxu0
    %2265 = vmatprep.subr.mxu0 0.0
    %2266 = vmatpush1.msra.mxu0 %v2262
    %2267 = vmatprep.subr.mxu0 0.0
    %2268 = vmatpush1.msra.mxu0 0.0
    %2269 = vmatprep.subr.mxu0 0.0
    %2270 = vmatpush1.msra.mxu0 0.0
    %2271 = vmatprep.subr.mxu0 0.0
    %2272 = vmatpush1.msra.mxu0 0.0
    %2273 = vmatprep.subr.mxu0 0.0
    %2274 = vmatpush1.msra.mxu0 0.0
    %2275 = vmatprep.subr.mxu0 0.0
    %2276 = vmatpush1.msra.mxu0 0.0
    %2277 = vmatprep.subr.mxu0 0.0
    %2278 = vmatpush1.msra.mxu0 0.0
    %2279 = vmatprep.subr.mxu0 0.0
    %2280 = vmatpush1.msra.mxu0 0.0
    %2281 = vmatprep.subr.mxu0 0.0
    %2282 = vmatpush1.msra.mxu0 0.0
    %2283 = vmatprep.subr.mxu0 0.0
    %2284 = vmatpush1.msra.mxu0 0.0
    %2285 = vmatprep.subr.mxu0 0.0
    %2286 = vmatpush1.msra.mxu0 0.0
    %2287 = vmatprep.subr.mxu0 0.0
    %2288 = vmatpush1.msra.mxu0 0.0
    %2289 = vmatprep.subr.mxu0 0.0
    %2290 = vmatpush1.msra.mxu0 0.0
    %2291 = vmatprep.subr.mxu0 0.0
    %2292 = vmatpush1.msra.mxu0 0.0
    %2293 = vmatprep.subr.mxu0 0.0
    %2294 = vmatpush1.msra.mxu0 0.0
    %2295 = vmatprep.subr.mxu0 0.0
    %2296 = vmatpush1.msra.mxu0 0.0
    %2297 = vmatprep.subr.mxu0 0.0
    %2298 = vmatpush1.msra.mxu0 0.0
    %2299 = vmatprep.subr.mxu0 0.0
    %2300 = vmatpush1.msra.mxu0 0.0
    %2301 = vmatprep.subr.mxu0 0.0
    %2302 = vmatpush1.msra.mxu0 0.0
    %2303 = vmatprep.subr.mxu0 0.0
    %2304 = vmatpush1.msra.mxu0 0.0
    %2305 = vmatprep.subr.mxu0 0.0
    %2306 = vmatpush1.msra.mxu0 0.0
    %2307 = vmatprep.subr.mxu0 0.0
    %2308 = vmatpush1.msra.mxu0 0.0
    %2309 = vmatprep.subr.mxu0 0.0
    %2310 = vmatpush1.msra.mxu0 0.0
    %2311 = vmatprep.subr.mxu0 0.0
    %2312 = vmatpush1.msra.mxu0 0.0
    %2313 = vmatprep.subr.mxu0 0.0
    %2314 = vmatpush1.msra.mxu0 0.0
    %2315 = vmatprep.subr.mxu0 0.0
    %2316 = vmatpush1.msra.mxu0 0.0
    %2317 = vmatprep.subr.mxu0 0.0
    %2318 = vmatpush1.msra.mxu0 0.0
    %2319 = vmatprep.subr.mxu0 0.0
    %2320 = vmatpush1.msra.mxu0 0.0
    %2321 = vmatprep.subr.mxu0 0.0
    %2322 = vmatpush1.msra.mxu0 0.0
    %2323 = vmatprep.subr.mxu0 0.0
    %2324 = vmatpush1.msra.mxu0 0.0
    %2325 = vmatprep.subr.mxu0 0.0
    %2326 = vmatpush1.msra.mxu0 0.0
    %2327 = vmatprep.subr.mxu0 0.0
    %2328 = vmatpush1.msra.mxu0 0.0
    %2329 = vmatprep.mubr.f32.mxu0 0.0
    %2330 = vmatmul.mubr.f32.gmra.mrb[0].mxu0 %v2123
    %v2331 = vpop.f32.mrb[0].mxu0
    %v2332 = vadd.f32 0.0, %v2331
    %v2333 = vpop.f32.mrb[0].mxu0
    %2334 = vdwg.mxu0
    %v2335 = vld [vmem:[%s4] sm:$0xff]
    %v2336 = vld [vmem:[%s7] sm:$0xff]
    %v2338 = vsel %vm1352, %v2192, 0
    %2340 = vmatprep.subr.mxu0 0.0
    %2341 = vmatpush1.msra.mxu0 %v2336
    %2342 = vmatprep.subr.mxu0 0.0
    %2343 = vmatpush1.msra.mxu0 0.0
    %2344 = vmatprep.subr.mxu0 0.0
    %2345 = vmatpush1.msra.mxu0 0.0
    %2346 = vmatprep.subr.mxu0 0.0
    %2347 = vmatpush1.msra.mxu0 0.0
    %2348 = vmatprep.subr.mxu0 0.0
    %2349 = vmatpush1.msra.mxu0 0.0
    %2350 = vmatprep.subr.mxu0 0.0
    %2351 = vmatpush1.msra.mxu0 0.0
    %2352 = vmatprep.subr.mxu0 0.0
    %2353 = vmatpush1.msra.mxu0 0.0
    %2354 = vmatprep.subr.mxu0 0.0
    %2355 = vmatpush1.msra.mxu0 0.0
    %2356 = vmatprep.subr.mxu0 0.0
    %2357 = vmatpush1.msra.mxu0 0.0
    %2358 = vmatprep.subr.mxu0 0.0
    %2359 = vmatpush1.msra.mxu0 0.0
    %2360 = vmatprep.subr.mxu0 0.0
    %2361 = vmatpush1.msra.mxu0 0.0
    %2362 = vmatprep.subr.mxu0 0.0
    %2363 = vmatpush1.msra.mxu0 0.0
    %2364 = vmatprep.subr.mxu0 0.0
    %2365 = vmatpush1.msra.mxu0 0.0
    %2366 = vmatprep.subr.mxu0 0.0
    %2367 = vmatpush1.msra.mxu0 0.0
    %2368 = vmatprep.subr.mxu0 0.0
    %2369 = vmatpush1.msra.mxu0 0.0
    %2370 = vmatprep.subr.mxu0 0.0
    %2371 = vmatpush1.msra.mxu0 0.0
    %2372 = vmatprep.subr.mxu0 0.0
    %2373 = vmatpush1.msra.mxu0 0.0
    %2374 = vmatprep.subr.mxu0 0.0
    %2375 = vmatpush1.msra.mxu0 0.0
    %2376 = vmatprep.subr.mxu0 0.0
    %2377 = vmatpush1.msra.mxu0 0.0
    %2378 = vmatprep.subr.mxu0 0.0
    %2379 = vmatpush1.msra.mxu0 0.0
    %2380 = vmatprep.subr.mxu0 0.0
    %2381 = vmatpush1.msra.mxu0 0.0
    %2382 = vmatprep.subr.mxu0 0.0
    %2383 = vmatpush1.msra.mxu0 0.0
    %2384 = vmatprep.subr.mxu0 0.0
    %2385 = vmatpush1.msra.mxu0 0.0
    %2386 = vmatprep.subr.mxu0 0.0
    %2387 = vmatpush1.msra.mxu0 0.0
    %2388 = vmatprep.subr.mxu0 0.0
    %2389 = vmatpush1.msra.mxu0 0.0
    %2390 = vmatprep.subr.mxu0 0.0
    %2391 = vmatpush1.msra.mxu0 0.0
    %2392 = vmatprep.subr.mxu0 0.0
    %2393 = vmatpush1.msra.mxu0 0.0
    %2394 = vmatprep.subr.mxu0 0.0
    %2395 = vmatpush1.msra.mxu0 0.0
    %2396 = vmatprep.subr.mxu0 0.0
    %2397 = vmatpush1.msra.mxu0 0.0
    %2398 = vmatprep.subr.mxu0 0.0
    %2399 = vmatpush1.msra.mxu0 0.0
    %2400 = vmatprep.subr.mxu0 0.0
    %2401 = vmatpush1.msra.mxu0 0.0
    %2402 = vmatprep.subr.mxu0 0.0
    %2403 = vmatpush1.msra.mxu0 0.0
    %2404 = vmatprep.mubr.f32.mxu0 0.0
    %2405 = vmatmul.mubr.f32.gmra.mrb[0].mxu0 %v2338
    %v2406 = vpop.f32.mrb[0].mxu0
    %v2407 = vadd.f32 0.0, %v2406
    %v2408 = vpop.f32.mrb[0].mxu0
    %2409 = vdwg.mxu0
    %vm2410 = vcmask 31744
    %v2412 = vsel %vm2410, %v2335, 0
    %vm2414 = vcmask 1043456
    %v2416 = vsel %vm2414, %v2407, 0
    %2418 = vmatprep.subr.mxu0 0.0
    %2419 = vmatpush1.msra.mxu0 %v2416
    %2420 = vmatprep.subr.mxu0 0.0
    %2421 = vmatpush1.msra.mxu0 0.0
    %2422 = vmatprep.subr.mxu0 0.0
    %2423 = vmatpush1.msra.mxu0 0.0
    %2424 = vmatprep.subr.mxu0 0.0
    %2425 = vmatpush1.msra.mxu0 0.0
    %2426 = vmatprep.subr.mxu0 0.0
    %2427 = vmatpush1.msra.mxu0 0.0
    %2428 = vmatprep.subr.mxu0 0.0
    %2429 = vmatpush1.msra.mxu0 0.0
    %2430 = vmatprep.subr.mxu0 0.0
    %2431 = vmatpush1.msra.mxu0 0.0
    %2432 = vmatprep.subr.mxu0 0.0
    %2433 = vmatpush1.msra.mxu0 0.0
    %2434 = vmatprep.subr.mxu0 0.0
    %2435 = vmatpush1.msra.mxu0 0.0
    %2436 = vmatprep.subr.mxu0 0.0
    %2437 = vmatpush1.msra.mxu0 0.0
    %2438 = vmatprep.subr.mxu0 0.0
    %2439 = vmatpush1.msra.mxu0 0.0
    %2440 = vmatprep.subr.mxu0 0.0
    %2441 = vmatpush1.msra.mxu0 0.0
    %2442 = vmatprep.subr.mxu0 0.0
    %2443 = vmatpush1.msra.mxu0 0.0
    %2444 = vmatprep.subr.mxu0 0.0
    %2445 = vmatpush1.msra.mxu0 0.0
    %2446 = vmatprep.subr.mxu0 0.0
    %2447 = vmatpush1.msra.mxu0 0.0
    %2448 = vmatprep.subr.mxu0 0.0
    %2449 = vmatpush1.msra.mxu0 0.0
    %2450 = vmatprep.subr.mxu0 0.0
    %2451 = vmatpush1.msra.mxu0 0.0
    %2452 = vmatprep.subr.mxu0 0.0
    %2453 = vmatpush1.msra.mxu0 0.0
    %2454 = vmatprep.subr.mxu0 0.0
    %2455 = vmatpush1.msra.mxu0 0.0
    %2456 = vmatprep.subr.mxu0 0.0
    %2457 = vmatpush1.msra.mxu0 0.0
    %2458 = vmatprep.subr.mxu0 0.0
    %2459 = vmatpush1.msra.mxu0 0.0
    %2460 = vmatprep.subr.mxu0 0.0
    %2461 = vmatpush1.msra.mxu0 0.0
    %2462 = vmatprep.subr.mxu0 0.0
    %2463 = vmatpush1.msra.mxu0 0.0
    %2464 = vmatprep.subr.mxu0 0.0
    %2465 = vmatpush1.msra.mxu0 0.0
    %2466 = vmatprep.subr.mxu0 0.0
    %2467 = vmatpush1.msra.mxu0 0.0
    %2468 = vmatprep.subr.mxu0 0.0
    %2469 = vmatpush1.msra.mxu0 0.0
    %2470 = vmatprep.subr.mxu0 0.0
    %2471 = vmatpush1.msra.mxu0 0.0
    %2472 = vmatprep.subr.mxu0 0.0
    %2473 = vmatpush1.msra.mxu0 0.0
    %2474 = vmatprep.subr.mxu0 0.0
    %2475 = vmatpush1.msra.mxu0 0.0
    %2476 = vmatprep.subr.mxu0 0.0
    %2477 = vmatpush1.msra.mxu0 0.0
    %2478 = vmatprep.subr.mxu0 0.0
    %2479 = vmatpush1.msra.mxu0 0.0
    %2480 = vmatprep.subr.mxu0 0.0
    %2481 = vmatpush1.msra.mxu0 0.0
    %2482 = vmatprep.mubr.f32.mxu0 0.0
    %2483 = vmatmul.mubr.f32.gmra.mrb[0].mxu0 %v2412
    %v2484 = vpop.f32.mrb[0].mxu0
    %v2485 = vadd.f32 0.0, %v2484
    %v2486 = vpop.f32.mrb[0].mxu0
    %2487 = vdwg.mxu0
    %v2489 = vsel %vm1352, %v2332, 0
    %2491 = vmatprep.subr.mxu0 0.0
    %2492 = vmatpush1.msra.mxu0 %v2336
    %2493 = vmatprep.subr.mxu0 0.0
    %2494 = vmatpush1.msra.mxu0 0.0
    %2495 = vmatprep.subr.mxu0 0.0
    %2496 = vmatpush1.msra.mxu0 0.0
    %2497 = vmatprep.subr.mxu0 0.0
    %2498 = vmatpush1.msra.mxu0 0.0
    %2499 = vmatprep.subr.mxu0 0.0
    %2500 = vmatpush1.msra.mxu0 0.0
    %2501 = vmatprep.subr.mxu0 0.0
    %2502 = vmatpush1.msra.mxu0 0.0
    %2503 = vmatprep.subr.mxu0 0.0
    %2504 = vmatpush1.msra.mxu0 0.0
    %2505 = vmatprep.subr.mxu0 0.0
    %2506 = vmatpush1.msra.mxu0 0.0
    %2507 = vmatprep.subr.mxu0 0.0
    %2508 = vmatpush1.msra.mxu0 0.0
    %2509 = vmatprep.subr.mxu0 0.0
    %2510 = vmatpush1.msra.mxu0 0.0
    %2511 = vmatprep.subr.mxu0 0.0
    %2512 = vmatpush1.msra.mxu0 0.0
    %2513 = vmatprep.subr.mxu0 0.0
    %2514 = vmatpush1.msra.mxu0 0.0
    %2515 = vmatprep.subr.mxu0 0.0
    %2516 = vmatpush1.msra.mxu0 0.0
    %2517 = vmatprep.subr.mxu0 0.0
    %2518 = vmatpush1.msra.mxu0 0.0
    %2519 = vmatprep.subr.mxu0 0.0
    %2520 = vmatpush1.msra.mxu0 0.0
    %2521 = vmatprep.subr.mxu0 0.0
    %2522 = vmatpush1.msra.mxu0 0.0
    %2523 = vmatprep.subr.mxu0 0.0
    %2524 = vmatpush1.msra.mxu0 0.0
    %2525 = vmatprep.subr.mxu0 0.0
    %2526 = vmatpush1.msra.mxu0 0.0
    %2527 = vmatprep.subr.mxu0 0.0
    %2528 = vmatpush1.msra.mxu0 0.0
    %2529 = vmatprep.subr.mxu0 0.0
    %2530 = vmatpush1.msra.mxu0 0.0
    %2531 = vmatprep.subr.mxu0 0.0
    %2532 = vmatpush1.msra.mxu0 0.0
    %2533 = vmatprep.subr.mxu0 0.0
    %2534 = vmatpush1.msra.mxu0 0.0
    %2535 = vmatprep.subr.mxu0 0.0
    %2536 = vmatpush1.msra.mxu0 0.0
    %2537 = vmatprep.subr.mxu0 0.0
    %2538 = vmatpush1.msra.mxu0 0.0
    %2539 = vmatprep.subr.mxu0 0.0
    %2540 = vmatpush1.msra.mxu0 0.0
    %2541 = vmatprep.subr.mxu0 0.0
    %2542 = vmatpush1.msra.mxu0 0.0
    %2543 = vmatprep.subr.mxu0 0.0
    %2544 = vmatpush1.msra.mxu0 0.0
    %2545 = vmatprep.subr.mxu0 0.0
    %2546 = vmatpush1.msra.mxu0 0.0
    %2547 = vmatprep.subr.mxu0 0.0
    %2548 = vmatpush1.msra.mxu0 0.0
    %2549 = vmatprep.subr.mxu0 0.0
    %2550 = vmatpush1.msra.mxu0 0.0
    %2551 = vmatprep.subr.mxu0 0.0
    %2552 = vmatpush1.msra.mxu0 0.0
    %2553 = vmatprep.subr.mxu0 0.0
    %2554 = vmatpush1.msra.mxu0 0.0
    %2555 = vmatprep.mubr.f32.mxu0 0.0
    %2556 = vmatmul.mubr.f32.gmra.mrb[0].mxu0 %v2489
    %v2557 = vpop.f32.mrb[0].mxu0
    %v2558 = vadd.f32 0.0, %v2557
    %v2559 = vpop.f32.mrb[0].mxu0
    %2560 = vdwg.mxu0
    %v2562 = vsel %vm2414, %v2558, 0
    %2564 = vmatprep.subr.mxu0 0.0
    %2565 = vmatpush1.msra.mxu0 %v2562
    %2566 = vmatprep.subr.mxu0 0.0
    %2567 = vmatpush1.msra.mxu0 0.0
    %2568 = vmatprep.subr.mxu0 0.0
    %2569 = vmatpush1.msra.mxu0 0.0
    %2570 = vmatprep.subr.mxu0 0.0
    %2571 = vmatpush1.msra.mxu0 0.0
    %2572 = vmatprep.subr.mxu0 0.0
    %2573 = vmatpush1.msra.mxu0 0.0
    %2574 = vmatprep.subr.mxu0 0.0
    %2575 = vmatpush1.msra.mxu0 0.0
    %2576 = vmatprep.subr.mxu0 0.0
    %2577 = vmatpush1.msra.mxu0 0.0
    %2578 = vmatprep.subr.mxu0 0.0
    %2579 = vmatpush1.msra.mxu0 0.0
    %2580 = vmatprep.subr.mxu0 0.0
    %2581 = vmatpush1.msra.mxu0 0.0
    %2582 = vmatprep.subr.mxu0 0.0
    %2583 = vmatpush1.msra.mxu0 0.0
    %2584 = vmatprep.subr.mxu0 0.0
    %2585 = vmatpush1.msra.mxu0 0.0
    %2586 = vmatprep.subr.mxu0 0.0
    %2587 = vmatpush1.msra.mxu0 0.0
    %2588 = vmatprep.subr.mxu0 0.0
    %2589 = vmatpush1.msra.mxu0 0.0
    %2590 = vmatprep.subr.mxu0 0.0
    %2591 = vmatpush1.msra.mxu0 0.0
    %2592 = vmatprep.subr.mxu0 0.0
    %2593 = vmatpush1.msra.mxu0 0.0
    %2594 = vmatprep.subr.mxu0 0.0
    %2595 = vmatpush1.msra.mxu0 0.0
    %2596 = vmatprep.subr.mxu0 0.0
    %2597 = vmatpush1.msra.mxu0 0.0
    %2598 = vmatprep.subr.mxu0 0.0
    %2599 = vmatpush1.msra.mxu0 0.0
    %2600 = vmatprep.subr.mxu0 0.0
    %2601 = vmatpush1.msra.mxu0 0.0
    %2602 = vmatprep.subr.mxu0 0.0
    %2603 = vmatpush1.msra.mxu0 0.0
    %2604 = vmatprep.subr.mxu0 0.0
    %2605 = vmatpush1.msra.mxu0 0.0
    %2606 = vmatprep.subr.mxu0 0.0
    %2607 = vmatpush1.msra.mxu0 0.0
    %2608 = vmatprep.subr.mxu0 0.0
    %2609 = vmatpush1.msra.mxu0 0.0
    %2610 = vmatprep.subr.mxu0 0.0
    %2611 = vmatpush1.msra.mxu0 0.0
    %2612 = vmatprep.subr.mxu0 0.0
    %2613 = vmatpush1.msra.mxu0 0.0
    %2614 = vmatprep.subr.mxu0 0.0
    %2615 = vmatpush1.msra.mxu0 0.0
    %2616 = vmatprep.subr.mxu0 0.0
    %2617 = vmatpush1.msra.mxu0 0.0
    %2618 = vmatprep.subr.mxu0 0.0
    %2619 = vmatpush1.msra.mxu0 0.0
    %2620 = vmatprep.subr.mxu0 0.0
    %2621 = vmatpush1.msra.mxu0 0.0
    %2622 = vmatprep.subr.mxu0 0.0
    %2623 = vmatpush1.msra.mxu0 0.0
    %2624 = vmatprep.subr.mxu0 0.0
    %2625 = vmatpush1.msra.mxu0 0.0
    %2626 = vmatprep.subr.mxu0 0.0
    %2627 = vmatpush1.msra.mxu0 0.0
    %2628 = vmatprep.mubr.f32.mxu0 0.0
    %2629 = vmatmul.mubr.f32.gmra.mrb[0].mxu0 %v2412
    %v2630 = vpop.f32.mrb[0].mxu0
    %v2631 = vadd.f32 0.0, %v2630
    %v2632 = vpop.f32.mrb[0].mxu0
    %2633 = vdwg.mxu0
    %v2634 = vmul.f32 %v2192, %v2192
    %v2636 = vsel %vm1352, %v2634, 0
    %2638 = vmatprep.subr.mxu0 0.0
    %2639 = vmatpush1.msra.mxu0 %v2336
    %2640 = vmatprep.subr.mxu0 0.0
    %2641 = vmatpush1.msra.mxu0 0.0
    %2642 = vmatprep.subr.mxu0 0.0
    %2643 = vmatpush1.msra.mxu0 0.0
    %2644 = vmatprep.subr.mxu0 0.0
    %2645 = vmatpush1.msra.mxu0 0.0
    %2646 = vmatprep.subr.mxu0 0.0
    %2647 = vmatpush1.msra.mxu0 0.0
    %2648 = vmatprep.subr.mxu0 0.0
    %2649 = vmatpush1.msra.mxu0 0.0
    %2650 = vmatprep.subr.mxu0 0.0
    %2651 = vmatpush1.msra.mxu0 0.0
    %2652 = vmatprep.subr.mxu0 0.0
    %2653 = vmatpush1.msra.mxu0 0.0
    %2654 = vmatprep.subr.mxu0 0.0
    %2655 = vmatpush1.msra.mxu0 0.0
    %2656 = vmatprep.subr.mxu0 0.0
    %2657 = vmatpush1.msra.mxu0 0.0
    %2658 = vmatprep.subr.mxu0 0.0
    %2659 = vmatpush1.msra.mxu0 0.0
    %2660 = vmatprep.subr.mxu0 0.0
    %2661 = vmatpush1.msra.mxu0 0.0
    %2662 = vmatprep.subr.mxu0 0.0
    %2663 = vmatpush1.msra.mxu0 0.0
    %2664 = vmatprep.subr.mxu0 0.0
    %2665 = vmatpush1.msra.mxu0 0.0
    %2666 = vmatprep.subr.mxu0 0.0
    %2667 = vmatpush1.msra.mxu0 0.0
    %2668 = vmatprep.subr.mxu0 0.0
    %2669 = vmatpush1.msra.mxu0 0.0
    %2670 = vmatprep.subr.mxu0 0.0
    %2671 = vmatpush1.msra.mxu0 0.0
    %2672 = vmatprep.subr.mxu0 0.0
    %2673 = vmatpush1.msra.mxu0 0.0
    %2674 = vmatprep.subr.mxu0 0.0
    %2675 = vmatpush1.msra.mxu0 0.0
    %2676 = vmatprep.subr.mxu0 0.0
    %2677 = vmatpush1.msra.mxu0 0.0
    %2678 = vmatprep.subr.mxu0 0.0
    %2679 = vmatpush1.msra.mxu0 0.0
    %2680 = vmatprep.subr.mxu0 0.0
    %2681 = vmatpush1.msra.mxu0 0.0
    %2682 = vmatprep.subr.mxu0 0.0
    %2683 = vmatpush1.msra.mxu0 0.0
    %2684 = vmatprep.subr.mxu0 0.0
    %2685 = vmatpush1.msra.mxu0 0.0
    %2686 = vmatprep.subr.mxu0 0.0
    %2687 = vmatpush1.msra.mxu0 0.0
    %2688 = vmatprep.subr.mxu0 0.0
    %2689 = vmatpush1.msra.mxu0 0.0
    %2690 = vmatprep.subr.mxu0 0.0
    %2691 = vmatpush1.msra.mxu0 0.0
    %2692 = vmatprep.subr.mxu0 0.0
    %2693 = vmatpush1.msra.mxu0 0.0
    %2694 = vmatprep.subr.mxu0 0.0
    %2695 = vmatpush1.msra.mxu0 0.0
    %2696 = vmatprep.subr.mxu0 0.0
    %2697 = vmatpush1.msra.mxu0 0.0
    %2698 = vmatprep.subr.mxu0 0.0
    %2699 = vmatpush1.msra.mxu0 0.0
    %2700 = vmatprep.subr.mxu0 0.0
    %2701 = vmatpush1.msra.mxu0 0.0
    %2702 = vmatprep.mubr.f32.mxu0 0.0
    %2703 = vmatmul.mubr.f32.gmra.mrb[0].mxu0 %v2636
    %v2704 = vpop.f32.mrb[0].mxu0
    %v2705 = vadd.f32 0.0, %v2704
    %v2706 = vpop.f32.mrb[0].mxu0
    %2707 = vdwg.mxu0
    %v2709 = vsel %vm2414, %v2705, 0
    %2711 = vmatprep.subr.mxu0 0.0
    %2712 = vmatpush1.msra.mxu0 %v2709
    %2713 = vmatprep.subr.mxu0 0.0
    %2714 = vmatpush1.msra.mxu0 0.0
    %2715 = vmatprep.subr.mxu0 0.0
    %2716 = vmatpush1.msra.mxu0 0.0
    %2717 = vmatprep.subr.mxu0 0.0
    %2718 = vmatpush1.msra.mxu0 0.0
    %2719 = vmatprep.subr.mxu0 0.0
    %2720 = vmatpush1.msra.mxu0 0.0
    %2721 = vmatprep.subr.mxu0 0.0
    %2722 = vmatpush1.msra.mxu0 0.0
    %2723 = vmatprep.subr.mxu0 0.0
    %2724 = vmatpush1.msra.mxu0 0.0
    %2725 = vmatprep.subr.mxu0 0.0
    %2726 = vmatpush1.msra.mxu0 0.0
    %2727 = vmatprep.subr.mxu0 0.0
    %2728 = vmatpush1.msra.mxu0 0.0
    %2729 = vmatprep.subr.mxu0 0.0
    %2730 = vmatpush1.msra.mxu0 0.0
    %2731 = vmatprep.subr.mxu0 0.0
    %2732 = vmatpush1.msra.mxu0 0.0
    %2733 = vmatprep.subr.mxu0 0.0
    %2734 = vmatpush1.msra.mxu0 0.0
    %2735 = vmatprep.subr.mxu0 0.0
    %2736 = vmatpush1.msra.mxu0 0.0
    %2737 = vmatprep.subr.mxu0 0.0
    %2738 = vmatpush1.msra.mxu0 0.0
    %2739 = vmatprep.subr.mxu0 0.0
    %2740 = vmatpush1.msra.mxu0 0.0
    %2741 = vmatprep.subr.mxu0 0.0
    %2742 = vmatpush1.msra.mxu0 0.0
    %2743 = vmatprep.subr.mxu0 0.0
    %2744 = vmatpush1.msra.mxu0 0.0
    %2745 = vmatprep.subr.mxu0 0.0
    %2746 = vmatpush1.msra.mxu0 0.0
    %2747 = vmatprep.subr.mxu0 0.0
    %2748 = vmatpush1.msra.mxu0 0.0
    %2749 = vmatprep.subr.mxu0 0.0
    %2750 = vmatpush1.msra.mxu0 0.0
    %2751 = vmatprep.subr.mxu0 0.0
    %2752 = vmatpush1.msra.mxu0 0.0
    %2753 = vmatprep.subr.mxu0 0.0
    %2754 = vmatpush1.msra.mxu0 0.0
    %2755 = vmatprep.subr.mxu0 0.0
    %2756 = vmatpush1.msra.mxu0 0.0
    %2757 = vmatprep.subr.mxu0 0.0
    %2758 = vmatpush1.msra.mxu0 0.0
    %2759 = vmatprep.subr.mxu0 0.0
    %2760 = vmatpush1.msra.mxu0 0.0
    %2761 = vmatprep.subr.mxu0 0.0
    %2762 = vmatpush1.msra.mxu0 0.0
    %2763 = vmatprep.subr.mxu0 0.0
    %2764 = vmatpush1.msra.mxu0 0.0
    %2765 = vmatprep.subr.mxu0 0.0
    %2766 = vmatpush1.msra.mxu0 0.0
    %2767 = vmatprep.subr.mxu0 0.0
    %2768 = vmatpush1.msra.mxu0 0.0
    %2769 = vmatprep.subr.mxu0 0.0
    %2770 = vmatpush1.msra.mxu0 0.0
    %2771 = vmatprep.subr.mxu0 0.0
    %2772 = vmatpush1.msra.mxu0 0.0
    %2773 = vmatprep.subr.mxu0 0.0
    %2774 = vmatpush1.msra.mxu0 0.0
    %2775 = vmatprep.mubr.f32.mxu0 0.0
    %2776 = vmatmul.mubr.f32.gmra.mrb[0].mxu0 %v2412
    %v2777 = vpop.f32.mrb[0].mxu0
    %v2778 = vadd.f32 0.0, %v2777
    %v2779 = vpop.f32.mrb[0].mxu0
    %2780 = vdwg.mxu0
    %v2781 = vmul.f32 %v2332, %v2332
    %v2783 = vsel %vm1352, %v2781, 0
    %2785 = vmatprep.subr.mxu0 0.0
    %2786 = vmatpush1.msra.mxu0 %v2336
    %2787 = vmatprep.subr.mxu0 0.0
    %2788 = vmatpush1.msra.mxu0 0.0
    %2789 = vmatprep.subr.mxu0 0.0
    %2790 = vmatpush1.msra.mxu0 0.0
    %2791 = vmatprep.subr.mxu0 0.0
    %2792 = vmatpush1.msra.mxu0 0.0
    %2793 = vmatprep.subr.mxu0 0.0
    %2794 = vmatpush1.msra.mxu0 0.0
    %2795 = vmatprep.subr.mxu0 0.0
    %2796 = vmatpush1.msra.mxu0 0.0
    %2797 = vmatprep.subr.mxu0 0.0
    %2798 = vmatpush1.msra.mxu0 0.0
    %2799 = vmatprep.subr.mxu0 0.0
    %2800 = vmatpush1.msra.mxu0 0.0
    %2801 = vmatprep.subr.mxu0 0.0
    %2802 = vmatpush1.msra.mxu0 0.0
    %2803 = vmatprep.subr.mxu0 0.0
    %2804 = vmatpush1.msra.mxu0 0.0
    %2805 = vmatprep.subr.mxu0 0.0
    %2806 = vmatpush1.msra.mxu0 0.0
    %2807 = vmatprep.subr.mxu0 0.0
    %2808 = vmatpush1.msra.mxu0 0.0
    %2809 = vmatprep.subr.mxu0 0.0
    %2810 = vmatpush1.msra.mxu0 0.0
    %2811 = vmatprep.subr.mxu0 0.0
    %2812 = vmatpush1.msra.mxu0 0.0
    %2813 = vmatprep.subr.mxu0 0.0
    %2814 = vmatpush1.msra.mxu0 0.0
    %2815 = vmatprep.subr.mxu0 0.0
    %2816 = vmatpush1.msra.mxu0 0.0
    %2817 = vmatprep.subr.mxu0 0.0
    %2818 = vmatpush1.msra.mxu0 0.0
    %2819 = vmatprep.subr.mxu0 0.0
    %2820 = vmatpush1.msra.mxu0 0.0
    %2821 = vmatprep.subr.mxu0 0.0
    %2822 = vmatpush1.msra.mxu0 0.0
    %2823 = vmatprep.subr.mxu0 0.0
    %2824 = vmatpush1.msra.mxu0 0.0
    %2825 = vmatprep.subr.mxu0 0.0
    %2826 = vmatpush1.msra.mxu0 0.0
    %2827 = vmatprep.subr.mxu0 0.0
    %2828 = vmatpush1.msra.mxu0 0.0
    %2829 = vmatprep.subr.mxu0 0.0
    %2830 = vmatpush1.msra.mxu0 0.0
    %2831 = vmatprep.subr.mxu0 0.0
    %2832 = vmatpush1.msra.mxu0 0.0
    %2833 = vmatprep.subr.mxu0 0.0
    %2834 = vmatpush1.msra.mxu0 0.0
    %2835 = vmatprep.subr.mxu0 0.0
    %2836 = vmatpush1.msra.mxu0 0.0
    %2837 = vmatprep.subr.mxu0 0.0
    %2838 = vmatpush1.msra.mxu0 0.0
    %2839 = vmatprep.subr.mxu0 0.0
    %2840 = vmatpush1.msra.mxu0 0.0
    %2841 = vmatprep.subr.mxu0 0.0
    %2842 = vmatpush1.msra.mxu0 0.0
    %2843 = vmatprep.subr.mxu0 0.0
    %2844 = vmatpush1.msra.mxu0 0.0
    %2845 = vmatprep.subr.mxu0 0.0
    %2846 = vmatpush1.msra.mxu0 0.0
    %2847 = vmatprep.subr.mxu0 0.0
    %2848 = vmatpush1.msra.mxu0 0.0
    %2849 = vmatprep.mubr.f32.mxu0 0.0
    %2850 = vmatmul.mubr.f32.gmra.mrb[0].mxu0 %v2783
    %v2851 = vpop.f32.mrb[0].mxu0
    %v2852 = vadd.f32 0.0, %v2851
    %v2853 = vpop.f32.mrb[0].mxu0
    %2854 = vdwg.mxu0
    %v2856 = vsel %vm2414, %v2852, 0
    %2858 = vmatprep.subr.mxu0 0.0
    %2859 = vmatpush1.msra.mxu0 %v2856
    %2860 = vmatprep.subr.mxu0 0.0
    %2861 = vmatpush1.msra.mxu0 0.0
    %2862 = vmatprep.subr.mxu0 0.0
    %2863 = vmatpush1.msra.mxu0 0.0
    %2864 = vmatprep.subr.mxu0 0.0
    %2865 = vmatpush1.msra.mxu0 0.0
    %2866 = vmatprep.subr.mxu0 0.0
    %2867 = vmatpush1.msra.mxu0 0.0
    %2868 = vmatprep.subr.mxu0 0.0
    %2869 = vmatpush1.msra.mxu0 0.0
    %2870 = vmatprep.subr.mxu0 0.0
    %2871 = vmatpush1.msra.mxu0 0.0
    %2872 = vmatprep.subr.mxu0 0.0
    %2873 = vmatpush1.msra.mxu0 0.0
    %2874 = vmatprep.subr.mxu0 0.0
    %2875 = vmatpush1.msra.mxu0 0.0
    %2876 = vmatprep.subr.mxu0 0.0
    %2877 = vmatpush1.msra.mxu0 0.0
    %2878 = vmatprep.subr.mxu0 0.0
    %2879 = vmatpush1.msra.mxu0 0.0
    %2880 = vmatprep.subr.mxu0 0.0
    %2881 = vmatpush1.msra.mxu0 0.0
    %2882 = vmatprep.subr.mxu0 0.0
    %2883 = vmatpush1.msra.mxu0 0.0
    %2884 = vmatprep.subr.mxu0 0.0
    %2885 = vmatpush1.msra.mxu0 0.0
    %2886 = vmatprep.subr.mxu0 0.0
    %2887 = vmatpush1.msra.mxu0 0.0
    %2888 = vmatprep.subr.mxu0 0.0
    %2889 = vmatpush1.msra.mxu0 0.0
    %2890 = vmatprep.subr.mxu0 0.0
    %2891 = vmatpush1.msra.mxu0 0.0
    %2892 = vmatprep.subr.mxu0 0.0
    %2893 = vmatpush1.msra.mxu0 0.0
    %2894 = vmatprep.subr.mxu0 0.0
    %2895 = vmatpush1.msra.mxu0 0.0
    %2896 = vmatprep.subr.mxu0 0.0
    %2897 = vmatpush1.msra.mxu0 0.0
    %2898 = vmatprep.subr.mxu0 0.0
    %2899 = vmatpush1.msra.mxu0 0.0
    %2900 = vmatprep.subr.mxu0 0.0
    %2901 = vmatpush1.msra.mxu0 0.0
    %2902 = vmatprep.subr.mxu0 0.0
    %2903 = vmatpush1.msra.mxu0 0.0
    %2904 = vmatprep.subr.mxu0 0.0
    %2905 = vmatpush1.msra.mxu0 0.0
    %2906 = vmatprep.subr.mxu0 0.0
    %2907 = vmatpush1.msra.mxu0 0.0
    %2908 = vmatprep.subr.mxu0 0.0
    %2909 = vmatpush1.msra.mxu0 0.0
    %2910 = vmatprep.subr.mxu0 0.0
    %2911 = vmatpush1.msra.mxu0 0.0
    %2912 = vmatprep.subr.mxu0 0.0
    %2913 = vmatpush1.msra.mxu0 0.0
    %2914 = vmatprep.subr.mxu0 0.0
    %2915 = vmatpush1.msra.mxu0 0.0
    %2916 = vmatprep.subr.mxu0 0.0
    %2917 = vmatpush1.msra.mxu0 0.0
    %2918 = vmatprep.subr.mxu0 0.0
    %2919 = vmatpush1.msra.mxu0 0.0
    %2920 = vmatprep.subr.mxu0 0.0
    %2921 = vmatpush1.msra.mxu0 0.0
    %2922 = vmatprep.mubr.f32.mxu0 0.0
    %2923 = vmatmul.mubr.f32.gmra.mrb[0].mxu0 %v2412
    %v2924 = vpop.f32.mrb[0].mxu0
    %v2925 = vadd.f32 0.0, %v2924
    %v2926 = vpop.f32.mrb[0].mxu0
    %2927 = vdwg.mxu0
    %v2928 = vmul.f32 %v2192, %v2332
    %v2930 = vsel %vm1352, %v2928, 0
    %2932 = vmatprep.subr.mxu0 0.0
    %2933 = vmatpush1.msra.mxu0 %v2336
    %2934 = vmatprep.subr.mxu0 0.0
    %2935 = vmatpush1.msra.mxu0 0.0
    %2936 = vmatprep.subr.mxu0 0.0
    %2937 = vmatpush1.msra.mxu0 0.0
    %2938 = vmatprep.subr.mxu0 0.0
    %2939 = vmatpush1.msra.mxu0 0.0
    %2940 = vmatprep.subr.mxu0 0.0
    %2941 = vmatpush1.msra.mxu0 0.0
    %2942 = vmatprep.subr.mxu0 0.0
    %2943 = vmatpush1.msra.mxu0 0.0
    %2944 = vmatprep.subr.mxu0 0.0
    %2945 = vmatpush1.msra.mxu0 0.0
    %2946 = vmatprep.subr.mxu0 0.0
    %2947 = vmatpush1.msra.mxu0 0.0
    %2948 = vmatprep.subr.mxu0 0.0
    %2949 = vmatpush1.msra.mxu0 0.0
    %2950 = vmatprep.subr.mxu0 0.0
    %2951 = vmatpush1.msra.mxu0 0.0
    %2952 = vmatprep.subr.mxu0 0.0
    %2953 = vmatpush1.msra.mxu0 0.0
    %2954 = vmatprep.subr.mxu0 0.0
    %2955 = vmatpush1.msra.mxu0 0.0
    %2956 = vmatprep.subr.mxu0 0.0
    %2957 = vmatpush1.msra.mxu0 0.0
    %2958 = vmatprep.subr.mxu0 0.0
    %2959 = vmatpush1.msra.mxu0 0.0
    %2960 = vmatprep.subr.mxu0 0.0
    %2961 = vmatpush1.msra.mxu0 0.0
    %2962 = vmatprep.subr.mxu0 0.0
    %2963 = vmatpush1.msra.mxu0 0.0
    %2964 = vmatprep.subr.mxu0 0.0
    %2965 = vmatpush1.msra.mxu0 0.0
    %2966 = vmatprep.subr.mxu0 0.0
    %2967 = vmatpush1.msra.mxu0 0.0
    %2968 = vmatprep.subr.mxu0 0.0
    %2969 = vmatpush1.msra.mxu0 0.0
    %2970 = vmatprep.subr.mxu0 0.0
    %2971 = vmatpush1.msra.mxu0 0.0
    %2972 = vmatprep.subr.mxu0 0.0
    %2973 = vmatpush1.msra.mxu0 0.0
    %2974 = vmatprep.subr.mxu0 0.0
    %2975 = vmatpush1.msra.mxu0 0.0
    %2976 = vmatprep.subr.mxu0 0.0
    %2977 = vmatpush1.msra.mxu0 0.0
    %2978 = vmatprep.subr.mxu0 0.0
    %2979 = vmatpush1.msra.mxu0 0.0
    %2980 = vmatprep.subr.mxu0 0.0
    %2981 = vmatpush1.msra.mxu0 0.0
    %2982 = vmatprep.subr.mxu0 0.0
    %2983 = vmatpush1.msra.mxu0 0.0
    %2984 = vmatprep.subr.mxu0 0.0
    %2985 = vmatpush1.msra.mxu0 0.0
    %2986 = vmatprep.subr.mxu0 0.0
    %2987 = vmatpush1.msra.mxu0 0.0
    %2988 = vmatprep.subr.mxu0 0.0
    %2989 = vmatpush1.msra.mxu0 0.0
    %2990 = vmatprep.subr.mxu0 0.0
    %2991 = vmatpush1.msra.mxu0 0.0
    %2992 = vmatprep.subr.mxu0 0.0
    %2993 = vmatpush1.msra.mxu0 0.0
    %2994 = vmatprep.subr.mxu0 0.0
    %2995 = vmatpush1.msra.mxu0 0.0
    %2996 = vmatprep.mubr.f32.mxu0 0.0
    %2997 = vmatmul.mubr.f32.gmra.mrb[0].mxu0 %v2930
    %v2998 = vpop.f32.mrb[0].mxu0
    %v2999 = vadd.f32 0.0, %v2998
    %v3000 = vpop.f32.mrb[0].mxu0
    %3001 = vdwg.mxu0
    %v3003 = vsel %vm2414, %v2999, 0
    %3005 = vmatprep.subr.mxu0 0.0
    %3006 = vmatpush1.msra.mxu0 %v3003
    %3007 = vmatprep.subr.mxu0 0.0
    %3008 = vmatpush1.msra.mxu0 0.0
    %3009 = vmatprep.subr.mxu0 0.0
    %3010 = vmatpush1.msra.mxu0 0.0
    %3011 = vmatprep.subr.mxu0 0.0
    %3012 = vmatpush1.msra.mxu0 0.0
    %3013 = vmatprep.subr.mxu0 0.0
    %3014 = vmatpush1.msra.mxu0 0.0
    %3015 = vmatprep.subr.mxu0 0.0
    %3016 = vmatpush1.msra.mxu0 0.0
    %3017 = vmatprep.subr.mxu0 0.0
    %3018 = vmatpush1.msra.mxu0 0.0
    %3019 = vmatprep.subr.mxu0 0.0
    %3020 = vmatpush1.msra.mxu0 0.0
    %3021 = vmatprep.subr.mxu0 0.0
    %3022 = vmatpush1.msra.mxu0 0.0
    %3023 = vmatprep.subr.mxu0 0.0
    %3024 = vmatpush1.msra.mxu0 0.0
    %3025 = vmatprep.subr.mxu0 0.0
    %3026 = vmatpush1.msra.mxu0 0.0
    %3027 = vmatprep.subr.mxu0 0.0
    %3028 = vmatpush1.msra.mxu0 0.0
    %3029 = vmatprep.subr.mxu0 0.0
    %3030 = vmatpush1.msra.mxu0 0.0
    %3031 = vmatprep.subr.mxu0 0.0
    %3032 = vmatpush1.msra.mxu0 0.0
    %3033 = vmatprep.subr.mxu0 0.0
    %3034 = vmatpush1.msra.mxu0 0.0
    %3035 = vmatprep.subr.mxu0 0.0
    %3036 = vmatpush1.msra.mxu0 0.0
    %3037 = vmatprep.subr.mxu0 0.0
    %3038 = vmatpush1.msra.mxu0 0.0
    %3039 = vmatprep.subr.mxu0 0.0
    %3040 = vmatpush1.msra.mxu0 0.0
    %3041 = vmatprep.subr.mxu0 0.0
    %3042 = vmatpush1.msra.mxu0 0.0
    %3043 = vmatprep.subr.mxu0 0.0
    %3044 = vmatpush1.msra.mxu0 0.0
    %3045 = vmatprep.subr.mxu0 0.0
    %3046 = vmatpush1.msra.mxu0 0.0
    %3047 = vmatprep.subr.mxu0 0.0
    %3048 = vmatpush1.msra.mxu0 0.0
    %3049 = vmatprep.subr.mxu0 0.0
    %3050 = vmatpush1.msra.mxu0 0.0
    %3051 = vmatprep.subr.mxu0 0.0
    %3052 = vmatpush1.msra.mxu0 0.0
    %3053 = vmatprep.subr.mxu0 0.0
    %3054 = vmatpush1.msra.mxu0 0.0
    %3055 = vmatprep.subr.mxu0 0.0
    %3056 = vmatpush1.msra.mxu0 0.0
    %3057 = vmatprep.subr.mxu0 0.0
    %3058 = vmatpush1.msra.mxu0 0.0
    %3059 = vmatprep.subr.mxu0 0.0
    %3060 = vmatpush1.msra.mxu0 0.0
    %3061 = vmatprep.subr.mxu0 0.0
    %3062 = vmatpush1.msra.mxu0 0.0
    %3063 = vmatprep.subr.mxu0 0.0
    %3064 = vmatpush1.msra.mxu0 0.0
    %3065 = vmatprep.subr.mxu0 0.0
    %3066 = vmatpush1.msra.mxu0 0.0
    %3067 = vmatprep.subr.mxu0 0.0
    %3068 = vmatpush1.msra.mxu0 0.0
    %3069 = vmatprep.mubr.f32.mxu0 0.0
    %3070 = vmatmul.mubr.f32.gmra.mrb[0].mxu0 %v2412
    %v3071 = vpop.f32.mrb[0].mxu0
    %v3072 = vadd.f32 0.0, %v3071
    %v3073 = vpop.f32.mrb[0].mxu0
    %3074 = vdwg.mxu0
    %v3075 = vmul.f32 %v2485, %v2485
    %v3076 = vmul.f32 %v2631, %v2631
    %v3077 = vmul.f32 %v2485, %v2631
    %v3078 = vsub.f32 %v2778, %v3075
    %v3079 = vsub.f32 %v2925, %v3076
    %v3080 = vsub.f32 %v3072, %v3077
    %v3081 = vmul.f32 %v3080, 2.0
    %v3082 = vadd.f32 %v3081, 0.0009
    %v3083 = vadd.f32 %v3078, %v3079
    %v3084 = vadd.f32 %v3083, 0.0009
    %v3085 = vrcp.pop %v3084
    %v3086 = vmul.f32 %v3082, %v3085
    %v3087 = vmul.f32 %v3077, 2.0
    %v3088 = vadd.f32 %v3087, 0.0001
    %v3089 = vadd.f32 %v3075, %v3076
    %v3090 = vadd.f32 %v3089, 0.0001
    %v3091 = vrcp.pop %v3090
    %v3092 = vmul.f32 %v3088, %v3091
    %v3093 = vmul.f32 %v3092, %v3086
    %v3094 = vsel %vm2410, %v3093, 0.0
    %3095 = vadd.xlane.f32.xlu0 %v3094
    %v3096 = vpop.xlane.xlu0 %3095
    %v3097 = vrot.slane %v3096, 4
    %v3098 = vadd.f32 %v3096, %v3097
    %v3099 = vrot.slane %v3098, 2
    %v3100 = vadd.f32 %v3098, %v3099
    %v3101 = vrot.slane %v3100, 1
    %v3102 = vadd.f32 %v3100, %v3101
    %s3103 = vtos %v3102
    %v3104 = vstv %s3103
    %v3105 = vsel %vm2410, %v3086, 0.0
    %3106 = vadd.xlane.f32.xlu0 %v3105
    %v3107 = vpop.xlane.xlu0 %3106
    %v3108 = vrot.slane %v3107, 4
    %v3109 = vadd.f32 %v3107, %v3108
    %v3110 = vrot.slane %v3109, 2
    %v3111 = vadd.f32 %v3109, %v3110
    %v3112 = vrot.slane %v3111, 1
    %v3113 = vadd.f32 %v3111, %v3112
    %s3114 = vtos %v3113
    %v3115 = vstv %s3114
    %v3116 = vld [vmem:[#allocation4] sm:$0x1]
    %v3117 = vadd.f32 %v3116, %v3104
    %3118 = vst.msk [vmem:[#allocation4] sm:$0x1] %vm973, %v3117
    %v3119 = vld [vmem:[#allocation7] sm:$0x1]
    %v3120 = vadd.f32 %v3119, %v3115
    %3121 = vst.msk [vmem:[#allocation7] sm:$0x1] %vm973, %v3120
    // Predicated region
    $region54: #{entropy_mse_loss.10} parent=1 // pred_check
      %p3122 = pneg %p91
    $region55: #{entropy_mse_loss.10} parent=1 // pred_check_branch
      %3124 = sbr.rel (%p3122) target = $region57
    $region56: #{entropy_mse_loss.10} parent=1 // pred_region
      %v3125 = vld [vmem:[#allocation2] sm:$0x1]
      %3126 = vst.msk [vmem:[#allocation8] sm:$0x1] %vm973, %v3125
      %v3127 = vld [vmem:[#allocation5] sm:$0x1]
      %3128 = vst.msk [vmem:[#allocation13] sm:$0x1] %vm973, %v3127
      %v3129 = vld [vmem:[#allocation3] sm:$0x1]
      %3130 = vst.msk [vmem:[#allocation10] sm:$0x1] %vm973, %v3129
      %v3131 = vld [vmem:[#allocation6] sm:$0x1]
      %3132 = vst.msk [vmem:[#allocation15] sm:$0x1] %vm973, %v3131
      %v3133 = vld [vmem:[#allocation4] sm:$0x1]
      %3134 = vst.msk [vmem:[#allocation12] sm:$0x1] %vm973, %v3133
      %v3135 = vld [vmem:[#allocation7] sm:$0x1]
      %3136 = vst.msk [vmem:[#allocation16] sm:$0x1] %vm973, %v3135
    $region57: #{entropy_mse_loss.10} parent=1 // pred_fallthru
      _
    // Predicated region
    $region58: #{entropy_mse_loss.10} parent=1 // pred_check
      _
    $region59: #{entropy_mse_loss.10} parent=1 // pred_check_branch
      %3138 = sbr.rel (0) target = $region61
    $region60: #{entropy_mse_loss.10} parent=1 // pred_region
      %s3140 = ssub.s32 16, 16
      %3141 = vsyncadd [#allocation9], %s3140
      %s3143 = sshll.u32 [#allocation8], 4
      %s3144 = int_to_ptr.vmem [resolvable:$true] %s3143
      %3146 = dma.vmem_to_hbm [thread:$0]  %s3144, 16, %s12, [#allocation9]
    $region61: #{entropy_mse_loss.10} parent=1 // pred_fallthru
      _
    // Predicated region
    $region62: #{entropy_mse_loss.10} parent=1 // pred_check
      _
    $region63: #{entropy_mse_loss.10} parent=1 // pred_check_branch
      %3148 = sbr.rel (0) target = $region65
    $region64: #{entropy_mse_loss.10} parent=1 // pred_region
      %s3150 = ssub.s32 16, 16
      %3151 = vsyncadd [#allocation11], %s3150
      %s3153 = sshll.u32 [#allocation10], 4
      %s3154 = int_to_ptr.vmem [resolvable:$true] %s3153
      %3156 = dma.vmem_to_hbm [thread:$0]  %s3154, 16, %s13, [#allocation11]
    $region65: #{entropy_mse_loss.10} parent=1 // pred_fallthru
      _
    // Predicated region
    $region66: #{entropy_mse_loss.10} parent=1 // pred_check
      _
    $region67: #{entropy_mse_loss.10} parent=1 // pred_check_branch
      %3158 = sbr.rel (0) target = $region69
    $region68: #{entropy_mse_loss.10} parent=1 // pred_region
      %s3160 = ssub.s32 16, 16
      %3161 = vsyncadd [#allocation11], %s3160
      %s3163 = sshll.u32 [#allocation12], 4
      %s3164 = int_to_ptr.vmem [resolvable:$true] %s3163
      %3166 = dma.vmem_to_hbm [thread:$0]  %s3164, 16, %s14, [#allocation11]
    $region69: #{entropy_mse_loss.10} parent=1 // pred_fallthru
      _
    // Predicated region
    $region70: #{entropy_mse_loss.10} parent=1 // pred_check
      _
    $region71: #{entropy_mse_loss.10} parent=1 // pred_check_branch
      %3168 = sbr.rel (0) target = $region73
    $region72: #{entropy_mse_loss.10} parent=1 // pred_region
      %s3170 = ssub.s32 16, 16
      %3171 = vsyncadd [#allocation14], %s3170
      %s3173 = sshll.u32 [#allocation13], 4
      %s3174 = int_to_ptr.vmem [resolvable:$true] %s3173
      %3176 = dma.vmem_to_hbm [thread:$0]  %s3174, 16, %s15, [#allocation14]
    $region73: #{entropy_mse_loss.10} parent=1 // pred_fallthru
      _
    // Predicated region
    $region74: #{entropy_mse_loss.10} parent=1 // pred_check
      _
    $region75: #{entropy_mse_loss.10} parent=1 // pred_check_branch
      %3178 = sbr.rel (0) target = $region77
    $region76: #{entropy_mse_loss.10} parent=1 // pred_region
      %s3180 = ssub.s32 16, 16
      %3181 = vsyncadd [#allocation14], %s3180
      %s3183 = sshll.u32 [#allocation15], 4
      %s3184 = int_to_ptr.vmem [resolvable:$true] %s3183
      %3186 = dma.vmem_to_hbm [thread:$0]  %s3184, 16, %s16, [#allocation14]
    $region77: #{entropy_mse_loss.10} parent=1 // pred_fallthru
      _
    // Predicated region
    $region78: #{entropy_mse_loss.10} parent=1 // pred_check
      _
    $region79: #{entropy_mse_loss.10} parent=1 // pred_check_branch
      %3188 = sbr.rel (0) target = $region81
    $region80: #{entropy_mse_loss.10} parent=1 // pred_region
      %s3190 = ssub.s32 16, 16
      %3191 = vsyncadd [#allocation17], %s3190
      %s3193 = sshll.u32 [#allocation16], 4
      %s3194 = int_to_ptr.vmem [resolvable:$true] %s3193
      %3196 = dma.vmem_to_hbm [thread:$0]  %s3194, 16, %s17, [#allocation17]
    $region81: #{entropy_mse_loss.10} parent=1 // pred_fallthru
      _
    // Predicated region
    $region82: #{entropy_mse_loss.10} parent=1 // pred_check
      _
    $region83: #{entropy_mse_loss.10} parent=1 // pred_check_branch
      %3198 = sbr.rel (0) target = $region85
    $region84: #{entropy_mse_loss.10} parent=1 // pred_region
      %3199 = dma.done [#allocation9], 16
    $region85: #{entropy_mse_loss.10} parent=1 // pred_fallthru
      _
    // Predicated region
    $region86: #{entropy_mse_loss.10} parent=1 // pred_check
      _
    $region87: #{entropy_mse_loss.10} parent=1 // pred_check_branch
      %3201 = sbr.rel (0) target = $region89
    $region88: #{entropy_mse_loss.10} parent=1 // pred_region
      %3202 = dma.done [#allocation11], 16
    $region89: #{entropy_mse_loss.10} parent=1 // pred_fallthru
      _
    // Predicated region
    $region90: #{entropy_mse_loss.10} parent=1 // pred_check
      _
    $region91: #{entropy_mse_loss.10} parent=1 // pred_check_branch
      %3204 = sbr.rel (0) target = $region93
    $region92: #{entropy_mse_loss.10} parent=1 // pred_region
      %3205 = dma.done [#allocation11], 16
    $region93: #{entropy_mse_loss.10} parent=1 // pred_fallthru
      _
    // Predicated region
    $region94: #{entropy_mse_loss.10} parent=1 // pred_check
      _
    $region95: #{entropy_mse_loss.10} parent=1 // pred_check_branch
      %3207 = sbr.rel (0) target = $region97
    $region96: #{entropy_mse_loss.10} parent=1 // pred_region
      %3208 = dma.done [#allocation14], 16
    $region97: #{entropy_mse_loss.10} parent=1 // pred_fallthru
      _
    // Predicated region
    $region98: #{entropy_mse_loss.10} parent=1 // pred_check
      _
    $region99: #{entropy_mse_loss.10} parent=1 // pred_check_branch
      %3210 = sbr.rel (0) target = $region101
    $region100: #{entropy_mse_loss.10} parent=1 // pred_region
      %3211 = dma.done [#allocation14], 16
    $region101: #{entropy_mse_loss.10} parent=1 // pred_fallthru
      _
    // Predicated region
    $region102: #{entropy_mse_loss.10} parent=1 // pred_check
      _
    $region103: #{entropy_mse_loss.10} parent=1 // pred_check_branch
      %3213 = sbr.rel (0) target = $region105
    $region104: #{entropy_mse_loss.10} parent=1 // pred_region
      %3214 = dma.done [#allocation17], 16
    $region105: #{entropy_mse_loss.10} parent=1 // pred_fallthru
      _
    %3215 = vsyncpa [#allocation9], 1
    %3216 = vsyncpa [#allocation11], 1
    %3217 = vsyncpa [#allocation14], 1
    %3218 = vsyncpa [#allocation17], 1

// kernel: entropy_mse_loss.9
$region0: #{entropy_mse_loss.9}
  #allocation0 [shape = 'u32[]', space=smem, size = 0x4, offset = 0x4, fixed_abs, tag = 'smem constant byte address 0x4 - core index']
  #allocation1 [shape = 'u32[144,128]{1,0:T(1,128)}', space=vmem, size = 0x12000, scoped, tag = 'internal scratch']
  #allocation2 [shape = 'f32[1,1]{1,0:T(1,128)}', space=vmem, size = 0x200, scoped, tag = 'scratch operand']
  #allocation3 [shape = 'f32[1,1]{1,0:T(1,128)}', space=vmem, size = 0x200, scoped, tag = 'scratch operand']
  #allocation4 [shape = 'f32[1,1]{1,0:T(1,128)}', space=vmem, size = 0x200, scoped, tag = 'scratch operand']
  #allocation5 [shape = 'f32[1,1]{1,0:T(1,128)}', space=vmem, size = 0x200, scoped, tag = 'scratch operand']
  #allocation6 [shape = 'f32[1,1]{1,0:T(1,128)}', space=vmem, size = 0x200, scoped, tag = 'scratch operand']
  #allocation7 [shape = 'f32[1,1]{1,0:T(1,128)}', space=vmem, size = 0x200, scoped, tag = 'scratch operand']
  %s0 = inlined_call_operand.vmem [shape: f32[1,32,64], index: 0, kind: input, shape index: {}]
  %s1 = inlined_call_operand.vmem [shape: f32[1,32,64], index: 1, kind: input, shape index: {}]
  %s2 = inlined_call_operand.vmem [shape: f32[32,32], index: 2, kind: input, shape index: {}]
  %s3 = inlined_call_operand.vmem [shape: f32[16,16], index: 3, kind: input, shape index: {}]
  %s4 = inlined_call_operand.vmem [shape: f32[8,8], index: 4, kind: input, shape index: {}]
  %s5 = inlined_call_operand.vmem [shape: f32[64,60], index: 5, kind: input, shape index: {}]
  %s6 = inlined_call_operand.vmem [shape: f32[32,28], index: 6, kind: input, shape index: {}]
  %s7 = inlined_call_operand.vmem [shape: f32[16,12], index: 7, kind: input, shape index: {}]
  %s8 = inlined_call_operand.vmem [shape: f32[16,32], index: 8, kind: input, shape index: {}]
  %s9 = inlined_call_operand.vmem [shape: f32[8,16], index: 9, kind: input, shape index: {}]
  %s10 = inlined_call_operand.vmem [shape: f32[64,32], index: 10, kind: input, shape index: {}]
  %s11 = inlined_call_operand.vmem [shape: f32[32,16], index: 11, kind: input, shape index: {}]
  %s12 = inlined_call_operand.hbm [shape: f32[1,1,1], index: 12, kind: output, shape index: {0}]
  %s13 = inlined_call_operand.hbm [shape: f32[1,1,1], index: 13, kind: output, shape index: {1}]
  %s14 = inlined_call_operand.hbm [shape: f32[1,1,1], index: 14, kind: output, shape index: {2}]
  %s15 = inlined_call_operand.hbm [shape: f32[1,1,1], index: 15, kind: output, shape index: {3}]
  %s16 = inlined_call_operand.hbm [shape: f32[1,1,1], index: 16, kind: output, shape index: {4}]
  %s17 = inlined_call_operand.hbm [shape: f32[1,1,1], index: 17, kind: output, shape index: {5}]
  %18 = xla_tuple %s12, %s13, %s14, %s15, %s16, %s17
  %s19 = sld [smem:[#allocation0]]
  $region106: #{entropy_mse_loss.9} parent=0
    _
  %s21 = ssub.s32 1, %s19
  %s22 = scalar_select 0, %s21, %s19
  $region1: #{entropy_mse_loss.9} parent=0
    #allocation8 [shape = 'u8[512]{0}', space=vmem, size = 0x400, scoped, tag = 'output window, operand 0, single buffered']
    #allocation9 [shape = 's32[1]{0}', space=sflag, size = 0x4, scoped, tag = 'scoped memory for entropy_mse_loss.9']
    #allocation10 [shape = 'u8[512]{0}', space=vmem, size = 0x400, scoped, tag = 'output window, operand 1, single buffered']
    #allocation11 [shape = 's32[1]{0}', space=sflag, size = 0x4, scoped, tag = 'scoped memory for entropy_mse_loss.9']
    #allocation12 [shape = 'u8[512]{0}', space=vmem, size = 0x400, scoped, tag = 'output window, operand 2, single buffered']
    #allocation13 [shape = 'u8[512]{0}', space=vmem, size = 0x400, scoped, tag = 'output window, operand 3, single buffered']
    #allocation14 [shape = 's32[1]{0}', space=sflag, size = 0x4, scoped, tag = 'scoped memory for entropy_mse_loss.9']
    #allocation15 [shape = 'u8[512]{0}', space=vmem, size = 0x400, scoped, tag = 'output window, operand 4, single buffered']
    #allocation16 [shape = 'u8[512]{0}', space=vmem, size = 0x400, scoped, tag = 'output window, operand 5, single buffered']
    #allocation17 [shape = 's32[1]{0}', space=sflag, size = 0x4, scoped, tag = 'scoped memory for entropy_mse_loss.9']
    %23 = vsyncpa [#allocation9], 0
    %24 = vsyncpa [#allocation11], 0
    %25 = vsyncpa [#allocation14], 0
    %26 = vsyncpa [#allocation17], 0
    // Predicated region
    $region2: #{entropy_mse_loss.9} parent=1 // pred_check
      _
    $region3: #{entropy_mse_loss.9} parent=1 // pred_check_branch
      %28 = sbr.rel (0) target = $region5
    $region4: #{entropy_mse_loss.9} parent=1 // pred_region
      %s29 = sadd.s32 0, 0
      %p30 = scmp.lt.s32.totalorder %s29, 0
      %s31 = scalar_select %p30, %s29, 0
      %s32 = smul.addr %s31, 4
      %s33 = smul.addr %s32, 8
      %s34 = scalar_lea.vmem %s0, %s33
      %s35 = sadd.s32 0, 0
    $region5: #{entropy_mse_loss.9} parent=1 // pred_fallthru
      _
    // Predicated region
    $region6: #{entropy_mse_loss.9} parent=1 // pred_check
      _
    $region7: #{entropy_mse_loss.9} parent=1 // pred_check_branch
      %37 = sbr.rel (0) target = $region9
    $region8: #{entropy_mse_loss.9} parent=1 // pred_region
      %s38 = sadd.s32 0, 0
      %p39 = scmp.lt.s32.totalorder %s38, 0
      %s40 = scalar_select %p39, %s38, 0
      %s41 = smul.addr %s40, 4
      %s42 = smul.addr %s41, 8
      %s43 = scalar_lea.vmem %s1, %s42
      %s44 = sadd.s32 0, 0
    $region9: #{entropy_mse_loss.9} parent=1 // pred_fallthru
      _
    // Predicated region
    $region10: #{entropy_mse_loss.9} parent=1 // pred_check
      _
    $region11: #{entropy_mse_loss.9} parent=1 // pred_check_branch
      %46 = sbr.rel (0) target = $region13
    $region12: #{entropy_mse_loss.9} parent=1 // pred_region
      _
    $region13: #{entropy_mse_loss.9} parent=1 // pred_fallthru
      _
    // Predicated region
    $region14: #{entropy_mse_loss.9} parent=1 // pred_check
      _
    $region15: #{entropy_mse_loss.9} parent=1 // pred_check_branch
      %48 = sbr.rel (0) target = $region17
    $region16: #{entropy_mse_loss.9} parent=1 // pred_region
      _
    $region17: #{entropy_mse_loss.9} parent=1 // pred_fallthru
      _
    // Predicated region
    $region18: #{entropy_mse_loss.9} parent=1 // pred_check
      _
    $region19: #{entropy_mse_loss.9} parent=1 // pred_check_branch
      %50 = sbr.rel (0) target = $region21
    $region20: #{entropy_mse_loss.9} parent=1 // pred_region
      _
    $region21: #{entropy_mse_loss.9} parent=1 // pred_fallthru
      _
    // Predicated region
    $region22: #{entropy_mse_loss.9} parent=1 // pred_check
      _
    $region23: #{entropy_mse_loss.9} parent=1 // pred_check_branch
      %52 = sbr.rel (0) target = $region25
    $region24: #{entropy_mse_loss.9} parent=1 // pred_region
      _
    $region25: #{entropy_mse_loss.9} parent=1 // pred_fallthru
      _
    // Predicated region
    $region26: #{entropy_mse_loss.9} parent=1 // pred_check
      _
    $region27: #{entropy_mse_loss.9} parent=1 // pred_check_branch
      %54 = sbr.rel (0) target = $region29
    $region28: #{entropy_mse_loss.9} parent=1 // pred_region
      _
    $region29: #{entropy_mse_loss.9} parent=1 // pred_fallthru
      _
    // Predicated region
    $region30: #{entropy_mse_loss.9} parent=1 // pred_check
      _
    $region31: #{entropy_mse_loss.9} parent=1 // pred_check_branch
      %56 = sbr.rel (0) target = $region33
    $region32: #{entropy_mse_loss.9} parent=1 // pred_region
      _
    $region33: #{entropy_mse_loss.9} parent=1 // pred_fallthru
      _
    // Predicated region
    $region34: #{entropy_mse_loss.9} parent=1 // pred_check
      _
    $region35: #{entropy_mse_loss.9} parent=1 // pred_check_branch
      %58 = sbr.rel (0) target = $region37
    $region36: #{entropy_mse_loss.9} parent=1 // pred_region
      _
    $region37: #{entropy_mse_loss.9} parent=1 // pred_fallthru
      _
    // Predicated region
    $region38: #{entropy_mse_loss.9} parent=1 // pred_check
      _
    $region39: #{entropy_mse_loss.9} parent=1 // pred_check_branch
      %60 = sbr.rel (0) target = $region41
    $region40: #{entropy_mse_loss.9} parent=1 // pred_region
      _
    $region41: #{entropy_mse_loss.9} parent=1 // pred_fallthru
      _
    // Predicated region
    $region42: #{entropy_mse_loss.9} parent=1 // pred_check
      _
    $region43: #{entropy_mse_loss.9} parent=1 // pred_check_branch
      %62 = sbr.rel (0) target = $region45
    $region44: #{entropy_mse_loss.9} parent=1 // pred_region
      _
    $region45: #{entropy_mse_loss.9} parent=1 // pred_fallthru
      _
    // Predicated region
    $region46: #{entropy_mse_loss.9} parent=1 // pred_check
      _
    $region47: #{entropy_mse_loss.9} parent=1 // pred_check_branch
      %64 = sbr.rel (0) target = $region49
    $region48: #{entropy_mse_loss.9} parent=1 // pred_region
      _
    $region49: #{entropy_mse_loss.9} parent=1 // pred_fallthru
      _
    %s65 = sadd.s32 0, 0
    %p66 = scmp.lt.s32.totalorder %s65, 0
    %s67 = scalar_select %p66, %s65, 0
    %s68 = smul.addr %s67, 4
    %s69 = smul.addr %s68, 8
    %s70 = scalar_lea.vmem %s0, %s69
    %s71 = sadd.s32 0, 0
    %p72 = scmp.lt.s32.totalorder %s71, 0
    %s73 = scalar_select %p72, %s71, 0
    %s74 = smul.addr %s73, 4
    %s75 = smul.addr %s74, 8
    %s76 = scalar_lea.vmem %s1, %s75
    %s77 = sadd.s32 0, 0
    %p78 = scmp.lt.s32.totalorder %s77, 0
    %s79 = scalar_select %p78, %s77, 0
    %s80 = smul.addr %s79, 4
    %s81 = smul.addr %s80, 8
    %s82 = scalar_lea.vmem %s0, %s81
    %s83 = sadd.s32 0, 0
    %s84 = sadd.s32 0, 0
    %p85 = scmp.lt.s32.totalorder %s84, 0
    %s86 = scalar_select %p85, %s84, 0
    %s87 = smul.addr %s86, 4
    %s88 = smul.addr %s87, 8
    %s89 = scalar_lea.vmem %s1, %s88
    %s90 = sadd.s32 0, 0
    %p91 = scmp.eq.s32.totalorder 0, 0
    // Predicated region
    $region50: #{entropy_mse_loss.9} parent=1 // pred_check
      %p92 = pneg %p91
    $region51: #{entropy_mse_loss.9} parent=1 // pred_check_branch
      %94 = sbr.rel (%p92) target = $region53
    $region52: #{entropy_mse_loss.9} parent=1 // pred_region
      %vm95 = vcmask 0
      %96 = vst.msk [vmem:[#allocation2] sm:$0x1] %vm95, 0.0
      %97 = vst.msk [vmem:[#allocation5] sm:$0x1] %vm95, 0.0
      %98 = vst.msk [vmem:[#allocation3] sm:$0x1] %vm95, 0.0
      %99 = vst.msk [vmem:[#allocation6] sm:$0x1] %vm95, 0.0
      %100 = vst.msk [vmem:[#allocation4] sm:$0x1] %vm95, 0.0
      %101 = vst.msk [vmem:[#allocation7] sm:$0x1] %vm95, 0.0
    $region53: #{entropy_mse_loss.9} parent=1 // pred_fallthru
      _
    %v102 = vld [vmem:[%s82] sm:$0xff]
    %v103 = vld [vmem:[%s82 + $0x8] sm:$0xff]
    %v104 = vld [vmem:[%s82 + $0x10] sm:$0xff]
    %v105 = vld [vmem:[%s82 + $0x18] sm:$0xff]
    %v106 = vld [vmem:[%s89] sm:$0xff]
    %v107 = vld [vmem:[%s89 + $0x8] sm:$0xff]
    %v108 = vld [vmem:[%s89 + $0x10] sm:$0xff]
    %v109 = vld [vmem:[%s89 + $0x18] sm:$0xff]
    %v110 = vld [vmem:[%s2] sm:$0xff]
    %v111 = vld [vmem:[%s2 + $0x8] sm:$0xff]
    %v112 = vld [vmem:[%s2 + $0x10] sm:$0xff]
    %v113 = vld [vmem:[%s2 + $0x18] sm:$0xff]
    %v114 = vld [vmem:[%s5] sm:$0xff]
    %v115 = vld [vmem:[%s5 + $0x8] sm:$0xff]
    %v116 = vld [vmem:[%s5 + $0x10] sm:$0xff]
    %v117 = vld [vmem:[%s5 + $0x18] sm:$0xff]
    %v118 = vld [vmem:[%s5 + $0x20] sm:$0xff]
    %v119 = vld [vmem:[%s5 + $0x28] sm:$0xff]
    %v120 = vld [vmem:[%s5 + $0x30] sm:$0xff]
    %v121 = vld [vmem:[%s5 + $0x38] sm:$0xff]
    %vm122 = vcmask 523264
    %v124 = vsel %vm122, %v102, 0
    %v127 = vsel %vm122, %v103, 0
    %v130 = vsel %vm122, %v104, 0
    %v133 = vsel %vm122, %v105, 0
    %135 = vmatprep.subr.mxu0 0.0
    %136 = vmatpush1.msra.mxu0 %v114
    %137 = vmatprep.subr.mxu0 0.0
    %138 = vmatpush1.msra.mxu0 %v115
    %139 = vmatprep.subr.mxu0 0.0
    %140 = vmatpush1.msra.mxu0 %v116
    %141 = vmatprep.subr.mxu0 0.0
    %142 = vmatpush1.msra.mxu0 %v117
    %143 = vmatprep.subr.mxu0 0.0
    %144 = vmatpush1.msra.mxu0 %v118
    %145 = vmatprep.subr.mxu0 0.0
    %146 = vmatpush1.msra.mxu0 %v119
    %147 = vmatprep.subr.mxu0 0.0
    %148 = vmatpush1.msra.mxu0 %v120
    %149 = vmatprep.subr.mxu0 0.0
    %150 = vmatpush1.msra.mxu0 %v121
    %151 = vmatprep.subr.mxu0 0.0
    %152 = vmatpush1.msra.mxu0 0.0
    %153 = vmatprep.subr.mxu0 0.0
    %154 = vmatpush1.msra.mxu0 0.0
    %155 = vmatprep.subr.mxu0 0.0
    %156 = vmatpush1.msra.mxu0 0.0
    %157 = vmatprep.subr.mxu0 0.0
    %158 = vmatpush1.msra.mxu0 0.0
    %159 = vmatprep.subr.mxu0 0.0
    %160 = vmatpush1.msra.mxu0 0.0
    %161 = vmatprep.subr.mxu0 0.0
    %162 = vmatpush1.msra.mxu0 0.0
    %163 = vmatprep.subr.mxu0 0.0
    %164 = vmatpush1.msra.mxu0 0.0
    %165 = vmatprep.subr.mxu0 0.0
    %166 = vmatpush1.msra.mxu0 0.0
    %167 = vmatprep.subr.mxu0 0.0
    %168 = vmatpush1.msra.mxu0 0.0
    %169 = vmatprep.subr.mxu0 0.0
    %170 = vmatpush1.msra.mxu0 0.0
    %171 = vmatprep.subr.mxu0 0.0
    %172 = vmatpush1.msra.mxu0 0.0
    %173 = vmatprep.subr.mxu0 0.0
    %174 = vmatpush1.msra.mxu0 0.0
    %175 = vmatprep.subr.mxu0 0.0
    %176 = vmatpush1.msra.mxu0 0.0
    %177 = vmatprep.subr.mxu0 0.0
    %178 = vmatpush1.msra.mxu0 0.0
    %179 = vmatprep.subr.mxu0 0.0
    %180 = vmatpush1.msra.mxu0 0.0
    %181 = vmatprep.subr.mxu0 0.0
    %182 = vmatpush1.msra.mxu0 0.0
    %183 = vmatprep.subr.mxu0 0.0
    %184 = vmatpush1.msra.mxu0 0.0
    %185 = vmatprep.subr.mxu0 0.0
    %186 = vmatpush1.msra.mxu0 0.0
    %187 = vmatprep.subr.mxu0 0.0
    %188 = vmatpush1.msra.mxu0 0.0
    %189 = vmatprep.subr.mxu0 0.0
    %190 = vmatpush1.msra.mxu0 0.0
    %191 = vmatprep.subr.mxu0 0.0
    %192 = vmatpush1.msra.mxu0 0.0
    %193 = vmatprep.subr.mxu0 0.0
    %194 = vmatpush1.msra.mxu0 0.0
    %195 = vmatprep.subr.mxu0 0.0
    %196 = vmatpush1.msra.mxu0 0.0
    %197 = vmatprep.subr.mxu0 0.0
    %198 = vmatpush1.msra.mxu0 0.0
    %199 = vmatprep.mubr.f32.mxu0 0.0
    %200 = vmatmul.mubr.f32.gmra.mrb[0].mxu0 %v124
    %v201 = vpop.f32.mrb[0].mxu0
    %v202 = vadd.f32 0.0, %v201
    %v203 = vpop.f32.mrb[0].mxu0
    %204 = vmatprep.mubr.f32.mxu0 0.0
    %205 = vmatmul.mubr.f32.gmra.mrb[0].mxu0 %v127
    %v206 = vpop.f32.mrb[0].mxu0
    %v207 = vadd.f32 0.0, %v206
    %v208 = vpop.f32.mrb[0].mxu0
    %209 = vmatprep.mubr.f32.mxu0 0.0
    %210 = vmatmul.mubr.f32.gmra.mrb[0].mxu0 %v130
    %v211 = vpop.f32.mrb[0].mxu0
    %v212 = vadd.f32 0.0, %v211
    %v213 = vpop.f32.mrb[0].mxu0
    %214 = vmatprep.mubr.f32.mxu0 0.0
    %215 = vmatmul.mubr.f32.gmra.mrb[0].mxu0 %v133
    %v216 = vpop.f32.mrb[0].mxu0
    %v217 = vadd.f32 0.0, %v216
    %v218 = vpop.f32.mrb[0].mxu0
    %219 = vdwg.mxu0
    %vm220 = vcmask 261120
    %v222 = vsel %vm220, %v110, 0
    %v225 = vsel %vm220, %v111, 0
    %v228 = vsel %vm220, %v112, 0
    %v231 = vsel %vm220, %v113, 0
    %233 = vmatprep.subr.mxu0 0.0
    %234 = vmatpush1.msra.mxu0 %v202
    %235 = vmatprep.subr.mxu0 0.0
    %236 = vmatpush1.msra.mxu0 %v207
    %237 = vmatprep.subr.mxu0 0.0
    %238 = vmatpush1.msra.mxu0 %v212
    %239 = vmatprep.subr.mxu0 0.0
    %240 = vmatpush1.msra.mxu0 %v217
    %241 = vmatprep.subr.mxu0 0.0
    %242 = vmatpush1.msra.mxu0 0.0
    %243 = vmatprep.subr.mxu0 0.0
    %244 = vmatpush1.msra.mxu0 0.0
    %245 = vmatprep.subr.mxu0 0.0
    %246 = vmatpush1.msra.mxu0 0.0
    %247 = vmatprep.subr.mxu0 0.0
    %248 = vmatpush1.msra.mxu0 0.0
    %249 = vmatprep.subr.mxu0 0.0
    %250 = vmatpush1.msra.mxu0 0.0
    %251 = vmatprep.subr.mxu0 0.0
    %252 = vmatpush1.msra.mxu0 0.0
    %253 = vmatprep.subr.mxu0 0.0
    %254 = vmatpush1.msra.mxu0 0.0
    %255 = vmatprep.subr.mxu0 0.0
    %256 = vmatpush1.msra.mxu0 0.0
    %257 = vmatprep.subr.mxu0 0.0
    %258 = vmatpush1.msra.mxu0 0.0
    %259 = vmatprep.subr.mxu0 0.0
    %260 = vmatpush1.msra.mxu0 0.0
    %261 = vmatprep.subr.mxu0 0.0
    %262 = vmatpush1.msra.mxu0 0.0
    %263 = vmatprep.subr.mxu0 0.0
    %264 = vmatpush1.msra.mxu0 0.0
    %265 = vmatprep.subr.mxu0 0.0
    %266 = vmatpush1.msra.mxu0 0.0
    %267 = vmatprep.subr.mxu0 0.0
    %268 = vmatpush1.msra.mxu0 0.0
    %269 = vmatprep.subr.mxu0 0.0
    %270 = vmatpush1.msra.mxu0 0.0
    %271 = vmatprep.subr.mxu0 0.0
    %272 = vmatpush1.msra.mxu0 0.0
    %273 = vmatprep.subr.mxu0 0.0
    %274 = vmatpush1.msra.mxu0 0.0
    %275 = vmatprep.subr.mxu0 0.0
    %276 = vmatpush1.msra.mxu0 0.0
    %277 = vmatprep.subr.mxu0 0.0
    %278 = vmatpush1.msra.mxu0 0.0
    %279 = vmatprep.subr.mxu0 0.0
    %280 = vmatpush1.msra.mxu0 0.0
    %281 = vmatprep.subr.mxu0 0.0
    %282 = vmatpush1.msra.mxu0 0.0
    %283 = vmatprep.subr.mxu0 0.0
    %284 = vmatpush1.msra.mxu0 0.0
    %285 = vmatprep.subr.mxu0 0.0
    %286 = vmatpush1.msra.mxu0 0.0
    %287 = vmatprep.subr.mxu0 0.0
    %288 = vmatpush1.msra.mxu0 0.0
    %289 = vmatprep.subr.mxu0 0.0
    %290 = vmatpush1.msra.mxu0 0.0
    %291 = vmatprep.subr.mxu0 0.0
    %292 = vmatpush1.msra.mxu0 0.0
    %293 = vmatprep.subr.mxu0 0.0
    %294 = vmatpush1.msra.mxu0 0.0
    %295 = vmatprep.subr.mxu0 0.0
    %296 = vmatpush1.msra.mxu0 0.0
    %297 = vmatprep.mubr.f32.mxu0 0.0
    %298 = vmatmul.mubr.f32.gmra.mrb[0].mxu0 %v222
    %v299 = vpop.f32.mrb[0].mxu0
    %v300 = vadd.f32 0.0, %v299
    %v301 = vpop.f32.mrb[0].mxu0
    %302 = vmatprep.mubr.f32.mxu0 0.0
    %303 = vmatmul.mubr.f32.gmra.mrb[0].mxu0 %v225
    %v304 = vpop.f32.mrb[0].mxu0
    %v305 = vadd.f32 0.0, %v304
    %v306 = vpop.f32.mrb[0].mxu0
    %307 = vmatprep.mubr.f32.mxu0 0.0
    %308 = vmatmul.mubr.f32.gmra.mrb[0].mxu0 %v228
    %v309 = vpop.f32.mrb[0].mxu0
    %v310 = vadd.f32 0.0, %v309
    %v311 = vpop.f32.mrb[0].mxu0
    %312 = vmatprep.mubr.f32.mxu0 0.0
    %313 = vmatmul.mubr.f32.gmra.mrb[0].mxu0 %v231
    %v314 = vpop.f32.mrb[0].mxu0
    %v315 = vadd.f32 0.0, %v314
    %v316 = vpop.f32.mrb[0].mxu0
    %317 = vdwg.mxu0
    %v319 = vsel %vm122, %v106, 0
    %v322 = vsel %vm122, %v107, 0
    %v325 = vsel %vm122, %v108, 0
    %v328 = vsel %vm122, %v109, 0
    %330 = vmatprep.subr.mxu0 0.0
    %331 = vmatpush1.msra.mxu0 %v114
    %332 = vmatprep.subr.mxu0 0.0
    %333 = vmatpush1.msra.mxu0 %v115
    %334 = vmatprep.subr.mxu0 0.0
    %335 = vmatpush1.msra.mxu0 %v116
    %336 = vmatprep.subr.mxu0 0.0
    %337 = vmatpush1.msra.mxu0 %v117
    %338 = vmatprep.subr.mxu0 0.0
    %339 = vmatpush1.msra.mxu0 %v118
    %340 = vmatprep.subr.mxu0 0.0
    %341 = vmatpush1.msra.mxu0 %v119
    %342 = vmatprep.subr.mxu0 0.0
    %343 = vmatpush1.msra.mxu0 %v120
    %344 = vmatprep.subr.mxu0 0.0
    %345 = vmatpush1.msra.mxu0 %v121
    %346 = vmatprep.subr.mxu0 0.0
    %347 = vmatpush1.msra.mxu0 0.0
    %348 = vmatprep.subr.mxu0 0.0
    %349 = vmatpush1.msra.mxu0 0.0
    %350 = vmatprep.subr.mxu0 0.0
    %351 = vmatpush1.msra.mxu0 0.0
    %352 = vmatprep.subr.mxu0 0.0
    %353 = vmatpush1.msra.mxu0 0.0
    %354 = vmatprep.subr.mxu0 0.0
    %355 = vmatpush1.msra.mxu0 0.0
    %356 = vmatprep.subr.mxu0 0.0
    %357 = vmatpush1.msra.mxu0 0.0
    %358 = vmatprep.subr.mxu0 0.0
    %359 = vmatpush1.msra.mxu0 0.0
    %360 = vmatprep.subr.mxu0 0.0
    %361 = vmatpush1.msra.mxu0 0.0
    %362 = vmatprep.subr.mxu0 0.0
    %363 = vmatpush1.msra.mxu0 0.0
    %364 = vmatprep.subr.mxu0 0.0
    %365 = vmatpush1.msra.mxu0 0.0
    %366 = vmatprep.subr.mxu0 0.0
    %367 = vmatpush1.msra.mxu0 0.0
    %368 = vmatprep.subr.mxu0 0.0
    %369 = vmatpush1.msra.mxu0 0.0
    %370 = vmatprep.subr.mxu0 0.0
    %371 = vmatpush1.msra.mxu0 0.0
    %372 = vmatprep.subr.mxu0 0.0
    %373 = vmatpush1.msra.mxu0 0.0
    %374 = vmatprep.subr.mxu0 0.0
    %375 = vmatpush1.msra.mxu0 0.0
    %376 = vmatprep.subr.mxu0 0.0
    %377 = vmatpush1.msra.mxu0 0.0
    %378 = vmatprep.subr.mxu0 0.0
    %379 = vmatpush1.msra.mxu0 0.0
    %380 = vmatprep.subr.mxu0 0.0
    %381 = vmatpush1.msra.mxu0 0.0
    %382 = vmatprep.subr.mxu0 0.0
    %383 = vmatpush1.msra.mxu0 0.0
    %384 = vmatprep.subr.mxu0 0.0
    %385 = vmatpush1.msra.mxu0 0.0
    %386 = vmatprep.subr.mxu0 0.0
    %387 = vmatpush1.msra.mxu0 0.0
    %388 = vmatprep.subr.mxu0 0.0
    %389 = vmatpush1.msra.mxu0 0.0
    %390 = vmatprep.subr.mxu0 0.0
    %391 = vmatpush1.msra.mxu0 0.0
    %392 = vmatprep.subr.mxu0 0.0
    %393 = vmatpush1.msra.mxu0 0.0
    %394 = vmatprep.mubr.f32.mxu0 0.0
    %395 = vmatmul.mubr.f32.gmra.mrb[0].mxu0 %v319
    %v396 = vpop.f32.mrb[0].mxu0
    %v397 = vadd.f32 0.0, %v396
    %v398 = vpop.f32.mrb[0].mxu0
    %399 = vmatprep.mubr.f32.mxu0 0.0
    %400 = vmatmul.mubr.f32.gmra.mrb[0].mxu0 %v322
    %v401 = vpop.f32.mrb[0].mxu0
    %v402 = vadd.f32 0.0, %v401
    %v403 = vpop.f32.mrb[0].mxu0
    %404 = vmatprep.mubr.f32.mxu0 0.0
    %405 = vmatmul.mubr.f32.gmra.mrb[0].mxu0 %v325
    %v406 = vpop.f32.mrb[0].mxu0
    %v407 = vadd.f32 0.0, %v406
    %v408 = vpop.f32.mrb[0].mxu0
    %409 = vmatprep.mubr.f32.mxu0 0.0
    %410 = vmatmul.mubr.f32.gmra.mrb[0].mxu0 %v328
    %v411 = vpop.f32.mrb[0].mxu0
    %v412 = vadd.f32 0.0, %v411
    %v413 = vpop.f32.mrb[0].mxu0
    %414 = vdwg.mxu0
    %415 = vmatprep.subr.mxu0 0.0
    %416 = vmatpush1.msra.mxu0 %v397
    %417 = vmatprep.subr.mxu0 0.0
    %418 = vmatpush1.msra.mxu0 %v402
    %419 = vmatprep.subr.mxu0 0.0
    %420 = vmatpush1.msra.mxu0 %v407
    %421 = vmatprep.subr.mxu0 0.0
    %422 = vmatpush1.msra.mxu0 %v412
    %423 = vmatprep.subr.mxu0 0.0
    %424 = vmatpush1.msra.mxu0 0.0
    %425 = vmatprep.subr.mxu0 0.0
    %426 = vmatpush1.msra.mxu0 0.0
    %427 = vmatprep.subr.mxu0 0.0
    %428 = vmatpush1.msra.mxu0 0.0
    %429 = vmatprep.subr.mxu0 0.0
    %430 = vmatpush1.msra.mxu0 0.0
    %431 = vmatprep.subr.mxu0 0.0
    %432 = vmatpush1.msra.mxu0 0.0
    %433 = vmatprep.subr.mxu0 0.0
    %434 = vmatpush1.msra.mxu0 0.0
    %435 = vmatprep.subr.mxu0 0.0
    %436 = vmatpush1.msra.mxu0 0.0
    %437 = vmatprep.subr.mxu0 0.0
    %438 = vmatpush1.msra.mxu0 0.0
    %439 = vmatprep.subr.mxu0 0.0
    %440 = vmatpush1.msra.mxu0 0.0
    %441 = vmatprep.subr.mxu0 0.0
    %442 = vmatpush1.msra.mxu0 0.0
    %443 = vmatprep.subr.mxu0 0.0
    %444 = vmatpush1.msra.mxu0 0.0
    %445 = vmatprep.subr.mxu0 0.0
    %446 = vmatpush1.msra.mxu0 0.0
    %447 = vmatprep.subr.mxu0 0.0
    %448 = vmatpush1.msra.mxu0 0.0
    %449 = vmatprep.subr.mxu0 0.0
    %450 = vmatpush1.msra.mxu0 0.0
    %451 = vmatprep.subr.mxu0 0.0
    %452 = vmatpush1.msra.mxu0 0.0
    %453 = vmatprep.subr.mxu0 0.0
    %454 = vmatpush1.msra.mxu0 0.0
    %455 = vmatprep.subr.mxu0 0.0
    %456 = vmatpush1.msra.mxu0 0.0
    %457 = vmatprep.subr.mxu0 0.0
    %458 = vmatpush1.msra.mxu0 0.0
    %459 = vmatprep.subr.mxu0 0.0
    %460 = vmatpush1.msra.mxu0 0.0
    %461 = vmatprep.subr.mxu0 0.0
    %462 = vmatpush1.msra.mxu0 0.0
    %463 = vmatprep.subr.mxu0 0.0
    %464 = vmatpush1.msra.mxu0 0.0
    %465 = vmatprep.subr.mxu0 0.0
    %466 = vmatpush1.msra.mxu0 0.0
    %467 = vmatprep.subr.mxu0 0.0
    %468 = vmatpush1.msra.mxu0 0.0
    %469 = vmatprep.subr.mxu0 0.0
    %470 = vmatpush1.msra.mxu0 0.0
    %471 = vmatprep.subr.mxu0 0.0
    %472 = vmatpush1.msra.mxu0 0.0
    %473 = vmatprep.subr.mxu0 0.0
    %474 = vmatpush1.msra.mxu0 0.0
    %475 = vmatprep.subr.mxu0 0.0
    %476 = vmatpush1.msra.mxu0 0.0
    %477 = vmatprep.subr.mxu0 0.0
    %478 = vmatpush1.msra.mxu0 0.0
    %479 = vmatprep.mubr.f32.mxu0 0.0
    %480 = vmatmul.mubr.f32.gmra.mrb[0].mxu0 %v222
    %v481 = vpop.f32.mrb[0].mxu0
    %v482 = vadd.f32 0.0, %v481
    %v483 = vpop.f32.mrb[0].mxu0
    %484 = vmatprep.mubr.f32.mxu0 0.0
    %485 = vmatmul.mubr.f32.gmra.mrb[0].mxu0 %v225
    %v486 = vpop.f32.mrb[0].mxu0
    %v487 = vadd.f32 0.0, %v486
    %v488 = vpop.f32.mrb[0].mxu0
    %489 = vmatprep.mubr.f32.mxu0 0.0
    %490 = vmatmul.mubr.f32.gmra.mrb[0].mxu0 %v228
    %v491 = vpop.f32.mrb[0].mxu0
    %v492 = vadd.f32 0.0, %v491
    %v493 = vpop.f32.mrb[0].mxu0
    %494 = vmatprep.mubr.f32.mxu0 0.0
    %495 = vmatmul.mubr.f32.gmra.mrb[0].mxu0 %v231
    %v496 = vpop.f32.mrb[0].mxu0
    %v497 = vadd.f32 0.0, %v496
    %v498 = vpop.f32.mrb[0].mxu0
    %499 = vdwg.mxu0
    %v500 = vmul.f32 %v102, %v102
    %v501 = vmul.f32 %v103, %v103
    %v502 = vmul.f32 %v104, %v104
    %v503 = vmul.f32 %v105, %v105
    %v505 = vsel %vm122, %v500, 0
    %v508 = vsel %vm122, %v501, 0
    %v511 = vsel %vm122, %v502, 0
    %v514 = vsel %vm122, %v503, 0
    %516 = vmatprep.subr.mxu0 0.0
    %517 = vmatpush1.msra.mxu0 %v114
    %518 = vmatprep.subr.mxu0 0.0
    %519 = vmatpush1.msra.mxu0 %v115
    %520 = vmatprep.subr.mxu0 0.0
    %521 = vmatpush1.msra.mxu0 %v116
    %522 = vmatprep.subr.mxu0 0.0
    %523 = vmatpush1.msra.mxu0 %v117
    %524 = vmatprep.subr.mxu0 0.0
    %525 = vmatpush1.msra.mxu0 %v118
    %526 = vmatprep.subr.mxu0 0.0
    %527 = vmatpush1.msra.mxu0 %v119
    %528 = vmatprep.subr.mxu0 0.0
    %529 = vmatpush1.msra.mxu0 %v120
    %530 = vmatprep.subr.mxu0 0.0
    %531 = vmatpush1.msra.mxu0 %v121
    %532 = vmatprep.subr.mxu0 0.0
    %533 = vmatpush1.msra.mxu0 0.0
    %534 = vmatprep.subr.mxu0 0.0
    %535 = vmatpush1.msra.mxu0 0.0
    %536 = vmatprep.subr.mxu0 0.0
    %537 = vmatpush1.msra.mxu0 0.0
    %538 = vmatprep.subr.mxu0 0.0
    %539 = vmatpush1.msra.mxu0 0.0
    %540 = vmatprep.subr.mxu0 0.0
    %541 = vmatpush1.msra.mxu0 0.0
    %542 = vmatprep.subr.mxu0 0.0
    %543 = vmatpush1.msra.mxu0 0.0
    %544 = vmatprep.subr.mxu0 0.0
    %545 = vmatpush1.msra.mxu0 0.0
    %546 = vmatprep.subr.mxu0 0.0
    %547 = vmatpush1.msra.mxu0 0.0
    %548 = vmatprep.subr.mxu0 0.0
    %549 = vmatpush1.msra.mxu0 0.0
    %550 = vmatprep.subr.mxu0 0.0
    %551 = vmatpush1.msra.mxu0 0.0
    %552 = vmatprep.subr.mxu0 0.0
    %553 = vmatpush1.msra.mxu0 0.0
    %554 = vmatprep.subr.mxu0 0.0
    %555 = vmatpush1.msra.mxu0 0.0
    %556 = vmatprep.subr.mxu0 0.0
    %557 = vmatpush1.msra.mxu0 0.0
    %558 = vmatprep.subr.mxu0 0.0
    %559 = vmatpush1.msra.mxu0 0.0
    %560 = vmatprep.subr.mxu0 0.0
    %561 = vmatpush1.msra.mxu0 0.0
    %562 = vmatprep.subr.mxu0 0.0
    %563 = vmatpush1.msra.mxu0 0.0
    %564 = vmatprep.subr.mxu0 0.0
    %565 = vmatpush1.msra.mxu0 0.0
    %566 = vmatprep.subr.mxu0 0.0
    %567 = vmatpush1.msra.mxu0 0.0
    %568 = vmatprep.subr.mxu0 0.0
    %569 = vmatpush1.msra.mxu0 0.0
    %570 = vmatprep.subr.mxu0 0.0
    %571 = vmatpush1.msra.mxu0 0.0
    %572 = vmatprep.subr.mxu0 0.0
    %573 = vmatpush1.msra.mxu0 0.0
    %574 = vmatprep.subr.mxu0 0.0
    %575 = vmatpush1.msra.mxu0 0.0
    %576 = vmatprep.subr.mxu0 0.0
    %577 = vmatpush1.msra.mxu0 0.0
    %578 = vmatprep.subr.mxu0 0.0
    %579 = vmatpush1.msra.mxu0 0.0
    %580 = vmatprep.mubr.f32.mxu0 0.0
    %581 = vmatmul.mubr.f32.gmra.mrb[0].mxu0 %v505
    %v582 = vpop.f32.mrb[0].mxu0
    %v583 = vadd.f32 0.0, %v582
    %v584 = vpop.f32.mrb[0].mxu0
    %585 = vmatprep.mubr.f32.mxu0 0.0
    %586 = vmatmul.mubr.f32.gmra.mrb[0].mxu0 %v508
    %v587 = vpop.f32.mrb[0].mxu0
    %v588 = vadd.f32 0.0, %v587
    %v589 = vpop.f32.mrb[0].mxu0
    %590 = vmatprep.mubr.f32.mxu0 0.0
    %591 = vmatmul.mubr.f32.gmra.mrb[0].mxu0 %v511
    %v592 = vpop.f32.mrb[0].mxu0
    %v593 = vadd.f32 0.0, %v592
    %v594 = vpop.f32.mrb[0].mxu0
    %595 = vmatprep.mubr.f32.mxu0 0.0
    %596 = vmatmul.mubr.f32.gmra.mrb[0].mxu0 %v514
    %v597 = vpop.f32.mrb[0].mxu0
    %v598 = vadd.f32 0.0, %v597
    %v599 = vpop.f32.mrb[0].mxu0
    %600 = vdwg.mxu0
    %601 = vmatprep.subr.mxu0 0.0
    %602 = vmatpush1.msra.mxu0 %v583
    %603 = vmatprep.subr.mxu0 0.0
    %604 = vmatpush1.msra.mxu0 %v588
    %605 = vmatprep.subr.mxu0 0.0
    %606 = vmatpush1.msra.mxu0 %v593
    %607 = vmatprep.subr.mxu0 0.0
    %608 = vmatpush1.msra.mxu0 %v598
    %609 = vmatprep.subr.mxu0 0.0
    %610 = vmatpush1.msra.mxu0 0.0
    %611 = vmatprep.subr.mxu0 0.0
    %612 = vmatpush1.msra.mxu0 0.0
    %613 = vmatprep.subr.mxu0 0.0
    %614 = vmatpush1.msra.mxu0 0.0
    %615 = vmatprep.subr.mxu0 0.0
    %616 = vmatpush1.msra.mxu0 0.0
    %617 = vmatprep.subr.mxu0 0.0
    %618 = vmatpush1.msra.mxu0 0.0
    %619 = vmatprep.subr.mxu0 0.0
    %620 = vmatpush1.msra.mxu0 0.0
    %621 = vmatprep.subr.mxu0 0.0
    %622 = vmatpush1.msra.mxu0 0.0
    %623 = vmatprep.subr.mxu0 0.0
    %624 = vmatpush1.msra.mxu0 0.0
    %625 = vmatprep.subr.mxu0 0.0
    %626 = vmatpush1.msra.mxu0 0.0
    %627 = vmatprep.subr.mxu0 0.0
    %628 = vmatpush1.msra.mxu0 0.0
    %629 = vmatprep.subr.mxu0 0.0
    %630 = vmatpush1.msra.mxu0 0.0
    %631 = vmatprep.subr.mxu0 0.0
    %632 = vmatpush1.msra.mxu0 0.0
    %633 = vmatprep.subr.mxu0 0.0
    %634 = vmatpush1.msra.mxu0 0.0
    %635 = vmatprep.subr.mxu0 0.0
    %636 = vmatpush1.msra.mxu0 0.0
    %637 = vmatprep.subr.mxu0 0.0
    %638 = vmatpush1.msra.mxu0 0.0
    %639 = vmatprep.subr.mxu0 0.0
    %640 = vmatpush1.msra.mxu0 0.0
    %641 = vmatprep.subr.mxu0 0.0
    %642 = vmatpush1.msra.mxu0 0.0
    %643 = vmatprep.subr.mxu0 0.0
    %644 = vmatpush1.msra.mxu0 0.0
    %645 = vmatprep.subr.mxu0 0.0
    %646 = vmatpush1.msra.mxu0 0.0
    %647 = vmatprep.subr.mxu0 0.0
    %648 = vmatpush1.msra.mxu0 0.0
    %649 = vmatprep.subr.mxu0 0.0
    %650 = vmatpush1.msra.mxu0 0.0
    %651 = vmatprep.subr.mxu0 0.0
    %652 = vmatpush1.msra.mxu0 0.0
    %653 = vmatprep.subr.mxu0 0.0
    %654 = vmatpush1.msra.mxu0 0.0
    %655 = vmatprep.subr.mxu0 0.0
    %656 = vmatpush1.msra.mxu0 0.0
    %657 = vmatprep.subr.mxu0 0.0
    %658 = vmatpush1.msra.mxu0 0.0
    %659 = vmatprep.subr.mxu0 0.0
    %660 = vmatpush1.msra.mxu0 0.0
    %661 = vmatprep.subr.mxu0 0.0
    %662 = vmatpush1.msra.mxu0 0.0
    %663 = vmatprep.subr.mxu0 0.0
    %664 = vmatpush1.msra.mxu0 0.0
    %665 = vmatprep.mubr.f32.mxu0 0.0
    %666 = vmatmul.mubr.f32.gmra.mrb[0].mxu0 %v222
    %v667 = vpop.f32.mrb[0].mxu0
    %v668 = vadd.f32 0.0, %v667
    %v669 = vpop.f32.mrb[0].mxu0
    %670 = vmatprep.mubr.f32.mxu0 0.0
    %671 = vmatmul.mubr.f32.gmra.mrb[0].mxu0 %v225
    %v672 = vpop.f32.mrb[0].mxu0
    %v673 = vadd.f32 0.0, %v672
    %v674 = vpop.f32.mrb[0].mxu0
    %675 = vmatprep.mubr.f32.mxu0 0.0
    %676 = vmatmul.mubr.f32.gmra.mrb[0].mxu0 %v228
    %v677 = vpop.f32.mrb[0].mxu0
    %v678 = vadd.f32 0.0, %v677
    %v679 = vpop.f32.mrb[0].mxu0
    %680 = vmatprep.mubr.f32.mxu0 0.0
    %681 = vmatmul.mubr.f32.gmra.mrb[0].mxu0 %v231
    %v682 = vpop.f32.mrb[0].mxu0
    %v683 = vadd.f32 0.0, %v682
    %v684 = vpop.f32.mrb[0].mxu0
    %685 = vdwg.mxu0
    %v686 = vmul.f32 %v106, %v106
    %v687 = vmul.f32 %v107, %v107
    %v688 = vmul.f32 %v108, %v108
    %v689 = vmul.f32 %v109, %v109
    %v691 = vsel %vm122, %v686, 0
    %v694 = vsel %vm122, %v687, 0
    %v697 = vsel %vm122, %v688, 0
    %v700 = vsel %vm122, %v689, 0
    %702 = vmatprep.subr.mxu0 0.0
    %703 = vmatpush1.msra.mxu0 %v114
    %704 = vmatprep.subr.mxu0 0.0
    %705 = vmatpush1.msra.mxu0 %v115
    %706 = vmatprep.subr.mxu0 0.0
    %707 = vmatpush1.msra.mxu0 %v116
    %708 = vmatprep.subr.mxu0 0.0
    %709 = vmatpush1.msra.mxu0 %v117
    %710 = vmatprep.subr.mxu0 0.0
    %711 = vmatpush1.msra.mxu0 %v118
    %712 = vmatprep.subr.mxu0 0.0
    %713 = vmatpush1.msra.mxu0 %v119
    %714 = vmatprep.subr.mxu0 0.0
    %715 = vmatpush1.msra.mxu0 %v120
    %716 = vmatprep.subr.mxu0 0.0
    %717 = vmatpush1.msra.mxu0 %v121
    %718 = vmatprep.subr.mxu0 0.0
    %719 = vmatpush1.msra.mxu0 0.0
    %720 = vmatprep.subr.mxu0 0.0
    %721 = vmatpush1.msra.mxu0 0.0
    %722 = vmatprep.subr.mxu0 0.0
    %723 = vmatpush1.msra.mxu0 0.0
    %724 = vmatprep.subr.mxu0 0.0
    %725 = vmatpush1.msra.mxu0 0.0
    %726 = vmatprep.subr.mxu0 0.0
    %727 = vmatpush1.msra.mxu0 0.0
    %728 = vmatprep.subr.mxu0 0.0
    %729 = vmatpush1.msra.mxu0 0.0
    %730 = vmatprep.subr.mxu0 0.0
    %731 = vmatpush1.msra.mxu0 0.0
    %732 = vmatprep.subr.mxu0 0.0
    %733 = vmatpush1.msra.mxu0 0.0
    %734 = vmatprep.subr.mxu0 0.0
    %735 = vmatpush1.msra.mxu0 0.0
    %736 = vmatprep.subr.mxu0 0.0
    %737 = vmatpush1.msra.mxu0 0.0
    %738 = vmatprep.subr.mxu0 0.0
    %739 = vmatpush1.msra.mxu0 0.0
    %740 = vmatprep.subr.mxu0 0.0
    %741 = vmatpush1.msra.mxu0 0.0
    %742 = vmatprep.subr.mxu0 0.0
    %743 = vmatpush1.msra.mxu0 0.0
    %744 = vmatprep.subr.mxu0 0.0
    %745 = vmatpush1.msra.mxu0 0.0
    %746 = vmatprep.subr.mxu0 0.0
    %747 = vmatpush1.msra.mxu0 0.0
    %748 = vmatprep.subr.mxu0 0.0
    %749 = vmatpush1.msra.mxu0 0.0
    %750 = vmatprep.subr.mxu0 0.0
    %751 = vmatpush1.msra.mxu0 0.0
    %752 = vmatprep.subr.mxu0 0.0
    %753 = vmatpush1.msra.mxu0 0.0
    %754 = vmatprep.subr.mxu0 0.0
    %755 = vmatpush1.msra.mxu0 0.0
    %756 = vmatprep.subr.mxu0 0.0
    %757 = vmatpush1.msra.mxu0 0.0
    %758 = vmatprep.subr.mxu0 0.0
    %759 = vmatpush1.msra.mxu0 0.0
    %760 = vmatprep.subr.mxu0 0.0
    %761 = vmatpush1.msra.mxu0 0.0
    %762 = vmatprep.subr.mxu0 0.0
    %763 = vmatpush1.msra.mxu0 0.0
    %764 = vmatprep.subr.mxu0 0.0
    %765 = vmatpush1.msra.mxu0 0.0
    %766 = vmatprep.mubr.f32.mxu0 0.0
    %767 = vmatmul.mubr.f32.gmra.mrb[0].mxu0 %v691
    %v768 = vpop.f32.mrb[0].mxu0
    %v769 = vadd.f32 0.0, %v768
    %v770 = vpop.f32.mrb[0].mxu0
    %771 = vmatprep.mubr.f32.mxu0 0.0
    %772 = vmatmul.mubr.f32.gmra.mrb[0].mxu0 %v694
    %v773 = vpop.f32.mrb[0].mxu0
    %v774 = vadd.f32 0.0, %v773
    %v775 = vpop.f32.mrb[0].mxu0
    %776 = vmatprep.mubr.f32.mxu0 0.0
    %777 = vmatmul.mubr.f32.gmra.mrb[0].mxu0 %v697
    %v778 = vpop.f32.mrb[0].mxu0
    %v779 = vadd.f32 0.0, %v778
    %v780 = vpop.f32.mrb[0].mxu0
    %781 = vmatprep.mubr.f32.mxu0 0.0
    %782 = vmatmul.mubr.f32.gmra.mrb[0].mxu0 %v700
    %v783 = vpop.f32.mrb[0].mxu0
    %v784 = vadd.f32 0.0, %v783
    %v785 = vpop.f32.mrb[0].mxu0
    %786 = vdwg.mxu0
    %787 = vmatprep.subr.mxu0 0.0
    %788 = vmatpush1.msra.mxu0 %v769
    %789 = vmatprep.subr.mxu0 0.0
    %790 = vmatpush1.msra.mxu0 %v774
    %791 = vmatprep.subr.mxu0 0.0
    %792 = vmatpush1.msra.mxu0 %v779
    %793 = vmatprep.subr.mxu0 0.0
    %794 = vmatpush1.msra.mxu0 %v784
    %795 = vmatprep.subr.mxu0 0.0
    %796 = vmatpush1.msra.mxu0 0.0
    %797 = vmatprep.subr.mxu0 0.0
    %798 = vmatpush1.msra.mxu0 0.0
    %799 = vmatprep.subr.mxu0 0.0
    %800 = vmatpush1.msra.mxu0 0.0
    %801 = vmatprep.subr.mxu0 0.0
    %802 = vmatpush1.msra.mxu0 0.0
    %803 = vmatprep.subr.mxu0 0.0
    %804 = vmatpush1.msra.mxu0 0.0
    %805 = vmatprep.subr.mxu0 0.0
    %806 = vmatpush1.msra.mxu0 0.0
    %807 = vmatprep.subr.mxu0 0.0
    %808 = vmatpush1.msra.mxu0 0.0
    %809 = vmatprep.subr.mxu0 0.0
    %810 = vmatpush1.msra.mxu0 0.0
    %811 = vmatprep.subr.mxu0 0.0
    %812 = vmatpush1.msra.mxu0 0.0
    %813 = vmatprep.subr.mxu0 0.0
    %814 = vmatpush1.msra.mxu0 0.0
    %815 = vmatprep.subr.mxu0 0.0
    %816 = vmatpush1.msra.mxu0 0.0
    %817 = vmatprep.subr.mxu0 0.0
    %818 = vmatpush1.msra.mxu0 0.0
    %819 = vmatprep.subr.mxu0 0.0
    %820 = vmatpush1.msra.mxu0 0.0
    %821 = vmatprep.subr.mxu0 0.0
    %822 = vmatpush1.msra.mxu0 0.0
    %823 = vmatprep.subr.mxu0 0.0
    %824 = vmatpush1.msra.mxu0 0.0
    %825 = vmatprep.subr.mxu0 0.0
    %826 = vmatpush1.msra.mxu0 0.0
    %827 = vmatprep.subr.mxu0 0.0
    %828 = vmatpush1.msra.mxu0 0.0
    %829 = vmatprep.subr.mxu0 0.0
    %830 = vmatpush1.msra.mxu0 0.0
    %831 = vmatprep.subr.mxu0 0.0
    %832 = vmatpush1.msra.mxu0 0.0
    %833 = vmatprep.subr.mxu0 0.0
    %834 = vmatpush1.msra.mxu0 0.0
    %835 = vmatprep.subr.mxu0 0.0
    %836 = vmatpush1.msra.mxu0 0.0
    %837 = vmatprep.subr.mxu0 0.0
    %838 = vmatpush1.msra.mxu0 0.0
    %839 = vmatprep.subr.mxu0 0.0
    %840 = vmatpush1.msra.mxu0 0.0
    %841 = vmatprep.subr.mxu0 0.0
    %842 = vmatpush1.msra.mxu0 0.0
    %843 = vmatprep.subr.mxu0 0.0
    %844 = vmatpush1.msra.mxu0 0.0
    %845 = vmatprep.subr.mxu0 0.0
    %846 = vmatpush1.msra.mxu0 0.0
    %847 = vmatprep.subr.mxu0 0.0
    %848 = vmatpush1.msra.mxu0 0.0
    %849 = vmatprep.subr.mxu0 0.0
    %850 = vmatpush1.msra.mxu0 0.0
    %851 = vmatprep.mubr.f32.mxu0 0.0
    %852 = vmatmul.mubr.f32.gmra.mrb[0].mxu0 %v222
    %v853 = vpop.f32.mrb[0].mxu0
    %v854 = vadd.f32 0.0, %v853
    %v855 = vpop.f32.mrb[0].mxu0
    %856 = vmatprep.mubr.f32.mxu0 0.0
    %857 = vmatmul.mubr.f32.gmra.mrb[0].mxu0 %v225
    %v858 = vpop.f32.mrb[0].mxu0
    %v859 = vadd.f32 0.0, %v858
    %v860 = vpop.f32.mrb[0].mxu0
    %861 = vmatprep.mubr.f32.mxu0 0.0
    %862 = vmatmul.mubr.f32.gmra.mrb[0].mxu0 %v228
    %v863 = vpop.f32.mrb[0].mxu0
    %v864 = vadd.f32 0.0, %v863
    %v865 = vpop.f32.mrb[0].mxu0
    %866 = vmatprep.mubr.f32.mxu0 0.0
    %867 = vmatmul.mubr.f32.gmra.mrb[0].mxu0 %v231
    %v868 = vpop.f32.mrb[0].mxu0
    %v869 = vadd.f32 0.0, %v868
    %v870 = vpop.f32.mrb[0].mxu0
    %871 = vdwg.mxu0
    %v872 = vmul.f32 %v102, %v106
    %v873 = vmul.f32 %v103, %v107
    %v874 = vmul.f32 %v104, %v108
    %v875 = vmul.f32 %v105, %v109
    %v877 = vsel %vm122, %v872, 0
    %v880 = vsel %vm122, %v873, 0
    %v883 = vsel %vm122, %v874, 0
    %v886 = vsel %vm122, %v875, 0
    %888 = vmatprep.subr.mxu0 0.0
    %889 = vmatpush1.msra.mxu0 %v114
    %890 = vmatprep.subr.mxu0 0.0
    %891 = vmatpush1.msra.mxu0 %v115
    %892 = vmatprep.subr.mxu0 0.0
    %893 = vmatpush1.msra.mxu0 %v116
    %894 = vmatprep.subr.mxu0 0.0
    %895 = vmatpush1.msra.mxu0 %v117
    %896 = vmatprep.subr.mxu0 0.0
    %897 = vmatpush1.msra.mxu0 %v118
    %898 = vmatprep.subr.mxu0 0.0
    %899 = vmatpush1.msra.mxu0 %v119
    %900 = vmatprep.subr.mxu0 0.0
    %901 = vmatpush1.msra.mxu0 %v120
    %902 = vmatprep.subr.mxu0 0.0
    %903 = vmatpush1.msra.mxu0 %v121
    %904 = vmatprep.subr.mxu0 0.0
    %905 = vmatpush1.msra.mxu0 0.0
    %906 = vmatprep.subr.mxu0 0.0
    %907 = vmatpush1.msra.mxu0 0.0
    %908 = vmatprep.subr.mxu0 0.0
    %909 = vmatpush1.msra.mxu0 0.0
    %910 = vmatprep.subr.mxu0 0.0
    %911 = vmatpush1.msra.mxu0 0.0
    %912 = vmatprep.subr.mxu0 0.0
    %913 = vmatpush1.msra.mxu0 0.0
    %914 = vmatprep.subr.mxu0 0.0
    %915 = vmatpush1.msra.mxu0 0.0
    %916 = vmatprep.subr.mxu0 0.0
    %917 = vmatpush1.msra.mxu0 0.0
    %918 = vmatprep.subr.mxu0 0.0
    %919 = vmatpush1.msra.mxu0 0.0
    %920 = vmatprep.subr.mxu0 0.0
    %921 = vmatpush1.msra.mxu0 0.0
    %922 = vmatprep.subr.mxu0 0.0
    %923 = vmatpush1.msra.mxu0 0.0
    %924 = vmatprep.subr.mxu0 0.0
    %925 = vmatpush1.msra.mxu0 0.0
    %926 = vmatprep.subr.mxu0 0.0
    %927 = vmatpush1.msra.mxu0 0.0
    %928 = vmatprep.subr.mxu0 0.0
    %929 = vmatpush1.msra.mxu0 0.0
    %930 = vmatprep.subr.mxu0 0.0
    %931 = vmatpush1.msra.mxu0 0.0
    %932 = vmatprep.subr.mxu0 0.0
    %933 = vmatpush1.msra.mxu0 0.0
    %934 = vmatprep.subr.mxu0 0.0
    %935 = vmatpush1.msra.mxu0 0.0
    %936 = vmatprep.subr.mxu0 0.0
    %937 = vmatpush1.msra.mxu0 0.0
    %938 = vmatprep.subr.mxu0 0.0
    %939 = vmatpush1.msra.mxu0 0.0
    %940 = vmatprep.subr.mxu0 0.0
    %941 = vmatpush1.msra.mxu0 0.0
    %942 = vmatprep.subr.mxu0 0.0
    %943 = vmatpush1.msra.mxu0 0.0
    %944 = vmatprep.subr.mxu0 0.0
    %945 = vmatpush1.msra.mxu0 0.0
    %946 = vmatprep.subr.mxu0 0.0
    %947 = vmatpush1.msra.mxu0 0.0
    %948 = vmatprep.subr.mxu0 0.0
    %949 = vmatpush1.msra.mxu0 0.0
    %950 = vmatprep.subr.mxu0 0.0
    %951 = vmatpush1.msra.mxu0 0.0
    %952 = vmatprep.mubr.f32.mxu0 0.0
    %953 = vmatmul.mubr.f32.gmra.mrb[0].mxu0 %v877
    %v954 = vpop.f32.mrb[0].mxu0
    %v955 = vadd.f32 0.0, %v954
    %v956 = vpop.f32.mrb[0].mxu0
    %957 = vmatprep.mubr.f32.mxu0 0.0
    %958 = vmatmul.mubr.f32.gmra.mrb[0].mxu0 %v880
    %v959 = vpop.f32.mrb[0].mxu0
    %v960 = vadd.f32 0.0, %v959
    %v961 = vpop.f32.mrb[0].mxu0
    %962 = vmatprep.mubr.f32.mxu0 0.0
    %963 = vmatmul.mubr.f32.gmra.mrb[0].mxu0 %v883
    %v964 = vpop.f32.mrb[0].mxu0
    %v965 = vadd.f32 0.0, %v964
    %v966 = vpop.f32.mrb[0].mxu0
    %967 = vmatprep.mubr.f32.mxu0 0.0
    %968 = vmatmul.mubr.f32.gmra.mrb[0].mxu0 %v886
    %v969 = vpop.f32.mrb[0].mxu0
    %v970 = vadd.f32 0.0, %v969
    %v971 = vpop.f32.mrb[0].mxu0
    %972 = vdwg.mxu0
    %973 = vmatprep.subr.mxu0 0.0
    %974 = vmatpush1.msra.mxu0 %v955
    %975 = vmatprep.subr.mxu0 0.0
    %976 = vmatpush1.msra.mxu0 %v960
    %977 = vmatprep.subr.mxu0 0.0
    %978 = vmatpush1.msra.mxu0 %v965
    %979 = vmatprep.subr.mxu0 0.0
    %980 = vmatpush1.msra.mxu0 %v970
    %981 = vmatprep.subr.mxu0 0.0
    %982 = vmatpush1.msra.mxu0 0.0
    %983 = vmatprep.subr.mxu0 0.0
    %984 = vmatpush1.msra.mxu0 0.0
    %985 = vmatprep.subr.mxu0 0.0
    %986 = vmatpush1.msra.mxu0 0.0
    %987 = vmatprep.subr.mxu0 0.0
    %988 = vmatpush1.msra.mxu0 0.0
    %989 = vmatprep.subr.mxu0 0.0
    %990 = vmatpush1.msra.mxu0 0.0
    %991 = vmatprep.subr.mxu0 0.0
    %992 = vmatpush1.msra.mxu0 0.0
    %993 = vmatprep.subr.mxu0 0.0
    %994 = vmatpush1.msra.mxu0 0.0
    %995 = vmatprep.subr.mxu0 0.0
    %996 = vmatpush1.msra.mxu0 0.0
    %997 = vmatprep.subr.mxu0 0.0
    %998 = vmatpush1.msra.mxu0 0.0
    %999 = vmatprep.subr.mxu0 0.0
    %1000 = vmatpush1.msra.mxu0 0.0
    %1001 = vmatprep.subr.mxu0 0.0
    %1002 = vmatpush1.msra.mxu0 0.0
    %1003 = vmatprep.subr.mxu0 0.0
    %1004 = vmatpush1.msra.mxu0 0.0
    %1005 = vmatprep.subr.mxu0 0.0
    %1006 = vmatpush1.msra.mxu0 0.0
    %1007 = vmatprep.subr.mxu0 0.0
    %1008 = vmatpush1.msra.mxu0 0.0
    %1009 = vmatprep.subr.mxu0 0.0
    %1010 = vmatpush1.msra.mxu0 0.0
    %1011 = vmatprep.subr.mxu0 0.0
    %1012 = vmatpush1.msra.mxu0 0.0
    %1013 = vmatprep.subr.mxu0 0.0
    %1014 = vmatpush1.msra.mxu0 0.0
    %1015 = vmatprep.subr.mxu0 0.0
    %1016 = vmatpush1.msra.mxu0 0.0
    %1017 = vmatprep.subr.mxu0 0.0
    %1018 = vmatpush1.msra.mxu0 0.0
    %1019 = vmatprep.subr.mxu0 0.0
    %1020 = vmatpush1.msra.mxu0 0.0
    %1021 = vmatprep.subr.mxu0 0.0
    %1022 = vmatpush1.msra.mxu0 0.0
    %1023 = vmatprep.subr.mxu0 0.0
    %1024 = vmatpush1.msra.mxu0 0.0
    %1025 = vmatprep.subr.mxu0 0.0
    %1026 = vmatpush1.msra.mxu0 0.0
    %1027 = vmatprep.subr.mxu0 0.0
    %1028 = vmatpush1.msra.mxu0 0.0
    %1029 = vmatprep.subr.mxu0 0.0
    %1030 = vmatpush1.msra.mxu0 0.0
    %1031 = vmatprep.subr.mxu0 0.0
    %1032 = vmatpush1.msra.mxu0 0.0
    %1033 = vmatprep.subr.mxu0 0.0
    %1034 = vmatpush1.msra.mxu0 0.0
    %1035 = vmatprep.subr.mxu0 0.0
    %1036 = vmatpush1.msra.mxu0 0.0
    %1037 = vmatprep.mubr.f32.mxu0 0.0
    %1038 = vmatmul.mubr.f32.gmra.mrb[0].mxu0 %v222
    %v1039 = vpop.f32.mrb[0].mxu0
    %v1040 = vadd.f32 0.0, %v1039
    %v1041 = vpop.f32.mrb[0].mxu0
    %1042 = vmatprep.mubr.f32.mxu0 0.0
    %1043 = vmatmul.mubr.f32.gmra.mrb[0].mxu0 %v225
    %v1044 = vpop.f32.mrb[0].mxu0
    %v1045 = vadd.f32 0.0, %v1044
    %v1046 = vpop.f32.mrb[0].mxu0
    %1047 = vmatprep.mubr.f32.mxu0 0.0
    %1048 = vmatmul.mubr.f32.gmra.mrb[0].mxu0 %v228
    %v1049 = vpop.f32.mrb[0].mxu0
    %v1050 = vadd.f32 0.0, %v1049
    %v1051 = vpop.f32.mrb[0].mxu0
    %1052 = vmatprep.mubr.f32.mxu0 0.0
    %1053 = vmatmul.mubr.f32.gmra.mrb[0].mxu0 %v231
    %v1054 = vpop.f32.mrb[0].mxu0
    %v1055 = vadd.f32 0.0, %v1054
    %v1056 = vpop.f32.mrb[0].mxu0
    %1057 = vdwg.mxu0
    %v1058 = vmul.f32 %v300, %v300
    %v1059 = vmul.f32 %v305, %v305
    %v1060 = vmul.f32 %v310, %v310
    %v1061 = vmul.f32 %v315, %v315
    %v1062 = vmul.f32 %v482, %v482
    %v1063 = vmul.f32 %v487, %v487
    %v1064 = vmul.f32 %v492, %v492
    %v1065 = vmul.f32 %v497, %v497
    %v1066 = vmul.f32 %v300, %v482
    %v1067 = vmul.f32 %v305, %v487
    %v1068 = vmul.f32 %v310, %v492
    %v1069 = vmul.f32 %v315, %v497
    %v1070 = vsub.f32 %v668, %v1058
    %v1071 = vsub.f32 %v673, %v1059
    %v1072 = vsub.f32 %v678, %v1060
    %v1073 = vsub.f32 %v683, %v1061
    %v1074 = vsub.f32 %v854, %v1062
    %v1075 = vsub.f32 %v859, %v1063
    %v1076 = vsub.f32 %v864, %v1064
    %v1077 = vsub.f32 %v869, %v1065
    %v1078 = vsub.f32 %v1040, %v1066
    %v1079 = vsub.f32 %v1045, %v1067
    %v1080 = vsub.f32 %v1050, %v1068
    %v1081 = vsub.f32 %v1055, %v1069
    %v1082 = vmul.f32 %v1078, 2.0
    %v1083 = vmul.f32 %v1079, 2.0
    %v1084 = vmul.f32 %v1080, 2.0
    %v1085 = vmul.f32 %v1081, 2.0
    %v1086 = vadd.f32 %v1082, 0.0009
    %v1087 = vadd.f32 %v1083, 0.0009
    %v1088 = vadd.f32 %v1084, 0.0009
    %v1089 = vadd.f32 %v1085, 0.0009
    %v1090 = vadd.f32 %v1070, %v1074
    %v1091 = vadd.f32 %v1071, %v1075
    %v1092 = vadd.f32 %v1072, %v1076
    %v1093 = vadd.f32 %v1073, %v1077
    %v1094 = vadd.f32 %v1090, 0.0009
    %v1095 = vadd.f32 %v1091, 0.0009
    %v1096 = vadd.f32 %v1092, 0.0009
    %v1097 = vadd.f32 %v1093, 0.0009
    %v1098 = vrcp.pop %v1094
    %v1099 = vmul.f32 %v1086, %v1098
    %v1100 = vrcp.pop %v1095
    %v1101 = vmul.f32 %v1087, %v1100
    %v1102 = vrcp.pop %v1096
    %v1103 = vmul.f32 %v1088, %v1102
    %v1104 = vrcp.pop %v1097
    %v1105 = vmul.f32 %v1089, %v1104
    %v1106 = vmul.f32 %v1066, 2.0
    %v1107 = vmul.f32 %v1067, 2.0
    %v1108 = vmul.f32 %v1068, 2.0
    %v1109 = vmul.f32 %v1069, 2.0
    %v1110 = vadd.f32 %v1106, 0.0001
    %v1111 = vadd.f32 %v1107, 0.0001
    %v1112 = vadd.f32 %v1108, 0.0001
    %v1113 = vadd.f32 %v1109, 0.0001
    %v1114 = vadd.f32 %v1058, %v1062
    %v1115 = vadd.f32 %v1059, %v1063
    %v1116 = vadd.f32 %v1060, %v1064
    %v1117 = vadd.f32 %v1061, %v1065
    %v1118 = vadd.f32 %v1114, 0.0001
    %v1119 = vadd.f32 %v1115, 0.0001
    %v1120 = vadd.f32 %v1116, 0.0001
    %v1121 = vadd.f32 %v1117, 0.0001
    %v1122 = vrcp.pop %v1118
    %v1123 = vmul.f32 %v1110, %v1122
    %v1124 = vrcp.pop %v1119
    %v1125 = vmul.f32 %v1111, %v1124
    %v1126 = vrcp.pop %v1120
    %v1127 = vmul.f32 %v1112, %v1126
    %v1128 = vrcp.pop %v1121
    %v1129 = vmul.f32 %v1113, %v1128
    %v1130 = vmul.f32 %v1123, %v1099
    %v1131 = vmul.f32 %v1125, %v1101
    %v1132 = vmul.f32 %v1127, %v1103
    %v1133 = vmul.f32 %v1129, %v1105
    %vm1134 = vcmask 490496
    %v1135 = vsel %vm1134, %v1130, 0.0
    %v1136 = vsel %vm1134, %v1131, 0.0
    %v1137 = vadd.f32 %v1135, %v1136
    %v1138 = vsel %vm1134, %v1132, 0.0
    %v1139 = vadd.f32 %v1137, %v1138
    %v1140 = vsel %vm1134, %v1133, 0.0
    %v1141 = vadd.f32 %v1139, %v1140
    %1142 = vadd.xlane.f32.xlu0 %v1141
    %v1143 = vpop.xlane.xlu0 %1142
    %v1144 = vrot.slane %v1143, 4
    %v1145 = vadd.f32 %v1143, %v1144
    %v1146 = vrot.slane %v1145, 2
    %v1147 = vadd.f32 %v1145, %v1146
    %v1148 = vrot.slane %v1147, 1
    %v1149 = vadd.f32 %v1147, %v1148
    %s1150 = vtos %v1149
    %v1151 = vstv %s1150
    %v1152 = vsel %vm1134, %v1099, 0.0
    %v1153 = vsel %vm1134, %v1101, 0.0
    %v1154 = vadd.f32 %v1152, %v1153
    %v1155 = vsel %vm1134, %v1103, 0.0
    %v1156 = vadd.f32 %v1154, %v1155
    %v1157 = vsel %vm1134, %v1105, 0.0
    %v1158 = vadd.f32 %v1156, %v1157
    %1159 = vadd.xlane.f32.xlu0 %v1158
    %v1160 = vpop.xlane.xlu0 %1159
    %v1161 = vrot.slane %v1160, 4
    %v1162 = vadd.f32 %v1160, %v1161
    %v1163 = vrot.slane %v1162, 2
    %v1164 = vadd.f32 %v1162, %v1163
    %v1165 = vrot.slane %v1164, 1
    %v1166 = vadd.f32 %v1164, %v1165
    %s1167 = vtos %v1166
    %v1168 = vstv %s1167
    %v1169 = vld [vmem:[#allocation2] sm:$0x1]
    %v1170 = vadd.f32 %v1169, %v1151
    %vm1171 = vcmask 0
    %1172 = vst.msk [vmem:[#allocation2] sm:$0x1] %vm1171, %v1170
    %v1173 = vld [vmem:[#allocation5] sm:$0x1]
    %v1174 = vadd.f32 %v1173, %v1168
    %1175 = vst.msk [vmem:[#allocation5] sm:$0x1] %vm1171, %v1174
    %v1176 = vld [vmem:[%s8] sm:$0xff]
    %v1177 = vld [vmem:[%s8 + $0x8] sm:$0xff]
    %v1178 = vld [vmem:[%s10] sm:$0xff]
    %v1179 = vld [vmem:[%s10 + $0x8] sm:$0xff]
    %v1180 = vld [vmem:[%s10 + $0x10] sm:$0xff]
    %v1181 = vld [vmem:[%s10 + $0x18] sm:$0xff]
    %v1182 = vld [vmem:[%s10 + $0x20] sm:$0xff]
    %v1183 = vld [vmem:[%s10 + $0x28] sm:$0xff]
    %v1184 = vld [vmem:[%s10 + $0x30] sm:$0xff]
    %v1185 = vld [vmem:[%s10 + $0x38] sm:$0xff]
    %1186 = vmatprep.subr.mxu0 0.0
    %1187 = vmatpush1.msra.mxu0 %v1178
    %1188 = vmatprep.subr.mxu0 0.0
    %1189 = vmatpush1.msra.mxu0 %v1179
    %1190 = vmatprep.subr.mxu0 0.0
    %1191 = vmatpush1.msra.mxu0 %v1180
    %1192 = vmatprep.subr.mxu0 0.0
    %1193 = vmatpush1.msra.mxu0 %v1181
    %1194 = vmatprep.subr.mxu0 0.0
    %1195 = vmatpush1.msra.mxu0 %v1182
    %1196 = vmatprep.subr.mxu0 0.0
    %1197 = vmatpush1.msra.mxu0 %v1183
    %1198 = vmatprep.subr.mxu0 0.0
    %1199 = vmatpush1.msra.mxu0 %v1184
    %1200 = vmatprep.subr.mxu0 0.0
    %1201 = vmatpush1.msra.mxu0 %v1185
    %1202 = vmatprep.subr.mxu0 0.0
    %1203 = vmatpush1.msra.mxu0 0.0
    %1204 = vmatprep.subr.mxu0 0.0
    %1205 = vmatpush1.msra.mxu0 0.0
    %1206 = vmatprep.subr.mxu0 0.0
    %1207 = vmatpush1.msra.mxu0 0.0
    %1208 = vmatprep.subr.mxu0 0.0
    %1209 = vmatpush1.msra.mxu0 0.0
    %1210 = vmatprep.subr.mxu0 0.0
    %1211 = vmatpush1.msra.mxu0 0.0
    %1212 = vmatprep.subr.mxu0 0.0
    %1213 = vmatpush1.msra.mxu0 0.0
    %1214 = vmatprep.subr.mxu0 0.0
    %1215 = vmatpush1.msra.mxu0 0.0
    %1216 = vmatprep.subr.mxu0 0.0
    %1217 = vmatpush1.msra.mxu0 0.0
    %1218 = vmatprep.subr.mxu0 0.0
    %1219 = vmatpush1.msra.mxu0 0.0
    %1220 = vmatprep.subr.mxu0 0.0
    %1221 = vmatpush1.msra.mxu0 0.0
    %1222 = vmatprep.subr.mxu0 0.0
    %1223 = vmatpush1.msra.mxu0 0.0
    %1224 = vmatprep.subr.mxu0 0.0
    %1225 = vmatpush1.msra.mxu0 0.0
    %1226 = vmatprep.subr.mxu0 0.0
    %1227 = vmatpush1.msra.mxu0 0.0
    %1228 = vmatprep.subr.mxu0 0.0
    %1229 = vmatpush1.msra.mxu0 0.0
    %1230 = vmatprep.subr.mxu0 0.0
    %1231 = vmatpush1.msra.mxu0 0.0
    %1232 = vmatprep.subr.mxu0 0.0
    %1233 = vmatpush1.msra.mxu0 0.0
    %1234 = vmatprep.subr.mxu0 0.0
    %1235 = vmatpush1.msra.mxu0 0.0
    %1236 = vmatprep.subr.mxu0 0.0
    %1237 = vmatpush1.msra.mxu0 0.0
    %1238 = vmatprep.subr.mxu0 0.0
    %1239 = vmatpush1.msra.mxu0 0.0
    %1240 = vmatprep.subr.mxu0 0.0
    %1241 = vmatpush1.msra.mxu0 0.0
    %1242 = vmatprep.subr.mxu0 0.0
    %1243 = vmatpush1.msra.mxu0 0.0
    %1244 = vmatprep.subr.mxu0 0.0
    %1245 = vmatpush1.msra.mxu0 0.0
    %1246 = vmatprep.subr.mxu0 0.0
    %1247 = vmatpush1.msra.mxu0 0.0
    %1248 = vmatprep.subr.mxu0 0.0
    %1249 = vmatpush1.msra.mxu0 0.0
    %1250 = vmatprep.mubr.f32.mxu0 0.0
    %1251 = vmatmul.mubr.f32.gmra.mrb[0].mxu0 %v124
    %v1252 = vpop.f32.mrb[0].mxu0
    %v1253 = vadd.f32 0.0, %v1252
    %v1254 = vpop.f32.mrb[0].mxu0
    %1255 = vmatprep.mubr.f32.mxu0 0.0
    %1256 = vmatmul.mubr.f32.gmra.mrb[0].mxu0 %v127
    %v1257 = vpop.f32.mrb[0].mxu0
    %v1258 = vadd.f32 0.0, %v1257
    %v1259 = vpop.f32.mrb[0].mxu0
    %1260 = vmatprep.mubr.f32.mxu0 0.0
    %1261 = vmatmul.mubr.f32.gmra.mrb[0].mxu0 %v130
    %v1262 = vpop.f32.mrb[0].mxu0
    %v1263 = vadd.f32 0.0, %v1262
    %v1264 = vpop.f32.mrb[0].mxu0
    %1265 = vmatprep.mubr.f32.mxu0 0.0
    %1266 = vmatmul.mubr.f32.gmra.mrb[0].mxu0 %v133
    %v1267 = vpop.f32.mrb[0].mxu0
    %v1268 = vadd.f32 0.0, %v1267
    %v1269 = vpop.f32.mrb[0].mxu0
    %1270 = vdwg.mxu0
    %v1272 = vsel %vm220, %v1176, 0
    %v1275 = vsel %vm220, %v1177, 0
    %1277 = vmatprep.subr.mxu0 0.0
    %1278 = vmatpush1.msra.mxu0 %v1253
    %1279 = vmatprep.subr.mxu0 0.0
    %1280 = vmatpush1.msra.mxu0 %v1258
    %1281 = vmatprep.subr.mxu0 0.0
    %1282 = vmatpush1.msra.mxu0 %v1263
    %1283 = vmatprep.subr.mxu0 0.0
    %1284 = vmatpush1.msra.mxu0 %v1268
    %1285 = vmatprep.subr.mxu0 0.0
    %1286 = vmatpush1.msra.mxu0 0.0
    %1287 = vmatprep.subr.mxu0 0.0
    %1288 = vmatpush1.msra.mxu0 0.0
    %1289 = vmatprep.subr.mxu0 0.0
    %1290 = vmatpush1.msra.mxu0 0.0
    %1291 = vmatprep.subr.mxu0 0.0
    %1292 = vmatpush1.msra.mxu0 0.0
    %1293 = vmatprep.subr.mxu0 0.0
    %1294 = vmatpush1.msra.mxu0 0.0
    %1295 = vmatprep.subr.mxu0 0.0
    %1296 = vmatpush1.msra.mxu0 0.0
    %1297 = vmatprep.subr.mxu0 0.0
    %1298 = vmatpush1.msra.mxu0 0.0
    %1299 = vmatprep.subr.mxu0 0.0
    %1300 = vmatpush1.msra.mxu0 0.0
    %1301 = vmatprep.subr.mxu0 0.0
    %1302 = vmatpush1.msra.mxu0 0.0
    %1303 = vmatprep.subr.mxu0 0.0
    %1304 = vmatpush1.msra.mxu0 0.0
    %1305 = vmatprep.subr.mxu0 0.0
    %1306 = vmatpush1.msra.mxu0 0.0
    %1307 = vmatprep.subr.mxu0 0.0
    %1308 = vmatpush1.msra.mxu0 0.0
    %1309 = vmatprep.subr.mxu0 0.0
    %1310 = vmatpush1.msra.mxu0 0.0
    %1311 = vmatprep.subr.mxu0 0.0
    %1312 = vmatpush1.msra.mxu0 0.0
    %1313 = vmatprep.subr.mxu0 0.0
    %1314 = vmatpush1.msra.mxu0 0.0
    %1315 = vmatprep.subr.mxu0 0.0
    %1316 = vmatpush1.msra.mxu0 0.0
    %1317 = vmatprep.subr.mxu0 0.0
    %1318 = vmatpush1.msra.mxu0 0.0
    %1319 = vmatprep.subr.mxu0 0.0
    %1320 = vmatpush1.msra.mxu0 0.0
    %1321 = vmatprep.subr.mxu0 0.0
    %1322 = vmatpush1.msra.mxu0 0.0
    %1323 = vmatprep.subr.mxu0 0.0
    %1324 = vmatpush1.msra.mxu0 0.0
    %1325 = vmatprep.subr.mxu0 0.0
    %1326 = vmatpush1.msra.mxu0 0.0
    %1327 = vmatprep.subr.mxu0 0.0
    %1328 = vmatpush1.msra.mxu0 0.0
    %1329 = vmatprep.subr.mxu0 0.0
    %1330 = vmatpush1.msra.mxu0 0.0
    %1331 = vmatprep.subr.mxu0 0.0
    %1332 = vmatpush1.msra.mxu0 0.0
    %1333 = vmatprep.subr.mxu0 0.0
    %1334 = vmatpush1.msra.mxu0 0.0
    %1335 = vmatprep.subr.mxu0 0.0
    %1336 = vmatpush1.msra.mxu0 0.0
    %1337 = vmatprep.subr.mxu0 0.0
    %1338 = vmatpush1.msra.mxu0 0.0
    %1339 = vmatprep.subr.mxu0 0.0
    %1340 = vmatpush1.msra.mxu0 0.0
    %1341 = vmatprep.mubr.f32.mxu0 0.0
    %1342 = vmatmul.mubr.f32.gmra.mrb[0].mxu0 %v1272
    %v1343 = vpop.f32.mrb[0].mxu0
    %v1344 = vadd.f32 0.0, %v1343
    %v1345 = vpop.f32.mrb[0].mxu0
    %1346 = vmatprep.mubr.f32.mxu0 0.0
    %1347 = vmatmul.mubr.f32.gmra.mrb[0].mxu0 %v1275
    %v1348 = vpop.f32.mrb[0].mxu0
    %v1349 = vadd.f32 0.0, %v1348
    %v1350 = vpop.f32.mrb[0].mxu0
    %1351 = vdwg.mxu0
    %1352 = vmatprep.subr.mxu0 0.0
    %1353 = vmatpush1.msra.mxu0 %v1178
    %1354 = vmatprep.subr.mxu0 0.0
    %1355 = vmatpush1.msra.mxu0 %v1179
    %1356 = vmatprep.subr.mxu0 0.0
    %1357 = vmatpush1.msra.mxu0 %v1180
    %1358 = vmatprep.subr.mxu0 0.0
    %1359 = vmatpush1.msra.mxu0 %v1181
    %1360 = vmatprep.subr.mxu0 0.0
    %1361 = vmatpush1.msra.mxu0 %v1182
    %1362 = vmatprep.subr.mxu0 0.0
    %1363 = vmatpush1.msra.mxu0 %v1183
    %1364 = vmatprep.subr.mxu0 0.0
    %1365 = vmatpush1.msra.mxu0 %v1184
    %1366 = vmatprep.subr.mxu0 0.0
    %1367 = vmatpush1.msra.mxu0 %v1185
    %1368 = vmatprep.subr.mxu0 0.0
    %1369 = vmatpush1.msra.mxu0 0.0
    %1370 = vmatprep.subr.mxu0 0.0
    %1371 = vmatpush1.msra.mxu0 0.0
    %1372 = vmatprep.subr.mxu0 0.0
    %1373 = vmatpush1.msra.mxu0 0.0
    %1374 = vmatprep.subr.mxu0 0.0
    %1375 = vmatpush1.msra.mxu0 0.0
    %1376 = vmatprep.subr.mxu0 0.0
    %1377 = vmatpush1.msra.mxu0 0.0
    %1378 = vmatprep.subr.mxu0 0.0
    %1379 = vmatpush1.msra.mxu0 0.0
    %1380 = vmatprep.subr.mxu0 0.0
    %1381 = vmatpush1.msra.mxu0 0.0
    %1382 = vmatprep.subr.mxu0 0.0
    %1383 = vmatpush1.msra.mxu0 0.0
    %1384 = vmatprep.subr.mxu0 0.0
    %1385 = vmatpush1.msra.mxu0 0.0
    %1386 = vmatprep.subr.mxu0 0.0
    %1387 = vmatpush1.msra.mxu0 0.0
    %1388 = vmatprep.subr.mxu0 0.0
    %1389 = vmatpush1.msra.mxu0 0.0
    %1390 = vmatprep.subr.mxu0 0.0
    %1391 = vmatpush1.msra.mxu0 0.0
    %1392 = vmatprep.subr.mxu0 0.0
    %1393 = vmatpush1.msra.mxu0 0.0
    %1394 = vmatprep.subr.mxu0 0.0
    %1395 = vmatpush1.msra.mxu0 0.0
    %1396 = vmatprep.subr.mxu0 0.0
    %1397 = vmatpush1.msra.mxu0 0.0
    %1398 = vmatprep.subr.mxu0 0.0
    %1399 = vmatpush1.msra.mxu0 0.0
    %1400 = vmatprep.subr.mxu0 0.0
    %1401 = vmatpush1.msra.mxu0 0.0
    %1402 = vmatprep.subr.mxu0 0.0
    %1403 = vmatpush1.msra.mxu0 0.0
    %1404 = vmatprep.subr.mxu0 0.0
    %1405 = vmatpush1.msra.mxu0 0.0
    %1406 = vmatprep.subr.mxu0 0.0
    %1407 = vmatpush1.msra.mxu0 0.0
    %1408 = vmatprep.subr.mxu0 0.0
    %1409 = vmatpush1.msra.mxu0 0.0
    %1410 = vmatprep.subr.mxu0 0.0
    %1411 = vmatpush1.msra.mxu0 0.0
    %1412 = vmatprep.subr.mxu0 0.0
    %1413 = vmatpush1.msra.mxu0 0.0
    %1414 = vmatprep.subr.mxu0 0.0
    %1415 = vmatpush1.msra.mxu0 0.0
    %1416 = vmatprep.mubr.f32.mxu0 0.0
    %1417 = vmatmul.mubr.f32.gmra.mrb[0].mxu0 %v319
    %v1418 = vpop.f32.mrb[0].mxu0
    %v1419 = vadd.f32 0.0, %v1418
    %v1420 = vpop.f32.mrb[0].mxu0
    %1421 = vmatprep.mubr.f32.mxu0 0.0
    %1422 = vmatmul.mubr.f32.gmra.mrb[0].mxu0 %v322
    %v1423 = vpop.f32.mrb[0].mxu0
    %v1424 = vadd.f32 0.0, %v1423
    %v1425 = vpop.f32.mrb[0].mxu0
    %1426 = vmatprep.mubr.f32.mxu0 0.0
    %1427 = vmatmul.mubr.f32.gmra.mrb[0].mxu0 %v325
    %v1428 = vpop.f32.mrb[0].mxu0
    %v1429 = vadd.f32 0.0, %v1428
    %v1430 = vpop.f32.mrb[0].mxu0
    %1431 = vmatprep.mubr.f32.mxu0 0.0
    %1432 = vmatmul.mubr.f32.gmra.mrb[0].mxu0 %v328
    %v1433 = vpop.f32.mrb[0].mxu0
    %v1434 = vadd.f32 0.0, %v1433
    %v1435 = vpop.f32.mrb[0].mxu0
    %1436 = vdwg.mxu0
    %1437 = vmatprep.subr.mxu0 0.0
    %1438 = vmatpush1.msra.mxu0 %v1419
    %1439 = vmatprep.subr.mxu0 0.0
    %1440 = vmatpush1.msra.mxu0 %v1424
    %1441 = vmatprep.subr.mxu0 0.0
    %1442 = vmatpush1.msra.mxu0 %v1429
    %1443 = vmatprep.subr.mxu0 0.0
    %1444 = vmatpush1.msra.mxu0 %v1434
    %1445 = vmatprep.subr.mxu0 0.0
    %1446 = vmatpush1.msra.mxu0 0.0
    %1447 = vmatprep.subr.mxu0 0.0
    %1448 = vmatpush1.msra.mxu0 0.0
    %1449 = vmatprep.subr.mxu0 0.0
    %1450 = vmatpush1.msra.mxu0 0.0
    %1451 = vmatprep.subr.mxu0 0.0
    %1452 = vmatpush1.msra.mxu0 0.0
    %1453 = vmatprep.subr.mxu0 0.0
    %1454 = vmatpush1.msra.mxu0 0.0
    %1455 = vmatprep.subr.mxu0 0.0
    %1456 = vmatpush1.msra.mxu0 0.0
    %1457 = vmatprep.subr.mxu0 0.0
    %1458 = vmatpush1.msra.mxu0 0.0
    %1459 = vmatprep.subr.mxu0 0.0
    %1460 = vmatpush1.msra.mxu0 0.0
    %1461 = vmatprep.subr.mxu0 0.0
    %1462 = vmatpush1.msra.mxu0 0.0
    %1463 = vmatprep.subr.mxu0 0.0
    %1464 = vmatpush1.msra.mxu0 0.0
    %1465 = vmatprep.subr.mxu0 0.0
    %1466 = vmatpush1.msra.mxu0 0.0
    %1467 = vmatprep.subr.mxu0 0.0
    %1468 = vmatpush1.msra.mxu0 0.0
    %1469 = vmatprep.subr.mxu0 0.0
    %1470 = vmatpush1.msra.mxu0 0.0
    %1471 = vmatprep.subr.mxu0 0.0
    %1472 = vmatpush1.msra.mxu0 0.0
    %1473 = vmatprep.subr.mxu0 0.0
    %1474 = vmatpush1.msra.mxu0 0.0
    %1475 = vmatprep.subr.mxu0 0.0
    %1476 = vmatpush1.msra.mxu0 0.0
    %1477 = vmatprep.subr.mxu0 0.0
    %1478 = vmatpush1.msra.mxu0 0.0
    %1479 = vmatprep.subr.mxu0 0.0
    %1480 = vmatpush1.msra.mxu0 0.0
    %1481 = vmatprep.subr.mxu0 0.0
    %1482 = vmatpush1.msra.mxu0 0.0
    %1483 = vmatprep.subr.mxu0 0.0
    %1484 = vmatpush1.msra.mxu0 0.0
    %1485 = vmatprep.subr.mxu0 0.0
    %1486 = vmatpush1.msra.mxu0 0.0
    %1487 = vmatprep.subr.mxu0 0.0
    %1488 = vmatpush1.msra.mxu0 0.0
    %1489 = vmatprep.subr.mxu0 0.0
    %1490 = vmatpush1.msra.mxu0 0.0
    %1491 = vmatprep.subr.mxu0 0.0
    %1492 = vmatpush1.msra.mxu0 0.0
    %1493 = vmatprep.subr.mxu0 0.0
    %1494 = vmatpush1.msra.mxu0 0.0
    %1495 = vmatprep.subr.mxu0 0.0
    %1496 = vmatpush1.msra.mxu0 0.0
    %1497 = vmatprep.subr.mxu0 0.0
    %1498 = vmatpush1.msra.mxu0 0.0
    %1499 = vmatprep.subr.mxu0 0.0
    %1500 = vmatpush1.msra.mxu0 0.0
    %1501 = vmatprep.mubr.f32.mxu0 0.0
    %1502 = vmatmul.mubr.f32.gmra.mrb[0].mxu0 %v1272
    %v1503 = vpop.f32.mrb[0].mxu0
    %v1504 = vadd.f32 0.0, %v1503
    %v1505 = vpop.f32.mrb[0].mxu0
    %1506 = vmatprep.mubr.f32.mxu0 0.0
    %1507 = vmatmul.mubr.f32.gmra.mrb[0].mxu0 %v1275
    %v1508 = vpop.f32.mrb[0].mxu0
    %v1509 = vadd.f32 0.0, %v1508
    %v1510 = vpop.f32.mrb[0].mxu0
    %1511 = vdwg.mxu0
    %v1512 = vld [vmem:[%s3] sm:$0xff]
    %v1513 = vld [vmem:[%s3 + $0x8] sm:$0xff]
    %v1514 = vld [vmem:[%s6] sm:$0xff]
    %v1515 = vld [vmem:[%s6 + $0x8] sm:$0xff]
    %v1516 = vld [vmem:[%s6 + $0x10] sm:$0xff]
    %v1517 = vld [vmem:[%s6 + $0x18] sm:$0xff]
    %v1519 = vsel %vm220, %v1344, 0
    %v1522 = vsel %vm220, %v1349, 0
    %1524 = vmatprep.subr.mxu0 0.0
    %1525 = vmatpush1.msra.mxu0 %v1514
    %1526 = vmatprep.subr.mxu0 0.0
    %1527 = vmatpush1.msra.mxu0 %v1515
    %1528 = vmatprep.subr.mxu0 0.0
    %1529 = vmatpush1.msra.mxu0 %v1516
    %1530 = vmatprep.subr.mxu0 0.0
    %1531 = vmatpush1.msra.mxu0 %v1517
    %1532 = vmatprep.subr.mxu0 0.0
    %1533 = vmatpush1.msra.mxu0 0.0
    %1534 = vmatprep.subr.mxu0 0.0
    %1535 = vmatpush1.msra.mxu0 0.0
    %1536 = vmatprep.subr.mxu0 0.0
    %1537 = vmatpush1.msra.mxu0 0.0
    %1538 = vmatprep.subr.mxu0 0.0
    %1539 = vmatpush1.msra.mxu0 0.0
    %1540 = vmatprep.subr.mxu0 0.0
    %1541 = vmatpush1.msra.mxu0 0.0
    %1542 = vmatprep.subr.mxu0 0.0
    %1543 = vmatpush1.msra.mxu0 0.0
    %1544 = vmatprep.subr.mxu0 0.0
    %1545 = vmatpush1.msra.mxu0 0.0
    %1546 = vmatprep.subr.mxu0 0.0
    %1547 = vmatpush1.msra.mxu0 0.0
    %1548 = vmatprep.subr.mxu0 0.0
    %1549 = vmatpush1.msra.mxu0 0.0
    %1550 = vmatprep.subr.mxu0 0.0
    %1551 = vmatpush1.msra.mxu0 0.0
    %1552 = vmatprep.subr.mxu0 0.0
    %1553 = vmatpush1.msra.mxu0 0.0
    %1554 = vmatprep.subr.mxu0 0.0
    %1555 = vmatpush1.msra.mxu0 0.0
    %1556 = vmatprep.subr.mxu0 0.0
    %1557 = vmatpush1.msra.mxu0 0.0
    %1558 = vmatprep.subr.mxu0 0.0
    %1559 = vmatpush1.msra.mxu0 0.0
    %1560 = vmatprep.subr.mxu0 0.0
    %1561 = vmatpush1.msra.mxu0 0.0
    %1562 = vmatprep.subr.mxu0 0.0
    %1563 = vmatpush1.msra.mxu0 0.0
    %1564 = vmatprep.subr.mxu0 0.0
    %1565 = vmatpush1.msra.mxu0 0.0
    %1566 = vmatprep.subr.mxu0 0.0
    %1567 = vmatpush1.msra.mxu0 0.0
    %1568 = vmatprep.subr.mxu0 0.0
    %1569 = vmatpush1.msra.mxu0 0.0
    %1570 = vmatprep.subr.mxu0 0.0
    %1571 = vmatpush1.msra.mxu0 0.0
    %1572 = vmatprep.subr.mxu0 0.0
    %1573 = vmatpush1.msra.mxu0 0.0
    %1574 = vmatprep.subr.mxu0 0.0
    %1575 = vmatpush1.msra.mxu0 0.0
    %1576 = vmatprep.subr.mxu0 0.0
    %1577 = vmatpush1.msra.mxu0 0.0
    %1578 = vmatprep.subr.mxu0 0.0
    %1579 = vmatpush1.msra.mxu0 0.0
    %1580 = vmatprep.subr.mxu0 0.0
    %1581 = vmatpush1.msra.mxu0 0.0
    %1582 = vmatprep.subr.mxu0 0.0
    %1583 = vmatpush1.msra.mxu0 0.0
    %1584 = vmatprep.subr.mxu0 0.0
    %1585 = vmatpush1.msra.mxu0 0.0
    %1586 = vmatprep.subr.mxu0 0.0
    %1587 = vmatpush1.msra.mxu0 0.0
    %1588 = vmatprep.mubr.f32.mxu0 0.0
    %1589 = vmatmul.mubr.f32.gmra.mrb[0].mxu0 %v1519
    %v1590 = vpop.f32.mrb[0].mxu0
    %v1591 = vadd.f32 0.0, %v1590
    %v1592 = vpop.f32.mrb[0].mxu0
    %1593 = vmatprep.mubr.f32.mxu0 0.0
    %1594 = vmatmul.mubr.f32.gmra.mrb[0].mxu0 %v1522
    %v1595 = vpop.f32.mrb[0].mxu0
    %v1596 = vadd.f32 0.0, %v1595
    %v1597 = vpop.f32.mrb[0].mxu0
    %1598 = vdwg.mxu0
    %vm1599 = vcmask 130048
    %v1601 = vsel %vm1599, %v1512, 0
    %v1604 = vsel %vm1599, %v1513, 0
    %1606 = vmatprep.subr.mxu0 0.0
    %1607 = vmatpush1.msra.mxu0 %v1591
    %1608 = vmatprep.subr.mxu0 0.0
    %1609 = vmatpush1.msra.mxu0 %v1596
    %1610 = vmatprep.subr.mxu0 0.0
    %1611 = vmatpush1.msra.mxu0 0.0
    %1612 = vmatprep.subr.mxu0 0.0
    %1613 = vmatpush1.msra.mxu0 0.0
    %1614 = vmatprep.subr.mxu0 0.0
    %1615 = vmatpush1.msra.mxu0 0.0
    %1616 = vmatprep.subr.mxu0 0.0
    %1617 = vmatpush1.msra.mxu0 0.0
    %1618 = vmatprep.subr.mxu0 0.0
    %1619 = vmatpush1.msra.mxu0 0.0
    %1620 = vmatprep.subr.mxu0 0.0
    %1621 = vmatpush1.msra.mxu0 0.0
    %1622 = vmatprep.subr.mxu0 0.0
    %1623 = vmatpush1.msra.mxu0 0.0
    %1624 = vmatprep.subr.mxu0 0.0
    %1625 = vmatpush1.msra.mxu0 0.0
    %1626 = vmatprep.subr.mxu0 0.0
    %1627 = vmatpush1.msra.mxu0 0.0
    %1628 = vmatprep.subr.mxu0 0.0
    %1629 = vmatpush1.msra.mxu0 0.0
    %1630 = vmatprep.subr.mxu0 0.0
    %1631 = vmatpush1.msra.mxu0 0.0
    %1632 = vmatprep.subr.mxu0 0.0
    %1633 = vmatpush1.msra.mxu0 0.0
    %1634 = vmatprep.subr.mxu0 0.0
    %1635 = vmatpush1.msra.mxu0 0.0
    %1636 = vmatprep.subr.mxu0 0.0
    %1637 = vmatpush1.msra.mxu0 0.0
    %1638 = vmatprep.subr.mxu0 0.0
    %1639 = vmatpush1.msra.mxu0 0.0
    %1640 = vmatprep.subr.mxu0 0.0
    %1641 = vmatpush1.msra.mxu0 0.0
    %1642 = vmatprep.subr.mxu0 0.0
    %1643 = vmatpush1.msra.mxu0 0.0
    %1644 = vmatprep.subr.mxu0 0.0
    %1645 = vmatpush1.msra.mxu0 0.0
    %1646 = vmatprep.subr.mxu0 0.0
    %1647 = vmatpush1.msra.mxu0 0.0
    %1648 = vmatprep.subr.mxu0 0.0
    %1649 = vmatpush1.msra.mxu0 0.0
    %1650 = vmatprep.subr.mxu0 0.0
    %1651 = vmatpush1.msra.mxu0 0.0
    %1652 = vmatprep.subr.mxu0 0.0
    %1653 = vmatpush1.msra.mxu0 0.0
    %1654 = vmatprep.subr.mxu0 0.0
    %1655 = vmatpush1.msra.mxu0 0.0
    %1656 = vmatprep.subr.mxu0 0.0
    %1657 = vmatpush1.msra.mxu0 0.0
    %1658 = vmatprep.subr.mxu0 0.0
    %1659 = vmatpush1.msra.mxu0 0.0
    %1660 = vmatprep.subr.mxu0 0.0
    %1661 = vmatpush1.msra.mxu0 0.0
    %1662 = vmatprep.subr.mxu0 0.0
    %1663 = vmatpush1.msra.mxu0 0.0
    %1664 = vmatprep.subr.mxu0 0.0
    %1665 = vmatpush1.msra.mxu0 0.0
    %1666 = vmatprep.subr.mxu0 0.0
    %1667 = vmatpush1.msra.mxu0 0.0
    %1668 = vmatprep.subr.mxu0 0.0
    %1669 = vmatpush1.msra.mxu0 0.0
    %1670 = vmatprep.mubr.f32.mxu0 0.0
    %1671 = vmatmul.mubr.f32.gmra.mrb[0].mxu0 %v1601
    %v1672 = vpop.f32.mrb[0].mxu0
    %v1673 = vadd.f32 0.0, %v1672
    %v1674 = vpop.f32.mrb[0].mxu0
    %1675 = vmatprep.mubr.f32.mxu0 0.0
    %1676 = vmatmul.mubr.f32.gmra.mrb[0].mxu0 %v1604
    %v1677 = vpop.f32.mrb[0].mxu0
    %v1678 = vadd.f32 0.0, %v1677
    %v1679 = vpop.f32.mrb[0].mxu0
    %1680 = vdwg.mxu0
    %v1682 = vsel %vm220, %v1504, 0
    %v1685 = vsel %vm220, %v1509, 0
    %1687 = vmatprep.subr.mxu0 0.0
    %1688 = vmatpush1.msra.mxu0 %v1514
    %1689 = vmatprep.subr.mxu0 0.0
    %1690 = vmatpush1.msra.mxu0 %v1515
    %1691 = vmatprep.subr.mxu0 0.0
    %1692 = vmatpush1.msra.mxu0 %v1516
    %1693 = vmatprep.subr.mxu0 0.0
    %1694 = vmatpush1.msra.mxu0 %v1517
    %1695 = vmatprep.subr.mxu0 0.0
    %1696 = vmatpush1.msra.mxu0 0.0
    %1697 = vmatprep.subr.mxu0 0.0
    %1698 = vmatpush1.msra.mxu0 0.0
    %1699 = vmatprep.subr.mxu0 0.0
    %1700 = vmatpush1.msra.mxu0 0.0
    %1701 = vmatprep.subr.mxu0 0.0
    %1702 = vmatpush1.msra.mxu0 0.0
    %1703 = vmatprep.subr.mxu0 0.0
    %1704 = vmatpush1.msra.mxu0 0.0
    %1705 = vmatprep.subr.mxu0 0.0
    %1706 = vmatpush1.msra.mxu0 0.0
    %1707 = vmatprep.subr.mxu0 0.0
    %1708 = vmatpush1.msra.mxu0 0.0
    %1709 = vmatprep.subr.mxu0 0.0
    %1710 = vmatpush1.msra.mxu0 0.0
    %1711 = vmatprep.subr.mxu0 0.0
    %1712 = vmatpush1.msra.mxu0 0.0
    %1713 = vmatprep.subr.mxu0 0.0
    %1714 = vmatpush1.msra.mxu0 0.0
    %1715 = vmatprep.subr.mxu0 0.0
    %1716 = vmatpush1.msra.mxu0 0.0
    %1717 = vmatprep.subr.mxu0 0.0
    %1718 = vmatpush1.msra.mxu0 0.0
    %1719 = vmatprep.subr.mxu0 0.0
    %1720 = vmatpush1.msra.mxu0 0.0
    %1721 = vmatprep.subr.mxu0 0.0
    %1722 = vmatpush1.msra.mxu0 0.0
    %1723 = vmatprep.subr.mxu0 0.0
    %1724 = vmatpush1.msra.mxu0 0.0
    %1725 = vmatprep.subr.mxu0 0.0
    %1726 = vmatpush1.msra.mxu0 0.0
    %1727 = vmatprep.subr.mxu0 0.0
    %1728 = vmatpush1.msra.mxu0 0.0
    %1729 = vmatprep.subr.mxu0 0.0
    %1730 = vmatpush1.msra.mxu0 0.0
    %1731 = vmatprep.subr.mxu0 0.0
    %1732 = vmatpush1.msra.mxu0 0.0
    %1733 = vmatprep.subr.mxu0 0.0
    %1734 = vmatpush1.msra.mxu0 0.0
    %1735 = vmatprep.subr.mxu0 0.0
    %1736 = vmatpush1.msra.mxu0 0.0
    %1737 = vmatprep.subr.mxu0 0.0
    %1738 = vmatpush1.msra.mxu0 0.0
    %1739 = vmatprep.subr.mxu0 0.0
    %1740 = vmatpush1.msra.mxu0 0.0
    %1741 = vmatprep.subr.mxu0 0.0
    %1742 = vmatpush1.msra.mxu0 0.0
    %1743 = vmatprep.subr.mxu0 0.0
    %1744 = vmatpush1.msra.mxu0 0.0
    %1745 = vmatprep.subr.mxu0 0.0
    %1746 = vmatpush1.msra.mxu0 0.0
    %1747 = vmatprep.subr.mxu0 0.0
    %1748 = vmatpush1.msra.mxu0 0.0
    %1749 = vmatprep.subr.mxu0 0.0
    %1750 = vmatpush1.msra.mxu0 0.0
    %1751 = vmatprep.mubr.f32.mxu0 0.0
    %1752 = vmatmul.mubr.f32.gmra.mrb[0].mxu0 %v1682
    %v1753 = vpop.f32.mrb[0].mxu0
    %v1754 = vadd.f32 0.0, %v1753
    %v1755 = vpop.f32.mrb[0].mxu0
    %1756 = vmatprep.mubr.f32.mxu0 0.0
    %1757 = vmatmul.mubr.f32.gmra.mrb[0].mxu0 %v1685
    %v1758 = vpop.f32.mrb[0].mxu0
    %v1759 = vadd.f32 0.0, %v1758
    %v1760 = vpop.f32.mrb[0].mxu0
    %1761 = vdwg.mxu0
    %1762 = vmatprep.subr.mxu0 0.0
    %1763 = vmatpush1.msra.mxu0 %v1754
    %1764 = vmatprep.subr.mxu0 0.0
    %1765 = vmatpush1.msra.mxu0 %v1759
    %1766 = vmatprep.subr.mxu0 0.0
    %1767 = vmatpush1.msra.mxu0 0.0
    %1768 = vmatprep.subr.mxu0 0.0
    %1769 = vmatpush1.msra.mxu0 0.0
    %1770 = vmatprep.subr.mxu0 0.0
    %1771 = vmatpush1.msra.mxu0 0.0
    %1772 = vmatprep.subr.mxu0 0.0
    %1773 = vmatpush1.msra.mxu0 0.0
    %1774 = vmatprep.subr.mxu0 0.0
    %1775 = vmatpush1.msra.mxu0 0.0
    %1776 = vmatprep.subr.mxu0 0.0
    %1777 = vmatpush1.msra.mxu0 0.0
    %1778 = vmatprep.subr.mxu0 0.0
    %1779 = vmatpush1.msra.mxu0 0.0
    %1780 = vmatprep.subr.mxu0 0.0
    %1781 = vmatpush1.msra.mxu0 0.0
    %1782 = vmatprep.subr.mxu0 0.0
    %1783 = vmatpush1.msra.mxu0 0.0
    %1784 = vmatprep.subr.mxu0 0.0
    %1785 = vmatpush1.msra.mxu0 0.0
    %1786 = vmatprep.subr.mxu0 0.0
    %1787 = vmatpush1.msra.mxu0 0.0
    %1788 = vmatprep.subr.mxu0 0.0
    %1789 = vmatpush1.msra.mxu0 0.0
    %1790 = vmatprep.subr.mxu0 0.0
    %1791 = vmatpush1.msra.mxu0 0.0
    %1792 = vmatprep.subr.mxu0 0.0
    %1793 = vmatpush1.msra.mxu0 0.0
    %1794 = vmatprep.subr.mxu0 0.0
    %1795 = vmatpush1.msra.mxu0 0.0
    %1796 = vmatprep.subr.mxu0 0.0
    %1797 = vmatpush1.msra.mxu0 0.0
    %1798 = vmatprep.subr.mxu0 0.0
    %1799 = vmatpush1.msra.mxu0 0.0
    %1800 = vmatprep.subr.mxu0 0.0
    %1801 = vmatpush1.msra.mxu0 0.0
    %1802 = vmatprep.subr.mxu0 0.0
    %1803 = vmatpush1.msra.mxu0 0.0
    %1804 = vmatprep.subr.mxu0 0.0
    %1805 = vmatpush1.msra.mxu0 0.0
    %1806 = vmatprep.subr.mxu0 0.0
    %1807 = vmatpush1.msra.mxu0 0.0
    %1808 = vmatprep.subr.mxu0 0.0
    %1809 = vmatpush1.msra.mxu0 0.0
    %1810 = vmatprep.subr.mxu0 0.0
    %1811 = vmatpush1.msra.mxu0 0.0
    %1812 = vmatprep.subr.mxu0 0.0
    %1813 = vmatpush1.msra.mxu0 0.0
    %1814 = vmatprep.subr.mxu0 0.0
    %1815 = vmatpush1.msra.mxu0 0.0
    %1816 = vmatprep.subr.mxu0 0.0
    %1817 = vmatpush1.msra.mxu0 0.0
    %1818 = vmatprep.subr.mxu0 0.0
    %1819 = vmatpush1.msra.mxu0 0.0
    %1820 = vmatprep.subr.mxu0 0.0
    %1821 = vmatpush1.msra.mxu0 0.0
    %1822 = vmatprep.subr.mxu0 0.0
    %1823 = vmatpush1.msra.mxu0 0.0
    %1824 = vmatprep.subr.mxu0 0.0
    %1825 = vmatpush1.msra.mxu0 0.0
    %1826 = vmatprep.mubr.f32.mxu0 0.0
    %1827 = vmatmul.mubr.f32.gmra.mrb[0].mxu0 %v1601
    %v1828 = vpop.f32.mrb[0].mxu0
    %v1829 = vadd.f32 0.0, %v1828
    %v1830 = vpop.f32.mrb[0].mxu0
    %1831 = vmatprep.mubr.f32.mxu0 0.0
    %1832 = vmatmul.mubr.f32.gmra.mrb[0].mxu0 %v1604
    %v1833 = vpop.f32.mrb[0].mxu0
    %v1834 = vadd.f32 0.0, %v1833
    %v1835 = vpop.f32.mrb[0].mxu0
    %1836 = vdwg.mxu0
    %v1837 = vmul.f32 %v1344, %v1344
    %v1838 = vmul.f32 %v1349, %v1349
    %v1840 = vsel %vm220, %v1837, 0
    %v1843 = vsel %vm220, %v1838, 0
    %1845 = vmatprep.subr.mxu0 0.0
    %1846 = vmatpush1.msra.mxu0 %v1514
    %1847 = vmatprep.subr.mxu0 0.0
    %1848 = vmatpush1.msra.mxu0 %v1515
    %1849 = vmatprep.subr.mxu0 0.0
    %1850 = vmatpush1.msra.mxu0 %v1516
    %1851 = vmatprep.subr.mxu0 0.0
    %1852 = vmatpush1.msra.mxu0 %v1517
    %1853 = vmatprep.subr.mxu0 0.0
    %1854 = vmatpush1.msra.mxu0 0.0
    %1855 = vmatprep.subr.mxu0 0.0
    %1856 = vmatpush1.msra.mxu0 0.0
    %1857 = vmatprep.subr.mxu0 0.0
    %1858 = vmatpush1.msra.mxu0 0.0
    %1859 = vmatprep.subr.mxu0 0.0
    %1860 = vmatpush1.msra.mxu0 0.0
    %1861 = vmatprep.subr.mxu0 0.0
    %1862 = vmatpush1.msra.mxu0 0.0
    %1863 = vmatprep.subr.mxu0 0.0
    %1864 = vmatpush1.msra.mxu0 0.0
    %1865 = vmatprep.subr.mxu0 0.0
    %1866 = vmatpush1.msra.mxu0 0.0
    %1867 = vmatprep.subr.mxu0 0.0
    %1868 = vmatpush1.msra.mxu0 0.0
    %1869 = vmatprep.subr.mxu0 0.0
    %1870 = vmatpush1.msra.mxu0 0.0
    %1871 = vmatprep.subr.mxu0 0.0
    %1872 = vmatpush1.msra.mxu0 0.0
    %1873 = vmatprep.subr.mxu0 0.0
    %1874 = vmatpush1.msra.mxu0 0.0
    %1875 = vmatprep.subr.mxu0 0.0
    %1876 = vmatpush1.msra.mxu0 0.0
    %1877 = vmatprep.subr.mxu0 0.0
    %1878 = vmatpush1.msra.mxu0 0.0
    %1879 = vmatprep.subr.mxu0 0.0
    %1880 = vmatpush1.msra.mxu0 0.0
    %1881 = vmatprep.subr.mxu0 0.0
    %1882 = vmatpush1.msra.mxu0 0.0
    %1883 = vmatprep.subr.mxu0 0.0
    %1884 = vmatpush1.msra.mxu0 0.0
    %1885 = vmatprep.subr.mxu0 0.0
    %1886 = vmatpush1.msra.mxu0 0.0
    %1887 = vmatprep.subr.mxu0 0.0
    %1888 = vmatpush1.msra.mxu0 0.0
    %1889 = vmatprep.subr.mxu0 0.0
    %1890 = vmatpush1.msra.mxu0 0.0
    %1891 = vmatprep.subr.mxu0 0.0
    %1892 = vmatpush1.msra.mxu0 0.0
    %1893 = vmatprep.subr.mxu0 0.0
    %1894 = vmatpush1.msra.mxu0 0.0
    %1895 = vmatprep.subr.mxu0 0.0
    %1896 = vmatpush1.msra.mxu0 0.0
    %1897 = vmatprep.subr.mxu0 0.0
    %1898 = vmatpush1.msra.mxu0 0.0
    %1899 = vmatprep.subr.mxu0 0.0
    %1900 = vmatpush1.msra.mxu0 0.0
    %1901 = vmatprep.subr.mxu0 0.0
    %1902 = vmatpush1.msra.mxu0 0.0
    %1903 = vmatprep.subr.mxu0 0.0
    %1904 = vmatpush1.msra.mxu0 0.0
    %1905 = vmatprep.subr.mxu0 0.0
    %1906 = vmatpush1.msra.mxu0 0.0
    %1907 = vmatprep.subr.mxu0 0.0
    %1908 = vmatpush1.msra.mxu0 0.0
    %1909 = vmatprep.mubr.f32.mxu0 0.0
    %1910 = vmatmul.mubr.f32.gmra.mrb[0].mxu0 %v1840
    %v1911 = vpop.f32.mrb[0].mxu0
    %v1912 = vadd.f32 0.0, %v1911
    %v1913 = vpop.f32.mrb[0].mxu0
    %1914 = vmatprep.mubr.f32.mxu0 0.0
    %1915 = vmatmul.mubr.f32.gmra.mrb[0].mxu0 %v1843
    %v1916 = vpop.f32.mrb[0].mxu0
    %v1917 = vadd.f32 0.0, %v1916
    %v1918 = vpop.f32.mrb[0].mxu0
    %1919 = vdwg.mxu0
    %1920 = vmatprep.subr.mxu0 0.0
    %1921 = vmatpush1.msra.mxu0 %v1912
    %1922 = vmatprep.subr.mxu0 0.0
    %1923 = vmatpush1.msra.mxu0 %v1917
    %1924 = vmatprep.subr.mxu0 0.0
    %1925 = vmatpush1.msra.mxu0 0.0
    %1926 = vmatprep.subr.mxu0 0.0
    %1927 = vmatpush1.msra.mxu0 0.0
    %1928 = vmatprep.subr.mxu0 0.0
    %1929 = vmatpush1.msra.mxu0 0.0
    %1930 = vmatprep.subr.mxu0 0.0
    %1931 = vmatpush1.msra.mxu0 0.0
    %1932 = vmatprep.subr.mxu0 0.0
    %1933 = vmatpush1.msra.mxu0 0.0
    %1934 = vmatprep.subr.mxu0 0.0
    %1935 = vmatpush1.msra.mxu0 0.0
    %1936 = vmatprep.subr.mxu0 0.0
    %1937 = vmatpush1.msra.mxu0 0.0
    %1938 = vmatprep.subr.mxu0 0.0
    %1939 = vmatpush1.msra.mxu0 0.0
    %1940 = vmatprep.subr.mxu0 0.0
    %1941 = vmatpush1.msra.mxu0 0.0
    %1942 = vmatprep.subr.mxu0 0.0
    %1943 = vmatpush1.msra.mxu0 0.0
    %1944 = vmatprep.subr.mxu0 0.0
    %1945 = vmatpush1.msra.mxu0 0.0
    %1946 = vmatprep.subr.mxu0 0.0
    %1947 = vmatpush1.msra.mxu0 0.0
    %1948 = vmatprep.subr.mxu0 0.0
    %1949 = vmatpush1.msra.mxu0 0.0
    %1950 = vmatprep.subr.mxu0 0.0
    %1951 = vmatpush1.msra.mxu0 0.0
    %1952 = vmatprep.subr.mxu0 0.0
    %1953 = vmatpush1.msra.mxu0 0.0
    %1954 = vmatprep.subr.mxu0 0.0
    %1955 = vmatpush1.msra.mxu0 0.0
    %1956 = vmatprep.subr.mxu0 0.0
    %1957 = vmatpush1.msra.mxu0 0.0
    %1958 = vmatprep.subr.mxu0 0.0
    %1959 = vmatpush1.msra.mxu0 0.0
    %1960 = vmatprep.subr.mxu0 0.0
    %1961 = vmatpush1.msra.mxu0 0.0
    %1962 = vmatprep.subr.mxu0 0.0
    %1963 = vmatpush1.msra.mxu0 0.0
    %1964 = vmatprep.subr.mxu0 0.0
    %1965 = vmatpush1.msra.mxu0 0.0
    %1966 = vmatprep.subr.mxu0 0.0
    %1967 = vmatpush1.msra.mxu0 0.0
    %1968 = vmatprep.subr.mxu0 0.0
    %1969 = vmatpush1.msra.mxu0 0.0
    %1970 = vmatprep.subr.mxu0 0.0
    %1971 = vmatpush1.msra.mxu0 0.0
    %1972 = vmatprep.subr.mxu0 0.0
    %1973 = vmatpush1.msra.mxu0 0.0
    %1974 = vmatprep.subr.mxu0 0.0
    %1975 = vmatpush1.msra.mxu0 0.0
    %1976 = vmatprep.subr.mxu0 0.0
    %1977 = vmatpush1.msra.mxu0 0.0
    %1978 = vmatprep.subr.mxu0 0.0
    %1979 = vmatpush1.msra.mxu0 0.0
    %1980 = vmatprep.subr.mxu0 0.0
    %1981 = vmatpush1.msra.mxu0 0.0
    %1982 = vmatprep.subr.mxu0 0.0
    %1983 = vmatpush1.msra.mxu0 0.0
    %1984 = vmatprep.mubr.f32.mxu0 0.0
    %1985 = vmatmul.mubr.f32.gmra.mrb[0].mxu0 %v1601
    %v1986 = vpop.f32.mrb[0].mxu0
    %v1987 = vadd.f32 0.0, %v1986
    %v1988 = vpop.f32.mrb[0].mxu0
    %1989 = vmatprep.mubr.f32.mxu0 0.0
    %1990 = vmatmul.mubr.f32.gmra.mrb[0].mxu0 %v1604
    %v1991 = vpop.f32.mrb[0].mxu0
    %v1992 = vadd.f32 0.0, %v1991
    %v1993 = vpop.f32.mrb[0].mxu0
    %1994 = vdwg.mxu0
    %v1995 = vmul.f32 %v1504, %v1504
    %v1996 = vmul.f32 %v1509, %v1509
    %v1998 = vsel %vm220, %v1995, 0
    %v2001 = vsel %vm220, %v1996, 0
    %2003 = vmatprep.subr.mxu0 0.0
    %2004 = vmatpush1.msra.mxu0 %v1514
    %2005 = vmatprep.subr.mxu0 0.0
    %2006 = vmatpush1.msra.mxu0 %v1515
    %2007 = vmatprep.subr.mxu0 0.0
    %2008 = vmatpush1.msra.mxu0 %v1516
    %2009 = vmatprep.subr.mxu0 0.0
    %2010 = vmatpush1.msra.mxu0 %v1517
    %2011 = vmatprep.subr.mxu0 0.0
    %2012 = vmatpush1.msra.mxu0 0.0
    %2013 = vmatprep.subr.mxu0 0.0
    %2014 = vmatpush1.msra.mxu0 0.0
    %2015 = vmatprep.subr.mxu0 0.0
    %2016 = vmatpush1.msra.mxu0 0.0
    %2017 = vmatprep.subr.mxu0 0.0
    %2018 = vmatpush1.msra.mxu0 0.0
    %2019 = vmatprep.subr.mxu0 0.0
    %2020 = vmatpush1.msra.mxu0 0.0
    %2021 = vmatprep.subr.mxu0 0.0
    %2022 = vmatpush1.msra.mxu0 0.0
    %2023 = vmatprep.subr.mxu0 0.0
    %2024 = vmatpush1.msra.mxu0 0.0
    %2025 = vmatprep.subr.mxu0 0.0
    %2026 = vmatpush1.msra.mxu0 0.0
    %2027 = vmatprep.subr.mxu0 0.0
    %2028 = vmatpush1.msra.mxu0 0.0
    %2029 = vmatprep.subr.mxu0 0.0
    %2030 = vmatpush1.msra.mxu0 0.0
    %2031 = vmatprep.subr.mxu0 0.0
    %2032 = vmatpush1.msra.mxu0 0.0
    %2033 = vmatprep.subr.mxu0 0.0
    %2034 = vmatpush1.msra.mxu0 0.0
    %2035 = vmatprep.subr.mxu0 0.0
    %2036 = vmatpush1.msra.mxu0 0.0
    %2037 = vmatprep.subr.mxu0 0.0
    %2038 = vmatpush1.msra.mxu0 0.0
    %2039 = vmatprep.subr.mxu0 0.0
    %2040 = vmatpush1.msra.mxu0 0.0
    %2041 = vmatprep.subr.mxu0 0.0
    %2042 = vmatpush1.msra.mxu0 0.0
    %2043 = vmatprep.subr.mxu0 0.0
    %2044 = vmatpush1.msra.mxu0 0.0
    %2045 = vmatprep.subr.mxu0 0.0
    %2046 = vmatpush1.msra.mxu0 0.0
    %2047 = vmatprep.subr.mxu0 0.0
    %2048 = vmatpush1.msra.mxu0 0.0
    %2049 = vmatprep.subr.mxu0 0.0
    %2050 = vmatpush1.msra.mxu0 0.0
    %2051 = vmatprep.subr.mxu0 0.0
    %2052 = vmatpush1.msra.mxu0 0.0
    %2053 = vmatprep.subr.mxu0 0.0
    %2054 = vmatpush1.msra.mxu0 0.0
    %2055 = vmatprep.subr.mxu0 0.0
    %2056 = vmatpush1.msra.mxu0 0.0
    %2057 = vmatprep.subr.mxu0 0.0
    %2058 = vmatpush1.msra.mxu0 0.0
    %2059 = vmatprep.subr.mxu0 0.0
    %2060 = vmatpush1.msra.mxu0 0.0
    %2061 = vmatprep.subr.mxu0 0.0
    %2062 = vmatpush1.msra.mxu0 0.0
    %2063 = vmatprep.subr.mxu0 0.0
    %2064 = vmatpush1.msra.mxu0 0.0
    %2065 = vmatprep.subr.mxu0 0.0
    %2066 = vmatpush1.msra.mxu0 0.0
    %2067 = vmatprep.mubr.f32.mxu0 0.0
    %2068 = vmatmul.mubr.f32.gmra.mrb[0].mxu0 %v1998
    %v2069 = vpop.f32.mrb[0].mxu0
    %v2070 = vadd.f32 0.0, %v2069
    %v2071 = vpop.f32.mrb[0].mxu0
    %2072 = vmatprep.mubr.f32.mxu0 0.0
    %2073 = vmatmul.mubr.f32.gmra.mrb[0].mxu0 %v2001
    %v2074 = vpop.f32.mrb[0].mxu0
    %v2075 = vadd.f32 0.0, %v2074
    %v2076 = vpop.f32.mrb[0].mxu0
    %2077 = vdwg.mxu0
    %2078 = vmatprep.subr.mxu0 0.0
    %2079 = vmatpush1.msra.mxu0 %v2070
    %2080 = vmatprep.subr.mxu0 0.0
    %2081 = vmatpush1.msra.mxu0 %v2075
    %2082 = vmatprep.subr.mxu0 0.0
    %2083 = vmatpush1.msra.mxu0 0.0
    %2084 = vmatprep.subr.mxu0 0.0
    %2085 = vmatpush1.msra.mxu0 0.0
    %2086 = vmatprep.subr.mxu0 0.0
    %2087 = vmatpush1.msra.mxu0 0.0
    %2088 = vmatprep.subr.mxu0 0.0
    %2089 = vmatpush1.msra.mxu0 0.0
    %2090 = vmatprep.subr.mxu0 0.0
    %2091 = vmatpush1.msra.mxu0 0.0
    %2092 = vmatprep.subr.mxu0 0.0
    %2093 = vmatpush1.msra.mxu0 0.0
    %2094 = vmatprep.subr.mxu0 0.0
    %2095 = vmatpush1.msra.mxu0 0.0
    %2096 = vmatprep.subr.mxu0 0.0
    %2097 = vmatpush1.msra.mxu0 0.0
    %2098 = vmatprep.subr.mxu0 0.0
    %2099 = vmatpush1.msra.mxu0 0.0
    %2100 = vmatprep.subr.mxu0 0.0
    %2101 = vmatpush1.msra.mxu0 0.0
    %2102 = vmatprep.subr.mxu0 0.0
    %2103 = vmatpush1.msra.mxu0 0.0
    %2104 = vmatprep.subr.mxu0 0.0
    %2105 = vmatpush1.msra.mxu0 0.0
    %2106 = vmatprep.subr.mxu0 0.0
    %2107 = vmatpush1.msra.mxu0 0.0
    %2108 = vmatprep.subr.mxu0 0.0
    %2109 = vmatpush1.msra.mxu0 0.0
    %2110 = vmatprep.subr.mxu0 0.0
    %2111 = vmatpush1.msra.mxu0 0.0
    %2112 = vmatprep.subr.mxu0 0.0
    %2113 = vmatpush1.msra.mxu0 0.0
    %2114 = vmatprep.subr.mxu0 0.0
    %2115 = vmatpush1.msra.mxu0 0.0
    %2116 = vmatprep.subr.mxu0 0.0
    %2117 = vmatpush1.msra.mxu0 0.0
    %2118 = vmatprep.subr.mxu0 0.0
    %2119 = vmatpush1.msra.mxu0 0.0
    %2120 = vmatprep.subr.mxu0 0.0
    %2121 = vmatpush1.msra.mxu0 0.0
    %2122 = vmatprep.subr.mxu0 0.0
    %2123 = vmatpush1.msra.mxu0 0.0
    %2124 = vmatprep.subr.mxu0 0.0
    %2125 = vmatpush1.msra.mxu0 0.0
    %2126 = vmatprep.subr.mxu0 0.0
    %2127 = vmatpush1.msra.mxu0 0.0
    %2128 = vmatprep.subr.mxu0 0.0
    %2129 = vmatpush1.msra.mxu0 0.0
    %2130 = vmatprep.subr.mxu0 0.0
    %2131 = vmatpush1.msra.mxu0 0.0
    %2132 = vmatprep.subr.mxu0 0.0
    %2133 = vmatpush1.msra.mxu0 0.0
    %2134 = vmatprep.subr.mxu0 0.0
    %2135 = vmatpush1.msra.mxu0 0.0
    %2136 = vmatprep.subr.mxu0 0.0
    %2137 = vmatpush1.msra.mxu0 0.0
    %2138 = vmatprep.subr.mxu0 0.0
    %2139 = vmatpush1.msra.mxu0 0.0
    %2140 = vmatprep.subr.mxu0 0.0
    %2141 = vmatpush1.msra.mxu0 0.0
    %2142 = vmatprep.mubr.f32.mxu0 0.0
    %2143 = vmatmul.mubr.f32.gmra.mrb[0].mxu0 %v1601
    %v2144 = vpop.f32.mrb[0].mxu0
    %v2145 = vadd.f32 0.0, %v2144
    %v2146 = vpop.f32.mrb[0].mxu0
    %2147 = vmatprep.mubr.f32.mxu0 0.0
    %2148 = vmatmul.mubr.f32.gmra.mrb[0].mxu0 %v1604
    %v2149 = vpop.f32.mrb[0].mxu0
    %v2150 = vadd.f32 0.0, %v2149
    %v2151 = vpop.f32.mrb[0].mxu0
    %2152 = vdwg.mxu0
    %v2153 = vmul.f32 %v1344, %v1504
    %v2154 = vmul.f32 %v1349, %v1509
    %v2156 = vsel %vm220, %v2153, 0
    %v2159 = vsel %vm220, %v2154, 0
    %2161 = vmatprep.subr.mxu0 0.0
    %2162 = vmatpush1.msra.mxu0 %v1514
    %2163 = vmatprep.subr.mxu0 0.0
    %2164 = vmatpush1.msra.mxu0 %v1515
    %2165 = vmatprep.subr.mxu0 0.0
    %2166 = vmatpush1.msra.mxu0 %v1516
    %2167 = vmatprep.subr.mxu0 0.0
    %2168 = vmatpush1.msra.mxu0 %v1517
    %2169 = vmatprep.subr.mxu0 0.0
    %2170 = vmatpush1.msra.mxu0 0.0
    %2171 = vmatprep.subr.mxu0 0.0
    %2172 = vmatpush1.msra.mxu0 0.0
    %2173 = vmatprep.subr.mxu0 0.0
    %2174 = vmatpush1.msra.mxu0 0.0
    %2175 = vmatprep.subr.mxu0 0.0
    %2176 = vmatpush1.msra.mxu0 0.0
    %2177 = vmatprep.subr.mxu0 0.0
    %2178 = vmatpush1.msra.mxu0 0.0
    %2179 = vmatprep.subr.mxu0 0.0
    %2180 = vmatpush1.msra.mxu0 0.0
    %2181 = vmatprep.subr.mxu0 0.0
    %2182 = vmatpush1.msra.mxu0 0.0
    %2183 = vmatprep.subr.mxu0 0.0
    %2184 = vmatpush1.msra.mxu0 0.0
    %2185 = vmatprep.subr.mxu0 0.0
    %2186 = vmatpush1.msra.mxu0 0.0
    %2187 = vmatprep.subr.mxu0 0.0
    %2188 = vmatpush1.msra.mxu0 0.0
    %2189 = vmatprep.subr.mxu0 0.0
    %2190 = vmatpush1.msra.mxu0 0.0
    %2191 = vmatprep.subr.mxu0 0.0
    %2192 = vmatpush1.msra.mxu0 0.0
    %2193 = vmatprep.subr.mxu0 0.0
    %2194 = vmatpush1.msra.mxu0 0.0
    %2195 = vmatprep.subr.mxu0 0.0
    %2196 = vmatpush1.msra.mxu0 0.0
    %2197 = vmatprep.subr.mxu0 0.0
    %2198 = vmatpush1.msra.mxu0 0.0
    %2199 = vmatprep.subr.mxu0 0.0
    %2200 = vmatpush1.msra.mxu0 0.0
    %2201 = vmatprep.subr.mxu0 0.0
    %2202 = vmatpush1.msra.mxu0 0.0
    %2203 = vmatprep.subr.mxu0 0.0
    %2204 = vmatpush1.msra.mxu0 0.0
    %2205 = vmatprep.subr.mxu0 0.0
    %2206 = vmatpush1.msra.mxu0 0.0
    %2207 = vmatprep.subr.mxu0 0.0
    %2208 = vmatpush1.msra.mxu0 0.0
    %2209 = vmatprep.subr.mxu0 0.0
    %2210 = vmatpush1.msra.mxu0 0.0
    %2211 = vmatprep.subr.mxu0 0.0
    %2212 = vmatpush1.msra.mxu0 0.0
    %2213 = vmatprep.subr.mxu0 0.0
    %2214 = vmatpush1.msra.mxu0 0.0
    %2215 = vmatprep.subr.mxu0 0.0
    %2216 = vmatpush1.msra.mxu0 0.0
    %2217 = vmatprep.subr.mxu0 0.0
    %2218 = vmatpush1.msra.mxu0 0.0
    %2219 = vmatprep.subr.mxu0 0.0
    %2220 = vmatpush1.msra.mxu0 0.0
    %2221 = vmatprep.subr.mxu0 0.0
    %2222 = vmatpush1.msra.mxu0 0.0
    %2223 = vmatprep.subr.mxu0 0.0
    %2224 = vmatpush1.msra.mxu0 0.0
    %2225 = vmatprep.mubr.f32.mxu0 0.0
    %2226 = vmatmul.mubr.f32.gmra.mrb[0].mxu0 %v2156
    %v2227 = vpop.f32.mrb[0].mxu0
    %v2228 = vadd.f32 0.0, %v2227
    %v2229 = vpop.f32.mrb[0].mxu0
    %2230 = vmatprep.mubr.f32.mxu0 0.0
    %2231 = vmatmul.mubr.f32.gmra.mrb[0].mxu0 %v2159
    %v2232 = vpop.f32.mrb[0].mxu0
    %v2233 = vadd.f32 0.0, %v2232
    %v2234 = vpop.f32.mrb[0].mxu0
    %2235 = vdwg.mxu0
    %2236 = vmatprep.subr.mxu0 0.0
    %2237 = vmatpush1.msra.mxu0 %v2228
    %2238 = vmatprep.subr.mxu0 0.0
    %2239 = vmatpush1.msra.mxu0 %v2233
    %2240 = vmatprep.subr.mxu0 0.0
    %2241 = vmatpush1.msra.mxu0 0.0
    %2242 = vmatprep.subr.mxu0 0.0
    %2243 = vmatpush1.msra.mxu0 0.0
    %2244 = vmatprep.subr.mxu0 0.0
    %2245 = vmatpush1.msra.mxu0 0.0
    %2246 = vmatprep.subr.mxu0 0.0
    %2247 = vmatpush1.msra.mxu0 0.0
    %2248 = vmatprep.subr.mxu0 0.0
    %2249 = vmatpush1.msra.mxu0 0.0
    %2250 = vmatprep.subr.mxu0 0.0
    %2251 = vmatpush1.msra.mxu0 0.0
    %2252 = vmatprep.subr.mxu0 0.0
    %2253 = vmatpush1.msra.mxu0 0.0
    %2254 = vmatprep.subr.mxu0 0.0
    %2255 = vmatpush1.msra.mxu0 0.0
    %2256 = vmatprep.subr.mxu0 0.0
    %2257 = vmatpush1.msra.mxu0 0.0
    %2258 = vmatprep.subr.mxu0 0.0
    %2259 = vmatpush1.msra.mxu0 0.0
    %2260 = vmatprep.subr.mxu0 0.0
    %2261 = vmatpush1.msra.mxu0 0.0
    %2262 = vmatprep.subr.mxu0 0.0
    %2263 = vmatpush1.msra.mxu0 0.0
    %2264 = vmatprep.subr.mxu0 0.0
    %2265 = vmatpush1.msra.mxu0 0.0
    %2266 = vmatprep.subr.mxu0 0.0
    %2267 = vmatpush1.msra.mxu0 0.0
    %2268 = vmatprep.subr.mxu0 0.0
    %2269 = vmatpush1.msra.mxu0 0.0
    %2270 = vmatprep.subr.mxu0 0.0
    %2271 = vmatpush1.msra.mxu0 0.0
    %2272 = vmatprep.subr.mxu0 0.0
    %2273 = vmatpush1.msra.mxu0 0.0
    %2274 = vmatprep.subr.mxu0 0.0
    %2275 = vmatpush1.msra.mxu0 0.0
    %2276 = vmatprep.subr.mxu0 0.0
    %2277 = vmatpush1.msra.mxu0 0.0
    %2278 = vmatprep.subr.mxu0 0.0
    %2279 = vmatpush1.msra.mxu0 0.0
    %2280 = vmatprep.subr.mxu0 0.0
    %2281 = vmatpush1.msra.mxu0 0.0
    %2282 = vmatprep.subr.mxu0 0.0
    %2283 = vmatpush1.msra.mxu0 0.0
    %2284 = vmatprep.subr.mxu0 0.0
    %2285 = vmatpush1.msra.mxu0 0.0
    %2286 = vmatprep.subr.mxu0 0.0
    %2287 = vmatpush1.msra.mxu0 0.0
    %2288 = vmatprep.subr.mxu0 0.0
    %2289 = vmatpush1.msra.mxu0 0.0
    %2290 = vmatprep.subr.mxu0 0.0
    %2291 = vmatpush1.msra.mxu0 0.0
    %2292 = vmatprep.subr.mxu0 0.0
    %2293 = vmatpush1.msra.mxu0 0.0
    %2294 = vmatprep.subr.mxu0 0.0
    %2295 = vmatpush1.msra.mxu0 0.0
    %2296 = vmatprep.subr.mxu0 0.0
    %2297 = vmatpush1.msra.mxu0 0.0
    %2298 = vmatprep.subr.mxu0 0.0
    %2299 = vmatpush1.msra.mxu0 0.0
    %2300 = vmatprep.mubr.f32.mxu0 0.0
    %2301 = vmatmul.mubr.f32.gmra.mrb[0].mxu0 %v1601
    %v2302 = vpop.f32.mrb[0].mxu0
    %v2303 = vadd.f32 0.0, %v2302
    %v2304 = vpop.f32.mrb[0].mxu0
    %2305 = vmatprep.mubr.f32.mxu0 0.0
    %2306 = vmatmul.mubr.f32.gmra.mrb[0].mxu0 %v1604
    %v2307 = vpop.f32.mrb[0].mxu0
    %v2308 = vadd.f32 0.0, %v2307
    %v2309 = vpop.f32.mrb[0].mxu0
    %2310 = vdwg.mxu0
    %v2311 = vmul.f32 %v1673, %v1673
    %v2312 = vmul.f32 %v1678, %v1678
    %v2313 = vmul.f32 %v1829, %v1829
    %v2314 = vmul.f32 %v1834, %v1834
    %v2315 = vmul.f32 %v1673, %v1829
    %v2316 = vmul.f32 %v1678, %v1834
    %v2317 = vsub.f32 %v1987, %v2311
    %v2318 = vsub.f32 %v1992, %v2312
    %v2319 = vsub.f32 %v2145, %v2313
    %v2320 = vsub.f32 %v2150, %v2314
    %v2321 = vsub.f32 %v2303, %v2315
    %v2322 = vsub.f32 %v2308, %v2316
    %v2323 = vmul.f32 %v2321, 2.0
    %v2324 = vmul.f32 %v2322, 2.0
    %v2325 = vadd.f32 %v2323, 0.0009
    %v2326 = vadd.f32 %v2324, 0.0009
    %v2327 = vadd.f32 %v2317, %v2319
    %v2328 = vadd.f32 %v2318, %v2320
    %v2329 = vadd.f32 %v2327, 0.0009
    %v2330 = vadd.f32 %v2328, 0.0009
    %v2331 = vrcp.pop %v2329
    %v2332 = vmul.f32 %v2325, %v2331
    %v2333 = vrcp.pop %v2330
    %v2334 = vmul.f32 %v2326, %v2333
    %v2335 = vmul.f32 %v2315, 2.0
    %v2336 = vmul.f32 %v2316, 2.0
    %v2337 = vadd.f32 %v2335, 0.0001
    %v2338 = vadd.f32 %v2336, 0.0001
    %v2339 = vadd.f32 %v2311, %v2313
    %v2340 = vadd.f32 %v2312, %v2314
    %v2341 = vadd.f32 %v2339, 0.0001
    %v2342 = vadd.f32 %v2340, 0.0001
    %v2343 = vrcp.pop %v2341
    %v2344 = vmul.f32 %v2337, %v2343
    %v2345 = vrcp.pop %v2342
    %v2346 = vmul.f32 %v2338, %v2345
    %v2347 = vmul.f32 %v2344, %v2332
    %v2348 = vmul.f32 %v2346, %v2334
    %vm2349 = vcmask 228352
    %v2350 = vsel %vm2349, %v2347, 0.0
    %v2351 = vsel %vm2349, %v2348, 0.0
    %v2352 = vadd.f32 %v2350, %v2351
    %2353 = vadd.xlane.f32.xlu0 %v2352
    %v2354 = vpop.xlane.xlu0 %2353
    %v2355 = vrot.slane %v2354, 4
    %v2356 = vadd.f32 %v2354, %v2355
    %v2357 = vrot.slane %v2356, 2
    %v2358 = vadd.f32 %v2356, %v2357
    %v2359 = vrot.slane %v2358, 1
    %v2360 = vadd.f32 %v2358, %v2359
    %s2361 = vtos %v2360
    %v2362 = vstv %s2361
    %v2363 = vsel %vm2349, %v2332, 0.0
    %v2364 = vsel %vm2349, %v2334, 0.0
    %v2365 = vadd.f32 %v2363, %v2364
    %2366 = vadd.xlane.f32.xlu0 %v2365
    %v2367 = vpop.xlane.xlu0 %2366
    %v2368 = vrot.slane %v2367, 4
    %v2369 = vadd.f32 %v2367, %v2368
    %v2370 = vrot.slane %v2369, 2
    %v2371 = vadd.f32 %v2369, %v2370
    %v2372 = vrot.slane %v2371, 1
    %v2373 = vadd.f32 %v2371, %v2372
    %s2374 = vtos %v2373
    %v2375 = vstv %s2374
    %v2376 = vld [vmem:[#allocation3] sm:$0x1]
    %v2377 = vadd.f32 %v2376, %v2362
    %2378 = vst.msk [vmem:[#allocation3] sm:$0x1] %vm1171, %v2377
    %v2379 = vld [vmem:[#allocation6] sm:$0x1]
    %v2380 = vadd.f32 %v2379, %v2375
    %2381 = vst.msk [vmem:[#allocation6] sm:$0x1] %vm1171, %v2380
    %v2382 = vld [vmem:[%s9] sm:$0xff]
    %v2383 = vld [vmem:[%s11] sm:$0xff]
    %v2384 = vld [vmem:[%s11 + $0x8] sm:$0xff]
    %v2385 = vld [vmem:[%s11 + $0x10] sm:$0xff]
    %v2386 = vld [vmem:[%s11 + $0x18] sm:$0xff]
    %2387 = vmatprep.subr.mxu0 0.0
    %2388 = vmatpush1.msra.mxu0 %v2383
    %2389 = vmatprep.subr.mxu0 0.0
    %2390 = vmatpush1.msra.mxu0 %v2384
    %2391 = vmatprep.subr.mxu0 0.0
    %2392 = vmatpush1.msra.mxu0 %v2385
    %2393 = vmatprep.subr.mxu0 0.0
    %2394 = vmatpush1.msra.mxu0 %v2386
    %2395 = vmatprep.subr.mxu0 0.0
    %2396 = vmatpush1.msra.mxu0 0.0
    %2397 = vmatprep.subr.mxu0 0.0
    %2398 = vmatpush1.msra.mxu0 0.0
    %2399 = vmatprep.subr.mxu0 0.0
    %2400 = vmatpush1.msra.mxu0 0.0
    %2401 = vmatprep.subr.mxu0 0.0
    %2402 = vmatpush1.msra.mxu0 0.0
    %2403 = vmatprep.subr.mxu0 0.0
    %2404 = vmatpush1.msra.mxu0 0.0
    %2405 = vmatprep.subr.mxu0 0.0
    %2406 = vmatpush1.msra.mxu0 0.0
    %2407 = vmatprep.subr.mxu0 0.0
    %2408 = vmatpush1.msra.mxu0 0.0
    %2409 = vmatprep.subr.mxu0 0.0
    %2410 = vmatpush1.msra.mxu0 0.0
    %2411 = vmatprep.subr.mxu0 0.0
    %2412 = vmatpush1.msra.mxu0 0.0
    %2413 = vmatprep.subr.mxu0 0.0
    %2414 = vmatpush1.msra.mxu0 0.0
    %2415 = vmatprep.subr.mxu0 0.0
    %2416 = vmatpush1.msra.mxu0 0.0
    %2417 = vmatprep.subr.mxu0 0.0
    %2418 = vmatpush1.msra.mxu0 0.0
    %2419 = vmatprep.subr.mxu0 0.0
    %2420 = vmatpush1.msra.mxu0 0.0
    %2421 = vmatprep.subr.mxu0 0.0
    %2422 = vmatpush1.msra.mxu0 0.0
    %2423 = vmatprep.subr.mxu0 0.0
    %2424 = vmatpush1.msra.mxu0 0.0
    %2425 = vmatprep.subr.mxu0 0.0
    %2426 = vmatpush1.msra.mxu0 0.0
    %2427 = vmatprep.subr.mxu0 0.0
    %2428 = vmatpush1.msra.mxu0 0.0
    %2429 = vmatprep.subr.mxu0 0.0
    %2430 = vmatpush1.msra.mxu0 0.0
    %2431 = vmatprep.subr.mxu0 0.0
    %2432 = vmatpush1.msra.mxu0 0.0
    %2433 = vmatprep.subr.mxu0 0.0
    %2434 = vmatpush1.msra.mxu0 0.0
    %2435 = vmatprep.subr.mxu0 0.0
    %2436 = vmatpush1.msra.mxu0 0.0
    %2437 = vmatprep.subr.mxu0 0.0
    %2438 = vmatpush1.msra.mxu0 0.0
    %2439 = vmatprep.subr.mxu0 0.0
    %2440 = vmatpush1.msra.mxu0 0.0
    %2441 = vmatprep.subr.mxu0 0.0
    %2442 = vmatpush1.msra.mxu0 0.0
    %2443 = vmatprep.subr.mxu0 0.0
    %2444 = vmatpush1.msra.mxu0 0.0
    %2445 = vmatprep.subr.mxu0 0.0
    %2446 = vmatpush1.msra.mxu0 0.0
    %2447 = vmatprep.subr.mxu0 0.0
    %2448 = vmatpush1.msra.mxu0 0.0
    %2449 = vmatprep.subr.mxu0 0.0
    %2450 = vmatpush1.msra.mxu0 0.0
    %2451 = vmatprep.mubr.f32.mxu0 0.0
    %2452 = vmatmul.mubr.f32.gmra.mrb[0].mxu0 %v1519
    %v2453 = vpop.f32.mrb[0].mxu0
    %v2454 = vadd.f32 0.0, %v2453
    %v2455 = vpop.f32.mrb[0].mxu0
    %2456 = vmatprep.mubr.f32.mxu0 0.0
    %2457 = vmatmul.mubr.f32.gmra.mrb[0].mxu0 %v1522
    %v2458 = vpop.f32.mrb[0].mxu0
    %v2459 = vadd.f32 0.0, %v2458
    %v2460 = vpop.f32.mrb[0].mxu0
    %2461 = vdwg.mxu0
    %v2463 = vsel %vm1599, %v2382, 0
    %2465 = vmatprep.subr.mxu0 0.0
    %2466 = vmatpush1.msra.mxu0 %v2454
    %2467 = vmatprep.subr.mxu0 0.0
    %2468 = vmatpush1.msra.mxu0 %v2459
    %2469 = vmatprep.subr.mxu0 0.0
    %2470 = vmatpush1.msra.mxu0 0.0
    %2471 = vmatprep.subr.mxu0 0.0
    %2472 = vmatpush1.msra.mxu0 0.0
    %2473 = vmatprep.subr.mxu0 0.0
    %2474 = vmatpush1.msra.mxu0 0.0
    %2475 = vmatprep.subr.mxu0 0.0
    %2476 = vmatpush1.msra.mxu0 0.0
    %2477 = vmatprep.subr.mxu0 0.0
    %2478 = vmatpush1.msra.mxu0 0.0
    %2479 = vmatprep.subr.mxu0 0.0
    %2480 = vmatpush1.msra.mxu0 0.0
    %2481 = vmatprep.subr.mxu0 0.0
    %2482 = vmatpush1.msra.mxu0 0.0
    %2483 = vmatprep.subr.mxu0 0.0
    %2484 = vmatpush1.msra.mxu0 0.0
    %2485 = vmatprep.subr.mxu0 0.0
    %2486 = vmatpush1.msra.mxu0 0.0
    %2487 = vmatprep.subr.mxu0 0.0
    %2488 = vmatpush1.msra.mxu0 0.0
    %2489 = vmatprep.subr.mxu0 0.0
    %2490 = vmatpush1.msra.mxu0 0.0
    %2491 = vmatprep.subr.mxu0 0.0
    %2492 = vmatpush1.msra.mxu0 0.0
    %2493 = vmatprep.subr.mxu0 0.0
    %2494 = vmatpush1.msra.mxu0 0.0
    %2495 = vmatprep.subr.mxu0 0.0
    %2496 = vmatpush1.msra.mxu0 0.0
    %2497 = vmatprep.subr.mxu0 0.0
    %2498 = vmatpush1.msra.mxu0 0.0
    %2499 = vmatprep.subr.mxu0 0.0
    %2500 = vmatpush1.msra.mxu0 0.0
    %2501 = vmatprep.subr.mxu0 0.0
    %2502 = vmatpush1.msra.mxu0 0.0
    %2503 = vmatprep.subr.mxu0 0.0
    %2504 = vmatpush1.msra.mxu0 0.0
    %2505 = vmatprep.subr.mxu0 0.0
    %2506 = vmatpush1.msra.mxu0 0.0
    %2507 = vmatprep.subr.mxu0 0.0
    %2508 = vmatpush1.msra.mxu0 0.0
    %2509 = vmatprep.subr.mxu0 0.0
    %2510 = vmatpush1.msra.mxu0 0.0
    %2511 = vmatprep.subr.mxu0 0.0
    %2512 = vmatpush1.msra.mxu0 0.0
    %2513 = vmatprep.subr.mxu0 0.0
    %2514 = vmatpush1.msra.mxu0 0.0
    %2515 = vmatprep.subr.mxu0 0.0
    %2516 = vmatpush1.msra.mxu0 0.0
    %2517 = vmatprep.subr.mxu0 0.0
    %2518 = vmatpush1.msra.mxu0 0.0
    %2519 = vmatprep.subr.mxu0 0.0
    %2520 = vmatpush1.msra.mxu0 0.0
    %2521 = vmatprep.subr.mxu0 0.0
    %2522 = vmatpush1.msra.mxu0 0.0
    %2523 = vmatprep.subr.mxu0 0.0
    %2524 = vmatpush1.msra.mxu0 0.0
    %2525 = vmatprep.subr.mxu0 0.0
    %2526 = vmatpush1.msra.mxu0 0.0
    %2527 = vmatprep.subr.mxu0 0.0
    %2528 = vmatpush1.msra.mxu0 0.0
    %2529 = vmatprep.mubr.f32.mxu0 0.0
    %2530 = vmatmul.mubr.f32.gmra.mrb[0].mxu0 %v2463
    %v2531 = vpop.f32.mrb[0].mxu0
    %v2532 = vadd.f32 0.0, %v2531
    %v2533 = vpop.f32.mrb[0].mxu0
    %2534 = vdwg.mxu0
    %2535 = vmatprep.subr.mxu0 0.0
    %2536 = vmatpush1.msra.mxu0 %v2383
    %2537 = vmatprep.subr.mxu0 0.0
    %2538 = vmatpush1.msra.mxu0 %v2384
    %2539 = vmatprep.subr.mxu0 0.0
    %2540 = vmatpush1.msra.mxu0 %v2385
    %2541 = vmatprep.subr.mxu0 0.0
    %2542 = vmatpush1.msra.mxu0 %v2386
    %2543 = vmatprep.subr.mxu0 0.0
    %2544 = vmatpush1.msra.mxu0 0.0
    %2545 = vmatprep.subr.mxu0 0.0
    %2546 = vmatpush1.msra.mxu0 0.0
    %2547 = vmatprep.subr.mxu0 0.0
    %2548 = vmatpush1.msra.mxu0 0.0
    %2549 = vmatprep.subr.mxu0 0.0
    %2550 = vmatpush1.msra.mxu0 0.0
    %2551 = vmatprep.subr.mxu0 0.0
    %2552 = vmatpush1.msra.mxu0 0.0
    %2553 = vmatprep.subr.mxu0 0.0
    %2554 = vmatpush1.msra.mxu0 0.0
    %2555 = vmatprep.subr.mxu0 0.0
    %2556 = vmatpush1.msra.mxu0 0.0
    %2557 = vmatprep.subr.mxu0 0.0
    %2558 = vmatpush1.msra.mxu0 0.0
    %2559 = vmatprep.subr.mxu0 0.0
    %2560 = vmatpush1.msra.mxu0 0.0
    %2561 = vmatprep.subr.mxu0 0.0
    %2562 = vmatpush1.msra.mxu0 0.0
    %2563 = vmatprep.subr.mxu0 0.0
    %2564 = vmatpush1.msra.mxu0 0.0
    %2565 = vmatprep.subr.mxu0 0.0
    %2566 = vmatpush1.msra.mxu0 0.0
    %2567 = vmatprep.subr.mxu0 0.0
    %2568 = vmatpush1.msra.mxu0 0.0
    %2569 = vmatprep.subr.mxu0 0.0
    %2570 = vmatpush1.msra.mxu0 0.0
    %2571 = vmatprep.subr.mxu0 0.0
    %2572 = vmatpush1.msra.mxu0 0.0
    %2573 = vmatprep.subr.mxu0 0.0
    %2574 = vmatpush1.msra.mxu0 0.0
    %2575 = vmatprep.subr.mxu0 0.0
    %2576 = vmatpush1.msra.mxu0 0.0
    %2577 = vmatprep.subr.mxu0 0.0
    %2578 = vmatpush1.msra.mxu0 0.0
    %2579 = vmatprep.subr.mxu0 0.0
    %2580 = vmatpush1.msra.mxu0 0.0
    %2581 = vmatprep.subr.mxu0 0.0
    %2582 = vmatpush1.msra.mxu0 0.0
    %2583 = vmatprep.subr.mxu0 0.0
    %2584 = vmatpush1.msra.mxu0 0.0
    %2585 = vmatprep.subr.mxu0 0.0
    %2586 = vmatpush1.msra.mxu0 0.0
    %2587 = vmatprep.subr.mxu0 0.0
    %2588 = vmatpush1.msra.mxu0 0.0
    %2589 = vmatprep.subr.mxu0 0.0
    %2590 = vmatpush1.msra.mxu0 0.0
    %2591 = vmatprep.subr.mxu0 0.0
    %2592 = vmatpush1.msra.mxu0 0.0
    %2593 = vmatprep.subr.mxu0 0.0
    %2594 = vmatpush1.msra.mxu0 0.0
    %2595 = vmatprep.subr.mxu0 0.0
    %2596 = vmatpush1.msra.mxu0 0.0
    %2597 = vmatprep.subr.mxu0 0.0
    %2598 = vmatpush1.msra.mxu0 0.0
    %2599 = vmatprep.mubr.f32.mxu0 0.0
    %2600 = vmatmul.mubr.f32.gmra.mrb[0].mxu0 %v1682
    %v2601 = vpop.f32.mrb[0].mxu0
    %v2602 = vadd.f32 0.0, %v2601
    %v2603 = vpop.f32.mrb[0].mxu0
    %2604 = vmatprep.mubr.f32.mxu0 0.0
    %2605 = vmatmul.mubr.f32.gmra.mrb[0].mxu0 %v1685
    %v2606 = vpop.f32.mrb[0].mxu0
    %v2607 = vadd.f32 0.0, %v2606
    %v2608 = vpop.f32.mrb[0].mxu0
    %2609 = vdwg.mxu0
    %2610 = vmatprep.subr.mxu0 0.0
    %2611 = vmatpush1.msra.mxu0 %v2602
    %2612 = vmatprep.subr.mxu0 0.0
    %2613 = vmatpush1.msra.mxu0 %v2607
    %2614 = vmatprep.subr.mxu0 0.0
    %2615 = vmatpush1.msra.mxu0 0.0
    %2616 = vmatprep.subr.mxu0 0.0
    %2617 = vmatpush1.msra.mxu0 0.0
    %2618 = vmatprep.subr.mxu0 0.0
    %2619 = vmatpush1.msra.mxu0 0.0
    %2620 = vmatprep.subr.mxu0 0.0
    %2621 = vmatpush1.msra.mxu0 0.0
    %2622 = vmatprep.subr.mxu0 0.0
    %2623 = vmatpush1.msra.mxu0 0.0
    %2624 = vmatprep.subr.mxu0 0.0
    %2625 = vmatpush1.msra.mxu0 0.0
    %2626 = vmatprep.subr.mxu0 0.0
    %2627 = vmatpush1.msra.mxu0 0.0
    %2628 = vmatprep.subr.mxu0 0.0
    %2629 = vmatpush1.msra.mxu0 0.0
    %2630 = vmatprep.subr.mxu0 0.0
    %2631 = vmatpush1.msra.mxu0 0.0
    %2632 = vmatprep.subr.mxu0 0.0
    %2633 = vmatpush1.msra.mxu0 0.0
    %2634 = vmatprep.subr.mxu0 0.0
    %2635 = vmatpush1.msra.mxu0 0.0
    %2636 = vmatprep.subr.mxu0 0.0
    %2637 = vmatpush1.msra.mxu0 0.0
    %2638 = vmatprep.subr.mxu0 0.0
    %2639 = vmatpush1.msra.mxu0 0.0
    %2640 = vmatprep.subr.mxu0 0.0
    %2641 = vmatpush1.msra.mxu0 0.0
    %2642 = vmatprep.subr.mxu0 0.0
    %2643 = vmatpush1.msra.mxu0 0.0
    %2644 = vmatprep.subr.mxu0 0.0
    %2645 = vmatpush1.msra.mxu0 0.0
    %2646 = vmatprep.subr.mxu0 0.0
    %2647 = vmatpush1.msra.mxu0 0.0
    %2648 = vmatprep.subr.mxu0 0.0
    %2649 = vmatpush1.msra.mxu0 0.0
    %2650 = vmatprep.subr.mxu0 0.0
    %2651 = vmatpush1.msra.mxu0 0.0
    %2652 = vmatprep.subr.mxu0 0.0
    %2653 = vmatpush1.msra.mxu0 0.0
    %2654 = vmatprep.subr.mxu0 0.0
    %2655 = vmatpush1.msra.mxu0 0.0
    %2656 = vmatprep.subr.mxu0 0.0
    %2657 = vmatpush1.msra.mxu0 0.0
    %2658 = vmatprep.subr.mxu0 0.0
    %2659 = vmatpush1.msra.mxu0 0.0
    %2660 = vmatprep.subr.mxu0 0.0
    %2661 = vmatpush1.msra.mxu0 0.0
    %2662 = vmatprep.subr.mxu0 0.0
    %2663 = vmatpush1.msra.mxu0 0.0
    %2664 = vmatprep.subr.mxu0 0.0
    %2665 = vmatpush1.msra.mxu0 0.0
    %2666 = vmatprep.subr.mxu0 0.0
    %2667 = vmatpush1.msra.mxu0 0.0
    %2668 = vmatprep.subr.mxu0 0.0
    %2669 = vmatpush1.msra.mxu0 0.0
    %2670 = vmatprep.subr.mxu0 0.0
    %2671 = vmatpush1.msra.mxu0 0.0
    %2672 = vmatprep.subr.mxu0 0.0
    %2673 = vmatpush1.msra.mxu0 0.0
    %2674 = vmatprep.mubr.f32.mxu0 0.0
    %2675 = vmatmul.mubr.f32.gmra.mrb[0].mxu0 %v2463
    %v2676 = vpop.f32.mrb[0].mxu0
    %v2677 = vadd.f32 0.0, %v2676
    %v2678 = vpop.f32.mrb[0].mxu0
    %2679 = vdwg.mxu0
    %v2680 = vld [vmem:[%s4] sm:$0xff]
    %v2681 = vld [vmem:[%s7] sm:$0xff]
    %v2682 = vld [vmem:[%s7 + $0x8] sm:$0xff]
    %v2684 = vsel %vm1599, %v2532, 0
    %2686 = vmatprep.subr.mxu0 0.0
    %2687 = vmatpush1.msra.mxu0 %v2681
    %2688 = vmatprep.subr.mxu0 0.0
    %2689 = vmatpush1.msra.mxu0 %v2682
    %2690 = vmatprep.subr.mxu0 0.0
    %2691 = vmatpush1.msra.mxu0 0.0
    %2692 = vmatprep.subr.mxu0 0.0
    %2693 = vmatpush1.msra.mxu0 0.0
    %2694 = vmatprep.subr.mxu0 0.0
    %2695 = vmatpush1.msra.mxu0 0.0
    %2696 = vmatprep.subr.mxu0 0.0
    %2697 = vmatpush1.msra.mxu0 0.0
    %2698 = vmatprep.subr.mxu0 0.0
    %2699 = vmatpush1.msra.mxu0 0.0
    %2700 = vmatprep.subr.mxu0 0.0
    %2701 = vmatpush1.msra.mxu0 0.0
    %2702 = vmatprep.subr.mxu0 0.0
    %2703 = vmatpush1.msra.mxu0 0.0
    %2704 = vmatprep.subr.mxu0 0.0
    %2705 = vmatpush1.msra.mxu0 0.0
    %2706 = vmatprep.subr.mxu0 0.0
    %2707 = vmatpush1.msra.mxu0 0.0
    %2708 = vmatprep.subr.mxu0 0.0
    %2709 = vmatpush1.msra.mxu0 0.0
    %2710 = vmatprep.subr.mxu0 0.0
    %2711 = vmatpush1.msra.mxu0 0.0
    %2712 = vmatprep.subr.mxu0 0.0
    %2713 = vmatpush1.msra.mxu0 0.0
    %2714 = vmatprep.subr.mxu0 0.0
    %2715 = vmatpush1.msra.mxu0 0.0
    %2716 = vmatprep.subr.mxu0 0.0
    %2717 = vmatpush1.msra.mxu0 0.0
    %2718 = vmatprep.subr.mxu0 0.0
    %2719 = vmatpush1.msra.mxu0 0.0
    %2720 = vmatprep.subr.mxu0 0.0
    %2721 = vmatpush1.msra.mxu0 0.0
    %2722 = vmatprep.subr.mxu0 0.0
    %2723 = vmatpush1.msra.mxu0 0.0
    %2724 = vmatprep.subr.mxu0 0.0
    %2725 = vmatpush1.msra.mxu0 0.0
    %2726 = vmatprep.subr.mxu0 0.0
    %2727 = vmatpush1.msra.mxu0 0.0
    %2728 = vmatprep.subr.mxu0 0.0
    %2729 = vmatpush1.msra.mxu0 0.0
    %2730 = vmatprep.subr.mxu0 0.0
    %2731 = vmatpush1.msra.mxu0 0.0
    %2732 = vmatprep.subr.mxu0 0.0
    %2733 = vmatpush1.msra.mxu0 0.0
    %2734 = vmatprep.subr.mxu0 0.0
    %2735 = vmatpush1.msra.mxu0 0.0
    %2736 = vmatprep.subr.mxu0 0.0
    %2737 = vmatpush1.msra.mxu0 0.0
    %2738 = vmatprep.subr.mxu0 0.0
    %2739 = vmatpush1.msra.mxu0 0.0
    %2740 = vmatprep.subr.mxu0 0.0
    %2741 = vmatpush1.msra.mxu0 0.0
    %2742 = vmatprep.subr.mxu0 0.0
    %2743 = vmatpush1.msra.mxu0 0.0
    %2744 = vmatprep.subr.mxu0 0.0
    %2745 = vmatpush1.msra.mxu0 0.0
    %2746 = vmatprep.subr.mxu0 0.0
    %2747 = vmatpush1.msra.mxu0 0.0
    %2748 = vmatprep.subr.mxu0 0.0
    %2749 = vmatpush1.msra.mxu0 0.0
    %2750 = vmatprep.mubr.f32.mxu0 0.0
    %2751 = vmatmul.mubr.f32.gmra.mrb[0].mxu0 %v2684
    %v2752 = vpop.f32.mrb[0].mxu0
    %v2753 = vadd.f32 0.0, %v2752
    %v2754 = vpop.f32.mrb[0].mxu0
    %2755 = vdwg.mxu0
    %vm2756 = vcmask 64512
    %v2758 = vsel %vm2756, %v2680, 0
    %2760 = vmatprep.subr.mxu0 0.0
    %2761 = vmatpush1.msra.mxu0 %v2753
    %2762 = vmatprep.subr.mxu0 0.0
    %2763 = vmatpush1.msra.mxu0 0.0
    %2764 = vmatprep.subr.mxu0 0.0
    %2765 = vmatpush1.msra.mxu0 0.0
    %2766 = vmatprep.subr.mxu0 0.0
    %2767 = vmatpush1.msra.mxu0 0.0
    %2768 = vmatprep.subr.mxu0 0.0
    %2769 = vmatpush1.msra.mxu0 0.0
    %2770 = vmatprep.subr.mxu0 0.0
    %2771 = vmatpush1.msra.mxu0 0.0
    %2772 = vmatprep.subr.mxu0 0.0
    %2773 = vmatpush1.msra.mxu0 0.0
    %2774 = vmatprep.subr.mxu0 0.0
    %2775 = vmatpush1.msra.mxu0 0.0
    %2776 = vmatprep.subr.mxu0 0.0
    %2777 = vmatpush1.msra.mxu0 0.0
    %2778 = vmatprep.subr.mxu0 0.0
    %2779 = vmatpush1.msra.mxu0 0.0
    %2780 = vmatprep.subr.mxu0 0.0
    %2781 = vmatpush1.msra.mxu0 0.0
    %2782 = vmatprep.subr.mxu0 0.0
    %2783 = vmatpush1.msra.mxu0 0.0
    %2784 = vmatprep.subr.mxu0 0.0
    %2785 = vmatpush1.msra.mxu0 0.0
    %2786 = vmatprep.subr.mxu0 0.0
    %2787 = vmatpush1.msra.mxu0 0.0
    %2788 = vmatprep.subr.mxu0 0.0
    %2789 = vmatpush1.msra.mxu0 0.0
    %2790 = vmatprep.subr.mxu0 0.0
    %2791 = vmatpush1.msra.mxu0 0.0
    %2792 = vmatprep.subr.mxu0 0.0
    %2793 = vmatpush1.msra.mxu0 0.0
    %2794 = vmatprep.subr.mxu0 0.0
    %2795 = vmatpush1.msra.mxu0 0.0
    %2796 = vmatprep.subr.mxu0 0.0
    %2797 = vmatpush1.msra.mxu0 0.0
    %2798 = vmatprep.subr.mxu0 0.0
    %2799 = vmatpush1.msra.mxu0 0.0
    %2800 = vmatprep.subr.mxu0 0.0
    %2801 = vmatpush1.msra.mxu0 0.0
    %2802 = vmatprep.subr.mxu0 0.0
    %2803 = vmatpush1.msra.mxu0 0.0
    %2804 = vmatprep.subr.mxu0 0.0
    %2805 = vmatpush1.msra.mxu0 0.0
    %2806 = vmatprep.subr.mxu0 0.0
    %2807 = vmatpush1.msra.mxu0 0.0
    %2808 = vmatprep.subr.mxu0 0.0
    %2809 = vmatpush1.msra.mxu0 0.0
    %2810 = vmatprep.subr.mxu0 0.0
    %2811 = vmatpush1.msra.mxu0 0.0
    %2812 = vmatprep.subr.mxu0 0.0
    %2813 = vmatpush1.msra.mxu0 0.0
    %2814 = vmatprep.subr.mxu0 0.0
    %2815 = vmatpush1.msra.mxu0 0.0
    %2816 = vmatprep.subr.mxu0 0.0
    %2817 = vmatpush1.msra.mxu0 0.0
    %2818 = vmatprep.subr.mxu0 0.0
    %2819 = vmatpush1.msra.mxu0 0.0
    %2820 = vmatprep.subr.mxu0 0.0
    %2821 = vmatpush1.msra.mxu0 0.0
    %2822 = vmatprep.subr.mxu0 0.0
    %2823 = vmatpush1.msra.mxu0 0.0
    %2824 = vmatprep.mubr.f32.mxu0 0.0
    %2825 = vmatmul.mubr.f32.gmra.mrb[0].mxu0 %v2758
    %v2826 = vpop.f32.mrb[0].mxu0
    %v2827 = vadd.f32 0.0, %v2826
    %v2828 = vpop.f32.mrb[0].mxu0
    %2829 = vdwg.mxu0
    %v2831 = vsel %vm1599, %v2677, 0
    %2833 = vmatprep.subr.mxu0 0.0
    %2834 = vmatpush1.msra.mxu0 %v2681
    %2835 = vmatprep.subr.mxu0 0.0
    %2836 = vmatpush1.msra.mxu0 %v2682
    %2837 = vmatprep.subr.mxu0 0.0
    %2838 = vmatpush1.msra.mxu0 0.0
    %2839 = vmatprep.subr.mxu0 0.0
    %2840 = vmatpush1.msra.mxu0 0.0
    %2841 = vmatprep.subr.mxu0 0.0
    %2842 = vmatpush1.msra.mxu0 0.0
    %2843 = vmatprep.subr.mxu0 0.0
    %2844 = vmatpush1.msra.mxu0 0.0
    %2845 = vmatprep.subr.mxu0 0.0
    %2846 = vmatpush1.msra.mxu0 0.0
    %2847 = vmatprep.subr.mxu0 0.0
    %2848 = vmatpush1.msra.mxu0 0.0
    %2849 = vmatprep.subr.mxu0 0.0
    %2850 = vmatpush1.msra.mxu0 0.0
    %2851 = vmatprep.subr.mxu0 0.0
    %2852 = vmatpush1.msra.mxu0 0.0
    %2853 = vmatprep.subr.mxu0 0.0
    %2854 = vmatpush1.msra.mxu0 0.0
    %2855 = vmatprep.subr.mxu0 0.0
    %2856 = vmatpush1.msra.mxu0 0.0
    %2857 = vmatprep.subr.mxu0 0.0
    %2858 = vmatpush1.msra.mxu0 0.0
    %2859 = vmatprep.subr.mxu0 0.0
    %2860 = vmatpush1.msra.mxu0 0.0
    %2861 = vmatprep.subr.mxu0 0.0
    %2862 = vmatpush1.msra.mxu0 0.0
    %2863 = vmatprep.subr.mxu0 0.0
    %2864 = vmatpush1.msra.mxu0 0.0
    %2865 = vmatprep.subr.mxu0 0.0
    %2866 = vmatpush1.msra.mxu0 0.0
    %2867 = vmatprep.subr.mxu0 0.0
    %2868 = vmatpush1.msra.mxu0 0.0
    %2869 = vmatprep.subr.mxu0 0.0
    %2870 = vmatpush1.msra.mxu0 0.0
    %2871 = vmatprep.subr.mxu0 0.0
    %2872 = vmatpush1.msra.mxu0 0.0
    %2873 = vmatprep.subr.mxu0 0.0
    %2874 = vmatpush1.msra.mxu0 0.0
    %2875 = vmatprep.subr.mxu0 0.0
    %2876 = vmatpush1.msra.mxu0 0.0
    %2877 = vmatprep.subr.mxu0 0.0
    %2878 = vmatpush1.msra.mxu0 0.0
    %2879 = vmatprep.subr.mxu0 0.0
    %2880 = vmatpush1.msra.mxu0 0.0
    %2881 = vmatprep.subr.mxu0 0.0
    %2882 = vmatpush1.msra.mxu0 0.0
    %2883 = vmatprep.subr.mxu0 0.0
    %2884 = vmatpush1.msra.mxu0 0.0
    %2885 = vmatprep.subr.mxu0 0.0
    %2886 = vmatpush1.msra.mxu0 0.0
    %2887 = vmatprep.subr.mxu0 0.0
    %2888 = vmatpush1.msra.mxu0 0.0
    %2889 = vmatprep.subr.mxu0 0.0
    %2890 = vmatpush1.msra.mxu0 0.0
    %2891 = vmatprep.subr.mxu0 0.0
    %2892 = vmatpush1.msra.mxu0 0.0
    %2893 = vmatprep.subr.mxu0 0.0
    %2894 = vmatpush1.msra.mxu0 0.0
    %2895 = vmatprep.subr.mxu0 0.0
    %2896 = vmatpush1.msra.mxu0 0.0
    %2897 = vmatprep.mubr.f32.mxu0 0.0
    %2898 = vmatmul.mubr.f32.gmra.mrb[0].mxu0 %v2831
    %v2899 = vpop.f32.mrb[0].mxu0
    %v2900 = vadd.f32 0.0, %v2899
    %v2901 = vpop.f32.mrb[0].mxu0
    %2902 = vdwg.mxu0
    %2903 = vmatprep.subr.mxu0 0.0
    %2904 = vmatpush1.msra.mxu0 %v2900
    %2905 = vmatprep.subr.mxu0 0.0
    %2906 = vmatpush1.msra.mxu0 0.0
    %2907 = vmatprep.subr.mxu0 0.0
    %2908 = vmatpush1.msra.mxu0 0.0
    %2909 = vmatprep.subr.mxu0 0.0
    %2910 = vmatpush1.msra.mxu0 0.0
    %2911 = vmatprep.subr.mxu0 0.0
    %2912 = vmatpush1.msra.mxu0 0.0
    %2913 = vmatprep.subr.mxu0 0.0
    %2914 = vmatpush1.msra.mxu0 0.0
    %2915 = vmatprep.subr.mxu0 0.0
    %2916 = vmatpush1.msra.mxu0 0.0
    %2917 = vmatprep.subr.mxu0 0.0
    %2918 = vmatpush1.msra.mxu0 0.0
    %2919 = vmatprep.subr.mxu0 0.0
    %2920 = vmatpush1.msra.mxu0 0.0
    %2921 = vmatprep.subr.mxu0 0.0
    %2922 = vmatpush1.msra.mxu0 0.0
    %2923 = vmatprep.subr.mxu0 0.0
    %2924 = vmatpush1.msra.mxu0 0.0
    %2925 = vmatprep.subr.mxu0 0.0
    %2926 = vmatpush1.msra.mxu0 0.0
    %2927 = vmatprep.subr.mxu0 0.0
    %2928 = vmatpush1.msra.mxu0 0.0
    %2929 = vmatprep.subr.mxu0 0.0
    %2930 = vmatpush1.msra.mxu0 0.0
    %2931 = vmatprep.subr.mxu0 0.0
    %2932 = vmatpush1.msra.mxu0 0.0
    %2933 = vmatprep.subr.mxu0 0.0
    %2934 = vmatpush1.msra.mxu0 0.0
    %2935 = vmatprep.subr.mxu0 0.0
    %2936 = vmatpush1.msra.mxu0 0.0
    %2937 = vmatprep.subr.mxu0 0.0
    %2938 = vmatpush1.msra.mxu0 0.0
    %2939 = vmatprep.subr.mxu0 0.0
    %2940 = vmatpush1.msra.mxu0 0.0
    %2941 = vmatprep.subr.mxu0 0.0
    %2942 = vmatpush1.msra.mxu0 0.0
    %2943 = vmatprep.subr.mxu0 0.0
    %2944 = vmatpush1.msra.mxu0 0.0
    %2945 = vmatprep.subr.mxu0 0.0
    %2946 = vmatpush1.msra.mxu0 0.0
    %2947 = vmatprep.subr.mxu0 0.0
    %2948 = vmatpush1.msra.mxu0 0.0
    %2949 = vmatprep.subr.mxu0 0.0
    %2950 = vmatpush1.msra.mxu0 0.0
    %2951 = vmatprep.subr.mxu0 0.0
    %2952 = vmatpush1.msra.mxu0 0.0
    %2953 = vmatprep.subr.mxu0 0.0
    %2954 = vmatpush1.msra.mxu0 0.0
    %2955 = vmatprep.subr.mxu0 0.0
    %2956 = vmatpush1.msra.mxu0 0.0
    %2957 = vmatprep.subr.mxu0 0.0
    %2958 = vmatpush1.msra.mxu0 0.0
    %2959 = vmatprep.subr.mxu0 0.0
    %2960 = vmatpush1.msra.mxu0 0.0
    %2961 = vmatprep.subr.mxu0 0.0
    %2962 = vmatpush1.msra.mxu0 0.0
    %2963 = vmatprep.subr.mxu0 0.0
    %2964 = vmatpush1.msra.mxu0 0.0
    %2965 = vmatprep.subr.mxu0 0.0
    %2966 = vmatpush1.msra.mxu0 0.0
    %2967 = vmatprep.mubr.f32.mxu0 0.0
    %2968 = vmatmul.mubr.f32.gmra.mrb[0].mxu0 %v2758
    %v2969 = vpop.f32.mrb[0].mxu0
    %v2970 = vadd.f32 0.0, %v2969
    %v2971 = vpop.f32.mrb[0].mxu0
    %2972 = vdwg.mxu0
    %v2973 = vmul.f32 %v2532, %v2532
    %v2975 = vsel %vm1599, %v2973, 0
    %2977 = vmatprep.subr.mxu0 0.0
    %2978 = vmatpush1.msra.mxu0 %v2681
    %2979 = vmatprep.subr.mxu0 0.0
    %2980 = vmatpush1.msra.mxu0 %v2682
    %2981 = vmatprep.subr.mxu0 0.0
    %2982 = vmatpush1.msra.mxu0 0.0
    %2983 = vmatprep.subr.mxu0 0.0
    %2984 = vmatpush1.msra.mxu0 0.0
    %2985 = vmatprep.subr.mxu0 0.0
    %2986 = vmatpush1.msra.mxu0 0.0
    %2987 = vmatprep.subr.mxu0 0.0
    %2988 = vmatpush1.msra.mxu0 0.0
    %2989 = vmatprep.subr.mxu0 0.0
    %2990 = vmatpush1.msra.mxu0 0.0
    %2991 = vmatprep.subr.mxu0 0.0
    %2992 = vmatpush1.msra.mxu0 0.0
    %2993 = vmatprep.subr.mxu0 0.0
    %2994 = vmatpush1.msra.mxu0 0.0
    %2995 = vmatprep.subr.mxu0 0.0
    %2996 = vmatpush1.msra.mxu0 0.0
    %2997 = vmatprep.subr.mxu0 0.0
    %2998 = vmatpush1.msra.mxu0 0.0
    %2999 = vmatprep.subr.mxu0 0.0
    %3000 = vmatpush1.msra.mxu0 0.0
    %3001 = vmatprep.subr.mxu0 0.0
    %3002 = vmatpush1.msra.mxu0 0.0
    %3003 = vmatprep.subr.mxu0 0.0
    %3004 = vmatpush1.msra.mxu0 0.0
    %3005 = vmatprep.subr.mxu0 0.0
    %3006 = vmatpush1.msra.mxu0 0.0
    %3007 = vmatprep.subr.mxu0 0.0
    %3008 = vmatpush1.msra.mxu0 0.0
    %3009 = vmatprep.subr.mxu0 0.0
    %3010 = vmatpush1.msra.mxu0 0.0
    %3011 = vmatprep.subr.mxu0 0.0
    %3012 = vmatpush1.msra.mxu0 0.0
    %3013 = vmatprep.subr.mxu0 0.0
    %3014 = vmatpush1.msra.mxu0 0.0
    %3015 = vmatprep.subr.mxu0 0.0
    %3016 = vmatpush1.msra.mxu0 0.0
    %3017 = vmatprep.subr.mxu0 0.0
    %3018 = vmatpush1.msra.mxu0 0.0
    %3019 = vmatprep.subr.mxu0 0.0
    %3020 = vmatpush1.msra.mxu0 0.0
    %3021 = vmatprep.subr.mxu0 0.0
    %3022 = vmatpush1.msra.mxu0 0.0
    %3023 = vmatprep.subr.mxu0 0.0
    %3024 = vmatpush1.msra.mxu0 0.0
    %3025 = vmatprep.subr.mxu0 0.0
    %3026 = vmatpush1.msra.mxu0 0.0
    %3027 = vmatprep.subr.mxu0 0.0
    %3028 = vmatpush1.msra.mxu0 0.0
    %3029 = vmatprep.subr.mxu0 0.0
    %3030 = vmatpush1.msra.mxu0 0.0
    %3031 = vmatprep.subr.mxu0 0.0
    %3032 = vmatpush1.msra.mxu0 0.0
    %3033 = vmatprep.subr.mxu0 0.0
    %3034 = vmatpush1.msra.mxu0 0.0
    %3035 = vmatprep.subr.mxu0 0.0
    %3036 = vmatpush1.msra.mxu0 0.0
    %3037 = vmatprep.subr.mxu0 0.0
    %3038 = vmatpush1.msra.mxu0 0.0
    %3039 = vmatprep.subr.mxu0 0.0
    %3040 = vmatpush1.msra.mxu0 0.0
    %3041 = vmatprep.mubr.f32.mxu0 0.0
    %3042 = vmatmul.mubr.f32.gmra.mrb[0].mxu0 %v2975
    %v3043 = vpop.f32.mrb[0].mxu0
    %v3044 = vadd.f32 0.0, %v3043
    %v3045 = vpop.f32.mrb[0].mxu0
    %3046 = vdwg.mxu0
    %3047 = vmatprep.subr.mxu0 0.0
    %3048 = vmatpush1.msra.mxu0 %v3044
    %3049 = vmatprep.subr.mxu0 0.0
    %3050 = vmatpush1.msra.mxu0 0.0
    %3051 = vmatprep.subr.mxu0 0.0
    %3052 = vmatpush1.msra.mxu0 0.0
    %3053 = vmatprep.subr.mxu0 0.0
    %3054 = vmatpush1.msra.mxu0 0.0
    %3055 = vmatprep.subr.mxu0 0.0
    %3056 = vmatpush1.msra.mxu0 0.0
    %3057 = vmatprep.subr.mxu0 0.0
    %3058 = vmatpush1.msra.mxu0 0.0
    %3059 = vmatprep.subr.mxu0 0.0
    %3060 = vmatpush1.msra.mxu0 0.0
    %3061 = vmatprep.subr.mxu0 0.0
    %3062 = vmatpush1.msra.mxu0 0.0
    %3063 = vmatprep.subr.mxu0 0.0
    %3064 = vmatpush1.msra.mxu0 0.0
    %3065 = vmatprep.subr.mxu0 0.0
    %3066 = vmatpush1.msra.mxu0 0.0
    %3067 = vmatprep.subr.mxu0 0.0
    %3068 = vmatpush1.msra.mxu0 0.0
    %3069 = vmatprep.subr.mxu0 0.0
    %3070 = vmatpush1.msra.mxu0 0.0
    %3071 = vmatprep.subr.mxu0 0.0
    %3072 = vmatpush1.msra.mxu0 0.0
    %3073 = vmatprep.subr.mxu0 0.0
    %3074 = vmatpush1.msra.mxu0 0.0
    %3075 = vmatprep.subr.mxu0 0.0
    %3076 = vmatpush1.msra.mxu0 0.0
    %3077 = vmatprep.subr.mxu0 0.0
    %3078 = vmatpush1.msra.mxu0 0.0
    %3079 = vmatprep.subr.mxu0 0.0
    %3080 = vmatpush1.msra.mxu0 0.0
    %3081 = vmatprep.subr.mxu0 0.0
    %3082 = vmatpush1.msra.mxu0 0.0
    %3083 = vmatprep.subr.mxu0 0.0
    %3084 = vmatpush1.msra.mxu0 0.0
    %3085 = vmatprep.subr.mxu0 0.0
    %3086 = vmatpush1.msra.mxu0 0.0
    %3087 = vmatprep.subr.mxu0 0.0
    %3088 = vmatpush1.msra.mxu0 0.0
    %3089 = vmatprep.subr.mxu0 0.0
    %3090 = vmatpush1.msra.mxu0 0.0
    %3091 = vmatprep.subr.mxu0 0.0
    %3092 = vmatpush1.msra.mxu0 0.0
    %3093 = vmatprep.subr.mxu0 0.0
    %3094 = vmatpush1.msra.mxu0 0.0
    %3095 = vmatprep.subr.mxu0 0.0
    %3096 = vmatpush1.msra.mxu0 0.0
    %3097 = vmatprep.subr.mxu0 0.0
    %3098 = vmatpush1.msra.mxu0 0.0
    %3099 = vmatprep.subr.mxu0 0.0
    %3100 = vmatpush1.msra.mxu0 0.0
    %3101 = vmatprep.subr.mxu0 0.0
    %3102 = vmatpush1.msra.mxu0 0.0
    %3103 = vmatprep.subr.mxu0 0.0
    %3104 = vmatpush1.msra.mxu0 0.0
    %3105 = vmatprep.subr.mxu0 0.0
    %3106 = vmatpush1.msra.mxu0 0.0
    %3107 = vmatprep.subr.mxu0 0.0
    %3108 = vmatpush1.msra.mxu0 0.0
    %3109 = vmatprep.subr.mxu0 0.0
    %3110 = vmatpush1.msra.mxu0 0.0
    %3111 = vmatprep.mubr.f32.mxu0 0.0
    %3112 = vmatmul.mubr.f32.gmra.mrb[0].mxu0 %v2758
    %v3113 = vpop.f32.mrb[0].mxu0
    %v3114 = vadd.f32 0.0, %v3113
    %v3115 = vpop.f32.mrb[0].mxu0
    %3116 = vdwg.mxu0
    %v3117 = vmul.f32 %v2677, %v2677
    %v3119 = vsel %vm1599, %v3117, 0
    %3121 = vmatprep.subr.mxu0 0.0
    %3122 = vmatpush1.msra.mxu0 %v2681
    %3123 = vmatprep.subr.mxu0 0.0
    %3124 = vmatpush1.msra.mxu0 %v2682
    %3125 = vmatprep.subr.mxu0 0.0
    %3126 = vmatpush1.msra.mxu0 0.0
    %3127 = vmatprep.subr.mxu0 0.0
    %3128 = vmatpush1.msra.mxu0 0.0
    %3129 = vmatprep.subr.mxu0 0.0
    %3130 = vmatpush1.msra.mxu0 0.0
    %3131 = vmatprep.subr.mxu0 0.0
    %3132 = vmatpush1.msra.mxu0 0.0
    %3133 = vmatprep.subr.mxu0 0.0
    %3134 = vmatpush1.msra.mxu0 0.0
    %3135 = vmatprep.subr.mxu0 0.0
    %3136 = vmatpush1.msra.mxu0 0.0
    %3137 = vmatprep.subr.mxu0 0.0
    %3138 = vmatpush1.msra.mxu0 0.0
    %3139 = vmatprep.subr.mxu0 0.0
    %3140 = vmatpush1.msra.mxu0 0.0
    %3141 = vmatprep.subr.mxu0 0.0
    %3142 = vmatpush1.msra.mxu0 0.0
    %3143 = vmatprep.subr.mxu0 0.0
    %3144 = vmatpush1.msra.mxu0 0.0
    %3145 = vmatprep.subr.mxu0 0.0
    %3146 = vmatpush1.msra.mxu0 0.0
    %3147 = vmatprep.subr.mxu0 0.0
    %3148 = vmatpush1.msra.mxu0 0.0
    %3149 = vmatprep.subr.mxu0 0.0
    %3150 = vmatpush1.msra.mxu0 0.0
    %3151 = vmatprep.subr.mxu0 0.0
    %3152 = vmatpush1.msra.mxu0 0.0
    %3153 = vmatprep.subr.mxu0 0.0
    %3154 = vmatpush1.msra.mxu0 0.0
    %3155 = vmatprep.subr.mxu0 0.0
    %3156 = vmatpush1.msra.mxu0 0.0
    %3157 = vmatprep.subr.mxu0 0.0
    %3158 = vmatpush1.msra.mxu0 0.0
    %3159 = vmatprep.subr.mxu0 0.0
    %3160 = vmatpush1.msra.mxu0 0.0
    %3161 = vmatprep.subr.mxu0 0.0
    %3162 = vmatpush1.msra.mxu0 0.0
    %3163 = vmatprep.subr.mxu0 0.0
    %3164 = vmatpush1.msra.mxu0 0.0
    %3165 = vmatprep.subr.mxu0 0.0
    %3166 = vmatpush1.msra.mxu0 0.0
    %3167 = vmatprep.subr.mxu0 0.0
    %3168 = vmatpush1.msra.mxu0 0.0
    %3169 = vmatprep.subr.mxu0 0.0
    %3170 = vmatpush1.msra.mxu0 0.0
    %3171 = vmatprep.subr.mxu0 0.0
    %3172 = vmatpush1.msra.mxu0 0.0
    %3173 = vmatprep.subr.mxu0 0.0
    %3174 = vmatpush1.msra.mxu0 0.0
    %3175 = vmatprep.subr.mxu0 0.0
    %3176 = vmatpush1.msra.mxu0 0.0
    %3177 = vmatprep.subr.mxu0 0.0
    %3178 = vmatpush1.msra.mxu0 0.0
    %3179 = vmatprep.subr.mxu0 0.0
    %3180 = vmatpush1.msra.mxu0 0.0
    %3181 = vmatprep.subr.mxu0 0.0
    %3182 = vmatpush1.msra.mxu0 0.0
    %3183 = vmatprep.subr.mxu0 0.0
    %3184 = vmatpush1.msra.mxu0 0.0
    %3185 = vmatprep.mubr.f32.mxu0 0.0
    %3186 = vmatmul.mubr.f32.gmra.mrb[0].mxu0 %v3119
    %v3187 = vpop.f32.mrb[0].mxu0
    %v3188 = vadd.f32 0.0, %v3187
    %v3189 = vpop.f32.mrb[0].mxu0
    %3190 = vdwg.mxu0
    %3191 = vmatprep.subr.mxu0 0.0
    %3192 = vmatpush1.msra.mxu0 %v3188
    %3193 = vmatprep.subr.mxu0 0.0
    %3194 = vmatpush1.msra.mxu0 0.0
    %3195 = vmatprep.subr.mxu0 0.0
    %3196 = vmatpush1.msra.mxu0 0.0
    %3197 = vmatprep.subr.mxu0 0.0
    %3198 = vmatpush1.msra.mxu0 0.0
    %3199 = vmatprep.subr.mxu0 0.0
    %3200 = vmatpush1.msra.mxu0 0.0
    %3201 = vmatprep.subr.mxu0 0.0
    %3202 = vmatpush1.msra.mxu0 0.0
    %3203 = vmatprep.subr.mxu0 0.0
    %3204 = vmatpush1.msra.mxu0 0.0
    %3205 = vmatprep.subr.mxu0 0.0
    %3206 = vmatpush1.msra.mxu0 0.0
    %3207 = vmatprep.subr.mxu0 0.0
    %3208 = vmatpush1.msra.mxu0 0.0
    %3209 = vmatprep.subr.mxu0 0.0
    %3210 = vmatpush1.msra.mxu0 0.0
    %3211 = vmatprep.subr.mxu0 0.0
    %3212 = vmatpush1.msra.mxu0 0.0
    %3213 = vmatprep.subr.mxu0 0.0
    %3214 = vmatpush1.msra.mxu0 0.0
    %3215 = vmatprep.subr.mxu0 0.0
    %3216 = vmatpush1.msra.mxu0 0.0
    %3217 = vmatprep.subr.mxu0 0.0
    %3218 = vmatpush1.msra.mxu0 0.0
    %3219 = vmatprep.subr.mxu0 0.0
    %3220 = vmatpush1.msra.mxu0 0.0
    %3221 = vmatprep.subr.mxu0 0.0
    %3222 = vmatpush1.msra.mxu0 0.0
    %3223 = vmatprep.subr.mxu0 0.0
    %3224 = vmatpush1.msra.mxu0 0.0
    %3225 = vmatprep.subr.mxu0 0.0
    %3226 = vmatpush1.msra.mxu0 0.0
    %3227 = vmatprep.subr.mxu0 0.0
    %3228 = vmatpush1.msra.mxu0 0.0
    %3229 = vmatprep.subr.mxu0 0.0
    %3230 = vmatpush1.msra.mxu0 0.0
    %3231 = vmatprep.subr.mxu0 0.0
    %3232 = vmatpush1.msra.mxu0 0.0
    %3233 = vmatprep.subr.mxu0 0.0
    %3234 = vmatpush1.msra.mxu0 0.0
    %3235 = vmatprep.subr.mxu0 0.0
    %3236 = vmatpush1.msra.mxu0 0.0
    %3237 = vmatprep.subr.mxu0 0.0
    %3238 = vmatpush1.msra.mxu0 0.0
    %3239 = vmatprep.subr.mxu0 0.0
    %3240 = vmatpush1.msra.mxu0 0.0
    %3241 = vmatprep.subr.mxu0 0.0
    %3242 = vmatpush1.msra.mxu0 0.0
    %3243 = vmatprep.subr.mxu0 0.0
    %3244 = vmatpush1.msra.mxu0 0.0
    %3245 = vmatprep.subr.mxu0 0.0
    %3246 = vmatpush1.msra.mxu0 0.0
    %3247 = vmatprep.subr.mxu0 0.0
    %3248 = vmatpush1.msra.mxu0 0.0
    %3249 = vmatprep.subr.mxu0 0.0
    %3250 = vmatpush1.msra.mxu0 0.0
    %3251 = vmatprep.subr.mxu0 0.0
    %3252 = vmatpush1.msra.mxu0 0.0
    %3253 = vmatprep.subr.mxu0 0.0
    %3254 = vmatpush1.msra.mxu0 0.0
    %3255 = vmatprep.mubr.f32.mxu0 0.0
    %3256 = vmatmul.mubr.f32.gmra.mrb[0].mxu0 %v2758
    %v3257 = vpop.f32.mrb[0].mxu0
    %v3258 = vadd.f32 0.0, %v3257
    %v3259 = vpop.f32.mrb[0].mxu0
    %3260 = vdwg.mxu0
    %v3261 = vmul.f32 %v2532, %v2677
    %v3263 = vsel %vm1599, %v3261, 0
    %3265 = vmatprep.subr.mxu0 0.0
    %3266 = vmatpush1.msra.mxu0 %v2681
    %3267 = vmatprep.subr.mxu0 0.0
    %3268 = vmatpush1.msra.mxu0 %v2682
    %3269 = vmatprep.subr.mxu0 0.0
    %3270 = vmatpush1.msra.mxu0 0.0
    %3271 = vmatprep.subr.mxu0 0.0
    %3272 = vmatpush1.msra.mxu0 0.0
    %3273 = vmatprep.subr.mxu0 0.0
    %3274 = vmatpush1.msra.mxu0 0.0
    %3275 = vmatprep.subr.mxu0 0.0
    %3276 = vmatpush1.msra.mxu0 0.0
    %3277 = vmatprep.subr.mxu0 0.0
    %3278 = vmatpush1.msra.mxu0 0.0
    %3279 = vmatprep.subr.mxu0 0.0
    %3280 = vmatpush1.msra.mxu0 0.0
    %3281 = vmatprep.subr.mxu0 0.0
    %3282 = vmatpush1.msra.mxu0 0.0
    %3283 = vmatprep.subr.mxu0 0.0
    %3284 = vmatpush1.msra.mxu0 0.0
    %3285 = vmatprep.subr.mxu0 0.0
    %3286 = vmatpush1.msra.mxu0 0.0
    %3287 = vmatprep.subr.mxu0 0.0
    %3288 = vmatpush1.msra.mxu0 0.0
    %3289 = vmatprep.subr.mxu0 0.0
    %3290 = vmatpush1.msra.mxu0 0.0
    %3291 = vmatprep.subr.mxu0 0.0
    %3292 = vmatpush1.msra.mxu0 0.0
    %3293 = vmatprep.subr.mxu0 0.0
    %3294 = vmatpush1.msra.mxu0 0.0
    %3295 = vmatprep.subr.mxu0 0.0
    %3296 = vmatpush1.msra.mxu0 0.0
    %3297 = vmatprep.subr.mxu0 0.0
    %3298 = vmatpush1.msra.mxu0 0.0
    %3299 = vmatprep.subr.mxu0 0.0
    %3300 = vmatpush1.msra.mxu0 0.0
    %3301 = vmatprep.subr.mxu0 0.0
    %3302 = vmatpush1.msra.mxu0 0.0
    %3303 = vmatprep.subr.mxu0 0.0
    %3304 = vmatpush1.msra.mxu0 0.0
    %3305 = vmatprep.subr.mxu0 0.0
    %3306 = vmatpush1.msra.mxu0 0.0
    %3307 = vmatprep.subr.mxu0 0.0
    %3308 = vmatpush1.msra.mxu0 0.0
    %3309 = vmatprep.subr.mxu0 0.0
    %3310 = vmatpush1.msra.mxu0 0.0
    %3311 = vmatprep.subr.mxu0 0.0
    %3312 = vmatpush1.msra.mxu0 0.0
    %3313 = vmatprep.subr.mxu0 0.0
    %3314 = vmatpush1.msra.mxu0 0.0
    %3315 = vmatprep.subr.mxu0 0.0
    %3316 = vmatpush1.msra.mxu0 0.0
    %3317 = vmatprep.subr.mxu0 0.0
    %3318 = vmatpush1.msra.mxu0 0.0
    %3319 = vmatprep.subr.mxu0 0.0
    %3320 = vmatpush1.msra.mxu0 0.0
    %3321 = vmatprep.subr.mxu0 0.0
    %3322 = vmatpush1.msra.mxu0 0.0
    %3323 = vmatprep.subr.mxu0 0.0
    %3324 = vmatpush1.msra.mxu0 0.0
    %3325 = vmatprep.subr.mxu0 0.0
    %3326 = vmatpush1.msra.mxu0 0.0
    %3327 = vmatprep.subr.mxu0 0.0
    %3328 = vmatpush1.msra.mxu0 0.0
    %3329 = vmatprep.mubr.f32.mxu0 0.0
    %3330 = vmatmul.mubr.f32.gmra.mrb[0].mxu0 %v3263
    %v3331 = vpop.f32.mrb[0].mxu0
    %v3332 = vadd.f32 0.0, %v3331
    %v3333 = vpop.f32.mrb[0].mxu0
    %3334 = vdwg.mxu0
    %3335 = vmatprep.subr.mxu0 0.0
    %3336 = vmatpush1.msra.mxu0 %v3332
    %3337 = vmatprep.subr.mxu0 0.0
    %3338 = vmatpush1.msra.mxu0 0.0
    %3339 = vmatprep.subr.mxu0 0.0
    %3340 = vmatpush1.msra.mxu0 0.0
    %3341 = vmatprep.subr.mxu0 0.0
    %3342 = vmatpush1.msra.mxu0 0.0
    %3343 = vmatprep.subr.mxu0 0.0
    %3344 = vmatpush1.msra.mxu0 0.0
    %3345 = vmatprep.subr.mxu0 0.0
    %3346 = vmatpush1.msra.mxu0 0.0
    %3347 = vmatprep.subr.mxu0 0.0
    %3348 = vmatpush1.msra.mxu0 0.0
    %3349 = vmatprep.subr.mxu0 0.0
    %3350 = vmatpush1.msra.mxu0 0.0
    %3351 = vmatprep.subr.mxu0 0.0
    %3352 = vmatpush1.msra.mxu0 0.0
    %3353 = vmatprep.subr.mxu0 0.0
    %3354 = vmatpush1.msra.mxu0 0.0
    %3355 = vmatprep.subr.mxu0 0.0
    %3356 = vmatpush1.msra.mxu0 0.0
    %3357 = vmatprep.subr.mxu0 0.0
    %3358 = vmatpush1.msra.mxu0 0.0
    %3359 = vmatprep.subr.mxu0 0.0
    %3360 = vmatpush1.msra.mxu0 0.0
    %3361 = vmatprep.subr.mxu0 0.0
    %3362 = vmatpush1.msra.mxu0 0.0
    %3363 = vmatprep.subr.mxu0 0.0
    %3364 = vmatpush1.msra.mxu0 0.0
    %3365 = vmatprep.subr.mxu0 0.0
    %3366 = vmatpush1.msra.mxu0 0.0
    %3367 = vmatprep.subr.mxu0 0.0
    %3368 = vmatpush1.msra.mxu0 0.0
    %3369 = vmatprep.subr.mxu0 0.0
    %3370 = vmatpush1.msra.mxu0 0.0
    %3371 = vmatprep.subr.mxu0 0.0
    %3372 = vmatpush1.msra.mxu0 0.0
    %3373 = vmatprep.subr.mxu0 0.0
    %3374 = vmatpush1.msra.mxu0 0.0
    %3375 = vmatprep.subr.mxu0 0.0
    %3376 = vmatpush1.msra.mxu0 0.0
    %3377 = vmatprep.subr.mxu0 0.0
    %3378 = vmatpush1.msra.mxu0 0.0
    %3379 = vmatprep.subr.mxu0 0.0
    %3380 = vmatpush1.msra.mxu0 0.0
    %3381 = vmatprep.subr.mxu0 0.0
    %3382 = vmatpush1.msra.mxu0 0.0
    %3383 = vmatprep.subr.mxu0 0.0
    %3384 = vmatpush1.msra.mxu0 0.0
    %3385 = vmatprep.subr.mxu0 0.0
    %3386 = vmatpush1.msra.mxu0 0.0
    %3387 = vmatprep.subr.mxu0 0.0
    %3388 = vmatpush1.msra.mxu0 0.0
    %3389 = vmatprep.subr.mxu0 0.0
    %3390 = vmatpush1.msra.mxu0 0.0
    %3391 = vmatprep.subr.mxu0 0.0
    %3392 = vmatpush1.msra.mxu0 0.0
    %3393 = vmatprep.subr.mxu0 0.0
    %3394 = vmatpush1.msra.mxu0 0.0
    %3395 = vmatprep.subr.mxu0 0.0
    %3396 = vmatpush1.msra.mxu0 0.0
    %3397 = vmatprep.subr.mxu0 0.0
    %3398 = vmatpush1.msra.mxu0 0.0
    %3399 = vmatprep.mubr.f32.mxu0 0.0
    %3400 = vmatmul.mubr.f32.gmra.mrb[0].mxu0 %v2758
    %v3401 = vpop.f32.mrb[0].mxu0
    %v3402 = vadd.f32 0.0, %v3401
    %v3403 = vpop.f32.mrb[0].mxu0
    %3404 = vdwg.mxu0
    %v3405 = vmul.f32 %v2827, %v2827
    %v3406 = vmul.f32 %v2970, %v2970
    %v3407 = vmul.f32 %v2827, %v2970
    %v3408 = vsub.f32 %v3114, %v3405
    %v3409 = vsub.f32 %v3258, %v3406
    %v3410 = vsub.f32 %v3402, %v3407
    %v3411 = vmul.f32 %v3410, 2.0
    %v3412 = vadd.f32 %v3411, 0.0009
    %v3413 = vadd.f32 %v3408, %v3409
    %v3414 = vadd.f32 %v3413, 0.0009
    %v3415 = vrcp.pop %v3414
    %v3416 = vmul.f32 %v3412, %v3415
    %v3417 = vmul.f32 %v3407, 2.0
    %v3418 = vadd.f32 %v3417, 0.0001
    %v3419 = vadd.f32 %v3405, %v3406
    %v3420 = vadd.f32 %v3419, 0.0001
    %v3421 = vrcp.pop %v3420
    %v3422 = vmul.f32 %v3418, %v3421
    %v3423 = vmul.f32 %v3422, %v3416
    %vm3424 = vcmask 97280
    %v3425 = vsel %vm3424, %v3423, 0.0
    %3426 = vadd.xlane.f32.xlu0 %v3425
    %v3427 = vpop.xlane.xlu0 %3426
    %v3428 = vrot.slane %v3427, 4
    %v3429 = vadd.f32 %v3427, %v3428
    %v3430 = vrot.slane %v3429, 2
    %v3431 = vadd.f32 %v3429, %v3430
    %v3432 = vrot.slane %v3431, 1
    %v3433 = vadd.f32 %v3431, %v3432
    %s3434 = vtos %v3433
    %v3435 = vstv %s3434
    %v3436 = vsel %vm3424, %v3416, 0.0
    %3437 = vadd.xlane.f32.xlu0 %v3436
    %v3438 = vpop.xlane.xlu0 %3437
    %v3439 = vrot.slane %v3438, 4
    %v3440 = vadd.f32 %v3438, %v3439
    %v3441 = vrot.slane %v3440, 2
    %v3442 = vadd.f32 %v3440, %v3441
    %v3443 = vrot.slane %v3442, 1
    %v3444 = vadd.f32 %v3442, %v3443
    %s3445 = vtos %v3444
    %v3446 = vstv %s3445
    %v3447 = vld [vmem:[#allocation4] sm:$0x1]
    %v3448 = vadd.f32 %v3447, %v3435
    %3449 = vst.msk [vmem:[#allocation4] sm:$0x1] %vm1171, %v3448
    %v3450 = vld [vmem:[#allocation7] sm:$0x1]
    %v3451 = vadd.f32 %v3450, %v3446
    %3452 = vst.msk [vmem:[#allocation7] sm:$0x1] %vm1171, %v3451
    // Predicated region
    $region54: #{entropy_mse_loss.9} parent=1 // pred_check
      %p3453 = pneg %p91
    $region55: #{entropy_mse_loss.9} parent=1 // pred_check_branch
      %3455 = sbr.rel (%p3453) target = $region57
    $region56: #{entropy_mse_loss.9} parent=1 // pred_region
      %v3456 = vld [vmem:[#allocation2] sm:$0x1]
      %3457 = vst.msk [vmem:[#allocation8] sm:$0x1] %vm1171, %v3456
      %v3458 = vld [vmem:[#allocation5] sm:$0x1]
      %3459 = vst.msk [vmem:[#allocation13] sm:$0x1] %vm1171, %v3458
      %v3460 = vld [vmem:[#allocation3] sm:$0x1]
      %3461 = vst.msk [vmem:[#allocation10] sm:$0x1] %vm1171, %v3460
      %v3462 = vld [vmem:[#allocation6] sm:$0x1]
      %3463 = vst.msk [vmem:[#allocation15] sm:$0x1] %vm1171, %v3462
      %v3464 = vld [vmem:[#allocation4] sm:$0x1]
      %3465 = vst.msk [vmem:[#allocation12] sm:$0x1] %vm1171, %v3464
      %v3466 = vld [vmem:[#allocation7] sm:$0x1]
      %3467 = vst.msk [vmem:[#allocation16] sm:$0x1] %vm1171, %v3466
    $region57: #{entropy_mse_loss.9} parent=1 // pred_fallthru
      _
    // Predicated region
    $region58: #{entropy_mse_loss.9} parent=1 // pred_check
      _
    $region59: #{entropy_mse_loss.9} parent=1 // pred_check_branch
      %3469 = sbr.rel (0) target = $region61
    $region60: #{entropy_mse_loss.9} parent=1 // pred_region
      %s3471 = ssub.s32 16, 16
      %3472 = vsyncadd [#allocation9], %s3471
      %s3474 = sshll.u32 [#allocation8], 4
      %s3475 = int_to_ptr.vmem [resolvable:$true] %s3474
      %3477 = dma.vmem_to_hbm [thread:$0]  %s3475, 16, %s12, [#allocation9]
    $region61: #{entropy_mse_loss.9} parent=1 // pred_fallthru
      _
    // Predicated region
    $region62: #{entropy_mse_loss.9} parent=1 // pred_check
      _
    $region63: #{entropy_mse_loss.9} parent=1 // pred_check_branch
      %3479 = sbr.rel (0) target = $region65
    $region64: #{entropy_mse_loss.9} parent=1 // pred_region
      %s3481 = ssub.s32 16, 16
      %3482 = vsyncadd [#allocation11], %s3481
      %s3484 = sshll.u32 [#allocation10], 4
      %s3485 = int_to_ptr.vmem [resolvable:$true] %s3484
      %3487 = dma.vmem_to_hbm [thread:$0]  %s3485, 16, %s13, [#allocation11]
    $region65: #{entropy_mse_loss.9} parent=1 // pred_fallthru
      _
    // Predicated region
    $region66: #{entropy_mse_loss.9} parent=1 // pred_check
      _
    $region67: #{entropy_mse_loss.9} parent=1 // pred_check_branch
      %3489 = sbr.rel (0) target = $region69
    $region68: #{entropy_mse_loss.9} parent=1 // pred_region
      %s3491 = ssub.s32 16, 16
      %3492 = vsyncadd [#allocation11], %s3491
      %s3494 = sshll.u32 [#allocation12], 4
      %s3495 = int_to_ptr.vmem [resolvable:$true] %s3494
      %3497 = dma.vmem_to_hbm [thread:$0]  %s3495, 16, %s14, [#allocation11]
    $region69: #{entropy_mse_loss.9} parent=1 // pred_fallthru
      _
    // Predicated region
    $region70: #{entropy_mse_loss.9} parent=1 // pred_check
      _
    $region71: #{entropy_mse_loss.9} parent=1 // pred_check_branch
      %3499 = sbr.rel (0) target = $region73
    $region72: #{entropy_mse_loss.9} parent=1 // pred_region
      %s3501 = ssub.s32 16, 16
      %3502 = vsyncadd [#allocation14], %s3501
      %s3504 = sshll.u32 [#allocation13], 4
      %s3505 = int_to_ptr.vmem [resolvable:$true] %s3504
      %3507 = dma.vmem_to_hbm [thread:$0]  %s3505, 16, %s15, [#allocation14]
    $region73: #{entropy_mse_loss.9} parent=1 // pred_fallthru
      _
    // Predicated region
    $region74: #{entropy_mse_loss.9} parent=1 // pred_check
      _
    $region75: #{entropy_mse_loss.9} parent=1 // pred_check_branch
      %3509 = sbr.rel (0) target = $region77
    $region76: #{entropy_mse_loss.9} parent=1 // pred_region
      %s3511 = ssub.s32 16, 16
      %3512 = vsyncadd [#allocation14], %s3511
      %s3514 = sshll.u32 [#allocation15], 4
      %s3515 = int_to_ptr.vmem [resolvable:$true] %s3514
      %3517 = dma.vmem_to_hbm [thread:$0]  %s3515, 16, %s16, [#allocation14]
    $region77: #{entropy_mse_loss.9} parent=1 // pred_fallthru
      _
    // Predicated region
    $region78: #{entropy_mse_loss.9} parent=1 // pred_check
      _
    $region79: #{entropy_mse_loss.9} parent=1 // pred_check_branch
      %3519 = sbr.rel (0) target = $region81
    $region80: #{entropy_mse_loss.9} parent=1 // pred_region
      %s3521 = ssub.s32 16, 16
      %3522 = vsyncadd [#allocation17], %s3521
      %s3524 = sshll.u32 [#allocation16], 4
      %s3525 = int_to_ptr.vmem [resolvable:$true] %s3524
      %3527 = dma.vmem_to_hbm [thread:$0]  %s3525, 16, %s17, [#allocation17]
    $region81: #{entropy_mse_loss.9} parent=1 // pred_fallthru
      _
    // Predicated region
    $region82: #{entropy_mse_loss.9} parent=1 // pred_check
      _
    $region83: #{entropy_mse_loss.9} parent=1 // pred_check_branch
      %3529 = sbr.rel (0) target = $region85
    $region84: #{entropy_mse_loss.9} parent=1 // pred_region
      %3530 = dma.done [#allocation9], 16
    $region85: #{entropy_mse_loss.9} parent=1 // pred_fallthru
      _
    // Predicated region
    $region86: #{entropy_mse_loss.9} parent=1 // pred_check
      _
    $region87: #{entropy_mse_loss.9} parent=1 // pred_check_branch
      %3532 = sbr.rel (0) target = $region89
    $region88: #{entropy_mse_loss.9} parent=1 // pred_region
      %3533 = dma.done [#allocation11], 16
    $region89: #{entropy_mse_loss.9} parent=1 // pred_fallthru
      _
    // Predicated region
    $region90: #{entropy_mse_loss.9} parent=1 // pred_check
      _
    $region91: #{entropy_mse_loss.9} parent=1 // pred_check_branch
      %3535 = sbr.rel (0) target = $region93
    $region92: #{entropy_mse_loss.9} parent=1 // pred_region
      %3536 = dma.done [#allocation11], 16
    $region93: #{entropy_mse_loss.9} parent=1 // pred_fallthru
      _
    // Predicated region
    $region94: #{entropy_mse_loss.9} parent=1 // pred_check
      _
    $region95: #{entropy_mse_loss.9} parent=1 // pred_check_branch
      %3538 = sbr.rel (0) target = $region97
    $region96: #{entropy_mse_loss.9} parent=1 // pred_region
      %3539 = dma.done [#allocation14], 16
    $region97: #{entropy_mse_loss.9} parent=1 // pred_fallthru
      _
    // Predicated region
    $region98: #{entropy_mse_loss.9} parent=1 // pred_check
      _
    $region99: #{entropy_mse_loss.9} parent=1 // pred_check_branch
      %3541 = sbr.rel (0) target = $region101
    $region100: #{entropy_mse_loss.9} parent=1 // pred_region
      %3542 = dma.done [#allocation14], 16
    $region101: #{entropy_mse_loss.9} parent=1 // pred_fallthru
      _
    // Predicated region
    $region102: #{entropy_mse_loss.9} parent=1 // pred_check
      _
    $region103: #{entropy_mse_loss.9} parent=1 // pred_check_branch
      %3544 = sbr.rel (0) target = $region105
    $region104: #{entropy_mse_loss.9} parent=1 // pred_region
      %3545 = dma.done [#allocation17], 16
    $region105: #{entropy_mse_loss.9} parent=1 // pred_fallthru
      _
    %3546 = vsyncpa [#allocation9], 1
    %3547 = vsyncpa [#allocation11], 1
    %3548 = vsyncpa [#allocation14], 1
    %3549 = vsyncpa [#allocation17], 1

</llo_original>
